<compile_context>
chip_gen: v5e
topology: v5e:2x2
jax: 0.10.0
libtpu: 0.0.40
codegen_flags: <defaults>
</compile_context>

<pallas_src>
import jax
import jax.numpy as jnp
from jax.experimental import pallas as pl
from jax.experimental.pallas import tpu as pltpu

TRUE_HIDDEN = 500   # matches the PyTorch module
HIDDEN = 512        # zero-padded hidden width (lane-dense, full MXU K/N tiles)
LANE = 128


def _round_up(n, m):
    return ((n + m - 1) // m) * m


def mlp_kernel(x_ref, w1_ref, b1_ref, w2_ref, b2_ref,
               w3_ref, b3_ref, w4_ref, b4_ref, o_ref):
    """Fused 4-layer MLP: bf16 MXU matmuls, f32 accumulation + bias/ReLU."""
    x = x_ref[...].astype(jnp.bfloat16)

    h = jnp.dot(x, w1_ref[...], preferred_element_type=jnp.float32) + b1_ref[...]
    h = jnp.maximum(h, 0.0)

    h = jnp.dot(h.astype(jnp.bfloat16), w2_ref[...],
                preferred_element_type=jnp.float32) + b2_ref[...]
    h = jnp.maximum(h, 0.0)

    h = jnp.dot(h.astype(jnp.bfloat16), w3_ref[...],
                preferred_element_type=jnp.float32) + b3_ref[...]
    h = jnp.maximum(h, 0.0)

    y = jnp.dot(h.astype(jnp.bfloat16), w4_ref[...],
                preferred_element_type=jnp.float32) + b4_ref[...]
    o_ref[...] = y.astype(o_ref.dtype)


def _choose_tiling(B):
    """Return (batch_tile, padded_B).

    Prefer the largest MXU-sized tile giving an even number of >= 4 grid
    steps, then >= 2 steps, else a single 128-row step.  The wrapper
    zero-pads the batch up to tile * steps (rows sliced off afterward).
    """
    for tile in (1024, 512, 256, 128):
        steps = -(-B // tile)
        if steps >= 4 and steps % 2 == 0:
            return tile, tile * steps
    for tile in (1024, 512, 256, 128):
        steps = -(-B // tile)
        if steps >= 2:
            return tile, tile * steps
    tile = 128
    return tile, tile * (-(-B // tile))


def _const_spec(shape, single_buffer):
    """Grid-invariant block (weights/biases): full array, VMEM-resident."""
    index_map = lambda i: (0,) * len(shape)
    if single_buffer:
        # DMA'd once across the whole grid -> no point double-buffering.
        return pl.BlockSpec(shape, index_map, pipeline_mode=pl.Buffered(1))
    return pl.BlockSpec(shape, index_map)


def neural_net_forward(x, params, outchannels):
    """x: (B, in_features) f32.  params: padded bf16 weights w1..w4, f32 biases b1..b4."""
    B, in_features = x.shape
    out_pad = params["b4"].shape[1]
    assert outchannels <= out_pad, "outchannels exceeds padded output width"

    batch_tile, padded_B = _choose_tiling(B)
    if padded_B != B:
        x = jnp.pad(x, ((0, padded_B - B), (0, 0)))

    w_b = (params["w1"], params["b1"], params["w2"], params["b2"],
           params["w3"], params["b3"], params["w4"], params["b4"])

    grid = (padded_B // batch_tile,)
    flops = 2 * padded_B * (in_features * HIDDEN + 2 * HIDDEN * HIDDEN
                            + HIDDEN * out_pad)
    weight_bytes = sum(int(a.size) * a.dtype.itemsize for a in w_b)
    bytes_accessed = (int(x.size) * x.dtype.itemsize + weight_bytes
                      + padded_B * out_pad * x.dtype.itemsize)

    def build(single_buffer_weights):
        in_specs = [pl.BlockSpec((batch_tile, in_features), lambda i: (i, 0))]
        in_specs += [_const_spec(a.shape, single_buffer_weights) for a in w_b]
        return pl.pallas_call(
            mlp_kernel,
            out_shape=jax.ShapeDtypeStruct((padded_B, out_pad), x.dtype),
            grid_spec=pltpu.PrefetchScalarGridSpec(
                num_scalar_prefetch=0,
                grid=grid,
                in_specs=in_specs,
                out_specs=pl.BlockSpec((batch_tile, out_pad), lambda i: (i, 0)),
            ),
            compiler_params=pltpu.CompilerParams(
                dimension_semantics=("parallel",),
                vmem_limit_bytes=32 * 1024 * 1024,
            ),
            cost_estimate=pl.CostEstimate(
                flops=flops, transcendentals=0, bytes_accessed=bytes_accessed),
        )

    try:
        out_padded = build(True)(x, *w_b)
    except Exception:  # fallback if pl.Buffered(1) is rejected by this jax build
        out_padded = build(False)(x, *w_b)

    # Drop zero-padded rows and zero-padded output lanes.
    return out_padded[:B, :outchannels]


def _pad_to(a, shape):
    return jnp.pad(a, [(0, s - d) for d, s in zip(a.shape, shape)])


def init_params(key, inchannels, outchannels):
    """PyTorch-like uniform(-1/sqrt(fan_in), 1/sqrt(fan_in)) init at true shapes."""
    dims = [(inchannels, TRUE_HIDDEN), (TRUE_HIDDEN, TRUE_HIDDEN),
            (TRUE_HIDDEN, TRUE_HIDDEN), (TRUE_HIDDEN, outchannels)]
    raw = {}
    for n, (fan_in, fan_out) in enumerate(dims, start=1):
        key, kw, kb = jax.random.split(key, 3)
        bound = float(fan_in) ** -0.5
        raw[f"w{n}"] = jax.random.uniform(
            kw, (fan_in, fan_out), jnp.float32, minval=-bound, maxval=bound)
        raw[f"b{n}"] = jax.random.uniform(
            kb, (1, fan_out), jnp.float32, minval=-bound, maxval=bound)
    return raw


def pad_params(raw, inchannels, outchannels):
    """Zero-pad to lane-dense widths; weights -> bf16, biases stay f32 (exact)."""
    out_pad = _round_up(outchannels, LANE)
    p = {}
    p["w1"] = _pad_to(raw["w1"], (inchannels, HIDDEN)).astype(jnp.bfloat16)
    p["b1"] = _pad_to(raw["b1"], (1, HIDDEN))
    p["w2"] = _pad_to(raw["w2"], (HIDDEN, HIDDEN)).astype(jnp.bfloat16)
    p["b2"] = _pad_to(raw["b2"], (1, HIDDEN))
    p["w3"] = _pad_to(raw["w3"], (HIDDEN, HIDDEN)).astype(jnp.bfloat16)
    p["b3"] = _pad_to(raw["b3"], (1, HIDDEN))
    p["w4"] = _pad_to(raw["w4"], (HIDDEN, out_pad)).astype(jnp.bfloat16)
    p["b4"] = _pad_to(raw["b4"], (1, out_pad))
    return p


def reference_forward(x, raw):
    """Pure-JAX reference with identical bf16-weight / f32-accumulate numerics."""
    def layer(h, w, b, relu):
        y = jnp.dot(h.astype(jnp.bfloat16), w.astype(jnp.bfloat16),
                    preferred_element_type=jnp.float32) + b
        return jnp.maximum(y, 0.0) if relu else y
    h = layer(x, raw["w1"], raw["b1"], True)
    h = layer(h, raw["w2"], raw["b2"], True)
    h = layer(h, raw["w3"], raw["b3"], True)
    return layer(h, raw["w4"], raw["b4"], False)


if __name__ == "__main__":
    inchannels, outchannels = 32, 10

    key = jax.random.PRNGKey(0)
    kx, kp, kx2 = jax.random.split(key, 3)

    raw_params = init_params(kp, inchannels, outchannels)
    params = pad_params(raw_params, inchannels, outchannels)

    # Small batch: padded to one 128-row grid step.
    x = jax.random.normal(kx, (8, inchannels), jnp.float32)
    out = jax.block_until_ready(neural_net_forward(x, params, outchannels))
    ref = reference_forward(x, raw_params)
    assert out.shape == (8, outchannels)
    assert jnp.allclose(out, ref, atol=1e-2, rtol=1e-2), "mismatch vs JAX reference (B=8)"

    # Awkward batch: exercises row padding + multi-step grid (tile=128, 2 steps).
    x2 = jax.random.normal(kx2, (200, inchannels), jnp.float32)
    out2 = jax.block_until_ready(neural_net_forward(x2, params, outchannels))
    ref2 = reference_forward(x2, raw_params)
    assert out2.shape == (200, outchannels)
    assert jnp.allclose(out2, ref2, atol=1e-2, rtol=1e-2), "mismatch vs JAX reference (B=200)"

    print("KERNEL_OK")
</pallas_src>

<mosaic_0001>
module attributes {stable_mosaic.version = 11 : i64} {
  func.func @mlp_kernel(%arg0: i32, %arg1: memref<128x32xf32, #tpu.memory_space<vmem>>, %arg2: memref<32x512xbf16, #tpu.memory_space<vmem>>, %arg3: memref<1x512xf32, #tpu.memory_space<vmem>>, %arg4: memref<512x512xbf16, #tpu.memory_space<vmem>>, %arg5: memref<1x512xf32, #tpu.memory_space<vmem>>, %arg6: memref<512x512xbf16, #tpu.memory_space<vmem>>, %arg7: memref<1x512xf32, #tpu.memory_space<vmem>>, %arg8: memref<512x128xbf16, #tpu.memory_space<vmem>>, %arg9: memref<1x128xf32, #tpu.memory_space<vmem>>, %arg10: memref<128x128xf32, #tpu.memory_space<vmem>>) attributes {dimension_semantics = [#tpu.dimension_semantics<parallel>], iteration_bounds = array<i64: 1>, scalar_prefetch = 0 : i64, scratch_operands = 0 : i64, tpu.core_type = #tpu.core_type<tc>, window_params = [{transform_indices = @transform_0, window_bounds = array<i64: 128, 32>}, {pipeline_mode = #tpu.pipeline_mode<synchronous>, transform_indices = @transform_1, window_bounds = array<i64: 32, 512>}, {pipeline_mode = #tpu.pipeline_mode<synchronous>, transform_indices = @transform_2, window_bounds = array<i64: 1, 512>}, {pipeline_mode = #tpu.pipeline_mode<synchronous>, transform_indices = @transform_3, window_bounds = array<i64: 512, 512>}, {pipeline_mode = #tpu.pipeline_mode<synchronous>, transform_indices = @transform_4, window_bounds = array<i64: 1, 512>}, {pipeline_mode = #tpu.pipeline_mode<synchronous>, transform_indices = @transform_5, window_bounds = array<i64: 512, 512>}, {pipeline_mode = #tpu.pipeline_mode<synchronous>, transform_indices = @transform_6, window_bounds = array<i64: 1, 512>}, {pipeline_mode = #tpu.pipeline_mode<synchronous>, transform_indices = @transform_7, window_bounds = array<i64: 512, 128>}, {pipeline_mode = #tpu.pipeline_mode<synchronous>, transform_indices = @transform_8, window_bounds = array<i64: 1, 128>}, {transform_indices = @transform_9, window_bounds = array<i64: 128, 128>}]} {
    %c0 = arith.constant 0 : index
    %c0_0 = arith.constant 0 : index
    %0 = vector.load %arg1[%c0, %c0_0] : memref<128x32xf32, #tpu.memory_space<vmem>>, vector<128x32xf32>
    %1 = arith.truncf %0 : vector<128x32xf32> to vector<128x32xbf16>
    %c0_1 = arith.constant 0 : index
    %c0_2 = arith.constant 0 : index
    %2 = vector.load %arg2[%c0_1, %c0_2] : memref<32x512xbf16, #tpu.memory_space<vmem>>, vector<32x512xbf16>
    %cst = arith.constant dense<0.000000e+00> : vector<128x512xf32>
    %3 = tpu.matmul %1, %2, %cst {dimension_numbers = #tpu.dot_dimension_numbers<[1], [0], [0], [1], [0, 0, 1, 1], [], []>} : vector<128x32xbf16>, vector<32x512xbf16>, vector<128x512xf32> -> vector<128x512xf32>
    %c0_3 = arith.constant 0 : index
    %c0_4 = arith.constant 0 : index
    %4 = vector.load %arg3[%c0_3, %c0_4] : memref<1x512xf32, #tpu.memory_space<vmem>>, vector<1x512xf32>
    %5 = vector.broadcast %4 : vector<1x512xf32> to vector<128x512xf32>
    %6 = arith.addf %3, %5 : vector<128x512xf32>
    %cst_5 = arith.constant 0.000000e+00 : f32
    %7 = vector.broadcast %cst_5 : f32 to vector<128x512xf32>
    %8 = arith.maximumf %6, %7 : vector<128x512xf32>
    %9 = arith.truncf %8 : vector<128x512xf32> to vector<128x512xbf16>
    %c0_6 = arith.constant 0 : index
    %c0_7 = arith.constant 0 : index
    %10 = vector.load %arg4[%c0_6, %c0_7] : memref<512x512xbf16, #tpu.memory_space<vmem>>, vector<512x512xbf16>
    %cst_8 = arith.constant dense<0.000000e+00> : vector<128x512xf32>
    %11 = tpu.matmul %9, %10, %cst_8 {dimension_numbers = #tpu.dot_dimension_numbers<[1], [0], [0], [1], [0, 0, 1, 1], [], []>} : vector<128x512xbf16>, vector<512x512xbf16>, vector<128x512xf32> -> vector<128x512xf32>
    %c0_9 = arith.constant 0 : index
    %c0_10 = arith.constant 0 : index
    %12 = vector.load %arg5[%c0_9, %c0_10] : memref<1x512xf32, #tpu.memory_space<vmem>>, vector<1x512xf32>
    %13 = vector.broadcast %12 : vector<1x512xf32> to vector<128x512xf32>
    %14 = arith.addf %11, %13 : vector<128x512xf32>
    %cst_11 = arith.constant 0.000000e+00 : f32
    %15 = vector.broadcast %cst_11 : f32 to vector<128x512xf32>
    %16 = arith.maximumf %14, %15 : vector<128x512xf32>
    %17 = arith.truncf %16 : vector<128x512xf32> to vector<128x512xbf16>
    %c0_12 = arith.constant 0 : index
    %c0_13 = arith.constant 0 : index
    %18 = vector.load %arg6[%c0_12, %c0_13] : memref<512x512xbf16, #tpu.memory_space<vmem>>, vector<512x512xbf16>
    %cst_14 = arith.constant dense<0.000000e+00> : vector<128x512xf32>
    %19 = tpu.matmul %17, %18, %cst_14 {dimension_numbers = #tpu.dot_dimension_numbers<[1], [0], [0], [1], [0, 0, 1, 1], [], []>} : vector<128x512xbf16>, vector<512x512xbf16>, vector<128x512xf32> -> vector<128x512xf32>
    %c0_15 = arith.constant 0 : index
    %c0_16 = arith.constant 0 : index
    %20 = vector.load %arg7[%c0_15, %c0_16] : memref<1x512xf32, #tpu.memory_space<vmem>>, vector<1x512xf32>
    %21 = vector.broadcast %20 : vector<1x512xf32> to vector<128x512xf32>
    %22 = arith.addf %19, %21 : vector<128x512xf32>
    %cst_17 = arith.constant 0.000000e+00 : f32
    %23 = vector.broadcast %cst_17 : f32 to vector<128x512xf32>
    %24 = arith.maximumf %22, %23 : vector<128x512xf32>
    %25 = arith.truncf %24 : vector<128x512xf32> to vector<128x512xbf16>
    %c0_18 = arith.constant 0 : index
    %c0_19 = arith.constant 0 : index
    %26 = vector.load %arg8[%c0_18, %c0_19] : memref<512x128xbf16, #tpu.memory_space<vmem>>, vector<512x128xbf16>
    %cst_20 = arith.constant dense<0.000000e+00> : vector<128x128xf32>
    %27 = tpu.matmul %25, %26, %cst_20 {dimension_numbers = #tpu.dot_dimension_numbers<[1], [0], [0], [1], [0, 0, 1, 1], [], []>} : vector<128x512xbf16>, vector<512x128xbf16>, vector<128x128xf32> -> vector<128x128xf32>
    %c0_21 = arith.constant 0 : index
    %c0_22 = arith.constant 0 : index
    %28 = vector.load %arg9[%c0_21, %c0_22] : memref<1x128xf32, #tpu.memory_space<vmem>>, vector<1x128xf32>
    %29 = vector.broadcast %28 : vector<1x128xf32> to vector<128x128xf32>
    %30 = arith.addf %27, %29 : vector<128x128xf32>
    %c0_23 = arith.constant 0 : index
    %c0_24 = arith.constant 0 : index
    %31 = vector.load %arg10[%c0_23, %c0_24] : memref<128x128xf32, #tpu.memory_space<vmem>>, vector<128x128xf32>
    tpu.vector_store %arg10[%c0_23, %c0_24], %30 {strides = array<i32>} : memref<128x128xf32, #tpu.memory_space<vmem>>, vector<128x128xf32>,
    return
  }
  func.func @transform_0(%arg0: i32) -> (i32, i32) {
    %c0_i32 = arith.constant 0 : i32
    %c0_i32_0 = arith.constant 0 : i32
    return %arg0, %c0_i32 : i32, i32
  }
  func.func @transform_1(%arg0: i32) -> (i32, i32) {
    %c0_i32 = arith.constant 0 : i32
    %c0_i32_0 = arith.constant 0 : i32
    %c0_i32_1 = arith.constant 0 : i32
    return %c0_i32, %c0_i32_0 : i32, i32
  }
  func.func @transform_2(%arg0: i32) -> (i32, i32) {
    %c0_i32 = arith.constant 0 : i32
    %c0_i32_0 = arith.constant 0 : i32
    %c0_i32_1 = arith.constant 0 : i32
    return %c0_i32, %c0_i32_0 : i32, i32
  }
  func.func @transform_3(%arg0: i32) -> (i32, i32) {
    %c0_i32 = arith.constant 0 : i32
    %c0_i32_0 = arith.constant 0 : i32
    %c0_i32_1 = arith.constant 0 : i32
    return %c0_i32, %c0_i32_0 : i32, i32
  }
  func.func @transform_4(%arg0: i32) -> (i32, i32) {
    %c0_i32 = arith.constant 0 : i32
    %c0_i32_0 = arith.constant 0 : i32
    %c0_i32_1 = arith.constant 0 : i32
    return %c0_i32, %c0_i32_0 : i32, i32
  }
  func.func @transform_5(%arg0: i32) -> (i32, i32) {
    %c0_i32 = arith.constant 0 : i32
    %c0_i32_0 = arith.constant 0 : i32
    %c0_i32_1 = arith.constant 0 : i32
    return %c0_i32, %c0_i32_0 : i32, i32
  }
  func.func @transform_6(%arg0: i32) -> (i32, i32) {
    %c0_i32 = arith.constant 0 : i32
    %c0_i32_0 = arith.constant 0 : i32
    %c0_i32_1 = arith.constant 0 : i32
    return %c0_i32, %c0_i32_0 : i32, i32
  }
  func.func @transform_7(%arg0: i32) -> (i32, i32) {
    %c0_i32 = arith.constant 0 : i32
    %c0_i32_0 = arith.constant 0 : i32
    %c0_i32_1 = arith.constant 0 : i32
    return %c0_i32, %c0_i32_0 : i32, i32
  }
  func.func @transform_8(%arg0: i32) -> (i32, i32) {
    %c0_i32 = arith.constant 0 : i32
    %c0_i32_0 = arith.constant 0 : i32
    %c0_i32_1 = arith.constant 0 : i32
    return %c0_i32, %c0_i32_0 : i32, i32
  }
  func.func @transform_9(%arg0: i32) -> (i32, i32) {
    %c0_i32 = arith.constant 0 : i32
    %c0_i32_0 = arith.constant 0 : i32
    return %arg0, %c0_i32 : i32, i32
  }
}

module attributes {stable_mosaic.version = 11 : i64} {
  func.func @mlp_kernel(%arg0: i32, %arg1: memref<128x32xf32, #tpu.memory_space<vmem>>, %arg2: memref<32x512xbf16, #tpu.memory_space<vmem>>, %arg3: memref<1x512xf32, #tpu.memory_space<vmem>>, %arg4: memref<512x512xbf16, #tpu.memory_space<vmem>>, %arg5: memref<1x512xf32, #tpu.memory_space<vmem>>, %arg6: memref<512x512xbf16, #tpu.memory_space<vmem>>, %arg7: memref<1x512xf32, #tpu.memory_space<vmem>>, %arg8: memref<512x128xbf16, #tpu.memory_space<vmem>>, %arg9: memref<1x128xf32, #tpu.memory_space<vmem>>, %arg10: memref<128x128xf32, #tpu.memory_space<vmem>>) attributes {dimension_semantics = [#tpu.dimension_semantics<parallel>], iteration_bounds = array<i64: 1>, scalar_prefetch = 0 : i64, scratch_operands = 0 : i64, tpu.core_type = #tpu.core_type<tc>, window_params = [{transform_indices = @transform_0, window_bounds = array<i64: 128, 32>}, {pipeline_mode = #tpu.pipeline_mode<synchronous>, transform_indices = @transform_1, window_bounds = array<i64: 32, 512>}, {pipeline_mode = #tpu.pipeline_mode<synchronous>, transform_indices = @transform_2, window_bounds = array<i64: 1, 512>}, {pipeline_mode = #tpu.pipeline_mode<synchronous>, transform_indices = @transform_3, window_bounds = array<i64: 512, 512>}, {pipeline_mode = #tpu.pipeline_mode<synchronous>, transform_indices = @transform_4, window_bounds = array<i64: 1, 512>}, {pipeline_mode = #tpu.pipeline_mode<synchronous>, transform_indices = @transform_5, window_bounds = array<i64: 512, 512>}, {pipeline_mode = #tpu.pipeline_mode<synchronous>, transform_indices = @transform_6, window_bounds = array<i64: 1, 512>}, {pipeline_mode = #tpu.pipeline_mode<synchronous>, transform_indices = @transform_7, window_bounds = array<i64: 512, 128>}, {pipeline_mode = #tpu.pipeline_mode<synchronous>, transform_indices = @transform_8, window_bounds = array<i64: 1, 128>}, {transform_indices = @transform_9, window_bounds = array<i64: 128, 128>}]} {
    %c0 = arith.constant 0 : index
    %c0_0 = arith.constant 0 : index
    %0 = vector.load %arg1[%c0, %c0_0] : memref<128x32xf32, #tpu.memory_space<vmem>>, vector<128x32xf32>
    %1 = arith.truncf %0 : vector<128x32xf32> to vector<128x32xbf16>
    %c0_1 = arith.constant 0 : index
    %c0_2 = arith.constant 0 : index
    %2 = vector.load %arg2[%c0_1, %c0_2] : memref<32x512xbf16, #tpu.memory_space<vmem>>, vector<32x512xbf16>
    %cst = arith.constant dense<0.000000e+00> : vector<128x512xf32>
    %3 = tpu.matmul %1, %2, %cst {dimension_numbers = #tpu.dot_dimension_numbers<[1], [0], [0], [1], [0, 0, 1, 1], [], []>} : vector<128x32xbf16>, vector<32x512xbf16>, vector<128x512xf32> -> vector<128x512xf32>
    %c0_3 = arith.constant 0 : index
    %c0_4 = arith.constant 0 : index
    %4 = vector.load %arg3[%c0_3, %c0_4] : memref<1x512xf32, #tpu.memory_space<vmem>>, vector<1x512xf32>
    %5 = vector.broadcast %4 : vector<1x512xf32> to vector<128x512xf32>
    %6 = arith.addf %3, %5 : vector<128x512xf32>
    %cst_5 = arith.constant 0.000000e+00 : f32
    %7 = vector.broadcast %cst_5 : f32 to vector<128x512xf32>
    %8 = arith.maximumf %6, %7 : vector<128x512xf32>
    %9 = arith.truncf %8 : vector<128x512xf32> to vector<128x512xbf16>
    %c0_6 = arith.constant 0 : index
    %c0_7 = arith.constant 0 : index
    %10 = vector.load %arg4[%c0_6, %c0_7] : memref<512x512xbf16, #tpu.memory_space<vmem>>, vector<512x512xbf16>
    %cst_8 = arith.constant dense<0.000000e+00> : vector<128x512xf32>
    %11 = tpu.matmul %9, %10, %cst_8 {dimension_numbers = #tpu.dot_dimension_numbers<[1], [0], [0], [1], [0, 0, 1, 1], [], []>} : vector<128x512xbf16>, vector<512x512xbf16>, vector<128x512xf32> -> vector<128x512xf32>
    %c0_9 = arith.constant 0 : index
    %c0_10 = arith.constant 0 : index
    %12 = vector.load %arg5[%c0_9, %c0_10] : memref<1x512xf32, #tpu.memory_space<vmem>>, vector<1x512xf32>
    %13 = vector.broadcast %12 : vector<1x512xf32> to vector<128x512xf32>
    %14 = arith.addf %11, %13 : vector<128x512xf32>
    %cst_11 = arith.constant 0.000000e+00 : f32
    %15 = vector.broadcast %cst_11 : f32 to vector<128x512xf32>
    %16 = arith.maximumf %14, %15 : vector<128x512xf32>
    %17 = arith.truncf %16 : vector<128x512xf32> to vector<128x512xbf16>
    %c0_12 = arith.constant 0 : index
    %c0_13 = arith.constant 0 : index
    %18 = vector.load %arg6[%c0_12, %c0_13] : memref<512x512xbf16, #tpu.memory_space<vmem>>, vector<512x512xbf16>
    %cst_14 = arith.constant dense<0.000000e+00> : vector<128x512xf32>
    %19 = tpu.matmul %17, %18, %cst_14 {dimension_numbers = #tpu.dot_dimension_numbers<[1], [0], [0], [1], [0, 0, 1, 1], [], []>} : vector<128x512xbf16>, vector<512x512xbf16>, vector<128x512xf32> -> vector<128x512xf32>
    %c0_15 = arith.constant 0 : index
    %c0_16 = arith.constant 0 : index
    %20 = vector.load %arg7[%c0_15, %c0_16] : memref<1x512xf32, #tpu.memory_space<vmem>>, vector<1x512xf32>
    %21 = vector.broadcast %20 : vector<1x512xf32> to vector<128x512xf32>
    %22 = arith.addf %19, %21 : vector<128x512xf32>
    %cst_17 = arith.constant 0.000000e+00 : f32
    %23 = vector.broadcast %cst_17 : f32 to vector<128x512xf32>
    %24 = arith.maximumf %22, %23 : vector<128x512xf32>
    %25 = arith.truncf %24 : vector<128x512xf32> to vector<128x512xbf16>
    %c0_18 = arith.constant 0 : index
    %c0_19 = arith.constant 0 : index
    %26 = vector.load %arg8[%c0_18, %c0_19] : memref<512x128xbf16, #tpu.memory_space<vmem>>, vector<512x128xbf16>
    %cst_20 = arith.constant dense<0.000000e+00> : vector<128x128xf32>
    %27 = tpu.matmul %25, %26, %cst_20 {dimension_numbers = #tpu.dot_dimension_numbers<[1], [0], [0], [1], [0, 0, 1, 1], [], []>} : vector<128x512xbf16>, vector<512x128xbf16>, vector<128x128xf32> -> vector<128x128xf32>
    %c0_21 = arith.constant 0 : index
    %c0_22 = arith.constant 0 : index
    %28 = vector.load %arg9[%c0_21, %c0_22] : memref<1x128xf32, #tpu.memory_space<vmem>>, vector<1x128xf32>
    %29 = vector.broadcast %28 : vector<1x128xf32> to vector<128x128xf32>
    %30 = arith.addf %27, %29 : vector<128x128xf32>
    %c0_23 = arith.constant 0 : index
    %c0_24 = arith.constant 0 : index
    %31 = vector.load %arg10[%c0_23, %c0_24] : memref<128x128xf32, #tpu.memory_space<vmem>>, vector<128x128xf32>
    tpu.vector_store %arg10[%c0_23, %c0_24], %30 {strides = array<i32>} : memref<128x128xf32, #tpu.memory_space<vmem>>, vector<128x128xf32>,
    return
  }
  func.func @transform_0(%arg0: i32) -> (i32, i32) {
    %c0_i32 = arith.constant 0 : i32
    %c0_i32_0 = arith.constant 0 : i32
    return %arg0, %c0_i32 : i32, i32
  }
  func.func @transform_1(%arg0: i32) -> (i32, i32) {
    %c0_i32 = arith.constant 0 : i32
    %c0_i32_0 = arith.constant 0 : i32
    %c0_i32_1 = arith.constant 0 : i32
    return %c0_i32, %c0_i32_0 : i32, i32
  }
  func.func @transform_2(%arg0: i32) -> (i32, i32) {
    %c0_i32 = arith.constant 0 : i32
    %c0_i32_0 = arith.constant 0 : i32
    %c0_i32_1 = arith.constant 0 : i32
    return %c0_i32, %c0_i32_0 : i32, i32
  }
  func.func @transform_3(%arg0: i32) -> (i32, i32) {
    %c0_i32 = arith.constant 0 : i32
    %c0_i32_0 = arith.constant 0 : i32
    %c0_i32_1 = arith.constant 0 : i32
    return %c0_i32, %c0_i32_0 : i32, i32
  }
  func.func @transform_4(%arg0: i32) -> (i32, i32) {
    %c0_i32 = arith.constant 0 : i32
    %c0_i32_0 = arith.constant 0 : i32
    %c0_i32_1 = arith.constant 0 : i32
    return %c0_i32, %c0_i32_0 : i32, i32
  }
  func.func @transform_5(%arg0: i32) -> (i32, i32) {
    %c0_i32 = arith.constant 0 : i32
    %c0_i32_0 = arith.constant 0 : i32
    %c0_i32_1 = arith.constant 0 : i32
    return %c0_i32, %c0_i32_0 : i32, i32
  }
  func.func @transform_6(%arg0: i32) -> (i32, i32) {
    %c0_i32 = arith.constant 0 : i32
    %c0_i32_0 = arith.constant 0 : i32
    %c0_i32_1 = arith.constant 0 : i32
    return %c0_i32, %c0_i32_0 : i32, i32
  }
  func.func @transform_7(%arg0: i32) -> (i32, i32) {
    %c0_i32 = arith.constant 0 : i32
    %c0_i32_0 = arith.constant 0 : i32
    %c0_i32_1 = arith.constant 0 : i32
    return %c0_i32, %c0_i32_0 : i32, i32
  }
  func.func @transform_8(%arg0: i32) -> (i32, i32) {
    %c0_i32 = arith.constant 0 : i32
    %c0_i32_0 = arith.constant 0 : i32
    %c0_i32_1 = arith.constant 0 : i32
    return %c0_i32, %c0_i32_0 : i32, i32
  }
  func.func @transform_9(%arg0: i32) -> (i32, i32) {
    %c0_i32 = arith.constant 0 : i32
    %c0_i32_0 = arith.constant 0 : i32
    return %arg0, %c0_i32 : i32, i32
  }
}

</mosaic_0001>

<llo_original>
// kernel: tpu_custom_call.1
$region0: #{tpu_custom_call.1}
  #allocation0 [shape = 'u32[]', space=smem, size = 0x4, offset = 0x4, fixed_abs, tag = 'smem constant byte address 0x4 - core index']
  #allocation1 [shape = 'u32[72,128]{1,0:T(1,128)}', space=vmem, size = 0x9000, scoped, tag = 'internal scratch']
  %s0 = inlined_call_operand.vmem [shape: f32[128,32], index: 0, kind: input, shape index: {}]
  %s1 = inlined_call_operand.vmem [shape: bf16[32,512], index: 1, kind: input, shape index: {}]
  %s2 = inlined_call_operand.vmem [shape: f32[1,512], index: 2, kind: input, shape index: {}]
  %s3 = inlined_call_operand.hbm [shape: bf16[512,512], index: 3, kind: input, shape index: {}]
  %s4 = inlined_call_operand.vmem [shape: f32[1,512], index: 4, kind: input, shape index: {}]
  %s5 = inlined_call_operand.hbm [shape: bf16[512,512], index: 5, kind: input, shape index: {}]
  %s6 = inlined_call_operand.vmem [shape: f32[1,512], index: 6, kind: input, shape index: {}]
  %s7 = inlined_call_operand.hbm [shape: bf16[512,128], index: 7, kind: input, shape index: {}]
  %s8 = inlined_call_operand.vmem [shape: f32[1,128], index: 8, kind: input, shape index: {}]
  %s9 = inlined_call_operand.hbm [shape: f32[128,128], index: 9, kind: output, shape index: {}]
  %s10 = sld [smem:[#allocation0]]
  $region58: #{tpu_custom_call.1} parent=0
    _
  %s12 = ssub.s32 1, %s10
  %s13 = scalar_select 0, %s12, %s10
  $region1: #{tpu_custom_call.1} parent=0
    #allocation2 [shape = 'u8[524288]{0}', space=vmem, size = 0x80000, scoped, tag = 'input window, operand 3, single buffered']
    #allocation3 [shape = 's32[1]{0}', space=sflag, size = 0x4, scoped, tag = 'scoped memory for tpu_custom_call.1']
    #allocation4 [shape = 's32[1]{0}', space=sflag, size = 0x4, scoped, tag = 'scoped memory for tpu_custom_call.1']
    #allocation5 [shape = 'u8[524288]{0}', space=vmem, size = 0x80000, scoped, tag = 'input window, operand 5, single buffered']
    #allocation6 [shape = 's32[1]{0}', space=sflag, size = 0x4, scoped, tag = 'scoped memory for tpu_custom_call.1']
    #allocation7 [shape = 'u8[131072]{0}', space=vmem, size = 0x20000, scoped, tag = 'input window, operand 7, single buffered']
    #allocation8 [shape = 'u8[65536]{0}', space=vmem, size = 0x10000, scoped, tag = 'output window, operand 0, single buffered']
    %14 = vsyncpa [#allocation3], 0
    %15 = vsyncpa [#allocation6], 0
    %16 = vsyncpa [#allocation4], 0
    // Predicated region
    $region2: #{tpu_custom_call.1} parent=1 // pred_check
      _
    $region3: #{tpu_custom_call.1} parent=1 // pred_check_branch
      %18 = sbr.rel (0) target = $region5
    $region4: #{tpu_custom_call.1} parent=1 // pred_region
      _
    $region5: #{tpu_custom_call.1} parent=1 // pred_fallthru
      _
    // Predicated region
    $region6: #{tpu_custom_call.1} parent=1 // pred_check
      _
    $region7: #{tpu_custom_call.1} parent=1 // pred_check_branch
      %20 = sbr.rel (0) target = $region9
    $region8: #{tpu_custom_call.1} parent=1 // pred_region
      _
    $region9: #{tpu_custom_call.1} parent=1 // pred_fallthru
      _
    // Predicated region
    $region10: #{tpu_custom_call.1} parent=1 // pred_check
      _
    $region11: #{tpu_custom_call.1} parent=1 // pred_check_branch
      %22 = sbr.rel (0) target = $region13
    $region12: #{tpu_custom_call.1} parent=1 // pred_region
      _
    $region13: #{tpu_custom_call.1} parent=1 // pred_fallthru
      _
    // Predicated region
    $region14: #{tpu_custom_call.1} parent=1 // pred_check
      _
    $region15: #{tpu_custom_call.1} parent=1 // pred_check_branch
      %24 = sbr.rel (0) target = $region17
    $region16: #{tpu_custom_call.1} parent=1 // pred_region
      %26 = vsyncadd [#allocation3], 0
      %s27 = sshll.u32 %s3, 4
      %s28 = int_to_ptr.hbm [resolvable:$true] %s27
      %s29 = sshll.u32 [#allocation2], 4
      %s30 = int_to_ptr.vmem [resolvable:$true] %s29
      %35 = dma.hbm_to_vmem [thread:$0]  %s28, 16384, %s30, [#allocation3], 256, 256, 16
    $region17: #{tpu_custom_call.1} parent=1 // pred_fallthru
      _
    // Predicated region
    $region18: #{tpu_custom_call.1} parent=1 // pred_check
      _
    $region19: #{tpu_custom_call.1} parent=1 // pred_check_branch
      %37 = sbr.rel (0) target = $region21
    $region20: #{tpu_custom_call.1} parent=1 // pred_region
      _
    $region21: #{tpu_custom_call.1} parent=1 // pred_fallthru
      _
    // Predicated region
    $region22: #{tpu_custom_call.1} parent=1 // pred_check
      _
    $region23: #{tpu_custom_call.1} parent=1 // pred_check_branch
      %39 = sbr.rel (0) target = $region25
    $region24: #{tpu_custom_call.1} parent=1 // pred_region
      %41 = vsyncadd [#allocation6], 0
      %s42 = sshll.u32 %s5, 4
      %s43 = int_to_ptr.hbm [resolvable:$true] %s42
      %s44 = sshll.u32 [#allocation5], 4
      %s45 = int_to_ptr.vmem [resolvable:$true] %s44
      %50 = dma.hbm_to_vmem [thread:$0]  %s43, 16384, %s45, [#allocation6], 256, 256, 16
    $region25: #{tpu_custom_call.1} parent=1 // pred_fallthru
      _
    // Predicated region
    $region26: #{tpu_custom_call.1} parent=1 // pred_check
      _
    $region27: #{tpu_custom_call.1} parent=1 // pred_check_branch
      %52 = sbr.rel (0) target = $region29
    $region28: #{tpu_custom_call.1} parent=1 // pred_region
      _
    $region29: #{tpu_custom_call.1} parent=1 // pred_fallthru
      _
    // Predicated region
    $region30: #{tpu_custom_call.1} parent=1 // pred_check
      _
    $region31: #{tpu_custom_call.1} parent=1 // pred_check_branch
      %54 = sbr.rel (0) target = $region33
    $region32: #{tpu_custom_call.1} parent=1 // pred_region
      %56 = vsyncadd [#allocation6], 0
      %s57 = sshll.u32 %s7, 4
      %s58 = int_to_ptr.hbm [resolvable:$true] %s57
      %s59 = sshll.u32 [#allocation7], 4
      %s60 = int_to_ptr.vmem [resolvable:$true] %s59
      %65 = dma.hbm_to_vmem [thread:$0]  %s58, 4096, %s60, [#allocation6], 64, 64, 4
    $region33: #{tpu_custom_call.1} parent=1 // pred_fallthru
      _
    // Predicated region
    $region34: #{tpu_custom_call.1} parent=1 // pred_check
      _
    $region35: #{tpu_custom_call.1} parent=1 // pred_check_branch
      %67 = sbr.rel (0) target = $region37
    $region36: #{tpu_custom_call.1} parent=1 // pred_region
      _
    $region37: #{tpu_custom_call.1} parent=1 // pred_fallthru
      _
    // Predicated region
    $region38: #{tpu_custom_call.1} parent=1 // pred_check
      _
    $region39: #{tpu_custom_call.1} parent=1 // pred_check_branch
      %69 = sbr.rel (0) target = $region41
    $region40: #{tpu_custom_call.1} parent=1 // pred_region
      %71 = dma.done [#allocation3], 16384
    $region41: #{tpu_custom_call.1} parent=1 // pred_fallthru
      _
    // Predicated region
    $region42: #{tpu_custom_call.1} parent=1 // pred_check
      _
    $region43: #{tpu_custom_call.1} parent=1 // pred_check_branch
      %73 = sbr.rel (0) target = $region45
    $region44: #{tpu_custom_call.1} parent=1 // pred_region
      %75 = dma.done [#allocation6], 16384
    $region45: #{tpu_custom_call.1} parent=1 // pred_fallthru
      _
    // Predicated region
    $region46: #{tpu_custom_call.1} parent=1 // pred_check
      _
    $region47: #{tpu_custom_call.1} parent=1 // pred_check_branch
      %77 = sbr.rel (0) target = $region49
    $region48: #{tpu_custom_call.1} parent=1 // pred_region
      %79 = dma.done [#allocation6], 4096
    $region49: #{tpu_custom_call.1} parent=1 // pred_fallthru
      _
    %v81 = vld [vmem:[%s0] sm:$0xff]
    %v82 = vld [vmem:[%s0 + $0x8] sm:$0xff]
    %v83 = vld [vmem:[%s0 + $0x10] sm:$0xff]
    %v84 = vld [vmem:[%s0 + $0x18] sm:$0xff]
    %v85 = vld [vmem:[%s0 + $0x20] sm:$0xff]
    %v86 = vld [vmem:[%s0 + $0x28] sm:$0xff]
    %v87 = vld [vmem:[%s0 + $0x30] sm:$0xff]
    %v88 = vld [vmem:[%s0 + $0x38] sm:$0xff]
    %v89 = vld [vmem:[%s0 + $0x40] sm:$0xff]
    %v90 = vld [vmem:[%s0 + $0x48] sm:$0xff]
    %v91 = vld [vmem:[%s0 + $0x50] sm:$0xff]
    %v92 = vld [vmem:[%s0 + $0x58] sm:$0xff]
    %v93 = vld [vmem:[%s0 + $0x60] sm:$0xff]
    %v94 = vld [vmem:[%s0 + $0x68] sm:$0xff]
    %v95 = vld [vmem:[%s0 + $0x70] sm:$0xff]
    %v96 = vld [vmem:[%s0 + $0x78] sm:$0xff]
    %v97 = vpack.c.bf16 %v82, %v81
    %v98 = vpack.c.bf16 %v84, %v83
    %v99 = vpack.c.bf16 %v86, %v85
    %v100 = vpack.c.bf16 %v88, %v87
    %v101 = vpack.c.bf16 %v90, %v89
    %v102 = vpack.c.bf16 %v92, %v91
    %v103 = vpack.c.bf16 %v94, %v93
    %v104 = vpack.c.bf16 %v96, %v95
    %v105 = vld [vmem:[%s1] sm:$0xff]
    %v106 = vld [vmem:[%s1 + $0x8] sm:$0xff]
    %v107 = vld [vmem:[%s1 + $0x10] sm:$0xff]
    %v108 = vld [vmem:[%s1 + $0x18] sm:$0xff]
    %v109 = vld [vmem:[%s1 + $0x20] sm:$0xff]
    %v110 = vld [vmem:[%s1 + $0x28] sm:$0xff]
    %v111 = vld [vmem:[%s1 + $0x30] sm:$0xff]
    %v112 = vld [vmem:[%s1 + $0x38] sm:$0xff]
    %v113 = vld [vmem:[%s2] sm:$0xf]
    %v115 = vperm.slane %v113, 0
    %v116 = vperm.slane %v113, 1
    %v117 = vperm.slane %v113, 2
    %v118 = vperm.slane %v113, 3
    %v131 = vunpack.c.l.b16 %v105
    %v132 = vunpack.c.h.b16 %v105
    %v133 = vunpack.c.l.b16 %v106
    %v134 = vunpack.c.h.b16 %v106
    %v135 = vunpack.c.l.b16 %v107
    %v136 = vunpack.c.h.b16 %v107
    %v137 = vunpack.c.l.b16 %v108
    %v138 = vunpack.c.h.b16 %v108
    %v139 = vunpack.c.l.b16 %v109
    %v140 = vunpack.c.h.b16 %v109
    %v141 = vunpack.c.l.b16 %v110
    %v142 = vunpack.c.h.b16 %v110
    %v143 = vunpack.c.l.b16 %v111
    %v144 = vunpack.c.h.b16 %v111
    %v145 = vunpack.c.l.b16 %v112
    %v146 = vunpack.c.h.b16 %v112
    %v147 = vpack.c.b16 %v135, %v131
    %v148 = vpack.c.b16 %v136, %v132
    %v149 = vpack.c.b16 %v137, %v133
    %v150 = vpack.c.b16 %v138, %v134
    %v151 = vpack.c.b16 %v143, %v139
    %v152 = vpack.c.b16 %v144, %v140
    %v153 = vpack.c.b16 %v145, %v141
    %v154 = vpack.c.b16 %v146, %v142
    %vm163 = vcmask 261120
    %v165 = vsel %vm163, %v97, 0
    %v168 = vsel %vm163, %v98, 0
    %v171 = vsel %vm163, %v99, 0
    %v174 = vsel %vm163, %v100, 0
    %v177 = vsel %vm163, %v101, 0
    %v180 = vsel %vm163, %v102, 0
    %v183 = vsel %vm163, %v103, 0
    %v186 = vsel %vm163, %v104, 0
    %188 = vmatpush.bf16.msra.mxu0 0
    %189 = vmatpush.bf16.msra.mxu0 0
    %190 = vmatpush.bf16.msra.mxu0 0
    %191 = vmatpush.bf16.msra.mxu0 0
    %192 = vmatpush.bf16.msra.mxu0 0
    %193 = vmatpush.bf16.msra.mxu0 0
    %194 = vmatpush.bf16.msra.mxu0 %v151
    %195 = vmatpush.bf16.msra.mxu0 %v147
    %196 = vmatmul.bf16.gmra.mxu0 %v165
    %v197 = vpop.f32.mrf.mxu0
    %v198 = vadd.f32 %v115, %v197
    %v199 = vpop.f32.mrf.mxu0
    %v200 = vadd.f32 %v115, %v199
    %201 = vmatmul.bf16.gmra.mxu0 %v168
    %v202 = vpop.f32.mrf.mxu0
    %v203 = vadd.f32 %v115, %v202
    %v204 = vpop.f32.mrf.mxu0
    %v205 = vadd.f32 %v115, %v204
    %206 = vmatmul.bf16.gmra.mxu0 %v171
    %v207 = vpop.f32.mrf.mxu0
    %v208 = vadd.f32 %v115, %v207
    %v209 = vpop.f32.mrf.mxu0
    %v210 = vadd.f32 %v115, %v209
    %211 = vmatmul.bf16.gmra.mxu0 %v174
    %v212 = vpop.f32.mrf.mxu0
    %v213 = vadd.f32 %v115, %v212
    %v214 = vpop.f32.mrf.mxu0
    %v215 = vadd.f32 %v115, %v214
    %216 = vmatmul.bf16.gmra.mxu0 %v177
    %v217 = vpop.f32.mrf.mxu0
    %v218 = vadd.f32 %v115, %v217
    %v219 = vpop.f32.mrf.mxu0
    %v220 = vadd.f32 %v115, %v219
    %221 = vmatmul.bf16.gmra.mxu0 %v180
    %v222 = vpop.f32.mrf.mxu0
    %v223 = vadd.f32 %v115, %v222
    %v224 = vpop.f32.mrf.mxu0
    %v225 = vadd.f32 %v115, %v224
    %226 = vmatmul.bf16.gmra.mxu0 %v183
    %v227 = vpop.f32.mrf.mxu0
    %v228 = vadd.f32 %v115, %v227
    %v229 = vpop.f32.mrf.mxu0
    %v230 = vadd.f32 %v115, %v229
    %231 = vmatmul.bf16.gmra.mxu0 %v186
    %v232 = vpop.f32.mrf.mxu0
    %v233 = vadd.f32 %v115, %v232
    %v234 = vpop.f32.mrf.mxu0
    %v235 = vadd.f32 %v115, %v234
    %236 = vdwg.mxu0
    %237 = vmatpush.bf16.msra.mxu0 0
    %238 = vmatpush.bf16.msra.mxu0 0
    %239 = vmatpush.bf16.msra.mxu0 0
    %240 = vmatpush.bf16.msra.mxu0 0
    %241 = vmatpush.bf16.msra.mxu0 0
    %242 = vmatpush.bf16.msra.mxu0 0
    %243 = vmatpush.bf16.msra.mxu0 %v152
    %244 = vmatpush.bf16.msra.mxu0 %v148
    %245 = vmatmul.bf16.gmra.mxu0 %v165
    %v246 = vpop.f32.mrf.mxu0
    %v247 = vadd.f32 %v116, %v246
    %v248 = vpop.f32.mrf.mxu0
    %v249 = vadd.f32 %v116, %v248
    %250 = vmatmul.bf16.gmra.mxu0 %v168
    %v251 = vpop.f32.mrf.mxu0
    %v252 = vadd.f32 %v116, %v251
    %v253 = vpop.f32.mrf.mxu0
    %v254 = vadd.f32 %v116, %v253
    %255 = vmatmul.bf16.gmra.mxu0 %v171
    %v256 = vpop.f32.mrf.mxu0
    %v257 = vadd.f32 %v116, %v256
    %v258 = vpop.f32.mrf.mxu0
    %v259 = vadd.f32 %v116, %v258
    %260 = vmatmul.bf16.gmra.mxu0 %v174
    %v261 = vpop.f32.mrf.mxu0
    %v262 = vadd.f32 %v116, %v261
    %v263 = vpop.f32.mrf.mxu0
    %v264 = vadd.f32 %v116, %v263
    %265 = vmatmul.bf16.gmra.mxu0 %v177
    %v266 = vpop.f32.mrf.mxu0
    %v267 = vadd.f32 %v116, %v266
    %v268 = vpop.f32.mrf.mxu0
    %v269 = vadd.f32 %v116, %v268
    %270 = vmatmul.bf16.gmra.mxu0 %v180
    %v271 = vpop.f32.mrf.mxu0
    %v272 = vadd.f32 %v116, %v271
    %v273 = vpop.f32.mrf.mxu0
    %v274 = vadd.f32 %v116, %v273
    %275 = vmatmul.bf16.gmra.mxu0 %v183
    %v276 = vpop.f32.mrf.mxu0
    %v277 = vadd.f32 %v116, %v276
    %v278 = vpop.f32.mrf.mxu0
    %v279 = vadd.f32 %v116, %v278
    %280 = vmatmul.bf16.gmra.mxu0 %v186
    %v281 = vpop.f32.mrf.mxu0
    %v282 = vadd.f32 %v116, %v281
    %v283 = vpop.f32.mrf.mxu0
    %v284 = vadd.f32 %v116, %v283
    %285 = vdwg.mxu0
    %286 = vmatpush.bf16.msra.mxu0 0
    %287 = vmatpush.bf16.msra.mxu0 0
    %288 = vmatpush.bf16.msra.mxu0 0
    %289 = vmatpush.bf16.msra.mxu0 0
    %290 = vmatpush.bf16.msra.mxu0 0
    %291 = vmatpush.bf16.msra.mxu0 0
    %292 = vmatpush.bf16.msra.mxu0 %v153
    %293 = vmatpush.bf16.msra.mxu0 %v149
    %294 = vmatmul.bf16.gmra.mxu0 %v165
    %v295 = vpop.f32.mrf.mxu0
    %v296 = vadd.f32 %v117, %v295
    %v297 = vpop.f32.mrf.mxu0
    %v298 = vadd.f32 %v117, %v297
    %299 = vmatmul.bf16.gmra.mxu0 %v168
    %v300 = vpop.f32.mrf.mxu0
    %v301 = vadd.f32 %v117, %v300
    %v302 = vpop.f32.mrf.mxu0
    %v303 = vadd.f32 %v117, %v302
    %304 = vmatmul.bf16.gmra.mxu0 %v171
    %v305 = vpop.f32.mrf.mxu0
    %v306 = vadd.f32 %v117, %v305
    %v307 = vpop.f32.mrf.mxu0
    %v308 = vadd.f32 %v117, %v307
    %309 = vmatmul.bf16.gmra.mxu0 %v174
    %v310 = vpop.f32.mrf.mxu0
    %v311 = vadd.f32 %v117, %v310
    %v312 = vpop.f32.mrf.mxu0
    %v313 = vadd.f32 %v117, %v312
    %314 = vmatmul.bf16.gmra.mxu0 %v177
    %v315 = vpop.f32.mrf.mxu0
    %v316 = vadd.f32 %v117, %v315
    %v317 = vpop.f32.mrf.mxu0
    %v318 = vadd.f32 %v117, %v317
    %319 = vmatmul.bf16.gmra.mxu0 %v180
    %v320 = vpop.f32.mrf.mxu0
    %v321 = vadd.f32 %v117, %v320
    %v322 = vpop.f32.mrf.mxu0
    %v323 = vadd.f32 %v117, %v322
    %324 = vmatmul.bf16.gmra.mxu0 %v183
    %v325 = vpop.f32.mrf.mxu0
    %v326 = vadd.f32 %v117, %v325
    %v327 = vpop.f32.mrf.mxu0
    %v328 = vadd.f32 %v117, %v327
    %329 = vmatmul.bf16.gmra.mxu0 %v186
    %v330 = vpop.f32.mrf.mxu0
    %v331 = vadd.f32 %v117, %v330
    %v332 = vpop.f32.mrf.mxu0
    %v333 = vadd.f32 %v117, %v332
    %334 = vdwg.mxu0
    %335 = vmatpush.bf16.msra.mxu0 0
    %336 = vmatpush.bf16.msra.mxu0 0
    %337 = vmatpush.bf16.msra.mxu0 0
    %338 = vmatpush.bf16.msra.mxu0 0
    %339 = vmatpush.bf16.msra.mxu0 0
    %340 = vmatpush.bf16.msra.mxu0 0
    %341 = vmatpush.bf16.msra.mxu0 %v154
    %342 = vmatpush.bf16.msra.mxu0 %v150
    %343 = vmatmul.bf16.gmra.mxu0 %v165
    %v344 = vpop.f32.mrf.mxu0
    %v345 = vadd.f32 %v118, %v344
    %v346 = vpop.f32.mrf.mxu0
    %v347 = vadd.f32 %v118, %v346
    %348 = vmatmul.bf16.gmra.mxu0 %v168
    %v349 = vpop.f32.mrf.mxu0
    %v350 = vadd.f32 %v118, %v349
    %v351 = vpop.f32.mrf.mxu0
    %v352 = vadd.f32 %v118, %v351
    %353 = vmatmul.bf16.gmra.mxu0 %v171
    %v354 = vpop.f32.mrf.mxu0
    %v355 = vadd.f32 %v118, %v354
    %v356 = vpop.f32.mrf.mxu0
    %v357 = vadd.f32 %v118, %v356
    %358 = vmatmul.bf16.gmra.mxu0 %v174
    %v359 = vpop.f32.mrf.mxu0
    %v360 = vadd.f32 %v118, %v359
    %v361 = vpop.f32.mrf.mxu0
    %v362 = vadd.f32 %v118, %v361
    %363 = vmatmul.bf16.gmra.mxu0 %v177
    %v364 = vpop.f32.mrf.mxu0
    %v365 = vadd.f32 %v118, %v364
    %v366 = vpop.f32.mrf.mxu0
    %v367 = vadd.f32 %v118, %v366
    %368 = vmatmul.bf16.gmra.mxu0 %v180
    %v369 = vpop.f32.mrf.mxu0
    %v370 = vadd.f32 %v118, %v369
    %v371 = vpop.f32.mrf.mxu0
    %v372 = vadd.f32 %v118, %v371
    %373 = vmatmul.bf16.gmra.mxu0 %v183
    %v374 = vpop.f32.mrf.mxu0
    %v375 = vadd.f32 %v118, %v374
    %v376 = vpop.f32.mrf.mxu0
    %v377 = vadd.f32 %v118, %v376
    %378 = vmatmul.bf16.gmra.mxu0 %v186
    %v379 = vpop.f32.mrf.mxu0
    %v380 = vadd.f32 %v118, %v379
    %v381 = vpop.f32.mrf.mxu0
    %v382 = vadd.f32 %v118, %v381
    %383 = vdwg.mxu0
    %v384 = vmax.f32 %v198, 0.0
    %v385 = vmax.f32 %v247, 0.0
    %v386 = vmax.f32 %v296, 0.0
    %v387 = vmax.f32 %v345, 0.0
    %v388 = vmax.f32 %v200, 0.0
    %v389 = vmax.f32 %v249, 0.0
    %v390 = vmax.f32 %v298, 0.0
    %v391 = vmax.f32 %v347, 0.0
    %v392 = vmax.f32 %v203, 0.0
    %v393 = vmax.f32 %v252, 0.0
    %v394 = vmax.f32 %v301, 0.0
    %v395 = vmax.f32 %v350, 0.0
    %v396 = vmax.f32 %v205, 0.0
    %v397 = vmax.f32 %v254, 0.0
    %v398 = vmax.f32 %v303, 0.0
    %v399 = vmax.f32 %v352, 0.0
    %v400 = vmax.f32 %v208, 0.0
    %v401 = vmax.f32 %v257, 0.0
    %v402 = vmax.f32 %v306, 0.0
    %v403 = vmax.f32 %v355, 0.0
    %v404 = vmax.f32 %v210, 0.0
    %v405 = vmax.f32 %v259, 0.0
    %v406 = vmax.f32 %v308, 0.0
    %v407 = vmax.f32 %v357, 0.0
    %v408 = vmax.f32 %v213, 0.0
    %v409 = vmax.f32 %v262, 0.0
    %v410 = vmax.f32 %v311, 0.0
    %v411 = vmax.f32 %v360, 0.0
    %v412 = vmax.f32 %v215, 0.0
    %v413 = vmax.f32 %v264, 0.0
    %v414 = vmax.f32 %v313, 0.0
    %v415 = vmax.f32 %v362, 0.0
    %v416 = vmax.f32 %v218, 0.0
    %v417 = vmax.f32 %v267, 0.0
    %v418 = vmax.f32 %v316, 0.0
    %v419 = vmax.f32 %v365, 0.0
    %v420 = vmax.f32 %v220, 0.0
    %v421 = vmax.f32 %v269, 0.0
    %v422 = vmax.f32 %v318, 0.0
    %v423 = vmax.f32 %v367, 0.0
    %v424 = vmax.f32 %v223, 0.0
    %v425 = vmax.f32 %v272, 0.0
    %v426 = vmax.f32 %v321, 0.0
    %v427 = vmax.f32 %v370, 0.0
    %v428 = vmax.f32 %v225, 0.0
    %v429 = vmax.f32 %v274, 0.0
    %v430 = vmax.f32 %v323, 0.0
    %v431 = vmax.f32 %v372, 0.0
    %v432 = vmax.f32 %v228, 0.0
    %v433 = vmax.f32 %v277, 0.0
    %v434 = vmax.f32 %v326, 0.0
    %v435 = vmax.f32 %v375, 0.0
    %v436 = vmax.f32 %v230, 0.0
    %v437 = vmax.f32 %v279, 0.0
    %v438 = vmax.f32 %v328, 0.0
    %v439 = vmax.f32 %v377, 0.0
    %v440 = vmax.f32 %v233, 0.0
    %v441 = vmax.f32 %v282, 0.0
    %v442 = vmax.f32 %v331, 0.0
    %v443 = vmax.f32 %v380, 0.0
    %v444 = vmax.f32 %v235, 0.0
    %v445 = vmax.f32 %v284, 0.0
    %v446 = vmax.f32 %v333, 0.0
    %v447 = vmax.f32 %v382, 0.0
    %v448 = vpack.c.bf16 %v388, %v384
    %v449 = vpack.c.bf16 %v389, %v385
    %v450 = vpack.c.bf16 %v390, %v386
    %v451 = vpack.c.bf16 %v391, %v387
    %v452 = vpack.c.bf16 %v396, %v392
    %v453 = vpack.c.bf16 %v397, %v393
    %v454 = vpack.c.bf16 %v398, %v394
    %v455 = vpack.c.bf16 %v399, %v395
    %v456 = vpack.c.bf16 %v404, %v400
    %v457 = vpack.c.bf16 %v405, %v401
    %v458 = vpack.c.bf16 %v406, %v402
    %v459 = vpack.c.bf16 %v407, %v403
    %v460 = vpack.c.bf16 %v412, %v408
    %v461 = vpack.c.bf16 %v413, %v409
    %v462 = vpack.c.bf16 %v414, %v410
    %v463 = vpack.c.bf16 %v415, %v411
    %v464 = vpack.c.bf16 %v420, %v416
    %v465 = vpack.c.bf16 %v421, %v417
    %v466 = vpack.c.bf16 %v422, %v418
    %v467 = vpack.c.bf16 %v423, %v419
    %v468 = vpack.c.bf16 %v428, %v424
    %v469 = vpack.c.bf16 %v429, %v425
    %v470 = vpack.c.bf16 %v430, %v426
    %v471 = vpack.c.bf16 %v431, %v427
    %v472 = vpack.c.bf16 %v436, %v432
    %v473 = vpack.c.bf16 %v437, %v433
    %v474 = vpack.c.bf16 %v438, %v434
    %v475 = vpack.c.bf16 %v439, %v435
    %v476 = vpack.c.bf16 %v444, %v440
    %v477 = vpack.c.bf16 %v445, %v441
    %v478 = vpack.c.bf16 %v446, %v442
    %v479 = vpack.c.bf16 %v447, %v443
    %v480 = vld [vmem:[#allocation2] sm:$0xff]
    %v481 = vld [vmem:[#allocation2 + $0x8] sm:$0xff]
    %v482 = vld [vmem:[#allocation2 + $0x10] sm:$0xff]
    %v483 = vld [vmem:[#allocation2 + $0x18] sm:$0xff]
    %v484 = vld [vmem:[#allocation2 + $0x20] sm:$0xff]
    %v485 = vld [vmem:[#allocation2 + $0x28] sm:$0xff]
    %v486 = vld [vmem:[#allocation2 + $0x30] sm:$0xff]
    %v487 = vld [vmem:[#allocation2 + $0x38] sm:$0xff]
    %v488 = vld [vmem:[#allocation2 + $0x40] sm:$0xff]
    %v489 = vld [vmem:[#allocation2 + $0x48] sm:$0xff]
    %v490 = vld [vmem:[#allocation2 + $0x50] sm:$0xff]
    %v491 = vld [vmem:[#allocation2 + $0x58] sm:$0xff]
    %v492 = vld [vmem:[#allocation2 + $0x60] sm:$0xff]
    %v493 = vld [vmem:[#allocation2 + $0x68] sm:$0xff]
    %v494 = vld [vmem:[#allocation2 + $0x70] sm:$0xff]
    %v495 = vld [vmem:[#allocation2 + $0x78] sm:$0xff]
    %v496 = vld [vmem:[#allocation2 + $0x80] sm:$0xff]
    %v497 = vld [vmem:[#allocation2 + $0x88] sm:$0xff]
    %v498 = vld [vmem:[#allocation2 + $0x90] sm:$0xff]
    %v499 = vld [vmem:[#allocation2 + $0x98] sm:$0xff]
    %v500 = vld [vmem:[#allocation2 + $0xa0] sm:$0xff]
    %v501 = vld [vmem:[#allocation2 + $0xa8] sm:$0xff]
    %v502 = vld [vmem:[#allocation2 + $0xb0] sm:$0xff]
    %v503 = vld [vmem:[#allocation2 + $0xb8] sm:$0xff]
    %v504 = vld [vmem:[#allocation2 + $0xc0] sm:$0xff]
    %v505 = vld [vmem:[#allocation2 + $0xc8] sm:$0xff]
    %v506 = vld [vmem:[#allocation2 + $0xd0] sm:$0xff]
    %v507 = vld [vmem:[#allocation2 + $0xd8] sm:$0xff]
    %v508 = vld [vmem:[#allocation2 + $0xe0] sm:$0xff]
    %v509 = vld [vmem:[#allocation2 + $0xe8] sm:$0xff]
    %v510 = vld [vmem:[#allocation2 + $0xf0] sm:$0xff]
    %v511 = vld [vmem:[#allocation2 + $0xf8] sm:$0xff]
    %v512 = vld [vmem:[#allocation2 + $0x100] sm:$0xff]
    %v513 = vld [vmem:[#allocation2 + $0x108] sm:$0xff]
    %v514 = vld [vmem:[#allocation2 + $0x110] sm:$0xff]
    %v515 = vld [vmem:[#allocation2 + $0x118] sm:$0xff]
    %v516 = vld [vmem:[#allocation2 + $0x120] sm:$0xff]
    %v517 = vld [vmem:[#allocation2 + $0x128] sm:$0xff]
    %v518 = vld [vmem:[#allocation2 + $0x130] sm:$0xff]
    %v519 = vld [vmem:[#allocation2 + $0x138] sm:$0xff]
    %v520 = vld [vmem:[#allocation2 + $0x140] sm:$0xff]
    %v521 = vld [vmem:[#allocation2 + $0x148] sm:$0xff]
    %v522 = vld [vmem:[#allocation2 + $0x150] sm:$0xff]
    %v523 = vld [vmem:[#allocation2 + $0x158] sm:$0xff]
    %v524 = vld [vmem:[#allocation2 + $0x160] sm:$0xff]
    %v525 = vld [vmem:[#allocation2 + $0x168] sm:$0xff]
    %v526 = vld [vmem:[#allocation2 + $0x170] sm:$0xff]
    %v527 = vld [vmem:[#allocation2 + $0x178] sm:$0xff]
    %v528 = vld [vmem:[#allocation2 + $0x180] sm:$0xff]
    %v529 = vld [vmem:[#allocation2 + $0x188] sm:$0xff]
    %v530 = vld [vmem:[#allocation2 + $0x190] sm:$0xff]
    %v531 = vld [vmem:[#allocation2 + $0x198] sm:$0xff]
    %v532 = vld [vmem:[#allocation2 + $0x1a0] sm:$0xff]
    %v533 = vld [vmem:[#allocation2 + $0x1a8] sm:$0xff]
    %v534 = vld [vmem:[#allocation2 + $0x1b0] sm:$0xff]
    %v535 = vld [vmem:[#allocation2 + $0x1b8] sm:$0xff]
    %v536 = vld [vmem:[#allocation2 + $0x1c0] sm:$0xff]
    %v537 = vld [vmem:[#allocation2 + $0x1c8] sm:$0xff]
    %v538 = vld [vmem:[#allocation2 + $0x1d0] sm:$0xff]
    %v539 = vld [vmem:[#allocation2 + $0x1d8] sm:$0xff]
    %v540 = vld [vmem:[#allocation2 + $0x1e0] sm:$0xff]
    %v541 = vld [vmem:[#allocation2 + $0x1e8] sm:$0xff]
    %v542 = vld [vmem:[#allocation2 + $0x1f0] sm:$0xff]
    %v543 = vld [vmem:[#allocation2 + $0x1f8] sm:$0xff]
    %v544 = vld [vmem:[#allocation2 + $0x200] sm:$0xff]
    %v545 = vld [vmem:[#allocation2 + $0x208] sm:$0xff]
    %v546 = vld [vmem:[#allocation2 + $0x210] sm:$0xff]
    %v547 = vld [vmem:[#allocation2 + $0x218] sm:$0xff]
    %v548 = vld [vmem:[#allocation2 + $0x220] sm:$0xff]
    %v549 = vld [vmem:[#allocation2 + $0x228] sm:$0xff]
    %v550 = vld [vmem:[#allocation2 + $0x230] sm:$0xff]
    %v551 = vld [vmem:[#allocation2 + $0x238] sm:$0xff]
    %v552 = vld [vmem:[#allocation2 + $0x240] sm:$0xff]
    %v553 = vld [vmem:[#allocation2 + $0x248] sm:$0xff]
    %v554 = vld [vmem:[#allocation2 + $0x250] sm:$0xff]
    %v555 = vld [vmem:[#allocation2 + $0x258] sm:$0xff]
    %v556 = vld [vmem:[#allocation2 + $0x260] sm:$0xff]
    %v557 = vld [vmem:[#allocation2 + $0x268] sm:$0xff]
    %v558 = vld [vmem:[#allocation2 + $0x270] sm:$0xff]
    %v559 = vld [vmem:[#allocation2 + $0x278] sm:$0xff]
    %v560 = vld [vmem:[#allocation2 + $0x280] sm:$0xff]
    %v561 = vld [vmem:[#allocation2 + $0x288] sm:$0xff]
    %v562 = vld [vmem:[#allocation2 + $0x290] sm:$0xff]
    %v563 = vld [vmem:[#allocation2 + $0x298] sm:$0xff]
    %v564 = vld [vmem:[#allocation2 + $0x2a0] sm:$0xff]
    %v565 = vld [vmem:[#allocation2 + $0x2a8] sm:$0xff]
    %v566 = vld [vmem:[#allocation2 + $0x2b0] sm:$0xff]
    %v567 = vld [vmem:[#allocation2 + $0x2b8] sm:$0xff]
    %v568 = vld [vmem:[#allocation2 + $0x2c0] sm:$0xff]
    %v569 = vld [vmem:[#allocation2 + $0x2c8] sm:$0xff]
    %v570 = vld [vmem:[#allocation2 + $0x2d0] sm:$0xff]
    %v571 = vld [vmem:[#allocation2 + $0x2d8] sm:$0xff]
    %v572 = vld [vmem:[#allocation2 + $0x2e0] sm:$0xff]
    %v573 = vld [vmem:[#allocation2 + $0x2e8] sm:$0xff]
    %v574 = vld [vmem:[#allocation2 + $0x2f0] sm:$0xff]
    %v575 = vld [vmem:[#allocation2 + $0x2f8] sm:$0xff]
    %v576 = vld [vmem:[#allocation2 + $0x300] sm:$0xff]
    %v577 = vld [vmem:[#allocation2 + $0x308] sm:$0xff]
    %v578 = vld [vmem:[#allocation2 + $0x310] sm:$0xff]
    %v579 = vld [vmem:[#allocation2 + $0x318] sm:$0xff]
    %v580 = vld [vmem:[#allocation2 + $0x320] sm:$0xff]
    %v581 = vld [vmem:[#allocation2 + $0x328] sm:$0xff]
    %v582 = vld [vmem:[#allocation2 + $0x330] sm:$0xff]
    %v583 = vld [vmem:[#allocation2 + $0x338] sm:$0xff]
    %v584 = vld [vmem:[#allocation2 + $0x340] sm:$0xff]
    %v585 = vld [vmem:[#allocation2 + $0x348] sm:$0xff]
    %v586 = vld [vmem:[#allocation2 + $0x350] sm:$0xff]
    %v587 = vld [vmem:[#allocation2 + $0x358] sm:$0xff]
    %v588 = vld [vmem:[#allocation2 + $0x360] sm:$0xff]
    %v589 = vld [vmem:[#allocation2 + $0x368] sm:$0xff]
    %v590 = vld [vmem:[#allocation2 + $0x370] sm:$0xff]
    %v591 = vld [vmem:[#allocation2 + $0x378] sm:$0xff]
    %v592 = vld [vmem:[#allocation2 + $0x380] sm:$0xff]
    %v593 = vld [vmem:[#allocation2 + $0x388] sm:$0xff]
    %v594 = vld [vmem:[#allocation2 + $0x390] sm:$0xff]
    %v595 = vld [vmem:[#allocation2 + $0x398] sm:$0xff]
    %v596 = vld [vmem:[#allocation2 + $0x3a0] sm:$0xff]
    %v597 = vld [vmem:[#allocation2 + $0x3a8] sm:$0xff]
    %v598 = vld [vmem:[#allocation2 + $0x3b0] sm:$0xff]
    %v599 = vld [vmem:[#allocation2 + $0x3b8] sm:$0xff]
    %v600 = vld [vmem:[#allocation2 + $0x3c0] sm:$0xff]
    %v601 = vld [vmem:[#allocation2 + $0x3c8] sm:$0xff]
    %v602 = vld [vmem:[#allocation2 + $0x3d0] sm:$0xff]
    %v603 = vld [vmem:[#allocation2 + $0x3d8] sm:$0xff]
    %v604 = vld [vmem:[#allocation2 + $0x3e0] sm:$0xff]
    %v605 = vld [vmem:[#allocation2 + $0x3e8] sm:$0xff]
    %v606 = vld [vmem:[#allocation2 + $0x3f0] sm:$0xff]
    %v607 = vld [vmem:[#allocation2 + $0x3f8] sm:$0xff]
    %v608 = vld [vmem:[%s4] sm:$0xf]
    %v610 = vperm.slane %v608, 0
    %v611 = vperm.slane %v608, 1
    %v612 = vperm.slane %v608, 2
    %v613 = vperm.slane %v608, 3
    %v746 = vunpack.c.l.b16 %v480
    %v747 = vunpack.c.h.b16 %v480
    %v748 = vunpack.c.l.b16 %v481
    %v749 = vunpack.c.h.b16 %v481
    %v750 = vunpack.c.l.b16 %v482
    %v751 = vunpack.c.h.b16 %v482
    %v752 = vunpack.c.l.b16 %v483
    %v753 = vunpack.c.h.b16 %v483
    %v754 = vunpack.c.l.b16 %v484
    %v755 = vunpack.c.h.b16 %v484
    %v756 = vunpack.c.l.b16 %v485
    %v757 = vunpack.c.h.b16 %v485
    %v758 = vunpack.c.l.b16 %v486
    %v759 = vunpack.c.h.b16 %v486
    %v760 = vunpack.c.l.b16 %v487
    %v761 = vunpack.c.h.b16 %v487
    %v762 = vunpack.c.l.b16 %v488
    %v763 = vunpack.c.h.b16 %v488
    %v764 = vunpack.c.l.b16 %v489
    %v765 = vunpack.c.h.b16 %v489
    %v766 = vunpack.c.l.b16 %v490
    %v767 = vunpack.c.h.b16 %v490
    %v768 = vunpack.c.l.b16 %v491
    %v769 = vunpack.c.h.b16 %v491
    %v770 = vunpack.c.l.b16 %v492
    %v771 = vunpack.c.h.b16 %v492
    %v772 = vunpack.c.l.b16 %v493
    %v773 = vunpack.c.h.b16 %v493
    %v774 = vunpack.c.l.b16 %v494
    %v775 = vunpack.c.h.b16 %v494
    %v776 = vunpack.c.l.b16 %v495
    %v777 = vunpack.c.h.b16 %v495
    %v778 = vunpack.c.l.b16 %v496
    %v779 = vunpack.c.h.b16 %v496
    %v780 = vunpack.c.l.b16 %v497
    %v781 = vunpack.c.h.b16 %v497
    %v782 = vunpack.c.l.b16 %v498
    %v783 = vunpack.c.h.b16 %v498
    %v784 = vunpack.c.l.b16 %v499
    %v785 = vunpack.c.h.b16 %v499
    %v786 = vunpack.c.l.b16 %v500
    %v787 = vunpack.c.h.b16 %v500
    %v788 = vunpack.c.l.b16 %v501
    %v789 = vunpack.c.h.b16 %v501
    %v790 = vunpack.c.l.b16 %v502
    %v791 = vunpack.c.h.b16 %v502
    %v792 = vunpack.c.l.b16 %v503
    %v793 = vunpack.c.h.b16 %v503
    %v794 = vunpack.c.l.b16 %v504
    %v795 = vunpack.c.h.b16 %v504
    %v796 = vunpack.c.l.b16 %v505
    %v797 = vunpack.c.h.b16 %v505
    %v798 = vunpack.c.l.b16 %v506
    %v799 = vunpack.c.h.b16 %v506
    %v800 = vunpack.c.l.b16 %v507
    %v801 = vunpack.c.h.b16 %v507
    %v802 = vunpack.c.l.b16 %v508
    %v803 = vunpack.c.h.b16 %v508
    %v804 = vunpack.c.l.b16 %v509
    %v805 = vunpack.c.h.b16 %v509
    %v806 = vunpack.c.l.b16 %v510
    %v807 = vunpack.c.h.b16 %v510
    %v808 = vunpack.c.l.b16 %v511
    %v809 = vunpack.c.h.b16 %v511
    %v810 = vunpack.c.l.b16 %v512
    %v811 = vunpack.c.h.b16 %v512
    %v812 = vunpack.c.l.b16 %v513
    %v813 = vunpack.c.h.b16 %v513
    %v814 = vunpack.c.l.b16 %v514
    %v815 = vunpack.c.h.b16 %v514
    %v816 = vunpack.c.l.b16 %v515
    %v817 = vunpack.c.h.b16 %v515
    %v818 = vunpack.c.l.b16 %v516
    %v819 = vunpack.c.h.b16 %v516
    %v820 = vunpack.c.l.b16 %v517
    %v821 = vunpack.c.h.b16 %v517
    %v822 = vunpack.c.l.b16 %v518
    %v823 = vunpack.c.h.b16 %v518
    %v824 = vunpack.c.l.b16 %v519
    %v825 = vunpack.c.h.b16 %v519
    %v826 = vunpack.c.l.b16 %v520
    %v827 = vunpack.c.h.b16 %v520
    %v828 = vunpack.c.l.b16 %v521
    %v829 = vunpack.c.h.b16 %v521
    %v830 = vunpack.c.l.b16 %v522
    %v831 = vunpack.c.h.b16 %v522
    %v832 = vunpack.c.l.b16 %v523
    %v833 = vunpack.c.h.b16 %v523
    %v834 = vunpack.c.l.b16 %v524
    %v835 = vunpack.c.h.b16 %v524
    %v836 = vunpack.c.l.b16 %v525
    %v837 = vunpack.c.h.b16 %v525
    %v838 = vunpack.c.l.b16 %v526
    %v839 = vunpack.c.h.b16 %v526
    %v840 = vunpack.c.l.b16 %v527
    %v841 = vunpack.c.h.b16 %v527
    %v842 = vunpack.c.l.b16 %v528
    %v843 = vunpack.c.h.b16 %v528
    %v844 = vunpack.c.l.b16 %v529
    %v845 = vunpack.c.h.b16 %v529
    %v846 = vunpack.c.l.b16 %v530
    %v847 = vunpack.c.h.b16 %v530
    %v848 = vunpack.c.l.b16 %v531
    %v849 = vunpack.c.h.b16 %v531
    %v850 = vunpack.c.l.b16 %v532
    %v851 = vunpack.c.h.b16 %v532
    %v852 = vunpack.c.l.b16 %v533
    %v853 = vunpack.c.h.b16 %v533
    %v854 = vunpack.c.l.b16 %v534
    %v855 = vunpack.c.h.b16 %v534
    %v856 = vunpack.c.l.b16 %v535
    %v857 = vunpack.c.h.b16 %v535
    %v858 = vunpack.c.l.b16 %v536
    %v859 = vunpack.c.h.b16 %v536
    %v860 = vunpack.c.l.b16 %v537
    %v861 = vunpack.c.h.b16 %v537
    %v862 = vunpack.c.l.b16 %v538
    %v863 = vunpack.c.h.b16 %v538
    %v864 = vunpack.c.l.b16 %v539
    %v865 = vunpack.c.h.b16 %v539
    %v866 = vunpack.c.l.b16 %v540
    %v867 = vunpack.c.h.b16 %v540
    %v868 = vunpack.c.l.b16 %v541
    %v869 = vunpack.c.h.b16 %v541
    %v870 = vunpack.c.l.b16 %v542
    %v871 = vunpack.c.h.b16 %v542
    %v872 = vunpack.c.l.b16 %v543
    %v873 = vunpack.c.h.b16 %v543
    %v874 = vunpack.c.l.b16 %v544
    %v875 = vunpack.c.h.b16 %v544
    %v876 = vunpack.c.l.b16 %v545
    %v877 = vunpack.c.h.b16 %v545
    %v878 = vunpack.c.l.b16 %v546
    %v879 = vunpack.c.h.b16 %v546
    %v880 = vunpack.c.l.b16 %v547
    %v881 = vunpack.c.h.b16 %v547
    %v882 = vunpack.c.l.b16 %v548
    %v883 = vunpack.c.h.b16 %v548
    %v884 = vunpack.c.l.b16 %v549
    %v885 = vunpack.c.h.b16 %v549
    %v886 = vunpack.c.l.b16 %v550
    %v887 = vunpack.c.h.b16 %v550
    %v888 = vunpack.c.l.b16 %v551
    %v889 = vunpack.c.h.b16 %v551
    %v890 = vunpack.c.l.b16 %v552
    %v891 = vunpack.c.h.b16 %v552
    %v892 = vunpack.c.l.b16 %v553
    %v893 = vunpack.c.h.b16 %v553
    %v894 = vunpack.c.l.b16 %v554
    %v895 = vunpack.c.h.b16 %v554
    %v896 = vunpack.c.l.b16 %v555
    %v897 = vunpack.c.h.b16 %v555
    %v898 = vunpack.c.l.b16 %v556
    %v899 = vunpack.c.h.b16 %v556
    %v900 = vunpack.c.l.b16 %v557
    %v901 = vunpack.c.h.b16 %v557
    %v902 = vunpack.c.l.b16 %v558
    %v903 = vunpack.c.h.b16 %v558
    %v904 = vunpack.c.l.b16 %v559
    %v905 = vunpack.c.h.b16 %v559
    %v906 = vunpack.c.l.b16 %v560
    %v907 = vunpack.c.h.b16 %v560
    %v908 = vunpack.c.l.b16 %v561
    %v909 = vunpack.c.h.b16 %v561
    %v910 = vunpack.c.l.b16 %v562
    %v911 = vunpack.c.h.b16 %v562
    %v912 = vunpack.c.l.b16 %v563
    %v913 = vunpack.c.h.b16 %v563
    %v914 = vunpack.c.l.b16 %v564
    %v915 = vunpack.c.h.b16 %v564
    %v916 = vunpack.c.l.b16 %v565
    %v917 = vunpack.c.h.b16 %v565
    %v918 = vunpack.c.l.b16 %v566
    %v919 = vunpack.c.h.b16 %v566
    %v920 = vunpack.c.l.b16 %v567
    %v921 = vunpack.c.h.b16 %v567
    %v922 = vunpack.c.l.b16 %v568
    %v923 = vunpack.c.h.b16 %v568
    %v924 = vunpack.c.l.b16 %v569
    %v925 = vunpack.c.h.b16 %v569
    %v926 = vunpack.c.l.b16 %v570
    %v927 = vunpack.c.h.b16 %v570
    %v928 = vunpack.c.l.b16 %v571
    %v929 = vunpack.c.h.b16 %v571
    %v930 = vunpack.c.l.b16 %v572
    %v931 = vunpack.c.h.b16 %v572
    %v932 = vunpack.c.l.b16 %v573
    %v933 = vunpack.c.h.b16 %v573
    %v934 = vunpack.c.l.b16 %v574
    %v935 = vunpack.c.h.b16 %v574
    %v936 = vunpack.c.l.b16 %v575
    %v937 = vunpack.c.h.b16 %v575
    %v938 = vunpack.c.l.b16 %v576
    %v939 = vunpack.c.h.b16 %v576
    %v940 = vunpack.c.l.b16 %v577
    %v941 = vunpack.c.h.b16 %v577
    %v942 = vunpack.c.l.b16 %v578
    %v943 = vunpack.c.h.b16 %v578
    %v944 = vunpack.c.l.b16 %v579
    %v945 = vunpack.c.h.b16 %v579
    %v946 = vunpack.c.l.b16 %v580
    %v947 = vunpack.c.h.b16 %v580
    %v948 = vunpack.c.l.b16 %v581
    %v949 = vunpack.c.h.b16 %v581
    %v950 = vunpack.c.l.b16 %v582
    %v951 = vunpack.c.h.b16 %v582
    %v952 = vunpack.c.l.b16 %v583
    %v953 = vunpack.c.h.b16 %v583
    %v954 = vunpack.c.l.b16 %v584
    %v955 = vunpack.c.h.b16 %v584
    %v956 = vunpack.c.l.b16 %v585
    %v957 = vunpack.c.h.b16 %v585
    %v958 = vunpack.c.l.b16 %v586
    %v959 = vunpack.c.h.b16 %v586
    %v960 = vunpack.c.l.b16 %v587
    %v961 = vunpack.c.h.b16 %v587
    %v962 = vunpack.c.l.b16 %v588
    %v963 = vunpack.c.h.b16 %v588
    %v964 = vunpack.c.l.b16 %v589
    %v965 = vunpack.c.h.b16 %v589
    %v966 = vunpack.c.l.b16 %v590
    %v967 = vunpack.c.h.b16 %v590
    %v968 = vunpack.c.l.b16 %v591
    %v969 = vunpack.c.h.b16 %v591
    %v970 = vunpack.c.l.b16 %v592
    %v971 = vunpack.c.h.b16 %v592
    %v972 = vunpack.c.l.b16 %v593
    %v973 = vunpack.c.h.b16 %v593
    %v974 = vunpack.c.l.b16 %v594
    %v975 = vunpack.c.h.b16 %v594
    %v976 = vunpack.c.l.b16 %v595
    %v977 = vunpack.c.h.b16 %v595
    %v978 = vunpack.c.l.b16 %v596
    %v979 = vunpack.c.h.b16 %v596
    %v980 = vunpack.c.l.b16 %v597
    %v981 = vunpack.c.h.b16 %v597
    %v982 = vunpack.c.l.b16 %v598
    %v983 = vunpack.c.h.b16 %v598
    %v984 = vunpack.c.l.b16 %v599
    %v985 = vunpack.c.h.b16 %v599
    %v986 = vunpack.c.l.b16 %v600
    %v987 = vunpack.c.h.b16 %v600
    %v988 = vunpack.c.l.b16 %v601
    %v989 = vunpack.c.h.b16 %v601
    %v990 = vunpack.c.l.b16 %v602
    %v991 = vunpack.c.h.b16 %v602
    %v992 = vunpack.c.l.b16 %v603
    %v993 = vunpack.c.h.b16 %v603
    %v994 = vunpack.c.l.b16 %v604
    %v995 = vunpack.c.h.b16 %v604
    %v996 = vunpack.c.l.b16 %v605
    %v997 = vunpack.c.h.b16 %v605
    %v998 = vunpack.c.l.b16 %v606
    %v999 = vunpack.c.h.b16 %v606
    %v1000 = vunpack.c.l.b16 %v607
    %v1001 = vunpack.c.h.b16 %v607
    %v1002 = vpack.c.b16 %v750, %v746
    %v1003 = vpack.c.b16 %v751, %v747
    %v1004 = vpack.c.b16 %v752, %v748
    %v1005 = vpack.c.b16 %v753, %v749
    %v1006 = vpack.c.b16 %v758, %v754
    %v1007 = vpack.c.b16 %v759, %v755
    %v1008 = vpack.c.b16 %v760, %v756
    %v1009 = vpack.c.b16 %v761, %v757
    %v1010 = vpack.c.b16 %v766, %v762
    %v1011 = vpack.c.b16 %v767, %v763
    %v1012 = vpack.c.b16 %v768, %v764
    %v1013 = vpack.c.b16 %v769, %v765
    %v1014 = vpack.c.b16 %v774, %v770
    %v1015 = vpack.c.b16 %v775, %v771
    %v1016 = vpack.c.b16 %v776, %v772
    %v1017 = vpack.c.b16 %v777, %v773
    %v1018 = vpack.c.b16 %v782, %v778
    %v1019 = vpack.c.b16 %v783, %v779
    %v1020 = vpack.c.b16 %v784, %v780
    %v1021 = vpack.c.b16 %v785, %v781
    %v1022 = vpack.c.b16 %v790, %v786
    %v1023 = vpack.c.b16 %v791, %v787
    %v1024 = vpack.c.b16 %v792, %v788
    %v1025 = vpack.c.b16 %v793, %v789
    %v1026 = vpack.c.b16 %v798, %v794
    %v1027 = vpack.c.b16 %v799, %v795
    %v1028 = vpack.c.b16 %v800, %v796
    %v1029 = vpack.c.b16 %v801, %v797
    %v1030 = vpack.c.b16 %v806, %v802
    %v1031 = vpack.c.b16 %v807, %v803
    %v1032 = vpack.c.b16 %v808, %v804
    %v1033 = vpack.c.b16 %v809, %v805
    %v1034 = vpack.c.b16 %v814, %v810
    %v1035 = vpack.c.b16 %v815, %v811
    %v1036 = vpack.c.b16 %v816, %v812
    %v1037 = vpack.c.b16 %v817, %v813
    %v1038 = vpack.c.b16 %v822, %v818
    %v1039 = vpack.c.b16 %v823, %v819
    %v1040 = vpack.c.b16 %v824, %v820
    %v1041 = vpack.c.b16 %v825, %v821
    %v1042 = vpack.c.b16 %v830, %v826
    %v1043 = vpack.c.b16 %v831, %v827
    %v1044 = vpack.c.b16 %v832, %v828
    %v1045 = vpack.c.b16 %v833, %v829
    %v1046 = vpack.c.b16 %v838, %v834
    %v1047 = vpack.c.b16 %v839, %v835
    %v1048 = vpack.c.b16 %v840, %v836
    %v1049 = vpack.c.b16 %v841, %v837
    %v1050 = vpack.c.b16 %v846, %v842
    %v1051 = vpack.c.b16 %v847, %v843
    %v1052 = vpack.c.b16 %v848, %v844
    %v1053 = vpack.c.b16 %v849, %v845
    %v1054 = vpack.c.b16 %v854, %v850
    %v1055 = vpack.c.b16 %v855, %v851
    %v1056 = vpack.c.b16 %v856, %v852
    %v1057 = vpack.c.b16 %v857, %v853
    %v1058 = vpack.c.b16 %v862, %v858
    %v1059 = vpack.c.b16 %v863, %v859
    %v1060 = vpack.c.b16 %v864, %v860
    %v1061 = vpack.c.b16 %v865, %v861
    %v1062 = vpack.c.b16 %v870, %v866
    %v1063 = vpack.c.b16 %v871, %v867
    %v1064 = vpack.c.b16 %v872, %v868
    %v1065 = vpack.c.b16 %v873, %v869
    %v1066 = vpack.c.b16 %v878, %v874
    %v1067 = vpack.c.b16 %v879, %v875
    %v1068 = vpack.c.b16 %v880, %v876
    %v1069 = vpack.c.b16 %v881, %v877
    %v1070 = vpack.c.b16 %v886, %v882
    %v1071 = vpack.c.b16 %v887, %v883
    %v1072 = vpack.c.b16 %v888, %v884
    %v1073 = vpack.c.b16 %v889, %v885
    %v1074 = vpack.c.b16 %v894, %v890
    %v1075 = vpack.c.b16 %v895, %v891
    %v1076 = vpack.c.b16 %v896, %v892
    %v1077 = vpack.c.b16 %v897, %v893
    %v1078 = vpack.c.b16 %v902, %v898
    %v1079 = vpack.c.b16 %v903, %v899
    %v1080 = vpack.c.b16 %v904, %v900
    %v1081 = vpack.c.b16 %v905, %v901
    %v1082 = vpack.c.b16 %v910, %v906
    %v1083 = vpack.c.b16 %v911, %v907
    %v1084 = vpack.c.b16 %v912, %v908
    %v1085 = vpack.c.b16 %v913, %v909
    %v1086 = vpack.c.b16 %v918, %v914
    %v1087 = vpack.c.b16 %v919, %v915
    %v1088 = vpack.c.b16 %v920, %v916
    %v1089 = vpack.c.b16 %v921, %v917
    %v1090 = vpack.c.b16 %v926, %v922
    %v1091 = vpack.c.b16 %v927, %v923
    %v1092 = vpack.c.b16 %v928, %v924
    %v1093 = vpack.c.b16 %v929, %v925
    %v1094 = vpack.c.b16 %v934, %v930
    %v1095 = vpack.c.b16 %v935, %v931
    %v1096 = vpack.c.b16 %v936, %v932
    %v1097 = vpack.c.b16 %v937, %v933
    %v1098 = vpack.c.b16 %v942, %v938
    %v1099 = vpack.c.b16 %v943, %v939
    %v1100 = vpack.c.b16 %v944, %v940
    %v1101 = vpack.c.b16 %v945, %v941
    %v1102 = vpack.c.b16 %v950, %v946
    %v1103 = vpack.c.b16 %v951, %v947
    %v1104 = vpack.c.b16 %v952, %v948
    %v1105 = vpack.c.b16 %v953, %v949
    %v1106 = vpack.c.b16 %v958, %v954
    %v1107 = vpack.c.b16 %v959, %v955
    %v1108 = vpack.c.b16 %v960, %v956
    %v1109 = vpack.c.b16 %v961, %v957
    %v1110 = vpack.c.b16 %v966, %v962
    %v1111 = vpack.c.b16 %v967, %v963
    %v1112 = vpack.c.b16 %v968, %v964
    %v1113 = vpack.c.b16 %v969, %v965
    %v1114 = vpack.c.b16 %v974, %v970
    %v1115 = vpack.c.b16 %v975, %v971
    %v1116 = vpack.c.b16 %v976, %v972
    %v1117 = vpack.c.b16 %v977, %v973
    %v1118 = vpack.c.b16 %v982, %v978
    %v1119 = vpack.c.b16 %v983, %v979
    %v1120 = vpack.c.b16 %v984, %v980
    %v1121 = vpack.c.b16 %v985, %v981
    %v1122 = vpack.c.b16 %v990, %v986
    %v1123 = vpack.c.b16 %v991, %v987
    %v1124 = vpack.c.b16 %v992, %v988
    %v1125 = vpack.c.b16 %v993, %v989
    %v1126 = vpack.c.b16 %v998, %v994
    %v1127 = vpack.c.b16 %v999, %v995
    %v1128 = vpack.c.b16 %v1000, %v996
    %v1129 = vpack.c.b16 %v1001, %v997
    %1258 = vmatpush.bf16.msra.mxu0 %v1030
    %1259 = vmatpush.bf16.msra.mxu0 %v1026
    %1260 = vmatpush.bf16.msra.mxu0 %v1022
    %1261 = vmatpush.bf16.msra.mxu0 %v1018
    %1262 = vmatpush.bf16.msra.mxu0 %v1014
    %1263 = vmatpush.bf16.msra.mxu0 %v1010
    %1264 = vmatpush.bf16.msra.mxu0 %v1006
    %1265 = vmatpush.bf16.msra.mxu0 %v1002
    %1266 = vmatmul.bf16.gmra.mxu0 %v448
    %v1267 = vpop.f32.mrf.mxu0
    %v1268 = vadd.f32 %v610, %v1267
    %v1269 = vpop.f32.mrf.mxu0
    %v1270 = vadd.f32 %v610, %v1269
    %1271 = vmatmul.bf16.gmra.mxu0 %v452
    %v1272 = vpop.f32.mrf.mxu0
    %v1273 = vadd.f32 %v610, %v1272
    %v1274 = vpop.f32.mrf.mxu0
    %v1275 = vadd.f32 %v610, %v1274
    %1276 = vmatmul.bf16.gmra.mxu0 %v456
    %v1277 = vpop.f32.mrf.mxu0
    %v1278 = vadd.f32 %v610, %v1277
    %v1279 = vpop.f32.mrf.mxu0
    %v1280 = vadd.f32 %v610, %v1279
    %1281 = vmatmul.bf16.gmra.mxu0 %v460
    %v1282 = vpop.f32.mrf.mxu0
    %v1283 = vadd.f32 %v610, %v1282
    %v1284 = vpop.f32.mrf.mxu0
    %v1285 = vadd.f32 %v610, %v1284
    %1286 = vmatmul.bf16.gmra.mxu0 %v464
    %v1287 = vpop.f32.mrf.mxu0
    %v1288 = vadd.f32 %v610, %v1287
    %v1289 = vpop.f32.mrf.mxu0
    %v1290 = vadd.f32 %v610, %v1289
    %1291 = vmatmul.bf16.gmra.mxu0 %v468
    %v1292 = vpop.f32.mrf.mxu0
    %v1293 = vadd.f32 %v610, %v1292
    %v1294 = vpop.f32.mrf.mxu0
    %v1295 = vadd.f32 %v610, %v1294
    %1296 = vmatmul.bf16.gmra.mxu0 %v472
    %v1297 = vpop.f32.mrf.mxu0
    %v1298 = vadd.f32 %v610, %v1297
    %v1299 = vpop.f32.mrf.mxu0
    %v1300 = vadd.f32 %v610, %v1299
    %1301 = vmatmul.bf16.gmra.mxu0 %v476
    %v1302 = vpop.f32.mrf.mxu0
    %v1303 = vadd.f32 %v610, %v1302
    %v1304 = vpop.f32.mrf.mxu0
    %v1305 = vadd.f32 %v610, %v1304
    %1306 = vdwg.mxu0
    %1307 = vmatpush.bf16.msra.mxu0 %v1062
    %1308 = vmatpush.bf16.msra.mxu0 %v1058
    %1309 = vmatpush.bf16.msra.mxu0 %v1054
    %1310 = vmatpush.bf16.msra.mxu0 %v1050
    %1311 = vmatpush.bf16.msra.mxu0 %v1046
    %1312 = vmatpush.bf16.msra.mxu0 %v1042
    %1313 = vmatpush.bf16.msra.mxu0 %v1038
    %1314 = vmatpush.bf16.msra.mxu0 %v1034
    %1315 = vmatmul.bf16.gmra.mxu0 %v449
    %v1316 = vpop.f32.mrf.mxu0
    %v1317 = vadd.f32 %v1268, %v1316
    %v1318 = vpop.f32.mrf.mxu0
    %v1319 = vadd.f32 %v1270, %v1318
    %1320 = vmatmul.bf16.gmra.mxu0 %v453
    %v1321 = vpop.f32.mrf.mxu0
    %v1322 = vadd.f32 %v1273, %v1321
    %v1323 = vpop.f32.mrf.mxu0
    %v1324 = vadd.f32 %v1275, %v1323
    %1325 = vmatmul.bf16.gmra.mxu0 %v457
    %v1326 = vpop.f32.mrf.mxu0
    %v1327 = vadd.f32 %v1278, %v1326
    %v1328 = vpop.f32.mrf.mxu0
    %v1329 = vadd.f32 %v1280, %v1328
    %1330 = vmatmul.bf16.gmra.mxu0 %v461
    %v1331 = vpop.f32.mrf.mxu0
    %v1332 = vadd.f32 %v1283, %v1331
    %v1333 = vpop.f32.mrf.mxu0
    %v1334 = vadd.f32 %v1285, %v1333
    %1335 = vmatmul.bf16.gmra.mxu0 %v465
    %v1336 = vpop.f32.mrf.mxu0
    %v1337 = vadd.f32 %v1288, %v1336
    %v1338 = vpop.f32.mrf.mxu0
    %v1339 = vadd.f32 %v1290, %v1338
    %1340 = vmatmul.bf16.gmra.mxu0 %v469
    %v1341 = vpop.f32.mrf.mxu0
    %v1342 = vadd.f32 %v1293, %v1341
    %v1343 = vpop.f32.mrf.mxu0
    %v1344 = vadd.f32 %v1295, %v1343
    %1345 = vmatmul.bf16.gmra.mxu0 %v473
    %v1346 = vpop.f32.mrf.mxu0
    %v1347 = vadd.f32 %v1298, %v1346
    %v1348 = vpop.f32.mrf.mxu0
    %v1349 = vadd.f32 %v1300, %v1348
    %1350 = vmatmul.bf16.gmra.mxu0 %v477
    %v1351 = vpop.f32.mrf.mxu0
    %v1352 = vadd.f32 %v1303, %v1351
    %v1353 = vpop.f32.mrf.mxu0
    %v1354 = vadd.f32 %v1305, %v1353
    %1355 = vdwg.mxu0
    %1356 = vmatpush.bf16.msra.mxu0 %v1094
    %1357 = vmatpush.bf16.msra.mxu0 %v1090
    %1358 = vmatpush.bf16.msra.mxu0 %v1086
    %1359 = vmatpush.bf16.msra.mxu0 %v1082
    %1360 = vmatpush.bf16.msra.mxu0 %v1078
    %1361 = vmatpush.bf16.msra.mxu0 %v1074
    %1362 = vmatpush.bf16.msra.mxu0 %v1070
    %1363 = vmatpush.bf16.msra.mxu0 %v1066
    %1364 = vmatmul.bf16.gmra.mxu0 %v450
    %v1365 = vpop.f32.mrf.mxu0
    %v1366 = vadd.f32 %v1317, %v1365
    %v1367 = vpop.f32.mrf.mxu0
    %v1368 = vadd.f32 %v1319, %v1367
    %1369 = vmatmul.bf16.gmra.mxu0 %v454
    %v1370 = vpop.f32.mrf.mxu0
    %v1371 = vadd.f32 %v1322, %v1370
    %v1372 = vpop.f32.mrf.mxu0
    %v1373 = vadd.f32 %v1324, %v1372
    %1374 = vmatmul.bf16.gmra.mxu0 %v458
    %v1375 = vpop.f32.mrf.mxu0
    %v1376 = vadd.f32 %v1327, %v1375
    %v1377 = vpop.f32.mrf.mxu0
    %v1378 = vadd.f32 %v1329, %v1377
    %1379 = vmatmul.bf16.gmra.mxu0 %v462
    %v1380 = vpop.f32.mrf.mxu0
    %v1381 = vadd.f32 %v1332, %v1380
    %v1382 = vpop.f32.mrf.mxu0
    %v1383 = vadd.f32 %v1334, %v1382
    %1384 = vmatmul.bf16.gmra.mxu0 %v466
    %v1385 = vpop.f32.mrf.mxu0
    %v1386 = vadd.f32 %v1337, %v1385
    %v1387 = vpop.f32.mrf.mxu0
    %v1388 = vadd.f32 %v1339, %v1387
    %1389 = vmatmul.bf16.gmra.mxu0 %v470
    %v1390 = vpop.f32.mrf.mxu0
    %v1391 = vadd.f32 %v1342, %v1390
    %v1392 = vpop.f32.mrf.mxu0
    %v1393 = vadd.f32 %v1344, %v1392
    %1394 = vmatmul.bf16.gmra.mxu0 %v474
    %v1395 = vpop.f32.mrf.mxu0
    %v1396 = vadd.f32 %v1347, %v1395
    %v1397 = vpop.f32.mrf.mxu0
    %v1398 = vadd.f32 %v1349, %v1397
    %1399 = vmatmul.bf16.gmra.mxu0 %v478
    %v1400 = vpop.f32.mrf.mxu0
    %v1401 = vadd.f32 %v1352, %v1400
    %v1402 = vpop.f32.mrf.mxu0
    %v1403 = vadd.f32 %v1354, %v1402
    %1404 = vdwg.mxu0
    %1405 = vmatpush.bf16.msra.mxu0 %v1126
    %1406 = vmatpush.bf16.msra.mxu0 %v1122
    %1407 = vmatpush.bf16.msra.mxu0 %v1118
    %1408 = vmatpush.bf16.msra.mxu0 %v1114
    %1409 = vmatpush.bf16.msra.mxu0 %v1110
    %1410 = vmatpush.bf16.msra.mxu0 %v1106
    %1411 = vmatpush.bf16.msra.mxu0 %v1102
    %1412 = vmatpush.bf16.msra.mxu0 %v1098
    %1413 = vmatmul.bf16.gmra.mxu0 %v451
    %v1414 = vpop.f32.mrf.mxu0
    %v1415 = vadd.f32 %v1366, %v1414
    %v1416 = vpop.f32.mrf.mxu0
    %v1417 = vadd.f32 %v1368, %v1416
    %1418 = vmatmul.bf16.gmra.mxu0 %v455
    %v1419 = vpop.f32.mrf.mxu0
    %v1420 = vadd.f32 %v1371, %v1419
    %v1421 = vpop.f32.mrf.mxu0
    %v1422 = vadd.f32 %v1373, %v1421
    %1423 = vmatmul.bf16.gmra.mxu0 %v459
    %v1424 = vpop.f32.mrf.mxu0
    %v1425 = vadd.f32 %v1376, %v1424
    %v1426 = vpop.f32.mrf.mxu0
    %v1427 = vadd.f32 %v1378, %v1426
    %1428 = vmatmul.bf16.gmra.mxu0 %v463
    %v1429 = vpop.f32.mrf.mxu0
    %v1430 = vadd.f32 %v1381, %v1429
    %v1431 = vpop.f32.mrf.mxu0
    %v1432 = vadd.f32 %v1383, %v1431
    %1433 = vmatmul.bf16.gmra.mxu0 %v467
    %v1434 = vpop.f32.mrf.mxu0
    %v1435 = vadd.f32 %v1386, %v1434
    %v1436 = vpop.f32.mrf.mxu0
    %v1437 = vadd.f32 %v1388, %v1436
    %1438 = vmatmul.bf16.gmra.mxu0 %v471
    %v1439 = vpop.f32.mrf.mxu0
    %v1440 = vadd.f32 %v1391, %v1439
    %v1441 = vpop.f32.mrf.mxu0
    %v1442 = vadd.f32 %v1393, %v1441
    %1443 = vmatmul.bf16.gmra.mxu0 %v475
    %v1444 = vpop.f32.mrf.mxu0
    %v1445 = vadd.f32 %v1396, %v1444
    %v1446 = vpop.f32.mrf.mxu0
    %v1447 = vadd.f32 %v1398, %v1446
    %1448 = vmatmul.bf16.gmra.mxu0 %v479
    %v1449 = vpop.f32.mrf.mxu0
    %v1450 = vadd.f32 %v1401, %v1449
    %v1451 = vpop.f32.mrf.mxu0
    %v1452 = vadd.f32 %v1403, %v1451
    %1453 = vdwg.mxu0
    %1454 = vmatpush.bf16.msra.mxu0 %v1031
    %1455 = vmatpush.bf16.msra.mxu0 %v1027
    %1456 = vmatpush.bf16.msra.mxu0 %v1023
    %1457 = vmatpush.bf16.msra.mxu0 %v1019
    %1458 = vmatpush.bf16.msra.mxu0 %v1015
    %1459 = vmatpush.bf16.msra.mxu0 %v1011
    %1460 = vmatpush.bf16.msra.mxu0 %v1007
    %1461 = vmatpush.bf16.msra.mxu0 %v1003
    %1462 = vmatmul.bf16.gmra.mxu0 %v448
    %v1463 = vpop.f32.mrf.mxu0
    %v1464 = vadd.f32 %v611, %v1463
    %v1465 = vpop.f32.mrf.mxu0
    %v1466 = vadd.f32 %v611, %v1465
    %1467 = vmatmul.bf16.gmra.mxu0 %v452
    %v1468 = vpop.f32.mrf.mxu0
    %v1469 = vadd.f32 %v611, %v1468
    %v1470 = vpop.f32.mrf.mxu0
    %v1471 = vadd.f32 %v611, %v1470
    %1472 = vmatmul.bf16.gmra.mxu0 %v456
    %v1473 = vpop.f32.mrf.mxu0
    %v1474 = vadd.f32 %v611, %v1473
    %v1475 = vpop.f32.mrf.mxu0
    %v1476 = vadd.f32 %v611, %v1475
    %1477 = vmatmul.bf16.gmra.mxu0 %v460
    %v1478 = vpop.f32.mrf.mxu0
    %v1479 = vadd.f32 %v611, %v1478
    %v1480 = vpop.f32.mrf.mxu0
    %v1481 = vadd.f32 %v611, %v1480
    %1482 = vmatmul.bf16.gmra.mxu0 %v464
    %v1483 = vpop.f32.mrf.mxu0
    %v1484 = vadd.f32 %v611, %v1483
    %v1485 = vpop.f32.mrf.mxu0
    %v1486 = vadd.f32 %v611, %v1485
    %1487 = vmatmul.bf16.gmra.mxu0 %v468
    %v1488 = vpop.f32.mrf.mxu0
    %v1489 = vadd.f32 %v611, %v1488
    %v1490 = vpop.f32.mrf.mxu0
    %v1491 = vadd.f32 %v611, %v1490
    %1492 = vmatmul.bf16.gmra.mxu0 %v472
    %v1493 = vpop.f32.mrf.mxu0
    %v1494 = vadd.f32 %v611, %v1493
    %v1495 = vpop.f32.mrf.mxu0
    %v1496 = vadd.f32 %v611, %v1495
    %1497 = vmatmul.bf16.gmra.mxu0 %v476
    %v1498 = vpop.f32.mrf.mxu0
    %v1499 = vadd.f32 %v611, %v1498
    %v1500 = vpop.f32.mrf.mxu0
    %v1501 = vadd.f32 %v611, %v1500
    %1502 = vdwg.mxu0
    %1503 = vmatpush.bf16.msra.mxu0 %v1063
    %1504 = vmatpush.bf16.msra.mxu0 %v1059
    %1505 = vmatpush.bf16.msra.mxu0 %v1055
    %1506 = vmatpush.bf16.msra.mxu0 %v1051
    %1507 = vmatpush.bf16.msra.mxu0 %v1047
    %1508 = vmatpush.bf16.msra.mxu0 %v1043
    %1509 = vmatpush.bf16.msra.mxu0 %v1039
    %1510 = vmatpush.bf16.msra.mxu0 %v1035
    %1511 = vmatmul.bf16.gmra.mxu0 %v449
    %v1512 = vpop.f32.mrf.mxu0
    %v1513 = vadd.f32 %v1464, %v1512
    %v1514 = vpop.f32.mrf.mxu0
    %v1515 = vadd.f32 %v1466, %v1514
    %1516 = vmatmul.bf16.gmra.mxu0 %v453
    %v1517 = vpop.f32.mrf.mxu0
    %v1518 = vadd.f32 %v1469, %v1517
    %v1519 = vpop.f32.mrf.mxu0
    %v1520 = vadd.f32 %v1471, %v1519
    %1521 = vmatmul.bf16.gmra.mxu0 %v457
    %v1522 = vpop.f32.mrf.mxu0
    %v1523 = vadd.f32 %v1474, %v1522
    %v1524 = vpop.f32.mrf.mxu0
    %v1525 = vadd.f32 %v1476, %v1524
    %1526 = vmatmul.bf16.gmra.mxu0 %v461
    %v1527 = vpop.f32.mrf.mxu0
    %v1528 = vadd.f32 %v1479, %v1527
    %v1529 = vpop.f32.mrf.mxu0
    %v1530 = vadd.f32 %v1481, %v1529
    %1531 = vmatmul.bf16.gmra.mxu0 %v465
    %v1532 = vpop.f32.mrf.mxu0
    %v1533 = vadd.f32 %v1484, %v1532
    %v1534 = vpop.f32.mrf.mxu0
    %v1535 = vadd.f32 %v1486, %v1534
    %1536 = vmatmul.bf16.gmra.mxu0 %v469
    %v1537 = vpop.f32.mrf.mxu0
    %v1538 = vadd.f32 %v1489, %v1537
    %v1539 = vpop.f32.mrf.mxu0
    %v1540 = vadd.f32 %v1491, %v1539
    %1541 = vmatmul.bf16.gmra.mxu0 %v473
    %v1542 = vpop.f32.mrf.mxu0
    %v1543 = vadd.f32 %v1494, %v1542
    %v1544 = vpop.f32.mrf.mxu0
    %v1545 = vadd.f32 %v1496, %v1544
    %1546 = vmatmul.bf16.gmra.mxu0 %v477
    %v1547 = vpop.f32.mrf.mxu0
    %v1548 = vadd.f32 %v1499, %v1547
    %v1549 = vpop.f32.mrf.mxu0
    %v1550 = vadd.f32 %v1501, %v1549
    %1551 = vdwg.mxu0
    %1552 = vmatpush.bf16.msra.mxu0 %v1095
    %1553 = vmatpush.bf16.msra.mxu0 %v1091
    %1554 = vmatpush.bf16.msra.mxu0 %v1087
    %1555 = vmatpush.bf16.msra.mxu0 %v1083
    %1556 = vmatpush.bf16.msra.mxu0 %v1079
    %1557 = vmatpush.bf16.msra.mxu0 %v1075
    %1558 = vmatpush.bf16.msra.mxu0 %v1071
    %1559 = vmatpush.bf16.msra.mxu0 %v1067
    %1560 = vmatmul.bf16.gmra.mxu0 %v450
    %v1561 = vpop.f32.mrf.mxu0
    %v1562 = vadd.f32 %v1513, %v1561
    %v1563 = vpop.f32.mrf.mxu0
    %v1564 = vadd.f32 %v1515, %v1563
    %1565 = vmatmul.bf16.gmra.mxu0 %v454
    %v1566 = vpop.f32.mrf.mxu0
    %v1567 = vadd.f32 %v1518, %v1566
    %v1568 = vpop.f32.mrf.mxu0
    %v1569 = vadd.f32 %v1520, %v1568
    %1570 = vmatmul.bf16.gmra.mxu0 %v458
    %v1571 = vpop.f32.mrf.mxu0
    %v1572 = vadd.f32 %v1523, %v1571
    %v1573 = vpop.f32.mrf.mxu0
    %v1574 = vadd.f32 %v1525, %v1573
    %1575 = vmatmul.bf16.gmra.mxu0 %v462
    %v1576 = vpop.f32.mrf.mxu0
    %v1577 = vadd.f32 %v1528, %v1576
    %v1578 = vpop.f32.mrf.mxu0
    %v1579 = vadd.f32 %v1530, %v1578
    %1580 = vmatmul.bf16.gmra.mxu0 %v466
    %v1581 = vpop.f32.mrf.mxu0
    %v1582 = vadd.f32 %v1533, %v1581
    %v1583 = vpop.f32.mrf.mxu0
    %v1584 = vadd.f32 %v1535, %v1583
    %1585 = vmatmul.bf16.gmra.mxu0 %v470
    %v1586 = vpop.f32.mrf.mxu0
    %v1587 = vadd.f32 %v1538, %v1586
    %v1588 = vpop.f32.mrf.mxu0
    %v1589 = vadd.f32 %v1540, %v1588
    %1590 = vmatmul.bf16.gmra.mxu0 %v474
    %v1591 = vpop.f32.mrf.mxu0
    %v1592 = vadd.f32 %v1543, %v1591
    %v1593 = vpop.f32.mrf.mxu0
    %v1594 = vadd.f32 %v1545, %v1593
    %1595 = vmatmul.bf16.gmra.mxu0 %v478
    %v1596 = vpop.f32.mrf.mxu0
    %v1597 = vadd.f32 %v1548, %v1596
    %v1598 = vpop.f32.mrf.mxu0
    %v1599 = vadd.f32 %v1550, %v1598
    %1600 = vdwg.mxu0
    %1601 = vmatpush.bf16.msra.mxu0 %v1127
    %1602 = vmatpush.bf16.msra.mxu0 %v1123
    %1603 = vmatpush.bf16.msra.mxu0 %v1119
    %1604 = vmatpush.bf16.msra.mxu0 %v1115
    %1605 = vmatpush.bf16.msra.mxu0 %v1111
    %1606 = vmatpush.bf16.msra.mxu0 %v1107
    %1607 = vmatpush.bf16.msra.mxu0 %v1103
    %1608 = vmatpush.bf16.msra.mxu0 %v1099
    %1609 = vmatmul.bf16.gmra.mxu0 %v451
    %v1610 = vpop.f32.mrf.mxu0
    %v1611 = vadd.f32 %v1562, %v1610
    %v1612 = vpop.f32.mrf.mxu0
    %v1613 = vadd.f32 %v1564, %v1612
    %1614 = vmatmul.bf16.gmra.mxu0 %v455
    %v1615 = vpop.f32.mrf.mxu0
    %v1616 = vadd.f32 %v1567, %v1615
    %v1617 = vpop.f32.mrf.mxu0
    %v1618 = vadd.f32 %v1569, %v1617
    %1619 = vmatmul.bf16.gmra.mxu0 %v459
    %v1620 = vpop.f32.mrf.mxu0
    %v1621 = vadd.f32 %v1572, %v1620
    %v1622 = vpop.f32.mrf.mxu0
    %v1623 = vadd.f32 %v1574, %v1622
    %1624 = vmatmul.bf16.gmra.mxu0 %v463
    %v1625 = vpop.f32.mrf.mxu0
    %v1626 = vadd.f32 %v1577, %v1625
    %v1627 = vpop.f32.mrf.mxu0
    %v1628 = vadd.f32 %v1579, %v1627
    %1629 = vmatmul.bf16.gmra.mxu0 %v467
    %v1630 = vpop.f32.mrf.mxu0
    %v1631 = vadd.f32 %v1582, %v1630
    %v1632 = vpop.f32.mrf.mxu0
    %v1633 = vadd.f32 %v1584, %v1632
    %1634 = vmatmul.bf16.gmra.mxu0 %v471
    %v1635 = vpop.f32.mrf.mxu0
    %v1636 = vadd.f32 %v1587, %v1635
    %v1637 = vpop.f32.mrf.mxu0
    %v1638 = vadd.f32 %v1589, %v1637
    %1639 = vmatmul.bf16.gmra.mxu0 %v475
    %v1640 = vpop.f32.mrf.mxu0
    %v1641 = vadd.f32 %v1592, %v1640
    %v1642 = vpop.f32.mrf.mxu0
    %v1643 = vadd.f32 %v1594, %v1642
    %1644 = vmatmul.bf16.gmra.mxu0 %v479
    %v1645 = vpop.f32.mrf.mxu0
    %v1646 = vadd.f32 %v1597, %v1645
    %v1647 = vpop.f32.mrf.mxu0
    %v1648 = vadd.f32 %v1599, %v1647
    %1649 = vdwg.mxu0
    %1650 = vmatpush.bf16.msra.mxu0 %v1032
    %1651 = vmatpush.bf16.msra.mxu0 %v1028
    %1652 = vmatpush.bf16.msra.mxu0 %v1024
    %1653 = vmatpush.bf16.msra.mxu0 %v1020
    %1654 = vmatpush.bf16.msra.mxu0 %v1016
    %1655 = vmatpush.bf16.msra.mxu0 %v1012
    %1656 = vmatpush.bf16.msra.mxu0 %v1008
    %1657 = vmatpush.bf16.msra.mxu0 %v1004
    %1658 = vmatmul.bf16.gmra.mxu0 %v448
    %v1659 = vpop.f32.mrf.mxu0
    %v1660 = vadd.f32 %v612, %v1659
    %v1661 = vpop.f32.mrf.mxu0
    %v1662 = vadd.f32 %v612, %v1661
    %1663 = vmatmul.bf16.gmra.mxu0 %v452
    %v1664 = vpop.f32.mrf.mxu0
    %v1665 = vadd.f32 %v612, %v1664
    %v1666 = vpop.f32.mrf.mxu0
    %v1667 = vadd.f32 %v612, %v1666
    %1668 = vmatmul.bf16.gmra.mxu0 %v456
    %v1669 = vpop.f32.mrf.mxu0
    %v1670 = vadd.f32 %v612, %v1669
    %v1671 = vpop.f32.mrf.mxu0
    %v1672 = vadd.f32 %v612, %v1671
    %1673 = vmatmul.bf16.gmra.mxu0 %v460
    %v1674 = vpop.f32.mrf.mxu0
    %v1675 = vadd.f32 %v612, %v1674
    %v1676 = vpop.f32.mrf.mxu0
    %v1677 = vadd.f32 %v612, %v1676
    %1678 = vmatmul.bf16.gmra.mxu0 %v464
    %v1679 = vpop.f32.mrf.mxu0
    %v1680 = vadd.f32 %v612, %v1679
    %v1681 = vpop.f32.mrf.mxu0
    %v1682 = vadd.f32 %v612, %v1681
    %1683 = vmatmul.bf16.gmra.mxu0 %v468
    %v1684 = vpop.f32.mrf.mxu0
    %v1685 = vadd.f32 %v612, %v1684
    %v1686 = vpop.f32.mrf.mxu0
    %v1687 = vadd.f32 %v612, %v1686
    %1688 = vmatmul.bf16.gmra.mxu0 %v472
    %v1689 = vpop.f32.mrf.mxu0
    %v1690 = vadd.f32 %v612, %v1689
    %v1691 = vpop.f32.mrf.mxu0
    %v1692 = vadd.f32 %v612, %v1691
    %1693 = vmatmul.bf16.gmra.mxu0 %v476
    %v1694 = vpop.f32.mrf.mxu0
    %v1695 = vadd.f32 %v612, %v1694
    %v1696 = vpop.f32.mrf.mxu0
    %v1697 = vadd.f32 %v612, %v1696
    %1698 = vdwg.mxu0
    %1699 = vmatpush.bf16.msra.mxu0 %v1064
    %1700 = vmatpush.bf16.msra.mxu0 %v1060
    %1701 = vmatpush.bf16.msra.mxu0 %v1056
    %1702 = vmatpush.bf16.msra.mxu0 %v1052
    %1703 = vmatpush.bf16.msra.mxu0 %v1048
    %1704 = vmatpush.bf16.msra.mxu0 %v1044
    %1705 = vmatpush.bf16.msra.mxu0 %v1040
    %1706 = vmatpush.bf16.msra.mxu0 %v1036
    %1707 = vmatmul.bf16.gmra.mxu0 %v449
    %v1708 = vpop.f32.mrf.mxu0
    %v1709 = vadd.f32 %v1660, %v1708
    %v1710 = vpop.f32.mrf.mxu0
    %v1711 = vadd.f32 %v1662, %v1710
    %1712 = vmatmul.bf16.gmra.mxu0 %v453
    %v1713 = vpop.f32.mrf.mxu0
    %v1714 = vadd.f32 %v1665, %v1713
    %v1715 = vpop.f32.mrf.mxu0
    %v1716 = vadd.f32 %v1667, %v1715
    %1717 = vmatmul.bf16.gmra.mxu0 %v457
    %v1718 = vpop.f32.mrf.mxu0
    %v1719 = vadd.f32 %v1670, %v1718
    %v1720 = vpop.f32.mrf.mxu0
    %v1721 = vadd.f32 %v1672, %v1720
    %1722 = vmatmul.bf16.gmra.mxu0 %v461
    %v1723 = vpop.f32.mrf.mxu0
    %v1724 = vadd.f32 %v1675, %v1723
    %v1725 = vpop.f32.mrf.mxu0
    %v1726 = vadd.f32 %v1677, %v1725
    %1727 = vmatmul.bf16.gmra.mxu0 %v465
    %v1728 = vpop.f32.mrf.mxu0
    %v1729 = vadd.f32 %v1680, %v1728
    %v1730 = vpop.f32.mrf.mxu0
    %v1731 = vadd.f32 %v1682, %v1730
    %1732 = vmatmul.bf16.gmra.mxu0 %v469
    %v1733 = vpop.f32.mrf.mxu0
    %v1734 = vadd.f32 %v1685, %v1733
    %v1735 = vpop.f32.mrf.mxu0
    %v1736 = vadd.f32 %v1687, %v1735
    %1737 = vmatmul.bf16.gmra.mxu0 %v473
    %v1738 = vpop.f32.mrf.mxu0
    %v1739 = vadd.f32 %v1690, %v1738
    %v1740 = vpop.f32.mrf.mxu0
    %v1741 = vadd.f32 %v1692, %v1740
    %1742 = vmatmul.bf16.gmra.mxu0 %v477
    %v1743 = vpop.f32.mrf.mxu0
    %v1744 = vadd.f32 %v1695, %v1743
    %v1745 = vpop.f32.mrf.mxu0
    %v1746 = vadd.f32 %v1697, %v1745
    %1747 = vdwg.mxu0
    %1748 = vmatpush.bf16.msra.mxu0 %v1096
    %1749 = vmatpush.bf16.msra.mxu0 %v1092
    %1750 = vmatpush.bf16.msra.mxu0 %v1088
    %1751 = vmatpush.bf16.msra.mxu0 %v1084
    %1752 = vmatpush.bf16.msra.mxu0 %v1080
    %1753 = vmatpush.bf16.msra.mxu0 %v1076
    %1754 = vmatpush.bf16.msra.mxu0 %v1072
    %1755 = vmatpush.bf16.msra.mxu0 %v1068
    %1756 = vmatmul.bf16.gmra.mxu0 %v450
    %v1757 = vpop.f32.mrf.mxu0
    %v1758 = vadd.f32 %v1709, %v1757
    %v1759 = vpop.f32.mrf.mxu0
    %v1760 = vadd.f32 %v1711, %v1759
    %1761 = vmatmul.bf16.gmra.mxu0 %v454
    %v1762 = vpop.f32.mrf.mxu0
    %v1763 = vadd.f32 %v1714, %v1762
    %v1764 = vpop.f32.mrf.mxu0
    %v1765 = vadd.f32 %v1716, %v1764
    %1766 = vmatmul.bf16.gmra.mxu0 %v458
    %v1767 = vpop.f32.mrf.mxu0
    %v1768 = vadd.f32 %v1719, %v1767
    %v1769 = vpop.f32.mrf.mxu0
    %v1770 = vadd.f32 %v1721, %v1769
    %1771 = vmatmul.bf16.gmra.mxu0 %v462
    %v1772 = vpop.f32.mrf.mxu0
    %v1773 = vadd.f32 %v1724, %v1772
    %v1774 = vpop.f32.mrf.mxu0
    %v1775 = vadd.f32 %v1726, %v1774
    %1776 = vmatmul.bf16.gmra.mxu0 %v466
    %v1777 = vpop.f32.mrf.mxu0
    %v1778 = vadd.f32 %v1729, %v1777
    %v1779 = vpop.f32.mrf.mxu0
    %v1780 = vadd.f32 %v1731, %v1779
    %1781 = vmatmul.bf16.gmra.mxu0 %v470
    %v1782 = vpop.f32.mrf.mxu0
    %v1783 = vadd.f32 %v1734, %v1782
    %v1784 = vpop.f32.mrf.mxu0
    %v1785 = vadd.f32 %v1736, %v1784
    %1786 = vmatmul.bf16.gmra.mxu0 %v474
    %v1787 = vpop.f32.mrf.mxu0
    %v1788 = vadd.f32 %v1739, %v1787
    %v1789 = vpop.f32.mrf.mxu0
    %v1790 = vadd.f32 %v1741, %v1789
    %1791 = vmatmul.bf16.gmra.mxu0 %v478
    %v1792 = vpop.f32.mrf.mxu0
    %v1793 = vadd.f32 %v1744, %v1792
    %v1794 = vpop.f32.mrf.mxu0
    %v1795 = vadd.f32 %v1746, %v1794
    %1796 = vdwg.mxu0
    %1797 = vmatpush.bf16.msra.mxu0 %v1128
    %1798 = vmatpush.bf16.msra.mxu0 %v1124
    %1799 = vmatpush.bf16.msra.mxu0 %v1120
    %1800 = vmatpush.bf16.msra.mxu0 %v1116
    %1801 = vmatpush.bf16.msra.mxu0 %v1112
    %1802 = vmatpush.bf16.msra.mxu0 %v1108
    %1803 = vmatpush.bf16.msra.mxu0 %v1104
    %1804 = vmatpush.bf16.msra.mxu0 %v1100
    %1805 = vmatmul.bf16.gmra.mxu0 %v451
    %v1806 = vpop.f32.mrf.mxu0
    %v1807 = vadd.f32 %v1758, %v1806
    %v1808 = vpop.f32.mrf.mxu0
    %v1809 = vadd.f32 %v1760, %v1808
    %1810 = vmatmul.bf16.gmra.mxu0 %v455
    %v1811 = vpop.f32.mrf.mxu0
    %v1812 = vadd.f32 %v1763, %v1811
    %v1813 = vpop.f32.mrf.mxu0
    %v1814 = vadd.f32 %v1765, %v1813
    %1815 = vmatmul.bf16.gmra.mxu0 %v459
    %v1816 = vpop.f32.mrf.mxu0
    %v1817 = vadd.f32 %v1768, %v1816
    %v1818 = vpop.f32.mrf.mxu0
    %v1819 = vadd.f32 %v1770, %v1818
    %1820 = vmatmul.bf16.gmra.mxu0 %v463
    %v1821 = vpop.f32.mrf.mxu0
    %v1822 = vadd.f32 %v1773, %v1821
    %v1823 = vpop.f32.mrf.mxu0
    %v1824 = vadd.f32 %v1775, %v1823
    %1825 = vmatmul.bf16.gmra.mxu0 %v467
    %v1826 = vpop.f32.mrf.mxu0
    %v1827 = vadd.f32 %v1778, %v1826
    %v1828 = vpop.f32.mrf.mxu0
    %v1829 = vadd.f32 %v1780, %v1828
    %1830 = vmatmul.bf16.gmra.mxu0 %v471
    %v1831 = vpop.f32.mrf.mxu0
    %v1832 = vadd.f32 %v1783, %v1831
    %v1833 = vpop.f32.mrf.mxu0
    %v1834 = vadd.f32 %v1785, %v1833
    %1835 = vmatmul.bf16.gmra.mxu0 %v475
    %v1836 = vpop.f32.mrf.mxu0
    %v1837 = vadd.f32 %v1788, %v1836
    %v1838 = vpop.f32.mrf.mxu0
    %v1839 = vadd.f32 %v1790, %v1838
    %1840 = vmatmul.bf16.gmra.mxu0 %v479
    %v1841 = vpop.f32.mrf.mxu0
    %v1842 = vadd.f32 %v1793, %v1841
    %v1843 = vpop.f32.mrf.mxu0
    %v1844 = vadd.f32 %v1795, %v1843
    %1845 = vdwg.mxu0
    %1846 = vmatpush.bf16.msra.mxu0 %v1033
    %1847 = vmatpush.bf16.msra.mxu0 %v1029
    %1848 = vmatpush.bf16.msra.mxu0 %v1025
    %1849 = vmatpush.bf16.msra.mxu0 %v1021
    %1850 = vmatpush.bf16.msra.mxu0 %v1017
    %1851 = vmatpush.bf16.msra.mxu0 %v1013
    %1852 = vmatpush.bf16.msra.mxu0 %v1009
    %1853 = vmatpush.bf16.msra.mxu0 %v1005
    %1854 = vmatmul.bf16.gmra.mxu0 %v448
    %v1855 = vpop.f32.mrf.mxu0
    %v1856 = vadd.f32 %v613, %v1855
    %v1857 = vpop.f32.mrf.mxu0
    %v1858 = vadd.f32 %v613, %v1857
    %1859 = vmatmul.bf16.gmra.mxu0 %v452
    %v1860 = vpop.f32.mrf.mxu0
    %v1861 = vadd.f32 %v613, %v1860
    %v1862 = vpop.f32.mrf.mxu0
    %v1863 = vadd.f32 %v613, %v1862
    %1864 = vmatmul.bf16.gmra.mxu0 %v456
    %v1865 = vpop.f32.mrf.mxu0
    %v1866 = vadd.f32 %v613, %v1865
    %v1867 = vpop.f32.mrf.mxu0
    %v1868 = vadd.f32 %v613, %v1867
    %1869 = vmatmul.bf16.gmra.mxu0 %v460
    %v1870 = vpop.f32.mrf.mxu0
    %v1871 = vadd.f32 %v613, %v1870
    %v1872 = vpop.f32.mrf.mxu0
    %v1873 = vadd.f32 %v613, %v1872
    %1874 = vmatmul.bf16.gmra.mxu0 %v464
    %v1875 = vpop.f32.mrf.mxu0
    %v1876 = vadd.f32 %v613, %v1875
    %v1877 = vpop.f32.mrf.mxu0
    %v1878 = vadd.f32 %v613, %v1877
    %1879 = vmatmul.bf16.gmra.mxu0 %v468
    %v1880 = vpop.f32.mrf.mxu0
    %v1881 = vadd.f32 %v613, %v1880
    %v1882 = vpop.f32.mrf.mxu0
    %v1883 = vadd.f32 %v613, %v1882
    %1884 = vmatmul.bf16.gmra.mxu0 %v472
    %v1885 = vpop.f32.mrf.mxu0
    %v1886 = vadd.f32 %v613, %v1885
    %v1887 = vpop.f32.mrf.mxu0
    %v1888 = vadd.f32 %v613, %v1887
    %1889 = vmatmul.bf16.gmra.mxu0 %v476
    %v1890 = vpop.f32.mrf.mxu0
    %v1891 = vadd.f32 %v613, %v1890
    %v1892 = vpop.f32.mrf.mxu0
    %v1893 = vadd.f32 %v613, %v1892
    %1894 = vdwg.mxu0
    %1895 = vmatpush.bf16.msra.mxu0 %v1065
    %1896 = vmatpush.bf16.msra.mxu0 %v1061
    %1897 = vmatpush.bf16.msra.mxu0 %v1057
    %1898 = vmatpush.bf16.msra.mxu0 %v1053
    %1899 = vmatpush.bf16.msra.mxu0 %v1049
    %1900 = vmatpush.bf16.msra.mxu0 %v1045
    %1901 = vmatpush.bf16.msra.mxu0 %v1041
    %1902 = vmatpush.bf16.msra.mxu0 %v1037
    %1903 = vmatmul.bf16.gmra.mxu0 %v449
    %v1904 = vpop.f32.mrf.mxu0
    %v1905 = vadd.f32 %v1856, %v1904
    %v1906 = vpop.f32.mrf.mxu0
    %v1907 = vadd.f32 %v1858, %v1906
    %1908 = vmatmul.bf16.gmra.mxu0 %v453
    %v1909 = vpop.f32.mrf.mxu0
    %v1910 = vadd.f32 %v1861, %v1909
    %v1911 = vpop.f32.mrf.mxu0
    %v1912 = vadd.f32 %v1863, %v1911
    %1913 = vmatmul.bf16.gmra.mxu0 %v457
    %v1914 = vpop.f32.mrf.mxu0
    %v1915 = vadd.f32 %v1866, %v1914
    %v1916 = vpop.f32.mrf.mxu0
    %v1917 = vadd.f32 %v1868, %v1916
    %1918 = vmatmul.bf16.gmra.mxu0 %v461
    %v1919 = vpop.f32.mrf.mxu0
    %v1920 = vadd.f32 %v1871, %v1919
    %v1921 = vpop.f32.mrf.mxu0
    %v1922 = vadd.f32 %v1873, %v1921
    %1923 = vmatmul.bf16.gmra.mxu0 %v465
    %v1924 = vpop.f32.mrf.mxu0
    %v1925 = vadd.f32 %v1876, %v1924
    %v1926 = vpop.f32.mrf.mxu0
    %v1927 = vadd.f32 %v1878, %v1926
    %1928 = vmatmul.bf16.gmra.mxu0 %v469
    %v1929 = vpop.f32.mrf.mxu0
    %v1930 = vadd.f32 %v1881, %v1929
    %v1931 = vpop.f32.mrf.mxu0
    %v1932 = vadd.f32 %v1883, %v1931
    %1933 = vmatmul.bf16.gmra.mxu0 %v473
    %v1934 = vpop.f32.mrf.mxu0
    %v1935 = vadd.f32 %v1886, %v1934
    %v1936 = vpop.f32.mrf.mxu0
    %v1937 = vadd.f32 %v1888, %v1936
    %1938 = vmatmul.bf16.gmra.mxu0 %v477
    %v1939 = vpop.f32.mrf.mxu0
    %v1940 = vadd.f32 %v1891, %v1939
    %v1941 = vpop.f32.mrf.mxu0
    %v1942 = vadd.f32 %v1893, %v1941
    %1943 = vdwg.mxu0
    %1944 = vmatpush.bf16.msra.mxu0 %v1097
    %1945 = vmatpush.bf16.msra.mxu0 %v1093
    %1946 = vmatpush.bf16.msra.mxu0 %v1089
    %1947 = vmatpush.bf16.msra.mxu0 %v1085
    %1948 = vmatpush.bf16.msra.mxu0 %v1081
    %1949 = vmatpush.bf16.msra.mxu0 %v1077
    %1950 = vmatpush.bf16.msra.mxu0 %v1073
    %1951 = vmatpush.bf16.msra.mxu0 %v1069
    %1952 = vmatmul.bf16.gmra.mxu0 %v450
    %v1953 = vpop.f32.mrf.mxu0
    %v1954 = vadd.f32 %v1905, %v1953
    %v1955 = vpop.f32.mrf.mxu0
    %v1956 = vadd.f32 %v1907, %v1955
    %1957 = vmatmul.bf16.gmra.mxu0 %v454
    %v1958 = vpop.f32.mrf.mxu0
    %v1959 = vadd.f32 %v1910, %v1958
    %v1960 = vpop.f32.mrf.mxu0
    %v1961 = vadd.f32 %v1912, %v1960
    %1962 = vmatmul.bf16.gmra.mxu0 %v458
    %v1963 = vpop.f32.mrf.mxu0
    %v1964 = vadd.f32 %v1915, %v1963
    %v1965 = vpop.f32.mrf.mxu0
    %v1966 = vadd.f32 %v1917, %v1965
    %1967 = vmatmul.bf16.gmra.mxu0 %v462
    %v1968 = vpop.f32.mrf.mxu0
    %v1969 = vadd.f32 %v1920, %v1968
    %v1970 = vpop.f32.mrf.mxu0
    %v1971 = vadd.f32 %v1922, %v1970
    %1972 = vmatmul.bf16.gmra.mxu0 %v466
    %v1973 = vpop.f32.mrf.mxu0
    %v1974 = vadd.f32 %v1925, %v1973
    %v1975 = vpop.f32.mrf.mxu0
    %v1976 = vadd.f32 %v1927, %v1975
    %1977 = vmatmul.bf16.gmra.mxu0 %v470
    %v1978 = vpop.f32.mrf.mxu0
    %v1979 = vadd.f32 %v1930, %v1978
    %v1980 = vpop.f32.mrf.mxu0
    %v1981 = vadd.f32 %v1932, %v1980
    %1982 = vmatmul.bf16.gmra.mxu0 %v474
    %v1983 = vpop.f32.mrf.mxu0
    %v1984 = vadd.f32 %v1935, %v1983
    %v1985 = vpop.f32.mrf.mxu0
    %v1986 = vadd.f32 %v1937, %v1985
    %1987 = vmatmul.bf16.gmra.mxu0 %v478
    %v1988 = vpop.f32.mrf.mxu0
    %v1989 = vadd.f32 %v1940, %v1988
    %v1990 = vpop.f32.mrf.mxu0
    %v1991 = vadd.f32 %v1942, %v1990
    %1992 = vdwg.mxu0
    %1993 = vmatpush.bf16.msra.mxu0 %v1129
    %1994 = vmatpush.bf16.msra.mxu0 %v1125
    %1995 = vmatpush.bf16.msra.mxu0 %v1121
    %1996 = vmatpush.bf16.msra.mxu0 %v1117
    %1997 = vmatpush.bf16.msra.mxu0 %v1113
    %1998 = vmatpush.bf16.msra.mxu0 %v1109
    %1999 = vmatpush.bf16.msra.mxu0 %v1105
    %2000 = vmatpush.bf16.msra.mxu0 %v1101
    %2001 = vmatmul.bf16.gmra.mxu0 %v451
    %v2002 = vpop.f32.mrf.mxu0
    %v2003 = vadd.f32 %v1954, %v2002
    %v2004 = vpop.f32.mrf.mxu0
    %v2005 = vadd.f32 %v1956, %v2004
    %2006 = vmatmul.bf16.gmra.mxu0 %v455
    %v2007 = vpop.f32.mrf.mxu0
    %v2008 = vadd.f32 %v1959, %v2007
    %v2009 = vpop.f32.mrf.mxu0
    %v2010 = vadd.f32 %v1961, %v2009
    %2011 = vmatmul.bf16.gmra.mxu0 %v459
    %v2012 = vpop.f32.mrf.mxu0
    %v2013 = vadd.f32 %v1964, %v2012
    %v2014 = vpop.f32.mrf.mxu0
    %v2015 = vadd.f32 %v1966, %v2014
    %2016 = vmatmul.bf16.gmra.mxu0 %v463
    %v2017 = vpop.f32.mrf.mxu0
    %v2018 = vadd.f32 %v1969, %v2017
    %v2019 = vpop.f32.mrf.mxu0
    %v2020 = vadd.f32 %v1971, %v2019
    %2021 = vmatmul.bf16.gmra.mxu0 %v467
    %v2022 = vpop.f32.mrf.mxu0
    %v2023 = vadd.f32 %v1974, %v2022
    %v2024 = vpop.f32.mrf.mxu0
    %v2025 = vadd.f32 %v1976, %v2024
    %2026 = vmatmul.bf16.gmra.mxu0 %v471
    %v2027 = vpop.f32.mrf.mxu0
    %v2028 = vadd.f32 %v1979, %v2027
    %v2029 = vpop.f32.mrf.mxu0
    %v2030 = vadd.f32 %v1981, %v2029
    %2031 = vmatmul.bf16.gmra.mxu0 %v475
    %v2032 = vpop.f32.mrf.mxu0
    %v2033 = vadd.f32 %v1984, %v2032
    %v2034 = vpop.f32.mrf.mxu0
    %v2035 = vadd.f32 %v1986, %v2034
    %2036 = vmatmul.bf16.gmra.mxu0 %v479
    %v2037 = vpop.f32.mrf.mxu0
    %v2038 = vadd.f32 %v1989, %v2037
    %v2039 = vpop.f32.mrf.mxu0
    %v2040 = vadd.f32 %v1991, %v2039
    %2041 = vdwg.mxu0
    %v2042 = vmax.f32 %v1415, 0.0
    %v2043 = vmax.f32 %v1611, 0.0
    %v2044 = vmax.f32 %v1807, 0.0
    %v2045 = vmax.f32 %v2003, 0.0
    %v2046 = vmax.f32 %v1417, 0.0
    %v2047 = vmax.f32 %v1613, 0.0
    %v2048 = vmax.f32 %v1809, 0.0
    %v2049 = vmax.f32 %v2005, 0.0
    %v2050 = vmax.f32 %v1420, 0.0
    %v2051 = vmax.f32 %v1616, 0.0
    %v2052 = vmax.f32 %v1812, 0.0
    %v2053 = vmax.f32 %v2008, 0.0
    %v2054 = vmax.f32 %v1422, 0.0
    %v2055 = vmax.f32 %v1618, 0.0
    %v2056 = vmax.f32 %v1814, 0.0
    %v2057 = vmax.f32 %v2010, 0.0
    %v2058 = vmax.f32 %v1425, 0.0
    %v2059 = vmax.f32 %v1621, 0.0
    %v2060 = vmax.f32 %v1817, 0.0
    %v2061 = vmax.f32 %v2013, 0.0
    %v2062 = vmax.f32 %v1427, 0.0
    %v2063 = vmax.f32 %v1623, 0.0
    %v2064 = vmax.f32 %v1819, 0.0
    %v2065 = vmax.f32 %v2015, 0.0
    %v2066 = vmax.f32 %v1430, 0.0
    %v2067 = vmax.f32 %v1626, 0.0
    %v2068 = vmax.f32 %v1822, 0.0
    %v2069 = vmax.f32 %v2018, 0.0
    %v2070 = vmax.f32 %v1432, 0.0
    %v2071 = vmax.f32 %v1628, 0.0
    %v2072 = vmax.f32 %v1824, 0.0
    %v2073 = vmax.f32 %v2020, 0.0
    %v2074 = vmax.f32 %v1435, 0.0
    %v2075 = vmax.f32 %v1631, 0.0
    %v2076 = vmax.f32 %v1827, 0.0
    %v2077 = vmax.f32 %v2023, 0.0
    %v2078 = vmax.f32 %v1437, 0.0
    %v2079 = vmax.f32 %v1633, 0.0
    %v2080 = vmax.f32 %v1829, 0.0
    %v2081 = vmax.f32 %v2025, 0.0
    %v2082 = vmax.f32 %v1440, 0.0
    %v2083 = vmax.f32 %v1636, 0.0
    %v2084 = vmax.f32 %v1832, 0.0
    %v2085 = vmax.f32 %v2028, 0.0
    %v2086 = vmax.f32 %v1442, 0.0
    %v2087 = vmax.f32 %v1638, 0.0
    %v2088 = vmax.f32 %v1834, 0.0
    %v2089 = vmax.f32 %v2030, 0.0
    %v2090 = vmax.f32 %v1445, 0.0
    %v2091 = vmax.f32 %v1641, 0.0
    %v2092 = vmax.f32 %v1837, 0.0
    %v2093 = vmax.f32 %v2033, 0.0
    %v2094 = vmax.f32 %v1447, 0.0
    %v2095 = vmax.f32 %v1643, 0.0
    %v2096 = vmax.f32 %v1839, 0.0
    %v2097 = vmax.f32 %v2035, 0.0
    %v2098 = vmax.f32 %v1450, 0.0
    %v2099 = vmax.f32 %v1646, 0.0
    %v2100 = vmax.f32 %v1842, 0.0
    %v2101 = vmax.f32 %v2038, 0.0
    %v2102 = vmax.f32 %v1452, 0.0
    %v2103 = vmax.f32 %v1648, 0.0
    %v2104 = vmax.f32 %v1844, 0.0
    %v2105 = vmax.f32 %v2040, 0.0
    %v2106 = vpack.c.bf16 %v2046, %v2042
    %v2107 = vpack.c.bf16 %v2047, %v2043
    %v2108 = vpack.c.bf16 %v2048, %v2044
    %v2109 = vpack.c.bf16 %v2049, %v2045
    %v2110 = vpack.c.bf16 %v2054, %v2050
    %v2111 = vpack.c.bf16 %v2055, %v2051
    %v2112 = vpack.c.bf16 %v2056, %v2052
    %v2113 = vpack.c.bf16 %v2057, %v2053
    %v2114 = vpack.c.bf16 %v2062, %v2058
    %v2115 = vpack.c.bf16 %v2063, %v2059
    %v2116 = vpack.c.bf16 %v2064, %v2060
    %v2117 = vpack.c.bf16 %v2065, %v2061
    %v2118 = vpack.c.bf16 %v2070, %v2066
    %v2119 = vpack.c.bf16 %v2071, %v2067
    %v2120 = vpack.c.bf16 %v2072, %v2068
    %v2121 = vpack.c.bf16 %v2073, %v2069
    %v2122 = vpack.c.bf16 %v2078, %v2074
    %v2123 = vpack.c.bf16 %v2079, %v2075
    %v2124 = vpack.c.bf16 %v2080, %v2076
    %v2125 = vpack.c.bf16 %v2081, %v2077
    %v2126 = vpack.c.bf16 %v2086, %v2082
    %v2127 = vpack.c.bf16 %v2087, %v2083
    %v2128 = vpack.c.bf16 %v2088, %v2084
    %v2129 = vpack.c.bf16 %v2089, %v2085
    %v2130 = vpack.c.bf16 %v2094, %v2090
    %v2131 = vpack.c.bf16 %v2095, %v2091
    %v2132 = vpack.c.bf16 %v2096, %v2092
    %v2133 = vpack.c.bf16 %v2097, %v2093
    %v2134 = vpack.c.bf16 %v2102, %v2098
    %v2135 = vpack.c.bf16 %v2103, %v2099
    %v2136 = vpack.c.bf16 %v2104, %v2100
    %v2137 = vpack.c.bf16 %v2105, %v2101
    %v2138 = vld [vmem:[#allocation5] sm:$0xff]
    %v2139 = vld [vmem:[#allocation5 + $0x8] sm:$0xff]
    %v2140 = vld [vmem:[#allocation5 + $0x10] sm:$0xff]
    %v2141 = vld [vmem:[#allocation5 + $0x18] sm:$0xff]
    %v2142 = vld [vmem:[#allocation5 + $0x20] sm:$0xff]
    %v2143 = vld [vmem:[#allocation5 + $0x28] sm:$0xff]
    %v2144 = vld [vmem:[#allocation5 + $0x30] sm:$0xff]
    %v2145 = vld [vmem:[#allocation5 + $0x38] sm:$0xff]
    %v2146 = vld [vmem:[#allocation5 + $0x40] sm:$0xff]
    %v2147 = vld [vmem:[#allocation5 + $0x48] sm:$0xff]
    %v2148 = vld [vmem:[#allocation5 + $0x50] sm:$0xff]
    %v2149 = vld [vmem:[#allocation5 + $0x58] sm:$0xff]
    %v2150 = vld [vmem:[#allocation5 + $0x60] sm:$0xff]
    %v2151 = vld [vmem:[#allocation5 + $0x68] sm:$0xff]
    %v2152 = vld [vmem:[#allocation5 + $0x70] sm:$0xff]
    %v2153 = vld [vmem:[#allocation5 + $0x78] sm:$0xff]
    %v2154 = vld [vmem:[#allocation5 + $0x80] sm:$0xff]
    %v2155 = vld [vmem:[#allocation5 + $0x88] sm:$0xff]
    %v2156 = vld [vmem:[#allocation5 + $0x90] sm:$0xff]
    %v2157 = vld [vmem:[#allocation5 + $0x98] sm:$0xff]
    %v2158 = vld [vmem:[#allocation5 + $0xa0] sm:$0xff]
    %v2159 = vld [vmem:[#allocation5 + $0xa8] sm:$0xff]
    %v2160 = vld [vmem:[#allocation5 + $0xb0] sm:$0xff]
    %v2161 = vld [vmem:[#allocation5 + $0xb8] sm:$0xff]
    %v2162 = vld [vmem:[#allocation5 + $0xc0] sm:$0xff]
    %v2163 = vld [vmem:[#allocation5 + $0xc8] sm:$0xff]
    %v2164 = vld [vmem:[#allocation5 + $0xd0] sm:$0xff]
    %v2165 = vld [vmem:[#allocation5 + $0xd8] sm:$0xff]
    %v2166 = vld [vmem:[#allocation5 + $0xe0] sm:$0xff]
    %v2167 = vld [vmem:[#allocation5 + $0xe8] sm:$0xff]
    %v2168 = vld [vmem:[#allocation5 + $0xf0] sm:$0xff]
    %v2169 = vld [vmem:[#allocation5 + $0xf8] sm:$0xff]
    %v2170 = vld [vmem:[#allocation5 + $0x100] sm:$0xff]
    %v2171 = vld [vmem:[#allocation5 + $0x108] sm:$0xff]
    %v2172 = vld [vmem:[#allocation5 + $0x110] sm:$0xff]
    %v2173 = vld [vmem:[#allocation5 + $0x118] sm:$0xff]
    %v2174 = vld [vmem:[#allocation5 + $0x120] sm:$0xff]
    %v2175 = vld [vmem:[#allocation5 + $0x128] sm:$0xff]
    %v2176 = vld [vmem:[#allocation5 + $0x130] sm:$0xff]
    %v2177 = vld [vmem:[#allocation5 + $0x138] sm:$0xff]
    %v2178 = vld [vmem:[#allocation5 + $0x140] sm:$0xff]
    %v2179 = vld [vmem:[#allocation5 + $0x148] sm:$0xff]
    %v2180 = vld [vmem:[#allocation5 + $0x150] sm:$0xff]
    %v2181 = vld [vmem:[#allocation5 + $0x158] sm:$0xff]
    %v2182 = vld [vmem:[#allocation5 + $0x160] sm:$0xff]
    %v2183 = vld [vmem:[#allocation5 + $0x168] sm:$0xff]
    %v2184 = vld [vmem:[#allocation5 + $0x170] sm:$0xff]
    %v2185 = vld [vmem:[#allocation5 + $0x178] sm:$0xff]
    %v2186 = vld [vmem:[#allocation5 + $0x180] sm:$0xff]
    %v2187 = vld [vmem:[#allocation5 + $0x188] sm:$0xff]
    %v2188 = vld [vmem:[#allocation5 + $0x190] sm:$0xff]
    %v2189 = vld [vmem:[#allocation5 + $0x198] sm:$0xff]
    %v2190 = vld [vmem:[#allocation5 + $0x1a0] sm:$0xff]
    %v2191 = vld [vmem:[#allocation5 + $0x1a8] sm:$0xff]
    %v2192 = vld [vmem:[#allocation5 + $0x1b0] sm:$0xff]
    %v2193 = vld [vmem:[#allocation5 + $0x1b8] sm:$0xff]
    %v2194 = vld [vmem:[#allocation5 + $0x1c0] sm:$0xff]
    %v2195 = vld [vmem:[#allocation5 + $0x1c8] sm:$0xff]
    %v2196 = vld [vmem:[#allocation5 + $0x1d0] sm:$0xff]
    %v2197 = vld [vmem:[#allocation5 + $0x1d8] sm:$0xff]
    %v2198 = vld [vmem:[#allocation5 + $0x1e0] sm:$0xff]
    %v2199 = vld [vmem:[#allocation5 + $0x1e8] sm:$0xff]
    %v2200 = vld [vmem:[#allocation5 + $0x1f0] sm:$0xff]
    %v2201 = vld [vmem:[#allocation5 + $0x1f8] sm:$0xff]
    %v2202 = vld [vmem:[#allocation5 + $0x200] sm:$0xff]
    %v2203 = vld [vmem:[#allocation5 + $0x208] sm:$0xff]
    %v2204 = vld [vmem:[#allocation5 + $0x210] sm:$0xff]
    %v2205 = vld [vmem:[#allocation5 + $0x218] sm:$0xff]
    %v2206 = vld [vmem:[#allocation5 + $0x220] sm:$0xff]
    %v2207 = vld [vmem:[#allocation5 + $0x228] sm:$0xff]
    %v2208 = vld [vmem:[#allocation5 + $0x230] sm:$0xff]
    %v2209 = vld [vmem:[#allocation5 + $0x238] sm:$0xff]
    %v2210 = vld [vmem:[#allocation5 + $0x240] sm:$0xff]
    %v2211 = vld [vmem:[#allocation5 + $0x248] sm:$0xff]
    %v2212 = vld [vmem:[#allocation5 + $0x250] sm:$0xff]
    %v2213 = vld [vmem:[#allocation5 + $0x258] sm:$0xff]
    %v2214 = vld [vmem:[#allocation5 + $0x260] sm:$0xff]
    %v2215 = vld [vmem:[#allocation5 + $0x268] sm:$0xff]
    %v2216 = vld [vmem:[#allocation5 + $0x270] sm:$0xff]
    %v2217 = vld [vmem:[#allocation5 + $0x278] sm:$0xff]
    %v2218 = vld [vmem:[#allocation5 + $0x280] sm:$0xff]
    %v2219 = vld [vmem:[#allocation5 + $0x288] sm:$0xff]
    %v2220 = vld [vmem:[#allocation5 + $0x290] sm:$0xff]
    %v2221 = vld [vmem:[#allocation5 + $0x298] sm:$0xff]
    %v2222 = vld [vmem:[#allocation5 + $0x2a0] sm:$0xff]
    %v2223 = vld [vmem:[#allocation5 + $0x2a8] sm:$0xff]
    %v2224 = vld [vmem:[#allocation5 + $0x2b0] sm:$0xff]
    %v2225 = vld [vmem:[#allocation5 + $0x2b8] sm:$0xff]
    %v2226 = vld [vmem:[#allocation5 + $0x2c0] sm:$0xff]
    %v2227 = vld [vmem:[#allocation5 + $0x2c8] sm:$0xff]
    %v2228 = vld [vmem:[#allocation5 + $0x2d0] sm:$0xff]
    %v2229 = vld [vmem:[#allocation5 + $0x2d8] sm:$0xff]
    %v2230 = vld [vmem:[#allocation5 + $0x2e0] sm:$0xff]
    %v2231 = vld [vmem:[#allocation5 + $0x2e8] sm:$0xff]
    %v2232 = vld [vmem:[#allocation5 + $0x2f0] sm:$0xff]
    %v2233 = vld [vmem:[#allocation5 + $0x2f8] sm:$0xff]
    %v2234 = vld [vmem:[#allocation5 + $0x300] sm:$0xff]
    %v2235 = vld [vmem:[#allocation5 + $0x308] sm:$0xff]
    %v2236 = vld [vmem:[#allocation5 + $0x310] sm:$0xff]
    %v2237 = vld [vmem:[#allocation5 + $0x318] sm:$0xff]
    %v2238 = vld [vmem:[#allocation5 + $0x320] sm:$0xff]
    %v2239 = vld [vmem:[#allocation5 + $0x328] sm:$0xff]
    %v2240 = vld [vmem:[#allocation5 + $0x330] sm:$0xff]
    %v2241 = vld [vmem:[#allocation5 + $0x338] sm:$0xff]
    %v2242 = vld [vmem:[#allocation5 + $0x340] sm:$0xff]
    %v2243 = vld [vmem:[#allocation5 + $0x348] sm:$0xff]
    %v2244 = vld [vmem:[#allocation5 + $0x350] sm:$0xff]
    %v2245 = vld [vmem:[#allocation5 + $0x358] sm:$0xff]
    %v2246 = vld [vmem:[#allocation5 + $0x360] sm:$0xff]
    %v2247 = vld [vmem:[#allocation5 + $0x368] sm:$0xff]
    %v2248 = vld [vmem:[#allocation5 + $0x370] sm:$0xff]
    %v2249 = vld [vmem:[#allocation5 + $0x378] sm:$0xff]
    %v2250 = vld [vmem:[#allocation5 + $0x380] sm:$0xff]
    %v2251 = vld [vmem:[#allocation5 + $0x388] sm:$0xff]
    %v2252 = vld [vmem:[#allocation5 + $0x390] sm:$0xff]
    %v2253 = vld [vmem:[#allocation5 + $0x398] sm:$0xff]
    %v2254 = vld [vmem:[#allocation5 + $0x3a0] sm:$0xff]
    %v2255 = vld [vmem:[#allocation5 + $0x3a8] sm:$0xff]
    %v2256 = vld [vmem:[#allocation5 + $0x3b0] sm:$0xff]
    %v2257 = vld [vmem:[#allocation5 + $0x3b8] sm:$0xff]
    %v2258 = vld [vmem:[#allocation5 + $0x3c0] sm:$0xff]
    %v2259 = vld [vmem:[#allocation5 + $0x3c8] sm:$0xff]
    %v2260 = vld [vmem:[#allocation5 + $0x3d0] sm:$0xff]
    %v2261 = vld [vmem:[#allocation5 + $0x3d8] sm:$0xff]
    %v2262 = vld [vmem:[#allocation5 + $0x3e0] sm:$0xff]
    %v2263 = vld [vmem:[#allocation5 + $0x3e8] sm:$0xff]
    %v2264 = vld [vmem:[#allocation5 + $0x3f0] sm:$0xff]
    %v2265 = vld [vmem:[#allocation5 + $0x3f8] sm:$0xff]
    %v2266 = vld [vmem:[%s6] sm:$0xf]
    %v2268 = vperm.slane %v2266, 0
    %v2269 = vperm.slane %v2266, 1
    %v2270 = vperm.slane %v2266, 2
    %v2271 = vperm.slane %v2266, 3
    %v2404 = vunpack.c.l.b16 %v2138
    %v2405 = vunpack.c.h.b16 %v2138
    %v2406 = vunpack.c.l.b16 %v2139
    %v2407 = vunpack.c.h.b16 %v2139
    %v2408 = vunpack.c.l.b16 %v2140
    %v2409 = vunpack.c.h.b16 %v2140
    %v2410 = vunpack.c.l.b16 %v2141
    %v2411 = vunpack.c.h.b16 %v2141
    %v2412 = vunpack.c.l.b16 %v2142
    %v2413 = vunpack.c.h.b16 %v2142
    %v2414 = vunpack.c.l.b16 %v2143
    %v2415 = vunpack.c.h.b16 %v2143
    %v2416 = vunpack.c.l.b16 %v2144
    %v2417 = vunpack.c.h.b16 %v2144
    %v2418 = vunpack.c.l.b16 %v2145
    %v2419 = vunpack.c.h.b16 %v2145
    %v2420 = vunpack.c.l.b16 %v2146
    %v2421 = vunpack.c.h.b16 %v2146
    %v2422 = vunpack.c.l.b16 %v2147
    %v2423 = vunpack.c.h.b16 %v2147
    %v2424 = vunpack.c.l.b16 %v2148
    %v2425 = vunpack.c.h.b16 %v2148
    %v2426 = vunpack.c.l.b16 %v2149
    %v2427 = vunpack.c.h.b16 %v2149
    %v2428 = vunpack.c.l.b16 %v2150
    %v2429 = vunpack.c.h.b16 %v2150
    %v2430 = vunpack.c.l.b16 %v2151
    %v2431 = vunpack.c.h.b16 %v2151
    %v2432 = vunpack.c.l.b16 %v2152
    %v2433 = vunpack.c.h.b16 %v2152
    %v2434 = vunpack.c.l.b16 %v2153
    %v2435 = vunpack.c.h.b16 %v2153
    %v2436 = vunpack.c.l.b16 %v2154
    %v2437 = vunpack.c.h.b16 %v2154
    %v2438 = vunpack.c.l.b16 %v2155
    %v2439 = vunpack.c.h.b16 %v2155
    %v2440 = vunpack.c.l.b16 %v2156
    %v2441 = vunpack.c.h.b16 %v2156
    %v2442 = vunpack.c.l.b16 %v2157
    %v2443 = vunpack.c.h.b16 %v2157
    %v2444 = vunpack.c.l.b16 %v2158
    %v2445 = vunpack.c.h.b16 %v2158
    %v2446 = vunpack.c.l.b16 %v2159
    %v2447 = vunpack.c.h.b16 %v2159
    %v2448 = vunpack.c.l.b16 %v2160
    %v2449 = vunpack.c.h.b16 %v2160
    %v2450 = vunpack.c.l.b16 %v2161
    %v2451 = vunpack.c.h.b16 %v2161
    %v2452 = vunpack.c.l.b16 %v2162
    %v2453 = vunpack.c.h.b16 %v2162
    %v2454 = vunpack.c.l.b16 %v2163
    %v2455 = vunpack.c.h.b16 %v2163
    %v2456 = vunpack.c.l.b16 %v2164
    %v2457 = vunpack.c.h.b16 %v2164
    %v2458 = vunpack.c.l.b16 %v2165
    %v2459 = vunpack.c.h.b16 %v2165
    %v2460 = vunpack.c.l.b16 %v2166
    %v2461 = vunpack.c.h.b16 %v2166
    %v2462 = vunpack.c.l.b16 %v2167
    %v2463 = vunpack.c.h.b16 %v2167
    %v2464 = vunpack.c.l.b16 %v2168
    %v2465 = vunpack.c.h.b16 %v2168
    %v2466 = vunpack.c.l.b16 %v2169
    %v2467 = vunpack.c.h.b16 %v2169
    %v2468 = vunpack.c.l.b16 %v2170
    %v2469 = vunpack.c.h.b16 %v2170
    %v2470 = vunpack.c.l.b16 %v2171
    %v2471 = vunpack.c.h.b16 %v2171
    %v2472 = vunpack.c.l.b16 %v2172
    %v2473 = vunpack.c.h.b16 %v2172
    %v2474 = vunpack.c.l.b16 %v2173
    %v2475 = vunpack.c.h.b16 %v2173
    %v2476 = vunpack.c.l.b16 %v2174
    %v2477 = vunpack.c.h.b16 %v2174
    %v2478 = vunpack.c.l.b16 %v2175
    %v2479 = vunpack.c.h.b16 %v2175
    %v2480 = vunpack.c.l.b16 %v2176
    %v2481 = vunpack.c.h.b16 %v2176
    %v2482 = vunpack.c.l.b16 %v2177
    %v2483 = vunpack.c.h.b16 %v2177
    %v2484 = vunpack.c.l.b16 %v2178
    %v2485 = vunpack.c.h.b16 %v2178
    %v2486 = vunpack.c.l.b16 %v2179
    %v2487 = vunpack.c.h.b16 %v2179
    %v2488 = vunpack.c.l.b16 %v2180
    %v2489 = vunpack.c.h.b16 %v2180
    %v2490 = vunpack.c.l.b16 %v2181
    %v2491 = vunpack.c.h.b16 %v2181
    %v2492 = vunpack.c.l.b16 %v2182
    %v2493 = vunpack.c.h.b16 %v2182
    %v2494 = vunpack.c.l.b16 %v2183
    %v2495 = vunpack.c.h.b16 %v2183
    %v2496 = vunpack.c.l.b16 %v2184
    %v2497 = vunpack.c.h.b16 %v2184
    %v2498 = vunpack.c.l.b16 %v2185
    %v2499 = vunpack.c.h.b16 %v2185
    %v2500 = vunpack.c.l.b16 %v2186
    %v2501 = vunpack.c.h.b16 %v2186
    %v2502 = vunpack.c.l.b16 %v2187
    %v2503 = vunpack.c.h.b16 %v2187
    %v2504 = vunpack.c.l.b16 %v2188
    %v2505 = vunpack.c.h.b16 %v2188
    %v2506 = vunpack.c.l.b16 %v2189
    %v2507 = vunpack.c.h.b16 %v2189
    %v2508 = vunpack.c.l.b16 %v2190
    %v2509 = vunpack.c.h.b16 %v2190
    %v2510 = vunpack.c.l.b16 %v2191
    %v2511 = vunpack.c.h.b16 %v2191
    %v2512 = vunpack.c.l.b16 %v2192
    %v2513 = vunpack.c.h.b16 %v2192
    %v2514 = vunpack.c.l.b16 %v2193
    %v2515 = vunpack.c.h.b16 %v2193
    %v2516 = vunpack.c.l.b16 %v2194
    %v2517 = vunpack.c.h.b16 %v2194
    %v2518 = vunpack.c.l.b16 %v2195
    %v2519 = vunpack.c.h.b16 %v2195
    %v2520 = vunpack.c.l.b16 %v2196
    %v2521 = vunpack.c.h.b16 %v2196
    %v2522 = vunpack.c.l.b16 %v2197
    %v2523 = vunpack.c.h.b16 %v2197
    %v2524 = vunpack.c.l.b16 %v2198
    %v2525 = vunpack.c.h.b16 %v2198
    %v2526 = vunpack.c.l.b16 %v2199
    %v2527 = vunpack.c.h.b16 %v2199
    %v2528 = vunpack.c.l.b16 %v2200
    %v2529 = vunpack.c.h.b16 %v2200
    %v2530 = vunpack.c.l.b16 %v2201
    %v2531 = vunpack.c.h.b16 %v2201
    %v2532 = vunpack.c.l.b16 %v2202
    %v2533 = vunpack.c.h.b16 %v2202
    %v2534 = vunpack.c.l.b16 %v2203
    %v2535 = vunpack.c.h.b16 %v2203
    %v2536 = vunpack.c.l.b16 %v2204
    %v2537 = vunpack.c.h.b16 %v2204
    %v2538 = vunpack.c.l.b16 %v2205
    %v2539 = vunpack.c.h.b16 %v2205
    %v2540 = vunpack.c.l.b16 %v2206
    %v2541 = vunpack.c.h.b16 %v2206
    %v2542 = vunpack.c.l.b16 %v2207
    %v2543 = vunpack.c.h.b16 %v2207
    %v2544 = vunpack.c.l.b16 %v2208
    %v2545 = vunpack.c.h.b16 %v2208
    %v2546 = vunpack.c.l.b16 %v2209
    %v2547 = vunpack.c.h.b16 %v2209
    %v2548 = vunpack.c.l.b16 %v2210
    %v2549 = vunpack.c.h.b16 %v2210
    %v2550 = vunpack.c.l.b16 %v2211
    %v2551 = vunpack.c.h.b16 %v2211
    %v2552 = vunpack.c.l.b16 %v2212
    %v2553 = vunpack.c.h.b16 %v2212
    %v2554 = vunpack.c.l.b16 %v2213
    %v2555 = vunpack.c.h.b16 %v2213
    %v2556 = vunpack.c.l.b16 %v2214
    %v2557 = vunpack.c.h.b16 %v2214
    %v2558 = vunpack.c.l.b16 %v2215
    %v2559 = vunpack.c.h.b16 %v2215
    %v2560 = vunpack.c.l.b16 %v2216
    %v2561 = vunpack.c.h.b16 %v2216
    %v2562 = vunpack.c.l.b16 %v2217
    %v2563 = vunpack.c.h.b16 %v2217
    %v2564 = vunpack.c.l.b16 %v2218
    %v2565 = vunpack.c.h.b16 %v2218
    %v2566 = vunpack.c.l.b16 %v2219
    %v2567 = vunpack.c.h.b16 %v2219
    %v2568 = vunpack.c.l.b16 %v2220
    %v2569 = vunpack.c.h.b16 %v2220
    %v2570 = vunpack.c.l.b16 %v2221
    %v2571 = vunpack.c.h.b16 %v2221
    %v2572 = vunpack.c.l.b16 %v2222
    %v2573 = vunpack.c.h.b16 %v2222
    %v2574 = vunpack.c.l.b16 %v2223
    %v2575 = vunpack.c.h.b16 %v2223
    %v2576 = vunpack.c.l.b16 %v2224
    %v2577 = vunpack.c.h.b16 %v2224
    %v2578 = vunpack.c.l.b16 %v2225
    %v2579 = vunpack.c.h.b16 %v2225
    %v2580 = vunpack.c.l.b16 %v2226
    %v2581 = vunpack.c.h.b16 %v2226
    %v2582 = vunpack.c.l.b16 %v2227
    %v2583 = vunpack.c.h.b16 %v2227
    %v2584 = vunpack.c.l.b16 %v2228
    %v2585 = vunpack.c.h.b16 %v2228
    %v2586 = vunpack.c.l.b16 %v2229
    %v2587 = vunpack.c.h.b16 %v2229
    %v2588 = vunpack.c.l.b16 %v2230
    %v2589 = vunpack.c.h.b16 %v2230
    %v2590 = vunpack.c.l.b16 %v2231
    %v2591 = vunpack.c.h.b16 %v2231
    %v2592 = vunpack.c.l.b16 %v2232
    %v2593 = vunpack.c.h.b16 %v2232
    %v2594 = vunpack.c.l.b16 %v2233
    %v2595 = vunpack.c.h.b16 %v2233
    %v2596 = vunpack.c.l.b16 %v2234
    %v2597 = vunpack.c.h.b16 %v2234
    %v2598 = vunpack.c.l.b16 %v2235
    %v2599 = vunpack.c.h.b16 %v2235
    %v2600 = vunpack.c.l.b16 %v2236
    %v2601 = vunpack.c.h.b16 %v2236
    %v2602 = vunpack.c.l.b16 %v2237
    %v2603 = vunpack.c.h.b16 %v2237
    %v2604 = vunpack.c.l.b16 %v2238
    %v2605 = vunpack.c.h.b16 %v2238
    %v2606 = vunpack.c.l.b16 %v2239
    %v2607 = vunpack.c.h.b16 %v2239
    %v2608 = vunpack.c.l.b16 %v2240
    %v2609 = vunpack.c.h.b16 %v2240
    %v2610 = vunpack.c.l.b16 %v2241
    %v2611 = vunpack.c.h.b16 %v2241
    %v2612 = vunpack.c.l.b16 %v2242
    %v2613 = vunpack.c.h.b16 %v2242
    %v2614 = vunpack.c.l.b16 %v2243
    %v2615 = vunpack.c.h.b16 %v2243
    %v2616 = vunpack.c.l.b16 %v2244
    %v2617 = vunpack.c.h.b16 %v2244
    %v2618 = vunpack.c.l.b16 %v2245
    %v2619 = vunpack.c.h.b16 %v2245
    %v2620 = vunpack.c.l.b16 %v2246
    %v2621 = vunpack.c.h.b16 %v2246
    %v2622 = vunpack.c.l.b16 %v2247
    %v2623 = vunpack.c.h.b16 %v2247
    %v2624 = vunpack.c.l.b16 %v2248
    %v2625 = vunpack.c.h.b16 %v2248
    %v2626 = vunpack.c.l.b16 %v2249
    %v2627 = vunpack.c.h.b16 %v2249
    %v2628 = vunpack.c.l.b16 %v2250
    %v2629 = vunpack.c.h.b16 %v2250
    %v2630 = vunpack.c.l.b16 %v2251
    %v2631 = vunpack.c.h.b16 %v2251
    %v2632 = vunpack.c.l.b16 %v2252
    %v2633 = vunpack.c.h.b16 %v2252
    %v2634 = vunpack.c.l.b16 %v2253
    %v2635 = vunpack.c.h.b16 %v2253
    %v2636 = vunpack.c.l.b16 %v2254
    %v2637 = vunpack.c.h.b16 %v2254
    %v2638 = vunpack.c.l.b16 %v2255
    %v2639 = vunpack.c.h.b16 %v2255
    %v2640 = vunpack.c.l.b16 %v2256
    %v2641 = vunpack.c.h.b16 %v2256
    %v2642 = vunpack.c.l.b16 %v2257
    %v2643 = vunpack.c.h.b16 %v2257
    %v2644 = vunpack.c.l.b16 %v2258
    %v2645 = vunpack.c.h.b16 %v2258
    %v2646 = vunpack.c.l.b16 %v2259
    %v2647 = vunpack.c.h.b16 %v2259
    %v2648 = vunpack.c.l.b16 %v2260
    %v2649 = vunpack.c.h.b16 %v2260
    %v2650 = vunpack.c.l.b16 %v2261
    %v2651 = vunpack.c.h.b16 %v2261
    %v2652 = vunpack.c.l.b16 %v2262
    %v2653 = vunpack.c.h.b16 %v2262
    %v2654 = vunpack.c.l.b16 %v2263
    %v2655 = vunpack.c.h.b16 %v2263
    %v2656 = vunpack.c.l.b16 %v2264
    %v2657 = vunpack.c.h.b16 %v2264
    %v2658 = vunpack.c.l.b16 %v2265
    %v2659 = vunpack.c.h.b16 %v2265
    %v2660 = vpack.c.b16 %v2408, %v2404
    %v2661 = vpack.c.b16 %v2409, %v2405
    %v2662 = vpack.c.b16 %v2410, %v2406
    %v2663 = vpack.c.b16 %v2411, %v2407
    %v2664 = vpack.c.b16 %v2416, %v2412
    %v2665 = vpack.c.b16 %v2417, %v2413
    %v2666 = vpack.c.b16 %v2418, %v2414
    %v2667 = vpack.c.b16 %v2419, %v2415
    %v2668 = vpack.c.b16 %v2424, %v2420
    %v2669 = vpack.c.b16 %v2425, %v2421
    %v2670 = vpack.c.b16 %v2426, %v2422
    %v2671 = vpack.c.b16 %v2427, %v2423
    %v2672 = vpack.c.b16 %v2432, %v2428
    %v2673 = vpack.c.b16 %v2433, %v2429
    %v2674 = vpack.c.b16 %v2434, %v2430
    %v2675 = vpack.c.b16 %v2435, %v2431
    %v2676 = vpack.c.b16 %v2440, %v2436
    %v2677 = vpack.c.b16 %v2441, %v2437
    %v2678 = vpack.c.b16 %v2442, %v2438
    %v2679 = vpack.c.b16 %v2443, %v2439
    %v2680 = vpack.c.b16 %v2448, %v2444
    %v2681 = vpack.c.b16 %v2449, %v2445
    %v2682 = vpack.c.b16 %v2450, %v2446
    %v2683 = vpack.c.b16 %v2451, %v2447
    %v2684 = vpack.c.b16 %v2456, %v2452
    %v2685 = vpack.c.b16 %v2457, %v2453
    %v2686 = vpack.c.b16 %v2458, %v2454
    %v2687 = vpack.c.b16 %v2459, %v2455
    %v2688 = vpack.c.b16 %v2464, %v2460
    %v2689 = vpack.c.b16 %v2465, %v2461
    %v2690 = vpack.c.b16 %v2466, %v2462
    %v2691 = vpack.c.b16 %v2467, %v2463
    %v2692 = vpack.c.b16 %v2472, %v2468
    %v2693 = vpack.c.b16 %v2473, %v2469
    %v2694 = vpack.c.b16 %v2474, %v2470
    %v2695 = vpack.c.b16 %v2475, %v2471
    %v2696 = vpack.c.b16 %v2480, %v2476
    %v2697 = vpack.c.b16 %v2481, %v2477
    %v2698 = vpack.c.b16 %v2482, %v2478
    %v2699 = vpack.c.b16 %v2483, %v2479
    %v2700 = vpack.c.b16 %v2488, %v2484
    %v2701 = vpack.c.b16 %v2489, %v2485
    %v2702 = vpack.c.b16 %v2490, %v2486
    %v2703 = vpack.c.b16 %v2491, %v2487
    %v2704 = vpack.c.b16 %v2496, %v2492
    %v2705 = vpack.c.b16 %v2497, %v2493
    %v2706 = vpack.c.b16 %v2498, %v2494
    %v2707 = vpack.c.b16 %v2499, %v2495
    %v2708 = vpack.c.b16 %v2504, %v2500
    %v2709 = vpack.c.b16 %v2505, %v2501
    %v2710 = vpack.c.b16 %v2506, %v2502
    %v2711 = vpack.c.b16 %v2507, %v2503
    %v2712 = vpack.c.b16 %v2512, %v2508
    %v2713 = vpack.c.b16 %v2513, %v2509
    %v2714 = vpack.c.b16 %v2514, %v2510
    %v2715 = vpack.c.b16 %v2515, %v2511
    %v2716 = vpack.c.b16 %v2520, %v2516
    %v2717 = vpack.c.b16 %v2521, %v2517
    %v2718 = vpack.c.b16 %v2522, %v2518
    %v2719 = vpack.c.b16 %v2523, %v2519
    %v2720 = vpack.c.b16 %v2528, %v2524
    %v2721 = vpack.c.b16 %v2529, %v2525
    %v2722 = vpack.c.b16 %v2530, %v2526
    %v2723 = vpack.c.b16 %v2531, %v2527
    %v2724 = vpack.c.b16 %v2536, %v2532
    %v2725 = vpack.c.b16 %v2537, %v2533
    %v2726 = vpack.c.b16 %v2538, %v2534
    %v2727 = vpack.c.b16 %v2539, %v2535
    %v2728 = vpack.c.b16 %v2544, %v2540
    %v2729 = vpack.c.b16 %v2545, %v2541
    %v2730 = vpack.c.b16 %v2546, %v2542
    %v2731 = vpack.c.b16 %v2547, %v2543
    %v2732 = vpack.c.b16 %v2552, %v2548
    %v2733 = vpack.c.b16 %v2553, %v2549
    %v2734 = vpack.c.b16 %v2554, %v2550
    %v2735 = vpack.c.b16 %v2555, %v2551
    %v2736 = vpack.c.b16 %v2560, %v2556
    %v2737 = vpack.c.b16 %v2561, %v2557
    %v2738 = vpack.c.b16 %v2562, %v2558
    %v2739 = vpack.c.b16 %v2563, %v2559
    %v2740 = vpack.c.b16 %v2568, %v2564
    %v2741 = vpack.c.b16 %v2569, %v2565
    %v2742 = vpack.c.b16 %v2570, %v2566
    %v2743 = vpack.c.b16 %v2571, %v2567
    %v2744 = vpack.c.b16 %v2576, %v2572
    %v2745 = vpack.c.b16 %v2577, %v2573
    %v2746 = vpack.c.b16 %v2578, %v2574
    %v2747 = vpack.c.b16 %v2579, %v2575
    %v2748 = vpack.c.b16 %v2584, %v2580
    %v2749 = vpack.c.b16 %v2585, %v2581
    %v2750 = vpack.c.b16 %v2586, %v2582
    %v2751 = vpack.c.b16 %v2587, %v2583
    %v2752 = vpack.c.b16 %v2592, %v2588
    %v2753 = vpack.c.b16 %v2593, %v2589
    %v2754 = vpack.c.b16 %v2594, %v2590
    %v2755 = vpack.c.b16 %v2595, %v2591
    %v2756 = vpack.c.b16 %v2600, %v2596
    %v2757 = vpack.c.b16 %v2601, %v2597
    %v2758 = vpack.c.b16 %v2602, %v2598
    %v2759 = vpack.c.b16 %v2603, %v2599
    %v2760 = vpack.c.b16 %v2608, %v2604
    %v2761 = vpack.c.b16 %v2609, %v2605
    %v2762 = vpack.c.b16 %v2610, %v2606
    %v2763 = vpack.c.b16 %v2611, %v2607
    %v2764 = vpack.c.b16 %v2616, %v2612
    %v2765 = vpack.c.b16 %v2617, %v2613
    %v2766 = vpack.c.b16 %v2618, %v2614
    %v2767 = vpack.c.b16 %v2619, %v2615
    %v2768 = vpack.c.b16 %v2624, %v2620
    %v2769 = vpack.c.b16 %v2625, %v2621
    %v2770 = vpack.c.b16 %v2626, %v2622
    %v2771 = vpack.c.b16 %v2627, %v2623
    %v2772 = vpack.c.b16 %v2632, %v2628
    %v2773 = vpack.c.b16 %v2633, %v2629
    %v2774 = vpack.c.b16 %v2634, %v2630
    %v2775 = vpack.c.b16 %v2635, %v2631
    %v2776 = vpack.c.b16 %v2640, %v2636
    %v2777 = vpack.c.b16 %v2641, %v2637
    %v2778 = vpack.c.b16 %v2642, %v2638
    %v2779 = vpack.c.b16 %v2643, %v2639
    %v2780 = vpack.c.b16 %v2648, %v2644
    %v2781 = vpack.c.b16 %v2649, %v2645
    %v2782 = vpack.c.b16 %v2650, %v2646
    %v2783 = vpack.c.b16 %v2651, %v2647
    %v2784 = vpack.c.b16 %v2656, %v2652
    %v2785 = vpack.c.b16 %v2657, %v2653
    %v2786 = vpack.c.b16 %v2658, %v2654
    %v2787 = vpack.c.b16 %v2659, %v2655
    %2916 = vmatpush.bf16.msra.mxu0 %v2688
    %2917 = vmatpush.bf16.msra.mxu0 %v2684
    %2918 = vmatpush.bf16.msra.mxu0 %v2680
    %2919 = vmatpush.bf16.msra.mxu0 %v2676
    %2920 = vmatpush.bf16.msra.mxu0 %v2672
    %2921 = vmatpush.bf16.msra.mxu0 %v2668
    %2922 = vmatpush.bf16.msra.mxu0 %v2664
    %2923 = vmatpush.bf16.msra.mxu0 %v2660
    %2924 = vmatmul.bf16.gmra.mxu0 %v2106
    %v2925 = vpop.f32.mrf.mxu0
    %v2926 = vadd.f32 %v2268, %v2925
    %v2927 = vpop.f32.mrf.mxu0
    %v2928 = vadd.f32 %v2268, %v2927
    %2929 = vmatmul.bf16.gmra.mxu0 %v2110
    %v2930 = vpop.f32.mrf.mxu0
    %v2931 = vadd.f32 %v2268, %v2930
    %v2932 = vpop.f32.mrf.mxu0
    %v2933 = vadd.f32 %v2268, %v2932
    %2934 = vmatmul.bf16.gmra.mxu0 %v2114
    %v2935 = vpop.f32.mrf.mxu0
    %v2936 = vadd.f32 %v2268, %v2935
    %v2937 = vpop.f32.mrf.mxu0
    %v2938 = vadd.f32 %v2268, %v2937
    %2939 = vmatmul.bf16.gmra.mxu0 %v2118
    %v2940 = vpop.f32.mrf.mxu0
    %v2941 = vadd.f32 %v2268, %v2940
    %v2942 = vpop.f32.mrf.mxu0
    %v2943 = vadd.f32 %v2268, %v2942
    %2944 = vmatmul.bf16.gmra.mxu0 %v2122
    %v2945 = vpop.f32.mrf.mxu0
    %v2946 = vadd.f32 %v2268, %v2945
    %v2947 = vpop.f32.mrf.mxu0
    %v2948 = vadd.f32 %v2268, %v2947
    %2949 = vmatmul.bf16.gmra.mxu0 %v2126
    %v2950 = vpop.f32.mrf.mxu0
    %v2951 = vadd.f32 %v2268, %v2950
    %v2952 = vpop.f32.mrf.mxu0
    %v2953 = vadd.f32 %v2268, %v2952
    %2954 = vmatmul.bf16.gmra.mxu0 %v2130
    %v2955 = vpop.f32.mrf.mxu0
    %v2956 = vadd.f32 %v2268, %v2955
    %v2957 = vpop.f32.mrf.mxu0
    %v2958 = vadd.f32 %v2268, %v2957
    %2959 = vmatmul.bf16.gmra.mxu0 %v2134
    %v2960 = vpop.f32.mrf.mxu0
    %v2961 = vadd.f32 %v2268, %v2960
    %v2962 = vpop.f32.mrf.mxu0
    %v2963 = vadd.f32 %v2268, %v2962
    %2964 = vdwg.mxu0
    %2965 = vmatpush.bf16.msra.mxu0 %v2720
    %2966 = vmatpush.bf16.msra.mxu0 %v2716
    %2967 = vmatpush.bf16.msra.mxu0 %v2712
    %2968 = vmatpush.bf16.msra.mxu0 %v2708
    %2969 = vmatpush.bf16.msra.mxu0 %v2704
    %2970 = vmatpush.bf16.msra.mxu0 %v2700
    %2971 = vmatpush.bf16.msra.mxu0 %v2696
    %2972 = vmatpush.bf16.msra.mxu0 %v2692
    %2973 = vmatmul.bf16.gmra.mxu0 %v2107
    %v2974 = vpop.f32.mrf.mxu0
    %v2975 = vadd.f32 %v2926, %v2974
    %v2976 = vpop.f32.mrf.mxu0
    %v2977 = vadd.f32 %v2928, %v2976
    %2978 = vmatmul.bf16.gmra.mxu0 %v2111
    %v2979 = vpop.f32.mrf.mxu0
    %v2980 = vadd.f32 %v2931, %v2979
    %v2981 = vpop.f32.mrf.mxu0
    %v2982 = vadd.f32 %v2933, %v2981
    %2983 = vmatmul.bf16.gmra.mxu0 %v2115
    %v2984 = vpop.f32.mrf.mxu0
    %v2985 = vadd.f32 %v2936, %v2984
    %v2986 = vpop.f32.mrf.mxu0
    %v2987 = vadd.f32 %v2938, %v2986
    %2988 = vmatmul.bf16.gmra.mxu0 %v2119
    %v2989 = vpop.f32.mrf.mxu0
    %v2990 = vadd.f32 %v2941, %v2989
    %v2991 = vpop.f32.mrf.mxu0
    %v2992 = vadd.f32 %v2943, %v2991
    %2993 = vmatmul.bf16.gmra.mxu0 %v2123
    %v2994 = vpop.f32.mrf.mxu0
    %v2995 = vadd.f32 %v2946, %v2994
    %v2996 = vpop.f32.mrf.mxu0
    %v2997 = vadd.f32 %v2948, %v2996
    %2998 = vmatmul.bf16.gmra.mxu0 %v2127
    %v2999 = vpop.f32.mrf.mxu0
    %v3000 = vadd.f32 %v2951, %v2999
    %v3001 = vpop.f32.mrf.mxu0
    %v3002 = vadd.f32 %v2953, %v3001
    %3003 = vmatmul.bf16.gmra.mxu0 %v2131
    %v3004 = vpop.f32.mrf.mxu0
    %v3005 = vadd.f32 %v2956, %v3004
    %v3006 = vpop.f32.mrf.mxu0
    %v3007 = vadd.f32 %v2958, %v3006
    %3008 = vmatmul.bf16.gmra.mxu0 %v2135
    %v3009 = vpop.f32.mrf.mxu0
    %v3010 = vadd.f32 %v2961, %v3009
    %v3011 = vpop.f32.mrf.mxu0
    %v3012 = vadd.f32 %v2963, %v3011
    %3013 = vdwg.mxu0
    %3014 = vmatpush.bf16.msra.mxu0 %v2752
    %3015 = vmatpush.bf16.msra.mxu0 %v2748
    %3016 = vmatpush.bf16.msra.mxu0 %v2744
    %3017 = vmatpush.bf16.msra.mxu0 %v2740
    %3018 = vmatpush.bf16.msra.mxu0 %v2736
    %3019 = vmatpush.bf16.msra.mxu0 %v2732
    %3020 = vmatpush.bf16.msra.mxu0 %v2728
    %3021 = vmatpush.bf16.msra.mxu0 %v2724
    %3022 = vmatmul.bf16.gmra.mxu0 %v2108
    %v3023 = vpop.f32.mrf.mxu0
    %v3024 = vadd.f32 %v2975, %v3023
    %v3025 = vpop.f32.mrf.mxu0
    %v3026 = vadd.f32 %v2977, %v3025
    %3027 = vmatmul.bf16.gmra.mxu0 %v2112
    %v3028 = vpop.f32.mrf.mxu0
    %v3029 = vadd.f32 %v2980, %v3028
    %v3030 = vpop.f32.mrf.mxu0
    %v3031 = vadd.f32 %v2982, %v3030
    %3032 = vmatmul.bf16.gmra.mxu0 %v2116
    %v3033 = vpop.f32.mrf.mxu0
    %v3034 = vadd.f32 %v2985, %v3033
    %v3035 = vpop.f32.mrf.mxu0
    %v3036 = vadd.f32 %v2987, %v3035
    %3037 = vmatmul.bf16.gmra.mxu0 %v2120
    %v3038 = vpop.f32.mrf.mxu0
    %v3039 = vadd.f32 %v2990, %v3038
    %v3040 = vpop.f32.mrf.mxu0
    %v3041 = vadd.f32 %v2992, %v3040
    %3042 = vmatmul.bf16.gmra.mxu0 %v2124
    %v3043 = vpop.f32.mrf.mxu0
    %v3044 = vadd.f32 %v2995, %v3043
    %v3045 = vpop.f32.mrf.mxu0
    %v3046 = vadd.f32 %v2997, %v3045
    %3047 = vmatmul.bf16.gmra.mxu0 %v2128
    %v3048 = vpop.f32.mrf.mxu0
    %v3049 = vadd.f32 %v3000, %v3048
    %v3050 = vpop.f32.mrf.mxu0
    %v3051 = vadd.f32 %v3002, %v3050
    %3052 = vmatmul.bf16.gmra.mxu0 %v2132
    %v3053 = vpop.f32.mrf.mxu0
    %v3054 = vadd.f32 %v3005, %v3053
    %v3055 = vpop.f32.mrf.mxu0
    %v3056 = vadd.f32 %v3007, %v3055
    %3057 = vmatmul.bf16.gmra.mxu0 %v2136
    %v3058 = vpop.f32.mrf.mxu0
    %v3059 = vadd.f32 %v3010, %v3058
    %v3060 = vpop.f32.mrf.mxu0
    %v3061 = vadd.f32 %v3012, %v3060
    %3062 = vdwg.mxu0
    %3063 = vmatpush.bf16.msra.mxu0 %v2784
    %3064 = vmatpush.bf16.msra.mxu0 %v2780
    %3065 = vmatpush.bf16.msra.mxu0 %v2776
    %3066 = vmatpush.bf16.msra.mxu0 %v2772
    %3067 = vmatpush.bf16.msra.mxu0 %v2768
    %3068 = vmatpush.bf16.msra.mxu0 %v2764
    %3069 = vmatpush.bf16.msra.mxu0 %v2760
    %3070 = vmatpush.bf16.msra.mxu0 %v2756
    %3071 = vmatmul.bf16.gmra.mxu0 %v2109
    %v3072 = vpop.f32.mrf.mxu0
    %v3073 = vadd.f32 %v3024, %v3072
    %v3074 = vpop.f32.mrf.mxu0
    %v3075 = vadd.f32 %v3026, %v3074
    %3076 = vmatmul.bf16.gmra.mxu0 %v2113
    %v3077 = vpop.f32.mrf.mxu0
    %v3078 = vadd.f32 %v3029, %v3077
    %v3079 = vpop.f32.mrf.mxu0
    %v3080 = vadd.f32 %v3031, %v3079
    %3081 = vmatmul.bf16.gmra.mxu0 %v2117
    %v3082 = vpop.f32.mrf.mxu0
    %v3083 = vadd.f32 %v3034, %v3082
    %v3084 = vpop.f32.mrf.mxu0
    %v3085 = vadd.f32 %v3036, %v3084
    %3086 = vmatmul.bf16.gmra.mxu0 %v2121
    %v3087 = vpop.f32.mrf.mxu0
    %v3088 = vadd.f32 %v3039, %v3087
    %v3089 = vpop.f32.mrf.mxu0
    %v3090 = vadd.f32 %v3041, %v3089
    %3091 = vmatmul.bf16.gmra.mxu0 %v2125
    %v3092 = vpop.f32.mrf.mxu0
    %v3093 = vadd.f32 %v3044, %v3092
    %v3094 = vpop.f32.mrf.mxu0
    %v3095 = vadd.f32 %v3046, %v3094
    %3096 = vmatmul.bf16.gmra.mxu0 %v2129
    %v3097 = vpop.f32.mrf.mxu0
    %v3098 = vadd.f32 %v3049, %v3097
    %v3099 = vpop.f32.mrf.mxu0
    %v3100 = vadd.f32 %v3051, %v3099
    %3101 = vmatmul.bf16.gmra.mxu0 %v2133
    %v3102 = vpop.f32.mrf.mxu0
    %v3103 = vadd.f32 %v3054, %v3102
    %v3104 = vpop.f32.mrf.mxu0
    %v3105 = vadd.f32 %v3056, %v3104
    %3106 = vmatmul.bf16.gmra.mxu0 %v2137
    %v3107 = vpop.f32.mrf.mxu0
    %v3108 = vadd.f32 %v3059, %v3107
    %v3109 = vpop.f32.mrf.mxu0
    %v3110 = vadd.f32 %v3061, %v3109
    %3111 = vdwg.mxu0
    %3112 = vmatpush.bf16.msra.mxu0 %v2689
    %3113 = vmatpush.bf16.msra.mxu0 %v2685
    %3114 = vmatpush.bf16.msra.mxu0 %v2681
    %3115 = vmatpush.bf16.msra.mxu0 %v2677
    %3116 = vmatpush.bf16.msra.mxu0 %v2673
    %3117 = vmatpush.bf16.msra.mxu0 %v2669
    %3118 = vmatpush.bf16.msra.mxu0 %v2665
    %3119 = vmatpush.bf16.msra.mxu0 %v2661
    %3120 = vmatmul.bf16.gmra.mxu0 %v2106
    %v3121 = vpop.f32.mrf.mxu0
    %v3122 = vadd.f32 %v2269, %v3121
    %v3123 = vpop.f32.mrf.mxu0
    %v3124 = vadd.f32 %v2269, %v3123
    %3125 = vmatmul.bf16.gmra.mxu0 %v2110
    %v3126 = vpop.f32.mrf.mxu0
    %v3127 = vadd.f32 %v2269, %v3126
    %v3128 = vpop.f32.mrf.mxu0
    %v3129 = vadd.f32 %v2269, %v3128
    %3130 = vmatmul.bf16.gmra.mxu0 %v2114
    %v3131 = vpop.f32.mrf.mxu0
    %v3132 = vadd.f32 %v2269, %v3131
    %v3133 = vpop.f32.mrf.mxu0
    %v3134 = vadd.f32 %v2269, %v3133
    %3135 = vmatmul.bf16.gmra.mxu0 %v2118
    %v3136 = vpop.f32.mrf.mxu0
    %v3137 = vadd.f32 %v2269, %v3136
    %v3138 = vpop.f32.mrf.mxu0
    %v3139 = vadd.f32 %v2269, %v3138
    %3140 = vmatmul.bf16.gmra.mxu0 %v2122
    %v3141 = vpop.f32.mrf.mxu0
    %v3142 = vadd.f32 %v2269, %v3141
    %v3143 = vpop.f32.mrf.mxu0
    %v3144 = vadd.f32 %v2269, %v3143
    %3145 = vmatmul.bf16.gmra.mxu0 %v2126
    %v3146 = vpop.f32.mrf.mxu0
    %v3147 = vadd.f32 %v2269, %v3146
    %v3148 = vpop.f32.mrf.mxu0
    %v3149 = vadd.f32 %v2269, %v3148
    %3150 = vmatmul.bf16.gmra.mxu0 %v2130
    %v3151 = vpop.f32.mrf.mxu0
    %v3152 = vadd.f32 %v2269, %v3151
    %v3153 = vpop.f32.mrf.mxu0
    %v3154 = vadd.f32 %v2269, %v3153
    %3155 = vmatmul.bf16.gmra.mxu0 %v2134
    %v3156 = vpop.f32.mrf.mxu0
    %v3157 = vadd.f32 %v2269, %v3156
    %v3158 = vpop.f32.mrf.mxu0
    %v3159 = vadd.f32 %v2269, %v3158
    %3160 = vdwg.mxu0
    %3161 = vmatpush.bf16.msra.mxu0 %v2721
    %3162 = vmatpush.bf16.msra.mxu0 %v2717
    %3163 = vmatpush.bf16.msra.mxu0 %v2713
    %3164 = vmatpush.bf16.msra.mxu0 %v2709
    %3165 = vmatpush.bf16.msra.mxu0 %v2705
    %3166 = vmatpush.bf16.msra.mxu0 %v2701
    %3167 = vmatpush.bf16.msra.mxu0 %v2697
    %3168 = vmatpush.bf16.msra.mxu0 %v2693
    %3169 = vmatmul.bf16.gmra.mxu0 %v2107
    %v3170 = vpop.f32.mrf.mxu0
    %v3171 = vadd.f32 %v3122, %v3170
    %v3172 = vpop.f32.mrf.mxu0
    %v3173 = vadd.f32 %v3124, %v3172
    %3174 = vmatmul.bf16.gmra.mxu0 %v2111
    %v3175 = vpop.f32.mrf.mxu0
    %v3176 = vadd.f32 %v3127, %v3175
    %v3177 = vpop.f32.mrf.mxu0
    %v3178 = vadd.f32 %v3129, %v3177
    %3179 = vmatmul.bf16.gmra.mxu0 %v2115
    %v3180 = vpop.f32.mrf.mxu0
    %v3181 = vadd.f32 %v3132, %v3180
    %v3182 = vpop.f32.mrf.mxu0
    %v3183 = vadd.f32 %v3134, %v3182
    %3184 = vmatmul.bf16.gmra.mxu0 %v2119
    %v3185 = vpop.f32.mrf.mxu0
    %v3186 = vadd.f32 %v3137, %v3185
    %v3187 = vpop.f32.mrf.mxu0
    %v3188 = vadd.f32 %v3139, %v3187
    %3189 = vmatmul.bf16.gmra.mxu0 %v2123
    %v3190 = vpop.f32.mrf.mxu0
    %v3191 = vadd.f32 %v3142, %v3190
    %v3192 = vpop.f32.mrf.mxu0
    %v3193 = vadd.f32 %v3144, %v3192
    %3194 = vmatmul.bf16.gmra.mxu0 %v2127
    %v3195 = vpop.f32.mrf.mxu0
    %v3196 = vadd.f32 %v3147, %v3195
    %v3197 = vpop.f32.mrf.mxu0
    %v3198 = vadd.f32 %v3149, %v3197
    %3199 = vmatmul.bf16.gmra.mxu0 %v2131
    %v3200 = vpop.f32.mrf.mxu0
    %v3201 = vadd.f32 %v3152, %v3200
    %v3202 = vpop.f32.mrf.mxu0
    %v3203 = vadd.f32 %v3154, %v3202
    %3204 = vmatmul.bf16.gmra.mxu0 %v2135
    %v3205 = vpop.f32.mrf.mxu0
    %v3206 = vadd.f32 %v3157, %v3205
    %v3207 = vpop.f32.mrf.mxu0
    %v3208 = vadd.f32 %v3159, %v3207
    %3209 = vdwg.mxu0
    %3210 = vmatpush.bf16.msra.mxu0 %v2753
    %3211 = vmatpush.bf16.msra.mxu0 %v2749
    %3212 = vmatpush.bf16.msra.mxu0 %v2745
    %3213 = vmatpush.bf16.msra.mxu0 %v2741
    %3214 = vmatpush.bf16.msra.mxu0 %v2737
    %3215 = vmatpush.bf16.msra.mxu0 %v2733
    %3216 = vmatpush.bf16.msra.mxu0 %v2729
    %3217 = vmatpush.bf16.msra.mxu0 %v2725
    %3218 = vmatmul.bf16.gmra.mxu0 %v2108
    %v3219 = vpop.f32.mrf.mxu0
    %v3220 = vadd.f32 %v3171, %v3219
    %v3221 = vpop.f32.mrf.mxu0
    %v3222 = vadd.f32 %v3173, %v3221
    %3223 = vmatmul.bf16.gmra.mxu0 %v2112
    %v3224 = vpop.f32.mrf.mxu0
    %v3225 = vadd.f32 %v3176, %v3224
    %v3226 = vpop.f32.mrf.mxu0
    %v3227 = vadd.f32 %v3178, %v3226
    %3228 = vmatmul.bf16.gmra.mxu0 %v2116
    %v3229 = vpop.f32.mrf.mxu0
    %v3230 = vadd.f32 %v3181, %v3229
    %v3231 = vpop.f32.mrf.mxu0
    %v3232 = vadd.f32 %v3183, %v3231
    %3233 = vmatmul.bf16.gmra.mxu0 %v2120
    %v3234 = vpop.f32.mrf.mxu0
    %v3235 = vadd.f32 %v3186, %v3234
    %v3236 = vpop.f32.mrf.mxu0
    %v3237 = vadd.f32 %v3188, %v3236
    %3238 = vmatmul.bf16.gmra.mxu0 %v2124
    %v3239 = vpop.f32.mrf.mxu0
    %v3240 = vadd.f32 %v3191, %v3239
    %v3241 = vpop.f32.mrf.mxu0
    %v3242 = vadd.f32 %v3193, %v3241
    %3243 = vmatmul.bf16.gmra.mxu0 %v2128
    %v3244 = vpop.f32.mrf.mxu0
    %v3245 = vadd.f32 %v3196, %v3244
    %v3246 = vpop.f32.mrf.mxu0
    %v3247 = vadd.f32 %v3198, %v3246
    %3248 = vmatmul.bf16.gmra.mxu0 %v2132
    %v3249 = vpop.f32.mrf.mxu0
    %v3250 = vadd.f32 %v3201, %v3249
    %v3251 = vpop.f32.mrf.mxu0
    %v3252 = vadd.f32 %v3203, %v3251
    %3253 = vmatmul.bf16.gmra.mxu0 %v2136
    %v3254 = vpop.f32.mrf.mxu0
    %v3255 = vadd.f32 %v3206, %v3254
    %v3256 = vpop.f32.mrf.mxu0
    %v3257 = vadd.f32 %v3208, %v3256
    %3258 = vdwg.mxu0
    %3259 = vmatpush.bf16.msra.mxu0 %v2785
    %3260 = vmatpush.bf16.msra.mxu0 %v2781
    %3261 = vmatpush.bf16.msra.mxu0 %v2777
    %3262 = vmatpush.bf16.msra.mxu0 %v2773
    %3263 = vmatpush.bf16.msra.mxu0 %v2769
    %3264 = vmatpush.bf16.msra.mxu0 %v2765
    %3265 = vmatpush.bf16.msra.mxu0 %v2761
    %3266 = vmatpush.bf16.msra.mxu0 %v2757
    %3267 = vmatmul.bf16.gmra.mxu0 %v2109
    %v3268 = vpop.f32.mrf.mxu0
    %v3269 = vadd.f32 %v3220, %v3268
    %v3270 = vpop.f32.mrf.mxu0
    %v3271 = vadd.f32 %v3222, %v3270
    %3272 = vmatmul.bf16.gmra.mxu0 %v2113
    %v3273 = vpop.f32.mrf.mxu0
    %v3274 = vadd.f32 %v3225, %v3273
    %v3275 = vpop.f32.mrf.mxu0
    %v3276 = vadd.f32 %v3227, %v3275
    %3277 = vmatmul.bf16.gmra.mxu0 %v2117
    %v3278 = vpop.f32.mrf.mxu0
    %v3279 = vadd.f32 %v3230, %v3278
    %v3280 = vpop.f32.mrf.mxu0
    %v3281 = vadd.f32 %v3232, %v3280
    %3282 = vmatmul.bf16.gmra.mxu0 %v2121
    %v3283 = vpop.f32.mrf.mxu0
    %v3284 = vadd.f32 %v3235, %v3283
    %v3285 = vpop.f32.mrf.mxu0
    %v3286 = vadd.f32 %v3237, %v3285
    %3287 = vmatmul.bf16.gmra.mxu0 %v2125
    %v3288 = vpop.f32.mrf.mxu0
    %v3289 = vadd.f32 %v3240, %v3288
    %v3290 = vpop.f32.mrf.mxu0
    %v3291 = vadd.f32 %v3242, %v3290
    %3292 = vmatmul.bf16.gmra.mxu0 %v2129
    %v3293 = vpop.f32.mrf.mxu0
    %v3294 = vadd.f32 %v3245, %v3293
    %v3295 = vpop.f32.mrf.mxu0
    %v3296 = vadd.f32 %v3247, %v3295
    %3297 = vmatmul.bf16.gmra.mxu0 %v2133
    %v3298 = vpop.f32.mrf.mxu0
    %v3299 = vadd.f32 %v3250, %v3298
    %v3300 = vpop.f32.mrf.mxu0
    %v3301 = vadd.f32 %v3252, %v3300
    %3302 = vmatmul.bf16.gmra.mxu0 %v2137
    %v3303 = vpop.f32.mrf.mxu0
    %v3304 = vadd.f32 %v3255, %v3303
    %v3305 = vpop.f32.mrf.mxu0
    %v3306 = vadd.f32 %v3257, %v3305
    %3307 = vdwg.mxu0
    %3308 = vmatpush.bf16.msra.mxu0 %v2690
    %3309 = vmatpush.bf16.msra.mxu0 %v2686
    %3310 = vmatpush.bf16.msra.mxu0 %v2682
    %3311 = vmatpush.bf16.msra.mxu0 %v2678
    %3312 = vmatpush.bf16.msra.mxu0 %v2674
    %3313 = vmatpush.bf16.msra.mxu0 %v2670
    %3314 = vmatpush.bf16.msra.mxu0 %v2666
    %3315 = vmatpush.bf16.msra.mxu0 %v2662
    %3316 = vmatmul.bf16.gmra.mxu0 %v2106
    %v3317 = vpop.f32.mrf.mxu0
    %v3318 = vadd.f32 %v2270, %v3317
    %v3319 = vpop.f32.mrf.mxu0
    %v3320 = vadd.f32 %v2270, %v3319
    %3321 = vmatmul.bf16.gmra.mxu0 %v2110
    %v3322 = vpop.f32.mrf.mxu0
    %v3323 = vadd.f32 %v2270, %v3322
    %v3324 = vpop.f32.mrf.mxu0
    %v3325 = vadd.f32 %v2270, %v3324
    %3326 = vmatmul.bf16.gmra.mxu0 %v2114
    %v3327 = vpop.f32.mrf.mxu0
    %v3328 = vadd.f32 %v2270, %v3327
    %v3329 = vpop.f32.mrf.mxu0
    %v3330 = vadd.f32 %v2270, %v3329
    %3331 = vmatmul.bf16.gmra.mxu0 %v2118
    %v3332 = vpop.f32.mrf.mxu0
    %v3333 = vadd.f32 %v2270, %v3332
    %v3334 = vpop.f32.mrf.mxu0
    %v3335 = vadd.f32 %v2270, %v3334
    %3336 = vmatmul.bf16.gmra.mxu0 %v2122
    %v3337 = vpop.f32.mrf.mxu0
    %v3338 = vadd.f32 %v2270, %v3337
    %v3339 = vpop.f32.mrf.mxu0
    %v3340 = vadd.f32 %v2270, %v3339
    %3341 = vmatmul.bf16.gmra.mxu0 %v2126
    %v3342 = vpop.f32.mrf.mxu0
    %v3343 = vadd.f32 %v2270, %v3342
    %v3344 = vpop.f32.mrf.mxu0
    %v3345 = vadd.f32 %v2270, %v3344
    %3346 = vmatmul.bf16.gmra.mxu0 %v2130
    %v3347 = vpop.f32.mrf.mxu0
    %v3348 = vadd.f32 %v2270, %v3347
    %v3349 = vpop.f32.mrf.mxu0
    %v3350 = vadd.f32 %v2270, %v3349
    %3351 = vmatmul.bf16.gmra.mxu0 %v2134
    %v3352 = vpop.f32.mrf.mxu0
    %v3353 = vadd.f32 %v2270, %v3352
    %v3354 = vpop.f32.mrf.mxu0
    %v3355 = vadd.f32 %v2270, %v3354
    %3356 = vdwg.mxu0
    %3357 = vmatpush.bf16.msra.mxu0 %v2722
    %3358 = vmatpush.bf16.msra.mxu0 %v2718
    %3359 = vmatpush.bf16.msra.mxu0 %v2714
    %3360 = vmatpush.bf16.msra.mxu0 %v2710
    %3361 = vmatpush.bf16.msra.mxu0 %v2706
    %3362 = vmatpush.bf16.msra.mxu0 %v2702
    %3363 = vmatpush.bf16.msra.mxu0 %v2698
    %3364 = vmatpush.bf16.msra.mxu0 %v2694
    %3365 = vmatmul.bf16.gmra.mxu0 %v2107
    %v3366 = vpop.f32.mrf.mxu0
    %v3367 = vadd.f32 %v3318, %v3366
    %v3368 = vpop.f32.mrf.mxu0
    %v3369 = vadd.f32 %v3320, %v3368
    %3370 = vmatmul.bf16.gmra.mxu0 %v2111
    %v3371 = vpop.f32.mrf.mxu0
    %v3372 = vadd.f32 %v3323, %v3371
    %v3373 = vpop.f32.mrf.mxu0
    %v3374 = vadd.f32 %v3325, %v3373
    %3375 = vmatmul.bf16.gmra.mxu0 %v2115
    %v3376 = vpop.f32.mrf.mxu0
    %v3377 = vadd.f32 %v3328, %v3376
    %v3378 = vpop.f32.mrf.mxu0
    %v3379 = vadd.f32 %v3330, %v3378
    %3380 = vmatmul.bf16.gmra.mxu0 %v2119
    %v3381 = vpop.f32.mrf.mxu0
    %v3382 = vadd.f32 %v3333, %v3381
    %v3383 = vpop.f32.mrf.mxu0
    %v3384 = vadd.f32 %v3335, %v3383
    %3385 = vmatmul.bf16.gmra.mxu0 %v2123
    %v3386 = vpop.f32.mrf.mxu0
    %v3387 = vadd.f32 %v3338, %v3386
    %v3388 = vpop.f32.mrf.mxu0
    %v3389 = vadd.f32 %v3340, %v3388
    %3390 = vmatmul.bf16.gmra.mxu0 %v2127
    %v3391 = vpop.f32.mrf.mxu0
    %v3392 = vadd.f32 %v3343, %v3391
    %v3393 = vpop.f32.mrf.mxu0
    %v3394 = vadd.f32 %v3345, %v3393
    %3395 = vmatmul.bf16.gmra.mxu0 %v2131
    %v3396 = vpop.f32.mrf.mxu0
    %v3397 = vadd.f32 %v3348, %v3396
    %v3398 = vpop.f32.mrf.mxu0
    %v3399 = vadd.f32 %v3350, %v3398
    %3400 = vmatmul.bf16.gmra.mxu0 %v2135
    %v3401 = vpop.f32.mrf.mxu0
    %v3402 = vadd.f32 %v3353, %v3401
    %v3403 = vpop.f32.mrf.mxu0
    %v3404 = vadd.f32 %v3355, %v3403
    %3405 = vdwg.mxu0
    %3406 = vmatpush.bf16.msra.mxu0 %v2754
    %3407 = vmatpush.bf16.msra.mxu0 %v2750
    %3408 = vmatpush.bf16.msra.mxu0 %v2746
    %3409 = vmatpush.bf16.msra.mxu0 %v2742
    %3410 = vmatpush.bf16.msra.mxu0 %v2738
    %3411 = vmatpush.bf16.msra.mxu0 %v2734
    %3412 = vmatpush.bf16.msra.mxu0 %v2730
    %3413 = vmatpush.bf16.msra.mxu0 %v2726
    %3414 = vmatmul.bf16.gmra.mxu0 %v2108
    %v3415 = vpop.f32.mrf.mxu0
    %v3416 = vadd.f32 %v3367, %v3415
    %v3417 = vpop.f32.mrf.mxu0
    %v3418 = vadd.f32 %v3369, %v3417
    %3419 = vmatmul.bf16.gmra.mxu0 %v2112
    %v3420 = vpop.f32.mrf.mxu0
    %v3421 = vadd.f32 %v3372, %v3420
    %v3422 = vpop.f32.mrf.mxu0
    %v3423 = vadd.f32 %v3374, %v3422
    %3424 = vmatmul.bf16.gmra.mxu0 %v2116
    %v3425 = vpop.f32.mrf.mxu0
    %v3426 = vadd.f32 %v3377, %v3425
    %v3427 = vpop.f32.mrf.mxu0
    %v3428 = vadd.f32 %v3379, %v3427
    %3429 = vmatmul.bf16.gmra.mxu0 %v2120
    %v3430 = vpop.f32.mrf.mxu0
    %v3431 = vadd.f32 %v3382, %v3430
    %v3432 = vpop.f32.mrf.mxu0
    %v3433 = vadd.f32 %v3384, %v3432
    %3434 = vmatmul.bf16.gmra.mxu0 %v2124
    %v3435 = vpop.f32.mrf.mxu0
    %v3436 = vadd.f32 %v3387, %v3435
    %v3437 = vpop.f32.mrf.mxu0
    %v3438 = vadd.f32 %v3389, %v3437
    %3439 = vmatmul.bf16.gmra.mxu0 %v2128
    %v3440 = vpop.f32.mrf.mxu0
    %v3441 = vadd.f32 %v3392, %v3440
    %v3442 = vpop.f32.mrf.mxu0
    %v3443 = vadd.f32 %v3394, %v3442
    %3444 = vmatmul.bf16.gmra.mxu0 %v2132
    %v3445 = vpop.f32.mrf.mxu0
    %v3446 = vadd.f32 %v3397, %v3445
    %v3447 = vpop.f32.mrf.mxu0
    %v3448 = vadd.f32 %v3399, %v3447
    %3449 = vmatmul.bf16.gmra.mxu0 %v2136
    %v3450 = vpop.f32.mrf.mxu0
    %v3451 = vadd.f32 %v3402, %v3450
    %v3452 = vpop.f32.mrf.mxu0
    %v3453 = vadd.f32 %v3404, %v3452
    %3454 = vdwg.mxu0
    %3455 = vmatpush.bf16.msra.mxu0 %v2786
    %3456 = vmatpush.bf16.msra.mxu0 %v2782
    %3457 = vmatpush.bf16.msra.mxu0 %v2778
    %3458 = vmatpush.bf16.msra.mxu0 %v2774
    %3459 = vmatpush.bf16.msra.mxu0 %v2770
    %3460 = vmatpush.bf16.msra.mxu0 %v2766
    %3461 = vmatpush.bf16.msra.mxu0 %v2762
    %3462 = vmatpush.bf16.msra.mxu0 %v2758
    %3463 = vmatmul.bf16.gmra.mxu0 %v2109
    %v3464 = vpop.f32.mrf.mxu0
    %v3465 = vadd.f32 %v3416, %v3464
    %v3466 = vpop.f32.mrf.mxu0
    %v3467 = vadd.f32 %v3418, %v3466
    %3468 = vmatmul.bf16.gmra.mxu0 %v2113
    %v3469 = vpop.f32.mrf.mxu0
    %v3470 = vadd.f32 %v3421, %v3469
    %v3471 = vpop.f32.mrf.mxu0
    %v3472 = vadd.f32 %v3423, %v3471
    %3473 = vmatmul.bf16.gmra.mxu0 %v2117
    %v3474 = vpop.f32.mrf.mxu0
    %v3475 = vadd.f32 %v3426, %v3474
    %v3476 = vpop.f32.mrf.mxu0
    %v3477 = vadd.f32 %v3428, %v3476
    %3478 = vmatmul.bf16.gmra.mxu0 %v2121
    %v3479 = vpop.f32.mrf.mxu0
    %v3480 = vadd.f32 %v3431, %v3479
    %v3481 = vpop.f32.mrf.mxu0
    %v3482 = vadd.f32 %v3433, %v3481
    %3483 = vmatmul.bf16.gmra.mxu0 %v2125
    %v3484 = vpop.f32.mrf.mxu0
    %v3485 = vadd.f32 %v3436, %v3484
    %v3486 = vpop.f32.mrf.mxu0
    %v3487 = vadd.f32 %v3438, %v3486
    %3488 = vmatmul.bf16.gmra.mxu0 %v2129
    %v3489 = vpop.f32.mrf.mxu0
    %v3490 = vadd.f32 %v3441, %v3489
    %v3491 = vpop.f32.mrf.mxu0
    %v3492 = vadd.f32 %v3443, %v3491
    %3493 = vmatmul.bf16.gmra.mxu0 %v2133
    %v3494 = vpop.f32.mrf.mxu0
    %v3495 = vadd.f32 %v3446, %v3494
    %v3496 = vpop.f32.mrf.mxu0
    %v3497 = vadd.f32 %v3448, %v3496
    %3498 = vmatmul.bf16.gmra.mxu0 %v2137
    %v3499 = vpop.f32.mrf.mxu0
    %v3500 = vadd.f32 %v3451, %v3499
    %v3501 = vpop.f32.mrf.mxu0
    %v3502 = vadd.f32 %v3453, %v3501
    %3503 = vdwg.mxu0
    %3504 = vmatpush.bf16.msra.mxu0 %v2691
    %3505 = vmatpush.bf16.msra.mxu0 %v2687
    %3506 = vmatpush.bf16.msra.mxu0 %v2683
    %3507 = vmatpush.bf16.msra.mxu0 %v2679
    %3508 = vmatpush.bf16.msra.mxu0 %v2675
    %3509 = vmatpush.bf16.msra.mxu0 %v2671
    %3510 = vmatpush.bf16.msra.mxu0 %v2667
    %3511 = vmatpush.bf16.msra.mxu0 %v2663
    %3512 = vmatmul.bf16.gmra.mxu0 %v2106
    %v3513 = vpop.f32.mrf.mxu0
    %v3514 = vadd.f32 %v2271, %v3513
    %v3515 = vpop.f32.mrf.mxu0
    %v3516 = vadd.f32 %v2271, %v3515
    %3517 = vmatmul.bf16.gmra.mxu0 %v2110
    %v3518 = vpop.f32.mrf.mxu0
    %v3519 = vadd.f32 %v2271, %v3518
    %v3520 = vpop.f32.mrf.mxu0
    %v3521 = vadd.f32 %v2271, %v3520
    %3522 = vmatmul.bf16.gmra.mxu0 %v2114
    %v3523 = vpop.f32.mrf.mxu0
    %v3524 = vadd.f32 %v2271, %v3523
    %v3525 = vpop.f32.mrf.mxu0
    %v3526 = vadd.f32 %v2271, %v3525
    %3527 = vmatmul.bf16.gmra.mxu0 %v2118
    %v3528 = vpop.f32.mrf.mxu0
    %v3529 = vadd.f32 %v2271, %v3528
    %v3530 = vpop.f32.mrf.mxu0
    %v3531 = vadd.f32 %v2271, %v3530
    %3532 = vmatmul.bf16.gmra.mxu0 %v2122
    %v3533 = vpop.f32.mrf.mxu0
    %v3534 = vadd.f32 %v2271, %v3533
    %v3535 = vpop.f32.mrf.mxu0
    %v3536 = vadd.f32 %v2271, %v3535
    %3537 = vmatmul.bf16.gmra.mxu0 %v2126
    %v3538 = vpop.f32.mrf.mxu0
    %v3539 = vadd.f32 %v2271, %v3538
    %v3540 = vpop.f32.mrf.mxu0
    %v3541 = vadd.f32 %v2271, %v3540
    %3542 = vmatmul.bf16.gmra.mxu0 %v2130
    %v3543 = vpop.f32.mrf.mxu0
    %v3544 = vadd.f32 %v2271, %v3543
    %v3545 = vpop.f32.mrf.mxu0
    %v3546 = vadd.f32 %v2271, %v3545
    %3547 = vmatmul.bf16.gmra.mxu0 %v2134
    %v3548 = vpop.f32.mrf.mxu0
    %v3549 = vadd.f32 %v2271, %v3548
    %v3550 = vpop.f32.mrf.mxu0
    %v3551 = vadd.f32 %v2271, %v3550
    %3552 = vdwg.mxu0
    %3553 = vmatpush.bf16.msra.mxu0 %v2723
    %3554 = vmatpush.bf16.msra.mxu0 %v2719
    %3555 = vmatpush.bf16.msra.mxu0 %v2715
    %3556 = vmatpush.bf16.msra.mxu0 %v2711
    %3557 = vmatpush.bf16.msra.mxu0 %v2707
    %3558 = vmatpush.bf16.msra.mxu0 %v2703
    %3559 = vmatpush.bf16.msra.mxu0 %v2699
    %3560 = vmatpush.bf16.msra.mxu0 %v2695
    %3561 = vmatmul.bf16.gmra.mxu0 %v2107
    %v3562 = vpop.f32.mrf.mxu0
    %v3563 = vadd.f32 %v3514, %v3562
    %v3564 = vpop.f32.mrf.mxu0
    %v3565 = vadd.f32 %v3516, %v3564
    %3566 = vmatmul.bf16.gmra.mxu0 %v2111
    %v3567 = vpop.f32.mrf.mxu0
    %v3568 = vadd.f32 %v3519, %v3567
    %v3569 = vpop.f32.mrf.mxu0
    %v3570 = vadd.f32 %v3521, %v3569
    %3571 = vmatmul.bf16.gmra.mxu0 %v2115
    %v3572 = vpop.f32.mrf.mxu0
    %v3573 = vadd.f32 %v3524, %v3572
    %v3574 = vpop.f32.mrf.mxu0
    %v3575 = vadd.f32 %v3526, %v3574
    %3576 = vmatmul.bf16.gmra.mxu0 %v2119
    %v3577 = vpop.f32.mrf.mxu0
    %v3578 = vadd.f32 %v3529, %v3577
    %v3579 = vpop.f32.mrf.mxu0
    %v3580 = vadd.f32 %v3531, %v3579
    %3581 = vmatmul.bf16.gmra.mxu0 %v2123
    %v3582 = vpop.f32.mrf.mxu0
    %v3583 = vadd.f32 %v3534, %v3582
    %v3584 = vpop.f32.mrf.mxu0
    %v3585 = vadd.f32 %v3536, %v3584
    %3586 = vmatmul.bf16.gmra.mxu0 %v2127
    %v3587 = vpop.f32.mrf.mxu0
    %v3588 = vadd.f32 %v3539, %v3587
    %v3589 = vpop.f32.mrf.mxu0
    %v3590 = vadd.f32 %v3541, %v3589
    %3591 = vmatmul.bf16.gmra.mxu0 %v2131
    %v3592 = vpop.f32.mrf.mxu0
    %v3593 = vadd.f32 %v3544, %v3592
    %v3594 = vpop.f32.mrf.mxu0
    %v3595 = vadd.f32 %v3546, %v3594
    %3596 = vmatmul.bf16.gmra.mxu0 %v2135
    %v3597 = vpop.f32.mrf.mxu0
    %v3598 = vadd.f32 %v3549, %v3597
    %v3599 = vpop.f32.mrf.mxu0
    %v3600 = vadd.f32 %v3551, %v3599
    %3601 = vdwg.mxu0
    %3602 = vmatpush.bf16.msra.mxu0 %v2755
    %3603 = vmatpush.bf16.msra.mxu0 %v2751
    %3604 = vmatpush.bf16.msra.mxu0 %v2747
    %3605 = vmatpush.bf16.msra.mxu0 %v2743
    %3606 = vmatpush.bf16.msra.mxu0 %v2739
    %3607 = vmatpush.bf16.msra.mxu0 %v2735
    %3608 = vmatpush.bf16.msra.mxu0 %v2731
    %3609 = vmatpush.bf16.msra.mxu0 %v2727
    %3610 = vmatmul.bf16.gmra.mxu0 %v2108
    %v3611 = vpop.f32.mrf.mxu0
    %v3612 = vadd.f32 %v3563, %v3611
    %v3613 = vpop.f32.mrf.mxu0
    %v3614 = vadd.f32 %v3565, %v3613
    %3615 = vmatmul.bf16.gmra.mxu0 %v2112
    %v3616 = vpop.f32.mrf.mxu0
    %v3617 = vadd.f32 %v3568, %v3616
    %v3618 = vpop.f32.mrf.mxu0
    %v3619 = vadd.f32 %v3570, %v3618
    %3620 = vmatmul.bf16.gmra.mxu0 %v2116
    %v3621 = vpop.f32.mrf.mxu0
    %v3622 = vadd.f32 %v3573, %v3621
    %v3623 = vpop.f32.mrf.mxu0
    %v3624 = vadd.f32 %v3575, %v3623
    %3625 = vmatmul.bf16.gmra.mxu0 %v2120
    %v3626 = vpop.f32.mrf.mxu0
    %v3627 = vadd.f32 %v3578, %v3626
    %v3628 = vpop.f32.mrf.mxu0
    %v3629 = vadd.f32 %v3580, %v3628
    %3630 = vmatmul.bf16.gmra.mxu0 %v2124
    %v3631 = vpop.f32.mrf.mxu0
    %v3632 = vadd.f32 %v3583, %v3631
    %v3633 = vpop.f32.mrf.mxu0
    %v3634 = vadd.f32 %v3585, %v3633
    %3635 = vmatmul.bf16.gmra.mxu0 %v2128
    %v3636 = vpop.f32.mrf.mxu0
    %v3637 = vadd.f32 %v3588, %v3636
    %v3638 = vpop.f32.mrf.mxu0
    %v3639 = vadd.f32 %v3590, %v3638
    %3640 = vmatmul.bf16.gmra.mxu0 %v2132
    %v3641 = vpop.f32.mrf.mxu0
    %v3642 = vadd.f32 %v3593, %v3641
    %v3643 = vpop.f32.mrf.mxu0
    %v3644 = vadd.f32 %v3595, %v3643
    %3645 = vmatmul.bf16.gmra.mxu0 %v2136
    %v3646 = vpop.f32.mrf.mxu0
    %v3647 = vadd.f32 %v3598, %v3646
    %v3648 = vpop.f32.mrf.mxu0
    %v3649 = vadd.f32 %v3600, %v3648
    %3650 = vdwg.mxu0
    %3651 = vmatpush.bf16.msra.mxu0 %v2787
    %3652 = vmatpush.bf16.msra.mxu0 %v2783
    %3653 = vmatpush.bf16.msra.mxu0 %v2779
    %3654 = vmatpush.bf16.msra.mxu0 %v2775
    %3655 = vmatpush.bf16.msra.mxu0 %v2771
    %3656 = vmatpush.bf16.msra.mxu0 %v2767
    %3657 = vmatpush.bf16.msra.mxu0 %v2763
    %3658 = vmatpush.bf16.msra.mxu0 %v2759
    %3659 = vmatmul.bf16.gmra.mxu0 %v2109
    %v3660 = vpop.f32.mrf.mxu0
    %v3661 = vadd.f32 %v3612, %v3660
    %v3662 = vpop.f32.mrf.mxu0
    %v3663 = vadd.f32 %v3614, %v3662
    %3664 = vmatmul.bf16.gmra.mxu0 %v2113
    %v3665 = vpop.f32.mrf.mxu0
    %v3666 = vadd.f32 %v3617, %v3665
    %v3667 = vpop.f32.mrf.mxu0
    %v3668 = vadd.f32 %v3619, %v3667
    %3669 = vmatmul.bf16.gmra.mxu0 %v2117
    %v3670 = vpop.f32.mrf.mxu0
    %v3671 = vadd.f32 %v3622, %v3670
    %v3672 = vpop.f32.mrf.mxu0
    %v3673 = vadd.f32 %v3624, %v3672
    %3674 = vmatmul.bf16.gmra.mxu0 %v2121
    %v3675 = vpop.f32.mrf.mxu0
    %v3676 = vadd.f32 %v3627, %v3675
    %v3677 = vpop.f32.mrf.mxu0
    %v3678 = vadd.f32 %v3629, %v3677
    %3679 = vmatmul.bf16.gmra.mxu0 %v2125
    %v3680 = vpop.f32.mrf.mxu0
    %v3681 = vadd.f32 %v3632, %v3680
    %v3682 = vpop.f32.mrf.mxu0
    %v3683 = vadd.f32 %v3634, %v3682
    %3684 = vmatmul.bf16.gmra.mxu0 %v2129
    %v3685 = vpop.f32.mrf.mxu0
    %v3686 = vadd.f32 %v3637, %v3685
    %v3687 = vpop.f32.mrf.mxu0
    %v3688 = vadd.f32 %v3639, %v3687
    %3689 = vmatmul.bf16.gmra.mxu0 %v2133
    %v3690 = vpop.f32.mrf.mxu0
    %v3691 = vadd.f32 %v3642, %v3690
    %v3692 = vpop.f32.mrf.mxu0
    %v3693 = vadd.f32 %v3644, %v3692
    %3694 = vmatmul.bf16.gmra.mxu0 %v2137
    %v3695 = vpop.f32.mrf.mxu0
    %v3696 = vadd.f32 %v3647, %v3695
    %v3697 = vpop.f32.mrf.mxu0
    %v3698 = vadd.f32 %v3649, %v3697
    %3699 = vdwg.mxu0
    %v3700 = vmax.f32 %v3073, 0.0
    %v3701 = vmax.f32 %v3269, 0.0
    %v3702 = vmax.f32 %v3465, 0.0
    %v3703 = vmax.f32 %v3661, 0.0
    %v3704 = vmax.f32 %v3075, 0.0
    %v3705 = vmax.f32 %v3271, 0.0
    %v3706 = vmax.f32 %v3467, 0.0
    %v3707 = vmax.f32 %v3663, 0.0
    %v3708 = vmax.f32 %v3078, 0.0
    %v3709 = vmax.f32 %v3274, 0.0
    %v3710 = vmax.f32 %v3470, 0.0
    %v3711 = vmax.f32 %v3666, 0.0
    %v3712 = vmax.f32 %v3080, 0.0
    %v3713 = vmax.f32 %v3276, 0.0
    %v3714 = vmax.f32 %v3472, 0.0
    %v3715 = vmax.f32 %v3668, 0.0
    %v3716 = vmax.f32 %v3083, 0.0
    %v3717 = vmax.f32 %v3279, 0.0
    %v3718 = vmax.f32 %v3475, 0.0
    %v3719 = vmax.f32 %v3671, 0.0
    %v3720 = vmax.f32 %v3085, 0.0
    %v3721 = vmax.f32 %v3281, 0.0
    %v3722 = vmax.f32 %v3477, 0.0
    %v3723 = vmax.f32 %v3673, 0.0
    %v3724 = vmax.f32 %v3088, 0.0
    %v3725 = vmax.f32 %v3284, 0.0
    %v3726 = vmax.f32 %v3480, 0.0
    %v3727 = vmax.f32 %v3676, 0.0
    %v3728 = vmax.f32 %v3090, 0.0
    %v3729 = vmax.f32 %v3286, 0.0
    %v3730 = vmax.f32 %v3482, 0.0
    %v3731 = vmax.f32 %v3678, 0.0
    %v3732 = vmax.f32 %v3093, 0.0
    %v3733 = vmax.f32 %v3289, 0.0
    %v3734 = vmax.f32 %v3485, 0.0
    %v3735 = vmax.f32 %v3681, 0.0
    %v3736 = vmax.f32 %v3095, 0.0
    %v3737 = vmax.f32 %v3291, 0.0
    %v3738 = vmax.f32 %v3487, 0.0
    %v3739 = vmax.f32 %v3683, 0.0
    %v3740 = vmax.f32 %v3098, 0.0
    %v3741 = vmax.f32 %v3294, 0.0
    %v3742 = vmax.f32 %v3490, 0.0
    %v3743 = vmax.f32 %v3686, 0.0
    %v3744 = vmax.f32 %v3100, 0.0
    %v3745 = vmax.f32 %v3296, 0.0
    %v3746 = vmax.f32 %v3492, 0.0
    %v3747 = vmax.f32 %v3688, 0.0
    %v3748 = vmax.f32 %v3103, 0.0
    %v3749 = vmax.f32 %v3299, 0.0
    %v3750 = vmax.f32 %v3495, 0.0
    %v3751 = vmax.f32 %v3691, 0.0
    %v3752 = vmax.f32 %v3105, 0.0
    %v3753 = vmax.f32 %v3301, 0.0
    %v3754 = vmax.f32 %v3497, 0.0
    %v3755 = vmax.f32 %v3693, 0.0
    %v3756 = vmax.f32 %v3108, 0.0
    %v3757 = vmax.f32 %v3304, 0.0
    %v3758 = vmax.f32 %v3500, 0.0
    %v3759 = vmax.f32 %v3696, 0.0
    %v3760 = vmax.f32 %v3110, 0.0
    %v3761 = vmax.f32 %v3306, 0.0
    %v3762 = vmax.f32 %v3502, 0.0
    %v3763 = vmax.f32 %v3698, 0.0
    %v3764 = vpack.c.bf16 %v3704, %v3700
    %v3765 = vpack.c.bf16 %v3705, %v3701
    %v3766 = vpack.c.bf16 %v3706, %v3702
    %v3767 = vpack.c.bf16 %v3707, %v3703
    %v3768 = vpack.c.bf16 %v3712, %v3708
    %v3769 = vpack.c.bf16 %v3713, %v3709
    %v3770 = vpack.c.bf16 %v3714, %v3710
    %v3771 = vpack.c.bf16 %v3715, %v3711
    %v3772 = vpack.c.bf16 %v3720, %v3716
    %v3773 = vpack.c.bf16 %v3721, %v3717
    %v3774 = vpack.c.bf16 %v3722, %v3718
    %v3775 = vpack.c.bf16 %v3723, %v3719
    %v3776 = vpack.c.bf16 %v3728, %v3724
    %v3777 = vpack.c.bf16 %v3729, %v3725
    %v3778 = vpack.c.bf16 %v3730, %v3726
    %v3779 = vpack.c.bf16 %v3731, %v3727
    %v3780 = vpack.c.bf16 %v3736, %v3732
    %v3781 = vpack.c.bf16 %v3737, %v3733
    %v3782 = vpack.c.bf16 %v3738, %v3734
    %v3783 = vpack.c.bf16 %v3739, %v3735
    %v3784 = vpack.c.bf16 %v3744, %v3740
    %v3785 = vpack.c.bf16 %v3745, %v3741
    %v3786 = vpack.c.bf16 %v3746, %v3742
    %v3787 = vpack.c.bf16 %v3747, %v3743
    %v3788 = vpack.c.bf16 %v3752, %v3748
    %v3789 = vpack.c.bf16 %v3753, %v3749
    %v3790 = vpack.c.bf16 %v3754, %v3750
    %v3791 = vpack.c.bf16 %v3755, %v3751
    %v3792 = vpack.c.bf16 %v3760, %v3756
    %v3793 = vpack.c.bf16 %v3761, %v3757
    %v3794 = vpack.c.bf16 %v3762, %v3758
    %v3795 = vpack.c.bf16 %v3763, %v3759
    %v3796 = vld [vmem:[#allocation7] sm:$0xf]
    %v3797 = vld [vmem:[#allocation7 + $0x4] sm:$0xf]
    %v3798 = vld [vmem:[#allocation7 + $0x8] sm:$0xf]
    %v3799 = vld [vmem:[#allocation7 + $0xc] sm:$0xf]
    %v3800 = vld [vmem:[#allocation7 + $0x10] sm:$0xf]
    %v3801 = vld [vmem:[#allocation7 + $0x14] sm:$0xf]
    %v3802 = vld [vmem:[#allocation7 + $0x18] sm:$0xf]
    %v3803 = vld [vmem:[#allocation7 + $0x1c] sm:$0xf]
    %v3804 = vld [vmem:[#allocation7 + $0x20] sm:$0xf]
    %v3805 = vld [vmem:[#allocation7 + $0x24] sm:$0xf]
    %v3806 = vld [vmem:[#allocation7 + $0x28] sm:$0xf]
    %v3807 = vld [vmem:[#allocation7 + $0x2c] sm:$0xf]
    %v3808 = vld [vmem:[#allocation7 + $0x30] sm:$0xf]
    %v3809 = vld [vmem:[#allocation7 + $0x34] sm:$0xf]
    %v3810 = vld [vmem:[#allocation7 + $0x38] sm:$0xf]
    %v3811 = vld [vmem:[#allocation7 + $0x3c] sm:$0xf]
    %v3812 = vld [vmem:[#allocation7 + $0x40] sm:$0xf]
    %v3813 = vld [vmem:[#allocation7 + $0x44] sm:$0xf]
    %v3814 = vld [vmem:[#allocation7 + $0x48] sm:$0xf]
    %v3815 = vld [vmem:[#allocation7 + $0x4c] sm:$0xf]
    %v3816 = vld [vmem:[#allocation7 + $0x50] sm:$0xf]
    %v3817 = vld [vmem:[#allocation7 + $0x54] sm:$0xf]
    %v3818 = vld [vmem:[#allocation7 + $0x58] sm:$0xf]
    %v3819 = vld [vmem:[#allocation7 + $0x5c] sm:$0xf]
    %v3820 = vld [vmem:[#allocation7 + $0x60] sm:$0xf]
    %v3821 = vld [vmem:[#allocation7 + $0x64] sm:$0xf]
    %v3822 = vld [vmem:[#allocation7 + $0x68] sm:$0xf]
    %v3823 = vld [vmem:[#allocation7 + $0x6c] sm:$0xf]
    %v3824 = vld [vmem:[#allocation7 + $0x70] sm:$0xf]
    %v3825 = vld [vmem:[#allocation7 + $0x74] sm:$0xf]
    %v3826 = vld [vmem:[#allocation7 + $0x78] sm:$0xf]
    %v3827 = vld [vmem:[#allocation7 + $0x7c] sm:$0xf]
    %v3828 = vld [vmem:[#allocation7 + $0x80] sm:$0xf]
    %v3829 = vld [vmem:[#allocation7 + $0x84] sm:$0xf]
    %v3830 = vld [vmem:[#allocation7 + $0x88] sm:$0xf]
    %v3831 = vld [vmem:[#allocation7 + $0x8c] sm:$0xf]
    %v3832 = vld [vmem:[#allocation7 + $0x90] sm:$0xf]
    %v3833 = vld [vmem:[#allocation7 + $0x94] sm:$0xf]
    %v3834 = vld [vmem:[#allocation7 + $0x98] sm:$0xf]
    %v3835 = vld [vmem:[#allocation7 + $0x9c] sm:$0xf]
    %v3836 = vld [vmem:[#allocation7 + $0xa0] sm:$0xf]
    %v3837 = vld [vmem:[#allocation7 + $0xa4] sm:$0xf]
    %v3838 = vld [vmem:[#allocation7 + $0xa8] sm:$0xf]
    %v3839 = vld [vmem:[#allocation7 + $0xac] sm:$0xf]
    %v3840 = vld [vmem:[#allocation7 + $0xb0] sm:$0xf]
    %v3841 = vld [vmem:[#allocation7 + $0xb4] sm:$0xf]
    %v3842 = vld [vmem:[#allocation7 + $0xb8] sm:$0xf]
    %v3843 = vld [vmem:[#allocation7 + $0xbc] sm:$0xf]
    %v3844 = vld [vmem:[#allocation7 + $0xc0] sm:$0xf]
    %v3845 = vld [vmem:[#allocation7 + $0xc4] sm:$0xf]
    %v3846 = vld [vmem:[#allocation7 + $0xc8] sm:$0xf]
    %v3847 = vld [vmem:[#allocation7 + $0xcc] sm:$0xf]
    %v3848 = vld [vmem:[#allocation7 + $0xd0] sm:$0xf]
    %v3849 = vld [vmem:[#allocation7 + $0xd4] sm:$0xf]
    %v3850 = vld [vmem:[#allocation7 + $0xd8] sm:$0xf]
    %v3851 = vld [vmem:[#allocation7 + $0xdc] sm:$0xf]
    %v3852 = vld [vmem:[#allocation7 + $0xe0] sm:$0xf]
    %v3853 = vld [vmem:[#allocation7 + $0xe4] sm:$0xf]
    %v3854 = vld [vmem:[#allocation7 + $0xe8] sm:$0xf]
    %v3855 = vld [vmem:[#allocation7 + $0xec] sm:$0xf]
    %v3856 = vld [vmem:[#allocation7 + $0xf0] sm:$0xf]
    %v3857 = vld [vmem:[#allocation7 + $0xf4] sm:$0xf]
    %v3858 = vld [vmem:[#allocation7 + $0xf8] sm:$0xf]
    %v3859 = vld [vmem:[#allocation7 + $0xfc] sm:$0xf]
    %v3860 = vld [vmem:[%s8] sm:$0x1]
    %v3862 = vperm.slane %v3860, 0
    %v3928 = vunpack.c.l.b16 %v3796
    %v3929 = vunpack.c.l.b16 %v3797
    %v3930 = vunpack.c.l.b16 %v3798
    %v3931 = vunpack.c.l.b16 %v3799
    %v3932 = vunpack.c.l.b16 %v3800
    %v3933 = vunpack.c.l.b16 %v3801
    %v3934 = vunpack.c.l.b16 %v3802
    %v3935 = vunpack.c.l.b16 %v3803
    %v3936 = vunpack.c.l.b16 %v3804
    %v3937 = vunpack.c.l.b16 %v3805
    %v3938 = vunpack.c.l.b16 %v3806
    %v3939 = vunpack.c.l.b16 %v3807
    %v3940 = vunpack.c.l.b16 %v3808
    %v3941 = vunpack.c.l.b16 %v3809
    %v3942 = vunpack.c.l.b16 %v3810
    %v3943 = vunpack.c.l.b16 %v3811
    %v3944 = vunpack.c.l.b16 %v3812
    %v3945 = vunpack.c.l.b16 %v3813
    %v3946 = vunpack.c.l.b16 %v3814
    %v3947 = vunpack.c.l.b16 %v3815
    %v3948 = vunpack.c.l.b16 %v3816
    %v3949 = vunpack.c.l.b16 %v3817
    %v3950 = vunpack.c.l.b16 %v3818
    %v3951 = vunpack.c.l.b16 %v3819
    %v3952 = vunpack.c.l.b16 %v3820
    %v3953 = vunpack.c.l.b16 %v3821
    %v3954 = vunpack.c.l.b16 %v3822
    %v3955 = vunpack.c.l.b16 %v3823
    %v3956 = vunpack.c.l.b16 %v3824
    %v3957 = vunpack.c.l.b16 %v3825
    %v3958 = vunpack.c.l.b16 %v3826
    %v3959 = vunpack.c.l.b16 %v3827
    %v3960 = vunpack.c.l.b16 %v3828
    %v3961 = vunpack.c.l.b16 %v3829
    %v3962 = vunpack.c.l.b16 %v3830
    %v3963 = vunpack.c.l.b16 %v3831
    %v3964 = vunpack.c.l.b16 %v3832
    %v3965 = vunpack.c.l.b16 %v3833
    %v3966 = vunpack.c.l.b16 %v3834
    %v3967 = vunpack.c.l.b16 %v3835
    %v3968 = vunpack.c.l.b16 %v3836
    %v3969 = vunpack.c.l.b16 %v3837
    %v3970 = vunpack.c.l.b16 %v3838
    %v3971 = vunpack.c.l.b16 %v3839
    %v3972 = vunpack.c.l.b16 %v3840
    %v3973 = vunpack.c.l.b16 %v3841
    %v3974 = vunpack.c.l.b16 %v3842
    %v3975 = vunpack.c.l.b16 %v3843
    %v3976 = vunpack.c.l.b16 %v3844
    %v3977 = vunpack.c.l.b16 %v3845
    %v3978 = vunpack.c.l.b16 %v3846
    %v3979 = vunpack.c.l.b16 %v3847
    %v3980 = vunpack.c.l.b16 %v3848
    %v3981 = vunpack.c.l.b16 %v3849
    %v3982 = vunpack.c.l.b16 %v3850
    %v3983 = vunpack.c.l.b16 %v3851
    %v3984 = vunpack.c.l.b16 %v3852
    %v3985 = vunpack.c.l.b16 %v3853
    %v3986 = vunpack.c.l.b16 %v3854
    %v3987 = vunpack.c.l.b16 %v3855
    %v3988 = vunpack.c.l.b16 %v3856
    %v3989 = vunpack.c.l.b16 %v3857
    %v3990 = vunpack.c.l.b16 %v3858
    %v3991 = vunpack.c.l.b16 %v3859
    %v3992 = vpack.c.b16 %v3929, %v3928
    %v3993 = vpack.c.b16 %v3931, %v3930
    %v3994 = vpack.c.b16 %v3933, %v3932
    %v3995 = vpack.c.b16 %v3935, %v3934
    %v3996 = vpack.c.b16 %v3937, %v3936
    %v3997 = vpack.c.b16 %v3939, %v3938
    %v3998 = vpack.c.b16 %v3941, %v3940
    %v3999 = vpack.c.b16 %v3943, %v3942
    %v4000 = vpack.c.b16 %v3945, %v3944
    %v4001 = vpack.c.b16 %v3947, %v3946
    %v4002 = vpack.c.b16 %v3949, %v3948
    %v4003 = vpack.c.b16 %v3951, %v3950
    %v4004 = vpack.c.b16 %v3953, %v3952
    %v4005 = vpack.c.b16 %v3955, %v3954
    %v4006 = vpack.c.b16 %v3957, %v3956
    %v4007 = vpack.c.b16 %v3959, %v3958
    %v4008 = vpack.c.b16 %v3961, %v3960
    %v4009 = vpack.c.b16 %v3963, %v3962
    %v4010 = vpack.c.b16 %v3965, %v3964
    %v4011 = vpack.c.b16 %v3967, %v3966
    %v4012 = vpack.c.b16 %v3969, %v3968
    %v4013 = vpack.c.b16 %v3971, %v3970
    %v4014 = vpack.c.b16 %v3973, %v3972
    %v4015 = vpack.c.b16 %v3975, %v3974
    %v4016 = vpack.c.b16 %v3977, %v3976
    %v4017 = vpack.c.b16 %v3979, %v3978
    %v4018 = vpack.c.b16 %v3981, %v3980
    %v4019 = vpack.c.b16 %v3983, %v3982
    %v4020 = vpack.c.b16 %v3985, %v3984
    %v4021 = vpack.c.b16 %v3987, %v3986
    %v4022 = vpack.c.b16 %v3989, %v3988
    %v4023 = vpack.c.b16 %v3991, %v3990
    %4056 = vmatpush.bf16.msra.mxu0 %v3999
    %4057 = vmatpush.bf16.msra.mxu0 %v3998
    %4058 = vmatpush.bf16.msra.mxu0 %v3997
    %4059 = vmatpush.bf16.msra.mxu0 %v3996
    %4060 = vmatpush.bf16.msra.mxu0 %v3995
    %4061 = vmatpush.bf16.msra.mxu0 %v3994
    %4062 = vmatpush.bf16.msra.mxu0 %v3993
    %4063 = vmatpush.bf16.msra.mxu0 %v3992
    %4064 = vmatmul.bf16.gmra.mxu0 %v3764
    %v4065 = vpop.f32.mrf.mxu0
    %v4066 = vadd.f32 %v3862, %v4065
    %v4067 = vpop.f32.mrf.mxu0
    %v4068 = vadd.f32 %v3862, %v4067
    %4069 = vmatmul.bf16.gmra.mxu0 %v3768
    %v4070 = vpop.f32.mrf.mxu0
    %v4071 = vadd.f32 %v3862, %v4070
    %v4072 = vpop.f32.mrf.mxu0
    %v4073 = vadd.f32 %v3862, %v4072
    %4074 = vmatmul.bf16.gmra.mxu0 %v3772
    %v4075 = vpop.f32.mrf.mxu0
    %v4076 = vadd.f32 %v3862, %v4075
    %v4077 = vpop.f32.mrf.mxu0
    %v4078 = vadd.f32 %v3862, %v4077
    %4079 = vmatmul.bf16.gmra.mxu0 %v3776
    %v4080 = vpop.f32.mrf.mxu0
    %v4081 = vadd.f32 %v3862, %v4080
    %v4082 = vpop.f32.mrf.mxu0
    %v4083 = vadd.f32 %v3862, %v4082
    %4084 = vmatmul.bf16.gmra.mxu0 %v3780
    %v4085 = vpop.f32.mrf.mxu0
    %v4086 = vadd.f32 %v3862, %v4085
    %v4087 = vpop.f32.mrf.mxu0
    %v4088 = vadd.f32 %v3862, %v4087
    %4089 = vmatmul.bf16.gmra.mxu0 %v3784
    %v4090 = vpop.f32.mrf.mxu0
    %v4091 = vadd.f32 %v3862, %v4090
    %v4092 = vpop.f32.mrf.mxu0
    %v4093 = vadd.f32 %v3862, %v4092
    %4094 = vmatmul.bf16.gmra.mxu0 %v3788
    %v4095 = vpop.f32.mrf.mxu0
    %v4096 = vadd.f32 %v3862, %v4095
    %v4097 = vpop.f32.mrf.mxu0
    %v4098 = vadd.f32 %v3862, %v4097
    %4099 = vmatmul.bf16.gmra.mxu0 %v3792
    %v4100 = vpop.f32.mrf.mxu0
    %v4101 = vadd.f32 %v3862, %v4100
    %v4102 = vpop.f32.mrf.mxu0
    %v4103 = vadd.f32 %v3862, %v4102
    %4104 = vdwg.mxu0
    %4105 = vmatpush.bf16.msra.mxu0 %v4007
    %4106 = vmatpush.bf16.msra.mxu0 %v4006
    %4107 = vmatpush.bf16.msra.mxu0 %v4005
    %4108 = vmatpush.bf16.msra.mxu0 %v4004
    %4109 = vmatpush.bf16.msra.mxu0 %v4003
    %4110 = vmatpush.bf16.msra.mxu0 %v4002
    %4111 = vmatpush.bf16.msra.mxu0 %v4001
    %4112 = vmatpush.bf16.msra.mxu0 %v4000
    %4113 = vmatmul.bf16.gmra.mxu0 %v3765
    %v4114 = vpop.f32.mrf.mxu0
    %v4115 = vadd.f32 %v4066, %v4114
    %v4116 = vpop.f32.mrf.mxu0
    %v4117 = vadd.f32 %v4068, %v4116
    %4118 = vmatmul.bf16.gmra.mxu0 %v3769
    %v4119 = vpop.f32.mrf.mxu0
    %v4120 = vadd.f32 %v4071, %v4119
    %v4121 = vpop.f32.mrf.mxu0
    %v4122 = vadd.f32 %v4073, %v4121
    %4123 = vmatmul.bf16.gmra.mxu0 %v3773
    %v4124 = vpop.f32.mrf.mxu0
    %v4125 = vadd.f32 %v4076, %v4124
    %v4126 = vpop.f32.mrf.mxu0
    %v4127 = vadd.f32 %v4078, %v4126
    %4128 = vmatmul.bf16.gmra.mxu0 %v3777
    %v4129 = vpop.f32.mrf.mxu0
    %v4130 = vadd.f32 %v4081, %v4129
    %v4131 = vpop.f32.mrf.mxu0
    %v4132 = vadd.f32 %v4083, %v4131
    %4133 = vmatmul.bf16.gmra.mxu0 %v3781
    %v4134 = vpop.f32.mrf.mxu0
    %v4135 = vadd.f32 %v4086, %v4134
    %v4136 = vpop.f32.mrf.mxu0
    %v4137 = vadd.f32 %v4088, %v4136
    %4138 = vmatmul.bf16.gmra.mxu0 %v3785
    %v4139 = vpop.f32.mrf.mxu0
    %v4140 = vadd.f32 %v4091, %v4139
    %v4141 = vpop.f32.mrf.mxu0
    %v4142 = vadd.f32 %v4093, %v4141
    %4143 = vmatmul.bf16.gmra.mxu0 %v3789
    %v4144 = vpop.f32.mrf.mxu0
    %v4145 = vadd.f32 %v4096, %v4144
    %v4146 = vpop.f32.mrf.mxu0
    %v4147 = vadd.f32 %v4098, %v4146
    %4148 = vmatmul.bf16.gmra.mxu0 %v3793
    %v4149 = vpop.f32.mrf.mxu0
    %v4150 = vadd.f32 %v4101, %v4149
    %v4151 = vpop.f32.mrf.mxu0
    %v4152 = vadd.f32 %v4103, %v4151
    %4153 = vdwg.mxu0
    %4154 = vmatpush.bf16.msra.mxu0 %v4015
    %4155 = vmatpush.bf16.msra.mxu0 %v4014
    %4156 = vmatpush.bf16.msra.mxu0 %v4013
    %4157 = vmatpush.bf16.msra.mxu0 %v4012
    %4158 = vmatpush.bf16.msra.mxu0 %v4011
    %4159 = vmatpush.bf16.msra.mxu0 %v4010
    %4160 = vmatpush.bf16.msra.mxu0 %v4009
    %4161 = vmatpush.bf16.msra.mxu0 %v4008
    %4162 = vmatmul.bf16.gmra.mxu0 %v3766
    %v4163 = vpop.f32.mrf.mxu0
    %v4164 = vadd.f32 %v4115, %v4163
    %v4165 = vpop.f32.mrf.mxu0
    %v4166 = vadd.f32 %v4117, %v4165
    %4167 = vmatmul.bf16.gmra.mxu0 %v3770
    %v4168 = vpop.f32.mrf.mxu0
    %v4169 = vadd.f32 %v4120, %v4168
    %v4170 = vpop.f32.mrf.mxu0
    %v4171 = vadd.f32 %v4122, %v4170
    %4172 = vmatmul.bf16.gmra.mxu0 %v3774
    %v4173 = vpop.f32.mrf.mxu0
    %v4174 = vadd.f32 %v4125, %v4173
    %v4175 = vpop.f32.mrf.mxu0
    %v4176 = vadd.f32 %v4127, %v4175
    %4177 = vmatmul.bf16.gmra.mxu0 %v3778
    %v4178 = vpop.f32.mrf.mxu0
    %v4179 = vadd.f32 %v4130, %v4178
    %v4180 = vpop.f32.mrf.mxu0
    %v4181 = vadd.f32 %v4132, %v4180
    %4182 = vmatmul.bf16.gmra.mxu0 %v3782
    %v4183 = vpop.f32.mrf.mxu0
    %v4184 = vadd.f32 %v4135, %v4183
    %v4185 = vpop.f32.mrf.mxu0
    %v4186 = vadd.f32 %v4137, %v4185
    %4187 = vmatmul.bf16.gmra.mxu0 %v3786
    %v4188 = vpop.f32.mrf.mxu0
    %v4189 = vadd.f32 %v4140, %v4188
    %v4190 = vpop.f32.mrf.mxu0
    %v4191 = vadd.f32 %v4142, %v4190
    %4192 = vmatmul.bf16.gmra.mxu0 %v3790
    %v4193 = vpop.f32.mrf.mxu0
    %v4194 = vadd.f32 %v4145, %v4193
    %v4195 = vpop.f32.mrf.mxu0
    %v4196 = vadd.f32 %v4147, %v4195
    %4197 = vmatmul.bf16.gmra.mxu0 %v3794
    %v4198 = vpop.f32.mrf.mxu0
    %v4199 = vadd.f32 %v4150, %v4198
    %v4200 = vpop.f32.mrf.mxu0
    %v4201 = vadd.f32 %v4152, %v4200
    %4202 = vdwg.mxu0
    %4203 = vmatpush.bf16.msra.mxu0 %v4023
    %4204 = vmatpush.bf16.msra.mxu0 %v4022
    %4205 = vmatpush.bf16.msra.mxu0 %v4021
    %4206 = vmatpush.bf16.msra.mxu0 %v4020
    %4207 = vmatpush.bf16.msra.mxu0 %v4019
    %4208 = vmatpush.bf16.msra.mxu0 %v4018
    %4209 = vmatpush.bf16.msra.mxu0 %v4017
    %4210 = vmatpush.bf16.msra.mxu0 %v4016
    %4211 = vmatmul.bf16.gmra.mxu0 %v3767
    %v4212 = vpop.f32.mrf.mxu0
    %v4213 = vadd.f32 %v4164, %v4212
    %v4214 = vpop.f32.mrf.mxu0
    %v4215 = vadd.f32 %v4166, %v4214
    %4216 = vmatmul.bf16.gmra.mxu0 %v3771
    %v4217 = vpop.f32.mrf.mxu0
    %v4218 = vadd.f32 %v4169, %v4217
    %v4219 = vpop.f32.mrf.mxu0
    %v4220 = vadd.f32 %v4171, %v4219
    %4221 = vmatmul.bf16.gmra.mxu0 %v3775
    %v4222 = vpop.f32.mrf.mxu0
    %v4223 = vadd.f32 %v4174, %v4222
    %v4224 = vpop.f32.mrf.mxu0
    %v4225 = vadd.f32 %v4176, %v4224
    %4226 = vmatmul.bf16.gmra.mxu0 %v3779
    %v4227 = vpop.f32.mrf.mxu0
    %v4228 = vadd.f32 %v4179, %v4227
    %v4229 = vpop.f32.mrf.mxu0
    %v4230 = vadd.f32 %v4181, %v4229
    %4231 = vmatmul.bf16.gmra.mxu0 %v3783
    %v4232 = vpop.f32.mrf.mxu0
    %v4233 = vadd.f32 %v4184, %v4232
    %v4234 = vpop.f32.mrf.mxu0
    %v4235 = vadd.f32 %v4186, %v4234
    %4236 = vmatmul.bf16.gmra.mxu0 %v3787
    %v4237 = vpop.f32.mrf.mxu0
    %v4238 = vadd.f32 %v4189, %v4237
    %v4239 = vpop.f32.mrf.mxu0
    %v4240 = vadd.f32 %v4191, %v4239
    %4241 = vmatmul.bf16.gmra.mxu0 %v3791
    %v4242 = vpop.f32.mrf.mxu0
    %v4243 = vadd.f32 %v4194, %v4242
    %v4244 = vpop.f32.mrf.mxu0
    %v4245 = vadd.f32 %v4196, %v4244
    %4246 = vmatmul.bf16.gmra.mxu0 %v3795
    %v4247 = vpop.f32.mrf.mxu0
    %v4248 = vadd.f32 %v4199, %v4247
    %v4249 = vpop.f32.mrf.mxu0
    %v4250 = vadd.f32 %v4201, %v4249
    %4251 = vdwg.mxu0
    %4252 = vst [vmem:[#allocation8] sm:$0xff] %v4213
    %4253 = vst [vmem:[#allocation8 + $0x8] sm:$0xff] %v4215
    %4254 = vst [vmem:[#allocation8 + $0x10] sm:$0xff] %v4218
    %4255 = vst [vmem:[#allocation8 + $0x18] sm:$0xff] %v4220
    %4256 = vst [vmem:[#allocation8 + $0x20] sm:$0xff] %v4223
    %4257 = vst [vmem:[#allocation8 + $0x28] sm:$0xff] %v4225
    %4258 = vst [vmem:[#allocation8 + $0x30] sm:$0xff] %v4228
    %4259 = vst [vmem:[#allocation8 + $0x38] sm:$0xff] %v4230
    %4260 = vst [vmem:[#allocation8 + $0x40] sm:$0xff] %v4233
    %4261 = vst [vmem:[#allocation8 + $0x48] sm:$0xff] %v4235
    %4262 = vst [vmem:[#allocation8 + $0x50] sm:$0xff] %v4238
    %4263 = vst [vmem:[#allocation8 + $0x58] sm:$0xff] %v4240
    %4264 = vst [vmem:[#allocation8 + $0x60] sm:$0xff] %v4243
    %4265 = vst [vmem:[#allocation8 + $0x68] sm:$0xff] %v4245
    %4266 = vst [vmem:[#allocation8 + $0x70] sm:$0xff] %v4248
    %4267 = vst [vmem:[#allocation8 + $0x78] sm:$0xff] %v4250
    // Predicated region
    $region50: #{tpu_custom_call.1} parent=1 // pred_check
      _
    $region51: #{tpu_custom_call.1} parent=1 // pred_check_branch
      %4269 = sbr.rel (0) target = $region53
    $region52: #{tpu_custom_call.1} parent=1 // pred_region
      %4271 = vsyncadd [#allocation4], 0
      %s4272 = sshll.u32 [#allocation8], 4
      %s4273 = int_to_ptr.vmem [resolvable:$true] %s4272
      %s4274 = sshll.u32 %s9, 4
      %s4275 = int_to_ptr.hbm [resolvable:$true] %s4274
      %4280 = dma.vmem_to_hbm [thread:$0]  %s4273, 2048, %s4275, [#allocation4], 128, 128, 8
    $region53: #{tpu_custom_call.1} parent=1 // pred_fallthru
      _
    // Predicated region
    $region54: #{tpu_custom_call.1} parent=1 // pred_check
      _
    $region55: #{tpu_custom_call.1} parent=1 // pred_check_branch
      %4282 = sbr.rel (0) target = $region57
    $region56: #{tpu_custom_call.1} parent=1 // pred_region
      %4284 = dma.done [#allocation4], 2048
    $region57: #{tpu_custom_call.1} parent=1 // pred_fallthru
      _
    %4285 = vsyncpa [#allocation3], 1
    %4286 = vsyncpa [#allocation6], 1
    %4287 = vsyncpa [#allocation4], 1

// kernel: tpu_custom_call.1
$region0: #{tpu_custom_call.1}
  #allocation0 [shape = 'u32[]', space=smem, size = 0x4, offset = 0x4, fixed_abs, tag = 'smem constant byte address 0x4 - core index']
  #allocation1 [shape = 'u32[72,128]{1,0:T(1,128)}', space=vmem, size = 0x9000, scoped, tag = 'internal scratch']
  %s0 = inlined_call_operand.vmem [shape: f32[128,32], index: 0, kind: input, shape index: {}]
  %s1 = inlined_call_operand.vmem [shape: bf16[32,512], index: 1, kind: input, shape index: {}]
  %s2 = inlined_call_operand.vmem [shape: f32[1,512], index: 2, kind: input, shape index: {}]
  %s3 = inlined_call_operand.hbm [shape: bf16[512,512], index: 3, kind: input, shape index: {}]
  %s4 = inlined_call_operand.vmem [shape: f32[1,512], index: 4, kind: input, shape index: {}]
  %s5 = inlined_call_operand.hbm [shape: bf16[512,512], index: 5, kind: input, shape index: {}]
  %s6 = inlined_call_operand.vmem [shape: f32[1,512], index: 6, kind: input, shape index: {}]
  %s7 = inlined_call_operand.hbm [shape: bf16[512,128], index: 7, kind: input, shape index: {}]
  %s8 = inlined_call_operand.vmem [shape: f32[1,128], index: 8, kind: input, shape index: {}]
  %s9 = inlined_call_operand.hbm [shape: f32[128,128], index: 9, kind: output, shape index: {}]
  %s10 = sld [smem:[#allocation0]]
  $region58: #{tpu_custom_call.1} parent=0
    _
  %s12 = ssub.s32 1, %s10
  %s13 = scalar_select 0, %s12, %s10
  $region1: #{tpu_custom_call.1} parent=0
    #allocation2 [shape = 'u8[524288]{0}', space=vmem, size = 0x80000, scoped, tag = 'input window, operand 3, single buffered']
    #allocation3 [shape = 's32[1]{0}', space=sflag, size = 0x4, scoped, tag = 'scoped memory for tpu_custom_call.1']
    #allocation4 [shape = 's32[1]{0}', space=sflag, size = 0x4, scoped, tag = 'scoped memory for tpu_custom_call.1']
    #allocation5 [shape = 'u8[524288]{0}', space=vmem, size = 0x80000, scoped, tag = 'input window, operand 5, single buffered']
    #allocation6 [shape = 's32[1]{0}', space=sflag, size = 0x4, scoped, tag = 'scoped memory for tpu_custom_call.1']
    #allocation7 [shape = 'u8[131072]{0}', space=vmem, size = 0x20000, scoped, tag = 'input window, operand 7, single buffered']
    #allocation8 [shape = 'u8[65536]{0}', space=vmem, size = 0x10000, scoped, tag = 'output window, operand 0, single buffered']
    %14 = vsyncpa [#allocation3], 0
    %15 = vsyncpa [#allocation6], 0
    %16 = vsyncpa [#allocation4], 0
    // Predicated region
    $region2: #{tpu_custom_call.1} parent=1 // pred_check
      _
    $region3: #{tpu_custom_call.1} parent=1 // pred_check_branch
      %18 = sbr.rel (0) target = $region5
    $region4: #{tpu_custom_call.1} parent=1 // pred_region
      _
    $region5: #{tpu_custom_call.1} parent=1 // pred_fallthru
      _
    // Predicated region
    $region6: #{tpu_custom_call.1} parent=1 // pred_check
      _
    $region7: #{tpu_custom_call.1} parent=1 // pred_check_branch
      %20 = sbr.rel (0) target = $region9
    $region8: #{tpu_custom_call.1} parent=1 // pred_region
      _
    $region9: #{tpu_custom_call.1} parent=1 // pred_fallthru
      _
    // Predicated region
    $region10: #{tpu_custom_call.1} parent=1 // pred_check
      _
    $region11: #{tpu_custom_call.1} parent=1 // pred_check_branch
      %22 = sbr.rel (0) target = $region13
    $region12: #{tpu_custom_call.1} parent=1 // pred_region
      _
    $region13: #{tpu_custom_call.1} parent=1 // pred_fallthru
      _
    // Predicated region
    $region14: #{tpu_custom_call.1} parent=1 // pred_check
      _
    $region15: #{tpu_custom_call.1} parent=1 // pred_check_branch
      %24 = sbr.rel (0) target = $region17
    $region16: #{tpu_custom_call.1} parent=1 // pred_region
      %26 = vsyncadd [#allocation3], 0
      %s27 = sshll.u32 %s3, 4
      %s28 = int_to_ptr.hbm [resolvable:$true] %s27
      %s29 = sshll.u32 [#allocation2], 4
      %s30 = int_to_ptr.vmem [resolvable:$true] %s29
      %35 = dma.hbm_to_vmem [thread:$0]  %s28, 16384, %s30, [#allocation3], 256, 256, 16
    $region17: #{tpu_custom_call.1} parent=1 // pred_fallthru
      _
    // Predicated region
    $region18: #{tpu_custom_call.1} parent=1 // pred_check
      _
    $region19: #{tpu_custom_call.1} parent=1 // pred_check_branch
      %37 = sbr.rel (0) target = $region21
    $region20: #{tpu_custom_call.1} parent=1 // pred_region
      _
    $region21: #{tpu_custom_call.1} parent=1 // pred_fallthru
      _
    // Predicated region
    $region22: #{tpu_custom_call.1} parent=1 // pred_check
      _
    $region23: #{tpu_custom_call.1} parent=1 // pred_check_branch
      %39 = sbr.rel (0) target = $region25
    $region24: #{tpu_custom_call.1} parent=1 // pred_region
      %41 = vsyncadd [#allocation6], 0
      %s42 = sshll.u32 %s5, 4
      %s43 = int_to_ptr.hbm [resolvable:$true] %s42
      %s44 = sshll.u32 [#allocation5], 4
      %s45 = int_to_ptr.vmem [resolvable:$true] %s44
      %50 = dma.hbm_to_vmem [thread:$0]  %s43, 16384, %s45, [#allocation6], 256, 256, 16
    $region25: #{tpu_custom_call.1} parent=1 // pred_fallthru
      _
    // Predicated region
    $region26: #{tpu_custom_call.1} parent=1 // pred_check
      _
    $region27: #{tpu_custom_call.1} parent=1 // pred_check_branch
      %52 = sbr.rel (0) target = $region29
    $region28: #{tpu_custom_call.1} parent=1 // pred_region
      _
    $region29: #{tpu_custom_call.1} parent=1 // pred_fallthru
      _
    // Predicated region
    $region30: #{tpu_custom_call.1} parent=1 // pred_check
      _
    $region31: #{tpu_custom_call.1} parent=1 // pred_check_branch
      %54 = sbr.rel (0) target = $region33
    $region32: #{tpu_custom_call.1} parent=1 // pred_region
      %56 = vsyncadd [#allocation6], 0
      %s57 = sshll.u32 %s7, 4
      %s58 = int_to_ptr.hbm [resolvable:$true] %s57
      %s59 = sshll.u32 [#allocation7], 4
      %s60 = int_to_ptr.vmem [resolvable:$true] %s59
      %65 = dma.hbm_to_vmem [thread:$0]  %s58, 4096, %s60, [#allocation6], 64, 64, 4
    $region33: #{tpu_custom_call.1} parent=1 // pred_fallthru
      _
    // Predicated region
    $region34: #{tpu_custom_call.1} parent=1 // pred_check
      _
    $region35: #{tpu_custom_call.1} parent=1 // pred_check_branch
      %67 = sbr.rel (0) target = $region37
    $region36: #{tpu_custom_call.1} parent=1 // pred_region
      _
    $region37: #{tpu_custom_call.1} parent=1 // pred_fallthru
      _
    // Predicated region
    $region38: #{tpu_custom_call.1} parent=1 // pred_check
      _
    $region39: #{tpu_custom_call.1} parent=1 // pred_check_branch
      %69 = sbr.rel (0) target = $region41
    $region40: #{tpu_custom_call.1} parent=1 // pred_region
      %71 = dma.done [#allocation3], 16384
    $region41: #{tpu_custom_call.1} parent=1 // pred_fallthru
      _
    // Predicated region
    $region42: #{tpu_custom_call.1} parent=1 // pred_check
      _
    $region43: #{tpu_custom_call.1} parent=1 // pred_check_branch
      %73 = sbr.rel (0) target = $region45
    $region44: #{tpu_custom_call.1} parent=1 // pred_region
      %75 = dma.done [#allocation6], 16384
    $region45: #{tpu_custom_call.1} parent=1 // pred_fallthru
      _
    // Predicated region
    $region46: #{tpu_custom_call.1} parent=1 // pred_check
      _
    $region47: #{tpu_custom_call.1} parent=1 // pred_check_branch
      %77 = sbr.rel (0) target = $region49
    $region48: #{tpu_custom_call.1} parent=1 // pred_region
      %79 = dma.done [#allocation6], 4096
    $region49: #{tpu_custom_call.1} parent=1 // pred_fallthru
      _
    %v81 = vld [vmem:[%s0] sm:$0xff]
    %v82 = vld [vmem:[%s0 + $0x8] sm:$0xff]
    %v83 = vld [vmem:[%s0 + $0x10] sm:$0xff]
    %v84 = vld [vmem:[%s0 + $0x18] sm:$0xff]
    %v85 = vld [vmem:[%s0 + $0x20] sm:$0xff]
    %v86 = vld [vmem:[%s0 + $0x28] sm:$0xff]
    %v87 = vld [vmem:[%s0 + $0x30] sm:$0xff]
    %v88 = vld [vmem:[%s0 + $0x38] sm:$0xff]
    %v89 = vld [vmem:[%s0 + $0x40] sm:$0xff]
    %v90 = vld [vmem:[%s0 + $0x48] sm:$0xff]
    %v91 = vld [vmem:[%s0 + $0x50] sm:$0xff]
    %v92 = vld [vmem:[%s0 + $0x58] sm:$0xff]
    %v93 = vld [vmem:[%s0 + $0x60] sm:$0xff]
    %v94 = vld [vmem:[%s0 + $0x68] sm:$0xff]
    %v95 = vld [vmem:[%s0 + $0x70] sm:$0xff]
    %v96 = vld [vmem:[%s0 + $0x78] sm:$0xff]
    %v97 = vpack.c.bf16 %v82, %v81
    %v98 = vpack.c.bf16 %v84, %v83
    %v99 = vpack.c.bf16 %v86, %v85
    %v100 = vpack.c.bf16 %v88, %v87
    %v101 = vpack.c.bf16 %v90, %v89
    %v102 = vpack.c.bf16 %v92, %v91
    %v103 = vpack.c.bf16 %v94, %v93
    %v104 = vpack.c.bf16 %v96, %v95
    %v105 = vld [vmem:[%s1] sm:$0xff]
    %v106 = vld [vmem:[%s1 + $0x8] sm:$0xff]
    %v107 = vld [vmem:[%s1 + $0x10] sm:$0xff]
    %v108 = vld [vmem:[%s1 + $0x18] sm:$0xff]
    %v109 = vld [vmem:[%s1 + $0x20] sm:$0xff]
    %v110 = vld [vmem:[%s1 + $0x28] sm:$0xff]
    %v111 = vld [vmem:[%s1 + $0x30] sm:$0xff]
    %v112 = vld [vmem:[%s1 + $0x38] sm:$0xff]
    %v113 = vld [vmem:[%s2] sm:$0xf]
    %v115 = vperm.slane %v113, 0
    %v116 = vperm.slane %v113, 1
    %v117 = vperm.slane %v113, 2
    %v118 = vperm.slane %v113, 3
    %v131 = vunpack.c.l.b16 %v105
    %v132 = vunpack.c.h.b16 %v105
    %v133 = vunpack.c.l.b16 %v106
    %v134 = vunpack.c.h.b16 %v106
    %v135 = vunpack.c.l.b16 %v107
    %v136 = vunpack.c.h.b16 %v107
    %v137 = vunpack.c.l.b16 %v108
    %v138 = vunpack.c.h.b16 %v108
    %v139 = vunpack.c.l.b16 %v109
    %v140 = vunpack.c.h.b16 %v109
    %v141 = vunpack.c.l.b16 %v110
    %v142 = vunpack.c.h.b16 %v110
    %v143 = vunpack.c.l.b16 %v111
    %v144 = vunpack.c.h.b16 %v111
    %v145 = vunpack.c.l.b16 %v112
    %v146 = vunpack.c.h.b16 %v112
    %v147 = vpack.c.b16 %v135, %v131
    %v148 = vpack.c.b16 %v136, %v132
    %v149 = vpack.c.b16 %v137, %v133
    %v150 = vpack.c.b16 %v138, %v134
    %v151 = vpack.c.b16 %v143, %v139
    %v152 = vpack.c.b16 %v144, %v140
    %v153 = vpack.c.b16 %v145, %v141
    %v154 = vpack.c.b16 %v146, %v142
    %vm163 = vcmask 261120
    %v165 = vsel %vm163, %v97, 0
    %v168 = vsel %vm163, %v98, 0
    %v171 = vsel %vm163, %v99, 0
    %v174 = vsel %vm163, %v100, 0
    %v177 = vsel %vm163, %v101, 0
    %v180 = vsel %vm163, %v102, 0
    %v183 = vsel %vm163, %v103, 0
    %v186 = vsel %vm163, %v104, 0
    %188 = vmatpush.bf16.msra.mxu0 0
    %189 = vmatpush.bf16.msra.mxu0 0
    %190 = vmatpush.bf16.msra.mxu0 0
    %191 = vmatpush.bf16.msra.mxu0 0
    %192 = vmatpush.bf16.msra.mxu0 0
    %193 = vmatpush.bf16.msra.mxu0 0
    %194 = vmatpush.bf16.msra.mxu0 %v151
    %195 = vmatpush.bf16.msra.mxu0 %v147
    %196 = vmatmul.bf16.gmra.mxu0 %v165
    %v197 = vpop.f32.mrf.mxu0
    %v198 = vadd.f32 %v115, %v197
    %v199 = vpop.f32.mrf.mxu0
    %v200 = vadd.f32 %v115, %v199
    %201 = vmatmul.bf16.gmra.mxu0 %v168
    %v202 = vpop.f32.mrf.mxu0
    %v203 = vadd.f32 %v115, %v202
    %v204 = vpop.f32.mrf.mxu0
    %v205 = vadd.f32 %v115, %v204
    %206 = vmatmul.bf16.gmra.mxu0 %v171
    %v207 = vpop.f32.mrf.mxu0
    %v208 = vadd.f32 %v115, %v207
    %v209 = vpop.f32.mrf.mxu0
    %v210 = vadd.f32 %v115, %v209
    %211 = vmatmul.bf16.gmra.mxu0 %v174
    %v212 = vpop.f32.mrf.mxu0
    %v213 = vadd.f32 %v115, %v212
    %v214 = vpop.f32.mrf.mxu0
    %v215 = vadd.f32 %v115, %v214
    %216 = vmatmul.bf16.gmra.mxu0 %v177
    %v217 = vpop.f32.mrf.mxu0
    %v218 = vadd.f32 %v115, %v217
    %v219 = vpop.f32.mrf.mxu0
    %v220 = vadd.f32 %v115, %v219
    %221 = vmatmul.bf16.gmra.mxu0 %v180
    %v222 = vpop.f32.mrf.mxu0
    %v223 = vadd.f32 %v115, %v222
    %v224 = vpop.f32.mrf.mxu0
    %v225 = vadd.f32 %v115, %v224
    %226 = vmatmul.bf16.gmra.mxu0 %v183
    %v227 = vpop.f32.mrf.mxu0
    %v228 = vadd.f32 %v115, %v227
    %v229 = vpop.f32.mrf.mxu0
    %v230 = vadd.f32 %v115, %v229
    %231 = vmatmul.bf16.gmra.mxu0 %v186
    %v232 = vpop.f32.mrf.mxu0
    %v233 = vadd.f32 %v115, %v232
    %v234 = vpop.f32.mrf.mxu0
    %v235 = vadd.f32 %v115, %v234
    %236 = vdwg.mxu0
    %237 = vmatpush.bf16.msra.mxu0 0
    %238 = vmatpush.bf16.msra.mxu0 0
    %239 = vmatpush.bf16.msra.mxu0 0
    %240 = vmatpush.bf16.msra.mxu0 0
    %241 = vmatpush.bf16.msra.mxu0 0
    %242 = vmatpush.bf16.msra.mxu0 0
    %243 = vmatpush.bf16.msra.mxu0 %v152
    %244 = vmatpush.bf16.msra.mxu0 %v148
    %245 = vmatmul.bf16.gmra.mxu0 %v165
    %v246 = vpop.f32.mrf.mxu0
    %v247 = vadd.f32 %v116, %v246
    %v248 = vpop.f32.mrf.mxu0
    %v249 = vadd.f32 %v116, %v248
    %250 = vmatmul.bf16.gmra.mxu0 %v168
    %v251 = vpop.f32.mrf.mxu0
    %v252 = vadd.f32 %v116, %v251
    %v253 = vpop.f32.mrf.mxu0
    %v254 = vadd.f32 %v116, %v253
    %255 = vmatmul.bf16.gmra.mxu0 %v171
    %v256 = vpop.f32.mrf.mxu0
    %v257 = vadd.f32 %v116, %v256
    %v258 = vpop.f32.mrf.mxu0
    %v259 = vadd.f32 %v116, %v258
    %260 = vmatmul.bf16.gmra.mxu0 %v174
    %v261 = vpop.f32.mrf.mxu0
    %v262 = vadd.f32 %v116, %v261
    %v263 = vpop.f32.mrf.mxu0
    %v264 = vadd.f32 %v116, %v263
    %265 = vmatmul.bf16.gmra.mxu0 %v177
    %v266 = vpop.f32.mrf.mxu0
    %v267 = vadd.f32 %v116, %v266
    %v268 = vpop.f32.mrf.mxu0
    %v269 = vadd.f32 %v116, %v268
    %270 = vmatmul.bf16.gmra.mxu0 %v180
    %v271 = vpop.f32.mrf.mxu0
    %v272 = vadd.f32 %v116, %v271
    %v273 = vpop.f32.mrf.mxu0
    %v274 = vadd.f32 %v116, %v273
    %275 = vmatmul.bf16.gmra.mxu0 %v183
    %v276 = vpop.f32.mrf.mxu0
    %v277 = vadd.f32 %v116, %v276
    %v278 = vpop.f32.mrf.mxu0
    %v279 = vadd.f32 %v116, %v278
    %280 = vmatmul.bf16.gmra.mxu0 %v186
    %v281 = vpop.f32.mrf.mxu0
    %v282 = vadd.f32 %v116, %v281
    %v283 = vpop.f32.mrf.mxu0
    %v284 = vadd.f32 %v116, %v283
    %285 = vdwg.mxu0
    %286 = vmatpush.bf16.msra.mxu0 0
    %287 = vmatpush.bf16.msra.mxu0 0
    %288 = vmatpush.bf16.msra.mxu0 0
    %289 = vmatpush.bf16.msra.mxu0 0
    %290 = vmatpush.bf16.msra.mxu0 0
    %291 = vmatpush.bf16.msra.mxu0 0
    %292 = vmatpush.bf16.msra.mxu0 %v153
    %293 = vmatpush.bf16.msra.mxu0 %v149
    %294 = vmatmul.bf16.gmra.mxu0 %v165
    %v295 = vpop.f32.mrf.mxu0
    %v296 = vadd.f32 %v117, %v295
    %v297 = vpop.f32.mrf.mxu0
    %v298 = vadd.f32 %v117, %v297
    %299 = vmatmul.bf16.gmra.mxu0 %v168
    %v300 = vpop.f32.mrf.mxu0
    %v301 = vadd.f32 %v117, %v300
    %v302 = vpop.f32.mrf.mxu0
    %v303 = vadd.f32 %v117, %v302
    %304 = vmatmul.bf16.gmra.mxu0 %v171
    %v305 = vpop.f32.mrf.mxu0
    %v306 = vadd.f32 %v117, %v305
    %v307 = vpop.f32.mrf.mxu0
    %v308 = vadd.f32 %v117, %v307
    %309 = vmatmul.bf16.gmra.mxu0 %v174
    %v310 = vpop.f32.mrf.mxu0
    %v311 = vadd.f32 %v117, %v310
    %v312 = vpop.f32.mrf.mxu0
    %v313 = vadd.f32 %v117, %v312
    %314 = vmatmul.bf16.gmra.mxu0 %v177
    %v315 = vpop.f32.mrf.mxu0
    %v316 = vadd.f32 %v117, %v315
    %v317 = vpop.f32.mrf.mxu0
    %v318 = vadd.f32 %v117, %v317
    %319 = vmatmul.bf16.gmra.mxu0 %v180
    %v320 = vpop.f32.mrf.mxu0
    %v321 = vadd.f32 %v117, %v320
    %v322 = vpop.f32.mrf.mxu0
    %v323 = vadd.f32 %v117, %v322
    %324 = vmatmul.bf16.gmra.mxu0 %v183
    %v325 = vpop.f32.mrf.mxu0
    %v326 = vadd.f32 %v117, %v325
    %v327 = vpop.f32.mrf.mxu0
    %v328 = vadd.f32 %v117, %v327
    %329 = vmatmul.bf16.gmra.mxu0 %v186
    %v330 = vpop.f32.mrf.mxu0
    %v331 = vadd.f32 %v117, %v330
    %v332 = vpop.f32.mrf.mxu0
    %v333 = vadd.f32 %v117, %v332
    %334 = vdwg.mxu0
    %335 = vmatpush.bf16.msra.mxu0 0
    %336 = vmatpush.bf16.msra.mxu0 0
    %337 = vmatpush.bf16.msra.mxu0 0
    %338 = vmatpush.bf16.msra.mxu0 0
    %339 = vmatpush.bf16.msra.mxu0 0
    %340 = vmatpush.bf16.msra.mxu0 0
    %341 = vmatpush.bf16.msra.mxu0 %v154
    %342 = vmatpush.bf16.msra.mxu0 %v150
    %343 = vmatmul.bf16.gmra.mxu0 %v165
    %v344 = vpop.f32.mrf.mxu0
    %v345 = vadd.f32 %v118, %v344
    %v346 = vpop.f32.mrf.mxu0
    %v347 = vadd.f32 %v118, %v346
    %348 = vmatmul.bf16.gmra.mxu0 %v168
    %v349 = vpop.f32.mrf.mxu0
    %v350 = vadd.f32 %v118, %v349
    %v351 = vpop.f32.mrf.mxu0
    %v352 = vadd.f32 %v118, %v351
    %353 = vmatmul.bf16.gmra.mxu0 %v171
    %v354 = vpop.f32.mrf.mxu0
    %v355 = vadd.f32 %v118, %v354
    %v356 = vpop.f32.mrf.mxu0
    %v357 = vadd.f32 %v118, %v356
    %358 = vmatmul.bf16.gmra.mxu0 %v174
    %v359 = vpop.f32.mrf.mxu0
    %v360 = vadd.f32 %v118, %v359
    %v361 = vpop.f32.mrf.mxu0
    %v362 = vadd.f32 %v118, %v361
    %363 = vmatmul.bf16.gmra.mxu0 %v177
    %v364 = vpop.f32.mrf.mxu0
    %v365 = vadd.f32 %v118, %v364
    %v366 = vpop.f32.mrf.mxu0
    %v367 = vadd.f32 %v118, %v366
    %368 = vmatmul.bf16.gmra.mxu0 %v180
    %v369 = vpop.f32.mrf.mxu0
    %v370 = vadd.f32 %v118, %v369
    %v371 = vpop.f32.mrf.mxu0
    %v372 = vadd.f32 %v118, %v371
    %373 = vmatmul.bf16.gmra.mxu0 %v183
    %v374 = vpop.f32.mrf.mxu0
    %v375 = vadd.f32 %v118, %v374
    %v376 = vpop.f32.mrf.mxu0
    %v377 = vadd.f32 %v118, %v376
    %378 = vmatmul.bf16.gmra.mxu0 %v186
    %v379 = vpop.f32.mrf.mxu0
    %v380 = vadd.f32 %v118, %v379
    %v381 = vpop.f32.mrf.mxu0
    %v382 = vadd.f32 %v118, %v381
    %383 = vdwg.mxu0
    %v384 = vmax.f32 %v198, 0.0
    %v385 = vmax.f32 %v247, 0.0
    %v386 = vmax.f32 %v296, 0.0
    %v387 = vmax.f32 %v345, 0.0
    %v388 = vmax.f32 %v200, 0.0
    %v389 = vmax.f32 %v249, 0.0
    %v390 = vmax.f32 %v298, 0.0
    %v391 = vmax.f32 %v347, 0.0
    %v392 = vmax.f32 %v203, 0.0
    %v393 = vmax.f32 %v252, 0.0
    %v394 = vmax.f32 %v301, 0.0
    %v395 = vmax.f32 %v350, 0.0
    %v396 = vmax.f32 %v205, 0.0
    %v397 = vmax.f32 %v254, 0.0
    %v398 = vmax.f32 %v303, 0.0
    %v399 = vmax.f32 %v352, 0.0
    %v400 = vmax.f32 %v208, 0.0
    %v401 = vmax.f32 %v257, 0.0
    %v402 = vmax.f32 %v306, 0.0
    %v403 = vmax.f32 %v355, 0.0
    %v404 = vmax.f32 %v210, 0.0
    %v405 = vmax.f32 %v259, 0.0
    %v406 = vmax.f32 %v308, 0.0
    %v407 = vmax.f32 %v357, 0.0
    %v408 = vmax.f32 %v213, 0.0
    %v409 = vmax.f32 %v262, 0.0
    %v410 = vmax.f32 %v311, 0.0
    %v411 = vmax.f32 %v360, 0.0
    %v412 = vmax.f32 %v215, 0.0
    %v413 = vmax.f32 %v264, 0.0
    %v414 = vmax.f32 %v313, 0.0
    %v415 = vmax.f32 %v362, 0.0
    %v416 = vmax.f32 %v218, 0.0
    %v417 = vmax.f32 %v267, 0.0
    %v418 = vmax.f32 %v316, 0.0
    %v419 = vmax.f32 %v365, 0.0
    %v420 = vmax.f32 %v220, 0.0
    %v421 = vmax.f32 %v269, 0.0
    %v422 = vmax.f32 %v318, 0.0
    %v423 = vmax.f32 %v367, 0.0
    %v424 = vmax.f32 %v223, 0.0
    %v425 = vmax.f32 %v272, 0.0
    %v426 = vmax.f32 %v321, 0.0
    %v427 = vmax.f32 %v370, 0.0
    %v428 = vmax.f32 %v225, 0.0
    %v429 = vmax.f32 %v274, 0.0
    %v430 = vmax.f32 %v323, 0.0
    %v431 = vmax.f32 %v372, 0.0
    %v432 = vmax.f32 %v228, 0.0
    %v433 = vmax.f32 %v277, 0.0
    %v434 = vmax.f32 %v326, 0.0
    %v435 = vmax.f32 %v375, 0.0
    %v436 = vmax.f32 %v230, 0.0
    %v437 = vmax.f32 %v279, 0.0
    %v438 = vmax.f32 %v328, 0.0
    %v439 = vmax.f32 %v377, 0.0
    %v440 = vmax.f32 %v233, 0.0
    %v441 = vmax.f32 %v282, 0.0
    %v442 = vmax.f32 %v331, 0.0
    %v443 = vmax.f32 %v380, 0.0
    %v444 = vmax.f32 %v235, 0.0
    %v445 = vmax.f32 %v284, 0.0
    %v446 = vmax.f32 %v333, 0.0
    %v447 = vmax.f32 %v382, 0.0
    %v448 = vpack.c.bf16 %v388, %v384
    %v449 = vpack.c.bf16 %v389, %v385
    %v450 = vpack.c.bf16 %v390, %v386
    %v451 = vpack.c.bf16 %v391, %v387
    %v452 = vpack.c.bf16 %v396, %v392
    %v453 = vpack.c.bf16 %v397, %v393
    %v454 = vpack.c.bf16 %v398, %v394
    %v455 = vpack.c.bf16 %v399, %v395
    %v456 = vpack.c.bf16 %v404, %v400
    %v457 = vpack.c.bf16 %v405, %v401
    %v458 = vpack.c.bf16 %v406, %v402
    %v459 = vpack.c.bf16 %v407, %v403
    %v460 = vpack.c.bf16 %v412, %v408
    %v461 = vpack.c.bf16 %v413, %v409
    %v462 = vpack.c.bf16 %v414, %v410
    %v463 = vpack.c.bf16 %v415, %v411
    %v464 = vpack.c.bf16 %v420, %v416
    %v465 = vpack.c.bf16 %v421, %v417
    %v466 = vpack.c.bf16 %v422, %v418
    %v467 = vpack.c.bf16 %v423, %v419
    %v468 = vpack.c.bf16 %v428, %v424
    %v469 = vpack.c.bf16 %v429, %v425
    %v470 = vpack.c.bf16 %v430, %v426
    %v471 = vpack.c.bf16 %v431, %v427
    %v472 = vpack.c.bf16 %v436, %v432
    %v473 = vpack.c.bf16 %v437, %v433
    %v474 = vpack.c.bf16 %v438, %v434
    %v475 = vpack.c.bf16 %v439, %v435
    %v476 = vpack.c.bf16 %v444, %v440
    %v477 = vpack.c.bf16 %v445, %v441
    %v478 = vpack.c.bf16 %v446, %v442
    %v479 = vpack.c.bf16 %v447, %v443
    %v480 = vld [vmem:[#allocation2] sm:$0xff]
    %v481 = vld [vmem:[#allocation2 + $0x8] sm:$0xff]
    %v482 = vld [vmem:[#allocation2 + $0x10] sm:$0xff]
    %v483 = vld [vmem:[#allocation2 + $0x18] sm:$0xff]
    %v484 = vld [vmem:[#allocation2 + $0x20] sm:$0xff]
    %v485 = vld [vmem:[#allocation2 + $0x28] sm:$0xff]
    %v486 = vld [vmem:[#allocation2 + $0x30] sm:$0xff]
    %v487 = vld [vmem:[#allocation2 + $0x38] sm:$0xff]
    %v488 = vld [vmem:[#allocation2 + $0x40] sm:$0xff]
    %v489 = vld [vmem:[#allocation2 + $0x48] sm:$0xff]
    %v490 = vld [vmem:[#allocation2 + $0x50] sm:$0xff]
    %v491 = vld [vmem:[#allocation2 + $0x58] sm:$0xff]
    %v492 = vld [vmem:[#allocation2 + $0x60] sm:$0xff]
    %v493 = vld [vmem:[#allocation2 + $0x68] sm:$0xff]
    %v494 = vld [vmem:[#allocation2 + $0x70] sm:$0xff]
    %v495 = vld [vmem:[#allocation2 + $0x78] sm:$0xff]
    %v496 = vld [vmem:[#allocation2 + $0x80] sm:$0xff]
    %v497 = vld [vmem:[#allocation2 + $0x88] sm:$0xff]
    %v498 = vld [vmem:[#allocation2 + $0x90] sm:$0xff]
    %v499 = vld [vmem:[#allocation2 + $0x98] sm:$0xff]
    %v500 = vld [vmem:[#allocation2 + $0xa0] sm:$0xff]
    %v501 = vld [vmem:[#allocation2 + $0xa8] sm:$0xff]
    %v502 = vld [vmem:[#allocation2 + $0xb0] sm:$0xff]
    %v503 = vld [vmem:[#allocation2 + $0xb8] sm:$0xff]
    %v504 = vld [vmem:[#allocation2 + $0xc0] sm:$0xff]
    %v505 = vld [vmem:[#allocation2 + $0xc8] sm:$0xff]
    %v506 = vld [vmem:[#allocation2 + $0xd0] sm:$0xff]
    %v507 = vld [vmem:[#allocation2 + $0xd8] sm:$0xff]
    %v508 = vld [vmem:[#allocation2 + $0xe0] sm:$0xff]
    %v509 = vld [vmem:[#allocation2 + $0xe8] sm:$0xff]
    %v510 = vld [vmem:[#allocation2 + $0xf0] sm:$0xff]
    %v511 = vld [vmem:[#allocation2 + $0xf8] sm:$0xff]
    %v512 = vld [vmem:[#allocation2 + $0x100] sm:$0xff]
    %v513 = vld [vmem:[#allocation2 + $0x108] sm:$0xff]
    %v514 = vld [vmem:[#allocation2 + $0x110] sm:$0xff]
    %v515 = vld [vmem:[#allocation2 + $0x118] sm:$0xff]
    %v516 = vld [vmem:[#allocation2 + $0x120] sm:$0xff]
    %v517 = vld [vmem:[#allocation2 + $0x128] sm:$0xff]
    %v518 = vld [vmem:[#allocation2 + $0x130] sm:$0xff]
    %v519 = vld [vmem:[#allocation2 + $0x138] sm:$0xff]
    %v520 = vld [vmem:[#allocation2 + $0x140] sm:$0xff]
    %v521 = vld [vmem:[#allocation2 + $0x148] sm:$0xff]
    %v522 = vld [vmem:[#allocation2 + $0x150] sm:$0xff]
    %v523 = vld [vmem:[#allocation2 + $0x158] sm:$0xff]
    %v524 = vld [vmem:[#allocation2 + $0x160] sm:$0xff]
    %v525 = vld [vmem:[#allocation2 + $0x168] sm:$0xff]
    %v526 = vld [vmem:[#allocation2 + $0x170] sm:$0xff]
    %v527 = vld [vmem:[#allocation2 + $0x178] sm:$0xff]
    %v528 = vld [vmem:[#allocation2 + $0x180] sm:$0xff]
    %v529 = vld [vmem:[#allocation2 + $0x188] sm:$0xff]
    %v530 = vld [vmem:[#allocation2 + $0x190] sm:$0xff]
    %v531 = vld [vmem:[#allocation2 + $0x198] sm:$0xff]
    %v532 = vld [vmem:[#allocation2 + $0x1a0] sm:$0xff]
    %v533 = vld [vmem:[#allocation2 + $0x1a8] sm:$0xff]
    %v534 = vld [vmem:[#allocation2 + $0x1b0] sm:$0xff]
    %v535 = vld [vmem:[#allocation2 + $0x1b8] sm:$0xff]
    %v536 = vld [vmem:[#allocation2 + $0x1c0] sm:$0xff]
    %v537 = vld [vmem:[#allocation2 + $0x1c8] sm:$0xff]
    %v538 = vld [vmem:[#allocation2 + $0x1d0] sm:$0xff]
    %v539 = vld [vmem:[#allocation2 + $0x1d8] sm:$0xff]
    %v540 = vld [vmem:[#allocation2 + $0x1e0] sm:$0xff]
    %v541 = vld [vmem:[#allocation2 + $0x1e8] sm:$0xff]
    %v542 = vld [vmem:[#allocation2 + $0x1f0] sm:$0xff]
    %v543 = vld [vmem:[#allocation2 + $0x1f8] sm:$0xff]
    %v544 = vld [vmem:[#allocation2 + $0x200] sm:$0xff]
    %v545 = vld [vmem:[#allocation2 + $0x208] sm:$0xff]
    %v546 = vld [vmem:[#allocation2 + $0x210] sm:$0xff]
    %v547 = vld [vmem:[#allocation2 + $0x218] sm:$0xff]
    %v548 = vld [vmem:[#allocation2 + $0x220] sm:$0xff]
    %v549 = vld [vmem:[#allocation2 + $0x228] sm:$0xff]
    %v550 = vld [vmem:[#allocation2 + $0x230] sm:$0xff]
    %v551 = vld [vmem:[#allocation2 + $0x238] sm:$0xff]
    %v552 = vld [vmem:[#allocation2 + $0x240] sm:$0xff]
    %v553 = vld [vmem:[#allocation2 + $0x248] sm:$0xff]
    %v554 = vld [vmem:[#allocation2 + $0x250] sm:$0xff]
    %v555 = vld [vmem:[#allocation2 + $0x258] sm:$0xff]
    %v556 = vld [vmem:[#allocation2 + $0x260] sm:$0xff]
    %v557 = vld [vmem:[#allocation2 + $0x268] sm:$0xff]
    %v558 = vld [vmem:[#allocation2 + $0x270] sm:$0xff]
    %v559 = vld [vmem:[#allocation2 + $0x278] sm:$0xff]
    %v560 = vld [vmem:[#allocation2 + $0x280] sm:$0xff]
    %v561 = vld [vmem:[#allocation2 + $0x288] sm:$0xff]
    %v562 = vld [vmem:[#allocation2 + $0x290] sm:$0xff]
    %v563 = vld [vmem:[#allocation2 + $0x298] sm:$0xff]
    %v564 = vld [vmem:[#allocation2 + $0x2a0] sm:$0xff]
    %v565 = vld [vmem:[#allocation2 + $0x2a8] sm:$0xff]
    %v566 = vld [vmem:[#allocation2 + $0x2b0] sm:$0xff]
    %v567 = vld [vmem:[#allocation2 + $0x2b8] sm:$0xff]
    %v568 = vld [vmem:[#allocation2 + $0x2c0] sm:$0xff]
    %v569 = vld [vmem:[#allocation2 + $0x2c8] sm:$0xff]
    %v570 = vld [vmem:[#allocation2 + $0x2d0] sm:$0xff]
    %v571 = vld [vmem:[#allocation2 + $0x2d8] sm:$0xff]
    %v572 = vld [vmem:[#allocation2 + $0x2e0] sm:$0xff]
    %v573 = vld [vmem:[#allocation2 + $0x2e8] sm:$0xff]
    %v574 = vld [vmem:[#allocation2 + $0x2f0] sm:$0xff]
    %v575 = vld [vmem:[#allocation2 + $0x2f8] sm:$0xff]
    %v576 = vld [vmem:[#allocation2 + $0x300] sm:$0xff]
    %v577 = vld [vmem:[#allocation2 + $0x308] sm:$0xff]
    %v578 = vld [vmem:[#allocation2 + $0x310] sm:$0xff]
    %v579 = vld [vmem:[#allocation2 + $0x318] sm:$0xff]
    %v580 = vld [vmem:[#allocation2 + $0x320] sm:$0xff]
    %v581 = vld [vmem:[#allocation2 + $0x328] sm:$0xff]
    %v582 = vld [vmem:[#allocation2 + $0x330] sm:$0xff]
    %v583 = vld [vmem:[#allocation2 + $0x338] sm:$0xff]
    %v584 = vld [vmem:[#allocation2 + $0x340] sm:$0xff]
    %v585 = vld [vmem:[#allocation2 + $0x348] sm:$0xff]
    %v586 = vld [vmem:[#allocation2 + $0x350] sm:$0xff]
    %v587 = vld [vmem:[#allocation2 + $0x358] sm:$0xff]
    %v588 = vld [vmem:[#allocation2 + $0x360] sm:$0xff]
    %v589 = vld [vmem:[#allocation2 + $0x368] sm:$0xff]
    %v590 = vld [vmem:[#allocation2 + $0x370] sm:$0xff]
    %v591 = vld [vmem:[#allocation2 + $0x378] sm:$0xff]
    %v592 = vld [vmem:[#allocation2 + $0x380] sm:$0xff]
    %v593 = vld [vmem:[#allocation2 + $0x388] sm:$0xff]
    %v594 = vld [vmem:[#allocation2 + $0x390] sm:$0xff]
    %v595 = vld [vmem:[#allocation2 + $0x398] sm:$0xff]
    %v596 = vld [vmem:[#allocation2 + $0x3a0] sm:$0xff]
    %v597 = vld [vmem:[#allocation2 + $0x3a8] sm:$0xff]
    %v598 = vld [vmem:[#allocation2 + $0x3b0] sm:$0xff]
    %v599 = vld [vmem:[#allocation2 + $0x3b8] sm:$0xff]
    %v600 = vld [vmem:[#allocation2 + $0x3c0] sm:$0xff]
    %v601 = vld [vmem:[#allocation2 + $0x3c8] sm:$0xff]
    %v602 = vld [vmem:[#allocation2 + $0x3d0] sm:$0xff]
    %v603 = vld [vmem:[#allocation2 + $0x3d8] sm:$0xff]
    %v604 = vld [vmem:[#allocation2 + $0x3e0] sm:$0xff]
    %v605 = vld [vmem:[#allocation2 + $0x3e8] sm:$0xff]
    %v606 = vld [vmem:[#allocation2 + $0x3f0] sm:$0xff]
    %v607 = vld [vmem:[#allocation2 + $0x3f8] sm:$0xff]
    %v608 = vld [vmem:[%s4] sm:$0xf]
    %v610 = vperm.slane %v608, 0
    %v611 = vperm.slane %v608, 1
    %v612 = vperm.slane %v608, 2
    %v613 = vperm.slane %v608, 3
    %v746 = vunpack.c.l.b16 %v480
    %v747 = vunpack.c.h.b16 %v480
    %v748 = vunpack.c.l.b16 %v481
    %v749 = vunpack.c.h.b16 %v481
    %v750 = vunpack.c.l.b16 %v482
    %v751 = vunpack.c.h.b16 %v482
    %v752 = vunpack.c.l.b16 %v483
    %v753 = vunpack.c.h.b16 %v483
    %v754 = vunpack.c.l.b16 %v484
    %v755 = vunpack.c.h.b16 %v484
    %v756 = vunpack.c.l.b16 %v485
    %v757 = vunpack.c.h.b16 %v485
    %v758 = vunpack.c.l.b16 %v486
    %v759 = vunpack.c.h.b16 %v486
    %v760 = vunpack.c.l.b16 %v487
    %v761 = vunpack.c.h.b16 %v487
    %v762 = vunpack.c.l.b16 %v488
    %v763 = vunpack.c.h.b16 %v488
    %v764 = vunpack.c.l.b16 %v489
    %v765 = vunpack.c.h.b16 %v489
    %v766 = vunpack.c.l.b16 %v490
    %v767 = vunpack.c.h.b16 %v490
    %v768 = vunpack.c.l.b16 %v491
    %v769 = vunpack.c.h.b16 %v491
    %v770 = vunpack.c.l.b16 %v492
    %v771 = vunpack.c.h.b16 %v492
    %v772 = vunpack.c.l.b16 %v493
    %v773 = vunpack.c.h.b16 %v493
    %v774 = vunpack.c.l.b16 %v494
    %v775 = vunpack.c.h.b16 %v494
    %v776 = vunpack.c.l.b16 %v495
    %v777 = vunpack.c.h.b16 %v495
    %v778 = vunpack.c.l.b16 %v496
    %v779 = vunpack.c.h.b16 %v496
    %v780 = vunpack.c.l.b16 %v497
    %v781 = vunpack.c.h.b16 %v497
    %v782 = vunpack.c.l.b16 %v498
    %v783 = vunpack.c.h.b16 %v498
    %v784 = vunpack.c.l.b16 %v499
    %v785 = vunpack.c.h.b16 %v499
    %v786 = vunpack.c.l.b16 %v500
    %v787 = vunpack.c.h.b16 %v500
    %v788 = vunpack.c.l.b16 %v501
    %v789 = vunpack.c.h.b16 %v501
    %v790 = vunpack.c.l.b16 %v502
    %v791 = vunpack.c.h.b16 %v502
    %v792 = vunpack.c.l.b16 %v503
    %v793 = vunpack.c.h.b16 %v503
    %v794 = vunpack.c.l.b16 %v504
    %v795 = vunpack.c.h.b16 %v504
    %v796 = vunpack.c.l.b16 %v505
    %v797 = vunpack.c.h.b16 %v505
    %v798 = vunpack.c.l.b16 %v506
    %v799 = vunpack.c.h.b16 %v506
    %v800 = vunpack.c.l.b16 %v507
    %v801 = vunpack.c.h.b16 %v507
    %v802 = vunpack.c.l.b16 %v508
    %v803 = vunpack.c.h.b16 %v508
    %v804 = vunpack.c.l.b16 %v509
    %v805 = vunpack.c.h.b16 %v509
    %v806 = vunpack.c.l.b16 %v510
    %v807 = vunpack.c.h.b16 %v510
    %v808 = vunpack.c.l.b16 %v511
    %v809 = vunpack.c.h.b16 %v511
    %v810 = vunpack.c.l.b16 %v512
    %v811 = vunpack.c.h.b16 %v512
    %v812 = vunpack.c.l.b16 %v513
    %v813 = vunpack.c.h.b16 %v513
    %v814 = vunpack.c.l.b16 %v514
    %v815 = vunpack.c.h.b16 %v514
    %v816 = vunpack.c.l.b16 %v515
    %v817 = vunpack.c.h.b16 %v515
    %v818 = vunpack.c.l.b16 %v516
    %v819 = vunpack.c.h.b16 %v516
    %v820 = vunpack.c.l.b16 %v517
    %v821 = vunpack.c.h.b16 %v517
    %v822 = vunpack.c.l.b16 %v518
    %v823 = vunpack.c.h.b16 %v518
    %v824 = vunpack.c.l.b16 %v519
    %v825 = vunpack.c.h.b16 %v519
    %v826 = vunpack.c.l.b16 %v520
    %v827 = vunpack.c.h.b16 %v520
    %v828 = vunpack.c.l.b16 %v521
    %v829 = vunpack.c.h.b16 %v521
    %v830 = vunpack.c.l.b16 %v522
    %v831 = vunpack.c.h.b16 %v522
    %v832 = vunpack.c.l.b16 %v523
    %v833 = vunpack.c.h.b16 %v523
    %v834 = vunpack.c.l.b16 %v524
    %v835 = vunpack.c.h.b16 %v524
    %v836 = vunpack.c.l.b16 %v525
    %v837 = vunpack.c.h.b16 %v525
    %v838 = vunpack.c.l.b16 %v526
    %v839 = vunpack.c.h.b16 %v526
    %v840 = vunpack.c.l.b16 %v527
    %v841 = vunpack.c.h.b16 %v527
    %v842 = vunpack.c.l.b16 %v528
    %v843 = vunpack.c.h.b16 %v528
    %v844 = vunpack.c.l.b16 %v529
    %v845 = vunpack.c.h.b16 %v529
    %v846 = vunpack.c.l.b16 %v530
    %v847 = vunpack.c.h.b16 %v530
    %v848 = vunpack.c.l.b16 %v531
    %v849 = vunpack.c.h.b16 %v531
    %v850 = vunpack.c.l.b16 %v532
    %v851 = vunpack.c.h.b16 %v532
    %v852 = vunpack.c.l.b16 %v533
    %v853 = vunpack.c.h.b16 %v533
    %v854 = vunpack.c.l.b16 %v534
    %v855 = vunpack.c.h.b16 %v534
    %v856 = vunpack.c.l.b16 %v535
    %v857 = vunpack.c.h.b16 %v535
    %v858 = vunpack.c.l.b16 %v536
    %v859 = vunpack.c.h.b16 %v536
    %v860 = vunpack.c.l.b16 %v537
    %v861 = vunpack.c.h.b16 %v537
    %v862 = vunpack.c.l.b16 %v538
    %v863 = vunpack.c.h.b16 %v538
    %v864 = vunpack.c.l.b16 %v539
    %v865 = vunpack.c.h.b16 %v539
    %v866 = vunpack.c.l.b16 %v540
    %v867 = vunpack.c.h.b16 %v540
    %v868 = vunpack.c.l.b16 %v541
    %v869 = vunpack.c.h.b16 %v541
    %v870 = vunpack.c.l.b16 %v542
    %v871 = vunpack.c.h.b16 %v542
    %v872 = vunpack.c.l.b16 %v543
    %v873 = vunpack.c.h.b16 %v543
    %v874 = vunpack.c.l.b16 %v544
    %v875 = vunpack.c.h.b16 %v544
    %v876 = vunpack.c.l.b16 %v545
    %v877 = vunpack.c.h.b16 %v545
    %v878 = vunpack.c.l.b16 %v546
    %v879 = vunpack.c.h.b16 %v546
    %v880 = vunpack.c.l.b16 %v547
    %v881 = vunpack.c.h.b16 %v547
    %v882 = vunpack.c.l.b16 %v548
    %v883 = vunpack.c.h.b16 %v548
    %v884 = vunpack.c.l.b16 %v549
    %v885 = vunpack.c.h.b16 %v549
    %v886 = vunpack.c.l.b16 %v550
    %v887 = vunpack.c.h.b16 %v550
    %v888 = vunpack.c.l.b16 %v551
    %v889 = vunpack.c.h.b16 %v551
    %v890 = vunpack.c.l.b16 %v552
    %v891 = vunpack.c.h.b16 %v552
    %v892 = vunpack.c.l.b16 %v553
    %v893 = vunpack.c.h.b16 %v553
    %v894 = vunpack.c.l.b16 %v554
    %v895 = vunpack.c.h.b16 %v554
    %v896 = vunpack.c.l.b16 %v555
    %v897 = vunpack.c.h.b16 %v555
    %v898 = vunpack.c.l.b16 %v556
    %v899 = vunpack.c.h.b16 %v556
    %v900 = vunpack.c.l.b16 %v557
    %v901 = vunpack.c.h.b16 %v557
    %v902 = vunpack.c.l.b16 %v558
    %v903 = vunpack.c.h.b16 %v558
    %v904 = vunpack.c.l.b16 %v559
    %v905 = vunpack.c.h.b16 %v559
    %v906 = vunpack.c.l.b16 %v560
    %v907 = vunpack.c.h.b16 %v560
    %v908 = vunpack.c.l.b16 %v561
    %v909 = vunpack.c.h.b16 %v561
    %v910 = vunpack.c.l.b16 %v562
    %v911 = vunpack.c.h.b16 %v562
    %v912 = vunpack.c.l.b16 %v563
    %v913 = vunpack.c.h.b16 %v563
    %v914 = vunpack.c.l.b16 %v564
    %v915 = vunpack.c.h.b16 %v564
    %v916 = vunpack.c.l.b16 %v565
    %v917 = vunpack.c.h.b16 %v565
    %v918 = vunpack.c.l.b16 %v566
    %v919 = vunpack.c.h.b16 %v566
    %v920 = vunpack.c.l.b16 %v567
    %v921 = vunpack.c.h.b16 %v567
    %v922 = vunpack.c.l.b16 %v568
    %v923 = vunpack.c.h.b16 %v568
    %v924 = vunpack.c.l.b16 %v569
    %v925 = vunpack.c.h.b16 %v569
    %v926 = vunpack.c.l.b16 %v570
    %v927 = vunpack.c.h.b16 %v570
    %v928 = vunpack.c.l.b16 %v571
    %v929 = vunpack.c.h.b16 %v571
    %v930 = vunpack.c.l.b16 %v572
    %v931 = vunpack.c.h.b16 %v572
    %v932 = vunpack.c.l.b16 %v573
    %v933 = vunpack.c.h.b16 %v573
    %v934 = vunpack.c.l.b16 %v574
    %v935 = vunpack.c.h.b16 %v574
    %v936 = vunpack.c.l.b16 %v575
    %v937 = vunpack.c.h.b16 %v575
    %v938 = vunpack.c.l.b16 %v576
    %v939 = vunpack.c.h.b16 %v576
    %v940 = vunpack.c.l.b16 %v577
    %v941 = vunpack.c.h.b16 %v577
    %v942 = vunpack.c.l.b16 %v578
    %v943 = vunpack.c.h.b16 %v578
    %v944 = vunpack.c.l.b16 %v579
    %v945 = vunpack.c.h.b16 %v579
    %v946 = vunpack.c.l.b16 %v580
    %v947 = vunpack.c.h.b16 %v580
    %v948 = vunpack.c.l.b16 %v581
    %v949 = vunpack.c.h.b16 %v581
    %v950 = vunpack.c.l.b16 %v582
    %v951 = vunpack.c.h.b16 %v582
    %v952 = vunpack.c.l.b16 %v583
    %v953 = vunpack.c.h.b16 %v583
    %v954 = vunpack.c.l.b16 %v584
    %v955 = vunpack.c.h.b16 %v584
    %v956 = vunpack.c.l.b16 %v585
    %v957 = vunpack.c.h.b16 %v585
    %v958 = vunpack.c.l.b16 %v586
    %v959 = vunpack.c.h.b16 %v586
    %v960 = vunpack.c.l.b16 %v587
    %v961 = vunpack.c.h.b16 %v587
    %v962 = vunpack.c.l.b16 %v588
    %v963 = vunpack.c.h.b16 %v588
    %v964 = vunpack.c.l.b16 %v589
    %v965 = vunpack.c.h.b16 %v589
    %v966 = vunpack.c.l.b16 %v590
    %v967 = vunpack.c.h.b16 %v590
    %v968 = vunpack.c.l.b16 %v591
    %v969 = vunpack.c.h.b16 %v591
    %v970 = vunpack.c.l.b16 %v592
    %v971 = vunpack.c.h.b16 %v592
    %v972 = vunpack.c.l.b16 %v593
    %v973 = vunpack.c.h.b16 %v593
    %v974 = vunpack.c.l.b16 %v594
    %v975 = vunpack.c.h.b16 %v594
    %v976 = vunpack.c.l.b16 %v595
    %v977 = vunpack.c.h.b16 %v595
    %v978 = vunpack.c.l.b16 %v596
    %v979 = vunpack.c.h.b16 %v596
    %v980 = vunpack.c.l.b16 %v597
    %v981 = vunpack.c.h.b16 %v597
    %v982 = vunpack.c.l.b16 %v598
    %v983 = vunpack.c.h.b16 %v598
    %v984 = vunpack.c.l.b16 %v599
    %v985 = vunpack.c.h.b16 %v599
    %v986 = vunpack.c.l.b16 %v600
    %v987 = vunpack.c.h.b16 %v600
    %v988 = vunpack.c.l.b16 %v601
    %v989 = vunpack.c.h.b16 %v601
    %v990 = vunpack.c.l.b16 %v602
    %v991 = vunpack.c.h.b16 %v602
    %v992 = vunpack.c.l.b16 %v603
    %v993 = vunpack.c.h.b16 %v603
    %v994 = vunpack.c.l.b16 %v604
    %v995 = vunpack.c.h.b16 %v604
    %v996 = vunpack.c.l.b16 %v605
    %v997 = vunpack.c.h.b16 %v605
    %v998 = vunpack.c.l.b16 %v606
    %v999 = vunpack.c.h.b16 %v606
    %v1000 = vunpack.c.l.b16 %v607
    %v1001 = vunpack.c.h.b16 %v607
    %v1002 = vpack.c.b16 %v750, %v746
    %v1003 = vpack.c.b16 %v751, %v747
    %v1004 = vpack.c.b16 %v752, %v748
    %v1005 = vpack.c.b16 %v753, %v749
    %v1006 = vpack.c.b16 %v758, %v754
    %v1007 = vpack.c.b16 %v759, %v755
    %v1008 = vpack.c.b16 %v760, %v756
    %v1009 = vpack.c.b16 %v761, %v757
    %v1010 = vpack.c.b16 %v766, %v762
    %v1011 = vpack.c.b16 %v767, %v763
    %v1012 = vpack.c.b16 %v768, %v764
    %v1013 = vpack.c.b16 %v769, %v765
    %v1014 = vpack.c.b16 %v774, %v770
    %v1015 = vpack.c.b16 %v775, %v771
    %v1016 = vpack.c.b16 %v776, %v772
    %v1017 = vpack.c.b16 %v777, %v773
    %v1018 = vpack.c.b16 %v782, %v778
    %v1019 = vpack.c.b16 %v783, %v779
    %v1020 = vpack.c.b16 %v784, %v780
    %v1021 = vpack.c.b16 %v785, %v781
    %v1022 = vpack.c.b16 %v790, %v786
    %v1023 = vpack.c.b16 %v791, %v787
    %v1024 = vpack.c.b16 %v792, %v788
    %v1025 = vpack.c.b16 %v793, %v789
    %v1026 = vpack.c.b16 %v798, %v794
    %v1027 = vpack.c.b16 %v799, %v795
    %v1028 = vpack.c.b16 %v800, %v796
    %v1029 = vpack.c.b16 %v801, %v797
    %v1030 = vpack.c.b16 %v806, %v802
    %v1031 = vpack.c.b16 %v807, %v803
    %v1032 = vpack.c.b16 %v808, %v804
    %v1033 = vpack.c.b16 %v809, %v805
    %v1034 = vpack.c.b16 %v814, %v810
    %v1035 = vpack.c.b16 %v815, %v811
    %v1036 = vpack.c.b16 %v816, %v812
    %v1037 = vpack.c.b16 %v817, %v813
    %v1038 = vpack.c.b16 %v822, %v818
    %v1039 = vpack.c.b16 %v823, %v819
    %v1040 = vpack.c.b16 %v824, %v820
    %v1041 = vpack.c.b16 %v825, %v821
    %v1042 = vpack.c.b16 %v830, %v826
    %v1043 = vpack.c.b16 %v831, %v827
    %v1044 = vpack.c.b16 %v832, %v828
    %v1045 = vpack.c.b16 %v833, %v829
    %v1046 = vpack.c.b16 %v838, %v834
    %v1047 = vpack.c.b16 %v839, %v835
    %v1048 = vpack.c.b16 %v840, %v836
    %v1049 = vpack.c.b16 %v841, %v837
    %v1050 = vpack.c.b16 %v846, %v842
    %v1051 = vpack.c.b16 %v847, %v843
    %v1052 = vpack.c.b16 %v848, %v844
    %v1053 = vpack.c.b16 %v849, %v845
    %v1054 = vpack.c.b16 %v854, %v850
    %v1055 = vpack.c.b16 %v855, %v851
    %v1056 = vpack.c.b16 %v856, %v852
    %v1057 = vpack.c.b16 %v857, %v853
    %v1058 = vpack.c.b16 %v862, %v858
    %v1059 = vpack.c.b16 %v863, %v859
    %v1060 = vpack.c.b16 %v864, %v860
    %v1061 = vpack.c.b16 %v865, %v861
    %v1062 = vpack.c.b16 %v870, %v866
    %v1063 = vpack.c.b16 %v871, %v867
    %v1064 = vpack.c.b16 %v872, %v868
    %v1065 = vpack.c.b16 %v873, %v869
    %v1066 = vpack.c.b16 %v878, %v874
    %v1067 = vpack.c.b16 %v879, %v875
    %v1068 = vpack.c.b16 %v880, %v876
    %v1069 = vpack.c.b16 %v881, %v877
    %v1070 = vpack.c.b16 %v886, %v882
    %v1071 = vpack.c.b16 %v887, %v883
    %v1072 = vpack.c.b16 %v888, %v884
    %v1073 = vpack.c.b16 %v889, %v885
    %v1074 = vpack.c.b16 %v894, %v890
    %v1075 = vpack.c.b16 %v895, %v891
    %v1076 = vpack.c.b16 %v896, %v892
    %v1077 = vpack.c.b16 %v897, %v893
    %v1078 = vpack.c.b16 %v902, %v898
    %v1079 = vpack.c.b16 %v903, %v899
    %v1080 = vpack.c.b16 %v904, %v900
    %v1081 = vpack.c.b16 %v905, %v901
    %v1082 = vpack.c.b16 %v910, %v906
    %v1083 = vpack.c.b16 %v911, %v907
    %v1084 = vpack.c.b16 %v912, %v908
    %v1085 = vpack.c.b16 %v913, %v909
    %v1086 = vpack.c.b16 %v918, %v914
    %v1087 = vpack.c.b16 %v919, %v915
    %v1088 = vpack.c.b16 %v920, %v916
    %v1089 = vpack.c.b16 %v921, %v917
    %v1090 = vpack.c.b16 %v926, %v922
    %v1091 = vpack.c.b16 %v927, %v923
    %v1092 = vpack.c.b16 %v928, %v924
    %v1093 = vpack.c.b16 %v929, %v925
    %v1094 = vpack.c.b16 %v934, %v930
    %v1095 = vpack.c.b16 %v935, %v931
    %v1096 = vpack.c.b16 %v936, %v932
    %v1097 = vpack.c.b16 %v937, %v933
    %v1098 = vpack.c.b16 %v942, %v938
    %v1099 = vpack.c.b16 %v943, %v939
    %v1100 = vpack.c.b16 %v944, %v940
    %v1101 = vpack.c.b16 %v945, %v941
    %v1102 = vpack.c.b16 %v950, %v946
    %v1103 = vpack.c.b16 %v951, %v947
    %v1104 = vpack.c.b16 %v952, %v948
    %v1105 = vpack.c.b16 %v953, %v949
    %v1106 = vpack.c.b16 %v958, %v954
    %v1107 = vpack.c.b16 %v959, %v955
    %v1108 = vpack.c.b16 %v960, %v956
    %v1109 = vpack.c.b16 %v961, %v957
    %v1110 = vpack.c.b16 %v966, %v962
    %v1111 = vpack.c.b16 %v967, %v963
    %v1112 = vpack.c.b16 %v968, %v964
    %v1113 = vpack.c.b16 %v969, %v965
    %v1114 = vpack.c.b16 %v974, %v970
    %v1115 = vpack.c.b16 %v975, %v971
    %v1116 = vpack.c.b16 %v976, %v972
    %v1117 = vpack.c.b16 %v977, %v973
    %v1118 = vpack.c.b16 %v982, %v978
    %v1119 = vpack.c.b16 %v983, %v979
    %v1120 = vpack.c.b16 %v984, %v980
    %v1121 = vpack.c.b16 %v985, %v981
    %v1122 = vpack.c.b16 %v990, %v986
    %v1123 = vpack.c.b16 %v991, %v987
    %v1124 = vpack.c.b16 %v992, %v988
    %v1125 = vpack.c.b16 %v993, %v989
    %v1126 = vpack.c.b16 %v998, %v994
    %v1127 = vpack.c.b16 %v999, %v995
    %v1128 = vpack.c.b16 %v1000, %v996
    %v1129 = vpack.c.b16 %v1001, %v997
    %1258 = vmatpush.bf16.msra.mxu0 %v1030
    %1259 = vmatpush.bf16.msra.mxu0 %v1026
    %1260 = vmatpush.bf16.msra.mxu0 %v1022
    %1261 = vmatpush.bf16.msra.mxu0 %v1018
    %1262 = vmatpush.bf16.msra.mxu0 %v1014
    %1263 = vmatpush.bf16.msra.mxu0 %v1010
    %1264 = vmatpush.bf16.msra.mxu0 %v1006
    %1265 = vmatpush.bf16.msra.mxu0 %v1002
    %1266 = vmatmul.bf16.gmra.mxu0 %v448
    %v1267 = vpop.f32.mrf.mxu0
    %v1268 = vadd.f32 %v610, %v1267
    %v1269 = vpop.f32.mrf.mxu0
    %v1270 = vadd.f32 %v610, %v1269
    %1271 = vmatmul.bf16.gmra.mxu0 %v452
    %v1272 = vpop.f32.mrf.mxu0
    %v1273 = vadd.f32 %v610, %v1272
    %v1274 = vpop.f32.mrf.mxu0
    %v1275 = vadd.f32 %v610, %v1274
    %1276 = vmatmul.bf16.gmra.mxu0 %v456
    %v1277 = vpop.f32.mrf.mxu0
    %v1278 = vadd.f32 %v610, %v1277
    %v1279 = vpop.f32.mrf.mxu0
    %v1280 = vadd.f32 %v610, %v1279
    %1281 = vmatmul.bf16.gmra.mxu0 %v460
    %v1282 = vpop.f32.mrf.mxu0
    %v1283 = vadd.f32 %v610, %v1282
    %v1284 = vpop.f32.mrf.mxu0
    %v1285 = vadd.f32 %v610, %v1284
    %1286 = vmatmul.bf16.gmra.mxu0 %v464
    %v1287 = vpop.f32.mrf.mxu0
    %v1288 = vadd.f32 %v610, %v1287
    %v1289 = vpop.f32.mrf.mxu0
    %v1290 = vadd.f32 %v610, %v1289
    %1291 = vmatmul.bf16.gmra.mxu0 %v468
    %v1292 = vpop.f32.mrf.mxu0
    %v1293 = vadd.f32 %v610, %v1292
    %v1294 = vpop.f32.mrf.mxu0
    %v1295 = vadd.f32 %v610, %v1294
    %1296 = vmatmul.bf16.gmra.mxu0 %v472
    %v1297 = vpop.f32.mrf.mxu0
    %v1298 = vadd.f32 %v610, %v1297
    %v1299 = vpop.f32.mrf.mxu0
    %v1300 = vadd.f32 %v610, %v1299
    %1301 = vmatmul.bf16.gmra.mxu0 %v476
    %v1302 = vpop.f32.mrf.mxu0
    %v1303 = vadd.f32 %v610, %v1302
    %v1304 = vpop.f32.mrf.mxu0
    %v1305 = vadd.f32 %v610, %v1304
    %1306 = vdwg.mxu0
    %1307 = vmatpush.bf16.msra.mxu0 %v1062
    %1308 = vmatpush.bf16.msra.mxu0 %v1058
    %1309 = vmatpush.bf16.msra.mxu0 %v1054
    %1310 = vmatpush.bf16.msra.mxu0 %v1050
    %1311 = vmatpush.bf16.msra.mxu0 %v1046
    %1312 = vmatpush.bf16.msra.mxu0 %v1042
    %1313 = vmatpush.bf16.msra.mxu0 %v1038
    %1314 = vmatpush.bf16.msra.mxu0 %v1034
    %1315 = vmatmul.bf16.gmra.mxu0 %v449
    %v1316 = vpop.f32.mrf.mxu0
    %v1317 = vadd.f32 %v1268, %v1316
    %v1318 = vpop.f32.mrf.mxu0
    %v1319 = vadd.f32 %v1270, %v1318
    %1320 = vmatmul.bf16.gmra.mxu0 %v453
    %v1321 = vpop.f32.mrf.mxu0
    %v1322 = vadd.f32 %v1273, %v1321
    %v1323 = vpop.f32.mrf.mxu0
    %v1324 = vadd.f32 %v1275, %v1323
    %1325 = vmatmul.bf16.gmra.mxu0 %v457
    %v1326 = vpop.f32.mrf.mxu0
    %v1327 = vadd.f32 %v1278, %v1326
    %v1328 = vpop.f32.mrf.mxu0
    %v1329 = vadd.f32 %v1280, %v1328
    %1330 = vmatmul.bf16.gmra.mxu0 %v461
    %v1331 = vpop.f32.mrf.mxu0
    %v1332 = vadd.f32 %v1283, %v1331
    %v1333 = vpop.f32.mrf.mxu0
    %v1334 = vadd.f32 %v1285, %v1333
    %1335 = vmatmul.bf16.gmra.mxu0 %v465
    %v1336 = vpop.f32.mrf.mxu0
    %v1337 = vadd.f32 %v1288, %v1336
    %v1338 = vpop.f32.mrf.mxu0
    %v1339 = vadd.f32 %v1290, %v1338
    %1340 = vmatmul.bf16.gmra.mxu0 %v469
    %v1341 = vpop.f32.mrf.mxu0
    %v1342 = vadd.f32 %v1293, %v1341
    %v1343 = vpop.f32.mrf.mxu0
    %v1344 = vadd.f32 %v1295, %v1343
    %1345 = vmatmul.bf16.gmra.mxu0 %v473
    %v1346 = vpop.f32.mrf.mxu0
    %v1347 = vadd.f32 %v1298, %v1346
    %v1348 = vpop.f32.mrf.mxu0
    %v1349 = vadd.f32 %v1300, %v1348
    %1350 = vmatmul.bf16.gmra.mxu0 %v477
    %v1351 = vpop.f32.mrf.mxu0
    %v1352 = vadd.f32 %v1303, %v1351
    %v1353 = vpop.f32.mrf.mxu0
    %v1354 = vadd.f32 %v1305, %v1353
    %1355 = vdwg.mxu0
    %1356 = vmatpush.bf16.msra.mxu0 %v1094
    %1357 = vmatpush.bf16.msra.mxu0 %v1090
    %1358 = vmatpush.bf16.msra.mxu0 %v1086
    %1359 = vmatpush.bf16.msra.mxu0 %v1082
    %1360 = vmatpush.bf16.msra.mxu0 %v1078
    %1361 = vmatpush.bf16.msra.mxu0 %v1074
    %1362 = vmatpush.bf16.msra.mxu0 %v1070
    %1363 = vmatpush.bf16.msra.mxu0 %v1066
    %1364 = vmatmul.bf16.gmra.mxu0 %v450
    %v1365 = vpop.f32.mrf.mxu0
    %v1366 = vadd.f32 %v1317, %v1365
    %v1367 = vpop.f32.mrf.mxu0
    %v1368 = vadd.f32 %v1319, %v1367
    %1369 = vmatmul.bf16.gmra.mxu0 %v454
    %v1370 = vpop.f32.mrf.mxu0
    %v1371 = vadd.f32 %v1322, %v1370
    %v1372 = vpop.f32.mrf.mxu0
    %v1373 = vadd.f32 %v1324, %v1372
    %1374 = vmatmul.bf16.gmra.mxu0 %v458
    %v1375 = vpop.f32.mrf.mxu0
    %v1376 = vadd.f32 %v1327, %v1375
    %v1377 = vpop.f32.mrf.mxu0
    %v1378 = vadd.f32 %v1329, %v1377
    %1379 = vmatmul.bf16.gmra.mxu0 %v462
    %v1380 = vpop.f32.mrf.mxu0
    %v1381 = vadd.f32 %v1332, %v1380
    %v1382 = vpop.f32.mrf.mxu0
    %v1383 = vadd.f32 %v1334, %v1382
    %1384 = vmatmul.bf16.gmra.mxu0 %v466
    %v1385 = vpop.f32.mrf.mxu0
    %v1386 = vadd.f32 %v1337, %v1385
    %v1387 = vpop.f32.mrf.mxu0
    %v1388 = vadd.f32 %v1339, %v1387
    %1389 = vmatmul.bf16.gmra.mxu0 %v470
    %v1390 = vpop.f32.mrf.mxu0
    %v1391 = vadd.f32 %v1342, %v1390
    %v1392 = vpop.f32.mrf.mxu0
    %v1393 = vadd.f32 %v1344, %v1392
    %1394 = vmatmul.bf16.gmra.mxu0 %v474
    %v1395 = vpop.f32.mrf.mxu0
    %v1396 = vadd.f32 %v1347, %v1395
    %v1397 = vpop.f32.mrf.mxu0
    %v1398 = vadd.f32 %v1349, %v1397
    %1399 = vmatmul.bf16.gmra.mxu0 %v478
    %v1400 = vpop.f32.mrf.mxu0
    %v1401 = vadd.f32 %v1352, %v1400
    %v1402 = vpop.f32.mrf.mxu0
    %v1403 = vadd.f32 %v1354, %v1402
    %1404 = vdwg.mxu0
    %1405 = vmatpush.bf16.msra.mxu0 %v1126
    %1406 = vmatpush.bf16.msra.mxu0 %v1122
    %1407 = vmatpush.bf16.msra.mxu0 %v1118
    %1408 = vmatpush.bf16.msra.mxu0 %v1114
    %1409 = vmatpush.bf16.msra.mxu0 %v1110
    %1410 = vmatpush.bf16.msra.mxu0 %v1106
    %1411 = vmatpush.bf16.msra.mxu0 %v1102
    %1412 = vmatpush.bf16.msra.mxu0 %v1098
    %1413 = vmatmul.bf16.gmra.mxu0 %v451
    %v1414 = vpop.f32.mrf.mxu0
    %v1415 = vadd.f32 %v1366, %v1414
    %v1416 = vpop.f32.mrf.mxu0
    %v1417 = vadd.f32 %v1368, %v1416
    %1418 = vmatmul.bf16.gmra.mxu0 %v455
    %v1419 = vpop.f32.mrf.mxu0
    %v1420 = vadd.f32 %v1371, %v1419
    %v1421 = vpop.f32.mrf.mxu0
    %v1422 = vadd.f32 %v1373, %v1421
    %1423 = vmatmul.bf16.gmra.mxu0 %v459
    %v1424 = vpop.f32.mrf.mxu0
    %v1425 = vadd.f32 %v1376, %v1424
    %v1426 = vpop.f32.mrf.mxu0
    %v1427 = vadd.f32 %v1378, %v1426
    %1428 = vmatmul.bf16.gmra.mxu0 %v463
    %v1429 = vpop.f32.mrf.mxu0
    %v1430 = vadd.f32 %v1381, %v1429
    %v1431 = vpop.f32.mrf.mxu0
    %v1432 = vadd.f32 %v1383, %v1431
    %1433 = vmatmul.bf16.gmra.mxu0 %v467
    %v1434 = vpop.f32.mrf.mxu0
    %v1435 = vadd.f32 %v1386, %v1434
    %v1436 = vpop.f32.mrf.mxu0
    %v1437 = vadd.f32 %v1388, %v1436
    %1438 = vmatmul.bf16.gmra.mxu0 %v471
    %v1439 = vpop.f32.mrf.mxu0
    %v1440 = vadd.f32 %v1391, %v1439
    %v1441 = vpop.f32.mrf.mxu0
    %v1442 = vadd.f32 %v1393, %v1441
    %1443 = vmatmul.bf16.gmra.mxu0 %v475
    %v1444 = vpop.f32.mrf.mxu0
    %v1445 = vadd.f32 %v1396, %v1444
    %v1446 = vpop.f32.mrf.mxu0
    %v1447 = vadd.f32 %v1398, %v1446
    %1448 = vmatmul.bf16.gmra.mxu0 %v479
    %v1449 = vpop.f32.mrf.mxu0
    %v1450 = vadd.f32 %v1401, %v1449
    %v1451 = vpop.f32.mrf.mxu0
    %v1452 = vadd.f32 %v1403, %v1451
    %1453 = vdwg.mxu0
    %1454 = vmatpush.bf16.msra.mxu0 %v1031
    %1455 = vmatpush.bf16.msra.mxu0 %v1027
    %1456 = vmatpush.bf16.msra.mxu0 %v1023
    %1457 = vmatpush.bf16.msra.mxu0 %v1019
    %1458 = vmatpush.bf16.msra.mxu0 %v1015
    %1459 = vmatpush.bf16.msra.mxu0 %v1011
    %1460 = vmatpush.bf16.msra.mxu0 %v1007
    %1461 = vmatpush.bf16.msra.mxu0 %v1003
    %1462 = vmatmul.bf16.gmra.mxu0 %v448
    %v1463 = vpop.f32.mrf.mxu0
    %v1464 = vadd.f32 %v611, %v1463
    %v1465 = vpop.f32.mrf.mxu0
    %v1466 = vadd.f32 %v611, %v1465
    %1467 = vmatmul.bf16.gmra.mxu0 %v452
    %v1468 = vpop.f32.mrf.mxu0
    %v1469 = vadd.f32 %v611, %v1468
    %v1470 = vpop.f32.mrf.mxu0
    %v1471 = vadd.f32 %v611, %v1470
    %1472 = vmatmul.bf16.gmra.mxu0 %v456
    %v1473 = vpop.f32.mrf.mxu0
    %v1474 = vadd.f32 %v611, %v1473
    %v1475 = vpop.f32.mrf.mxu0
    %v1476 = vadd.f32 %v611, %v1475
    %1477 = vmatmul.bf16.gmra.mxu0 %v460
    %v1478 = vpop.f32.mrf.mxu0
    %v1479 = vadd.f32 %v611, %v1478
    %v1480 = vpop.f32.mrf.mxu0
    %v1481 = vadd.f32 %v611, %v1480
    %1482 = vmatmul.bf16.gmra.mxu0 %v464
    %v1483 = vpop.f32.mrf.mxu0
    %v1484 = vadd.f32 %v611, %v1483
    %v1485 = vpop.f32.mrf.mxu0
    %v1486 = vadd.f32 %v611, %v1485
    %1487 = vmatmul.bf16.gmra.mxu0 %v468
    %v1488 = vpop.f32.mrf.mxu0
    %v1489 = vadd.f32 %v611, %v1488
    %v1490 = vpop.f32.mrf.mxu0
    %v1491 = vadd.f32 %v611, %v1490
    %1492 = vmatmul.bf16.gmra.mxu0 %v472
    %v1493 = vpop.f32.mrf.mxu0
    %v1494 = vadd.f32 %v611, %v1493
    %v1495 = vpop.f32.mrf.mxu0
    %v1496 = vadd.f32 %v611, %v1495
    %1497 = vmatmul.bf16.gmra.mxu0 %v476
    %v1498 = vpop.f32.mrf.mxu0
    %v1499 = vadd.f32 %v611, %v1498
    %v1500 = vpop.f32.mrf.mxu0
    %v1501 = vadd.f32 %v611, %v1500
    %1502 = vdwg.mxu0
    %1503 = vmatpush.bf16.msra.mxu0 %v1063
    %1504 = vmatpush.bf16.msra.mxu0 %v1059
    %1505 = vmatpush.bf16.msra.mxu0 %v1055
    %1506 = vmatpush.bf16.msra.mxu0 %v1051
    %1507 = vmatpush.bf16.msra.mxu0 %v1047
    %1508 = vmatpush.bf16.msra.mxu0 %v1043
    %1509 = vmatpush.bf16.msra.mxu0 %v1039
    %1510 = vmatpush.bf16.msra.mxu0 %v1035
    %1511 = vmatmul.bf16.gmra.mxu0 %v449
    %v1512 = vpop.f32.mrf.mxu0
    %v1513 = vadd.f32 %v1464, %v1512
    %v1514 = vpop.f32.mrf.mxu0
    %v1515 = vadd.f32 %v1466, %v1514
    %1516 = vmatmul.bf16.gmra.mxu0 %v453
    %v1517 = vpop.f32.mrf.mxu0
    %v1518 = vadd.f32 %v1469, %v1517
    %v1519 = vpop.f32.mrf.mxu0
    %v1520 = vadd.f32 %v1471, %v1519
    %1521 = vmatmul.bf16.gmra.mxu0 %v457
    %v1522 = vpop.f32.mrf.mxu0
    %v1523 = vadd.f32 %v1474, %v1522
    %v1524 = vpop.f32.mrf.mxu0
    %v1525 = vadd.f32 %v1476, %v1524
    %1526 = vmatmul.bf16.gmra.mxu0 %v461
    %v1527 = vpop.f32.mrf.mxu0
    %v1528 = vadd.f32 %v1479, %v1527
    %v1529 = vpop.f32.mrf.mxu0
    %v1530 = vadd.f32 %v1481, %v1529
    %1531 = vmatmul.bf16.gmra.mxu0 %v465
    %v1532 = vpop.f32.mrf.mxu0
    %v1533 = vadd.f32 %v1484, %v1532
    %v1534 = vpop.f32.mrf.mxu0
    %v1535 = vadd.f32 %v1486, %v1534
    %1536 = vmatmul.bf16.gmra.mxu0 %v469
    %v1537 = vpop.f32.mrf.mxu0
    %v1538 = vadd.f32 %v1489, %v1537
    %v1539 = vpop.f32.mrf.mxu0
    %v1540 = vadd.f32 %v1491, %v1539
    %1541 = vmatmul.bf16.gmra.mxu0 %v473
    %v1542 = vpop.f32.mrf.mxu0
    %v1543 = vadd.f32 %v1494, %v1542
    %v1544 = vpop.f32.mrf.mxu0
    %v1545 = vadd.f32 %v1496, %v1544
    %1546 = vmatmul.bf16.gmra.mxu0 %v477
    %v1547 = vpop.f32.mrf.mxu0
    %v1548 = vadd.f32 %v1499, %v1547
    %v1549 = vpop.f32.mrf.mxu0
    %v1550 = vadd.f32 %v1501, %v1549
    %1551 = vdwg.mxu0
    %1552 = vmatpush.bf16.msra.mxu0 %v1095
    %1553 = vmatpush.bf16.msra.mxu0 %v1091
    %1554 = vmatpush.bf16.msra.mxu0 %v1087
    %1555 = vmatpush.bf16.msra.mxu0 %v1083
    %1556 = vmatpush.bf16.msra.mxu0 %v1079
    %1557 = vmatpush.bf16.msra.mxu0 %v1075
    %1558 = vmatpush.bf16.msra.mxu0 %v1071
    %1559 = vmatpush.bf16.msra.mxu0 %v1067
    %1560 = vmatmul.bf16.gmra.mxu0 %v450
    %v1561 = vpop.f32.mrf.mxu0
    %v1562 = vadd.f32 %v1513, %v1561
    %v1563 = vpop.f32.mrf.mxu0
    %v1564 = vadd.f32 %v1515, %v1563
    %1565 = vmatmul.bf16.gmra.mxu0 %v454
    %v1566 = vpop.f32.mrf.mxu0
    %v1567 = vadd.f32 %v1518, %v1566
    %v1568 = vpop.f32.mrf.mxu0
    %v1569 = vadd.f32 %v1520, %v1568
    %1570 = vmatmul.bf16.gmra.mxu0 %v458
    %v1571 = vpop.f32.mrf.mxu0
    %v1572 = vadd.f32 %v1523, %v1571
    %v1573 = vpop.f32.mrf.mxu0
    %v1574 = vadd.f32 %v1525, %v1573
    %1575 = vmatmul.bf16.gmra.mxu0 %v462
    %v1576 = vpop.f32.mrf.mxu0
    %v1577 = vadd.f32 %v1528, %v1576
    %v1578 = vpop.f32.mrf.mxu0
    %v1579 = vadd.f32 %v1530, %v1578
    %1580 = vmatmul.bf16.gmra.mxu0 %v466
    %v1581 = vpop.f32.mrf.mxu0
    %v1582 = vadd.f32 %v1533, %v1581
    %v1583 = vpop.f32.mrf.mxu0
    %v1584 = vadd.f32 %v1535, %v1583
    %1585 = vmatmul.bf16.gmra.mxu0 %v470
    %v1586 = vpop.f32.mrf.mxu0
    %v1587 = vadd.f32 %v1538, %v1586
    %v1588 = vpop.f32.mrf.mxu0
    %v1589 = vadd.f32 %v1540, %v1588
    %1590 = vmatmul.bf16.gmra.mxu0 %v474
    %v1591 = vpop.f32.mrf.mxu0
    %v1592 = vadd.f32 %v1543, %v1591
    %v1593 = vpop.f32.mrf.mxu0
    %v1594 = vadd.f32 %v1545, %v1593
    %1595 = vmatmul.bf16.gmra.mxu0 %v478
    %v1596 = vpop.f32.mrf.mxu0
    %v1597 = vadd.f32 %v1548, %v1596
    %v1598 = vpop.f32.mrf.mxu0
    %v1599 = vadd.f32 %v1550, %v1598
    %1600 = vdwg.mxu0
    %1601 = vmatpush.bf16.msra.mxu0 %v1127
    %1602 = vmatpush.bf16.msra.mxu0 %v1123
    %1603 = vmatpush.bf16.msra.mxu0 %v1119
    %1604 = vmatpush.bf16.msra.mxu0 %v1115
    %1605 = vmatpush.bf16.msra.mxu0 %v1111
    %1606 = vmatpush.bf16.msra.mxu0 %v1107
    %1607 = vmatpush.bf16.msra.mxu0 %v1103
    %1608 = vmatpush.bf16.msra.mxu0 %v1099
    %1609 = vmatmul.bf16.gmra.mxu0 %v451
    %v1610 = vpop.f32.mrf.mxu0
    %v1611 = vadd.f32 %v1562, %v1610
    %v1612 = vpop.f32.mrf.mxu0
    %v1613 = vadd.f32 %v1564, %v1612
    %1614 = vmatmul.bf16.gmra.mxu0 %v455
    %v1615 = vpop.f32.mrf.mxu0
    %v1616 = vadd.f32 %v1567, %v1615
    %v1617 = vpop.f32.mrf.mxu0
    %v1618 = vadd.f32 %v1569, %v1617
    %1619 = vmatmul.bf16.gmra.mxu0 %v459
    %v1620 = vpop.f32.mrf.mxu0
    %v1621 = vadd.f32 %v1572, %v1620
    %v1622 = vpop.f32.mrf.mxu0
    %v1623 = vadd.f32 %v1574, %v1622
    %1624 = vmatmul.bf16.gmra.mxu0 %v463
    %v1625 = vpop.f32.mrf.mxu0
    %v1626 = vadd.f32 %v1577, %v1625
    %v1627 = vpop.f32.mrf.mxu0
    %v1628 = vadd.f32 %v1579, %v1627
    %1629 = vmatmul.bf16.gmra.mxu0 %v467
    %v1630 = vpop.f32.mrf.mxu0
    %v1631 = vadd.f32 %v1582, %v1630
    %v1632 = vpop.f32.mrf.mxu0
    %v1633 = vadd.f32 %v1584, %v1632
    %1634 = vmatmul.bf16.gmra.mxu0 %v471
    %v1635 = vpop.f32.mrf.mxu0
    %v1636 = vadd.f32 %v1587, %v1635
    %v1637 = vpop.f32.mrf.mxu0
    %v1638 = vadd.f32 %v1589, %v1637
    %1639 = vmatmul.bf16.gmra.mxu0 %v475
    %v1640 = vpop.f32.mrf.mxu0
    %v1641 = vadd.f32 %v1592, %v1640
    %v1642 = vpop.f32.mrf.mxu0
    %v1643 = vadd.f32 %v1594, %v1642
    %1644 = vmatmul.bf16.gmra.mxu0 %v479
    %v1645 = vpop.f32.mrf.mxu0
    %v1646 = vadd.f32 %v1597, %v1645
    %v1647 = vpop.f32.mrf.mxu0
    %v1648 = vadd.f32 %v1599, %v1647
    %1649 = vdwg.mxu0
    %1650 = vmatpush.bf16.msra.mxu0 %v1032
    %1651 = vmatpush.bf16.msra.mxu0 %v1028
    %1652 = vmatpush.bf16.msra.mxu0 %v1024
    %1653 = vmatpush.bf16.msra.mxu0 %v1020
    %1654 = vmatpush.bf16.msra.mxu0 %v1016
    %1655 = vmatpush.bf16.msra.mxu0 %v1012
    %1656 = vmatpush.bf16.msra.mxu0 %v1008
    %1657 = vmatpush.bf16.msra.mxu0 %v1004
    %1658 = vmatmul.bf16.gmra.mxu0 %v448
    %v1659 = vpop.f32.mrf.mxu0
    %v1660 = vadd.f32 %v612, %v1659
    %v1661 = vpop.f32.mrf.mxu0
    %v1662 = vadd.f32 %v612, %v1661
    %1663 = vmatmul.bf16.gmra.mxu0 %v452
    %v1664 = vpop.f32.mrf.mxu0
    %v1665 = vadd.f32 %v612, %v1664
    %v1666 = vpop.f32.mrf.mxu0
    %v1667 = vadd.f32 %v612, %v1666
    %1668 = vmatmul.bf16.gmra.mxu0 %v456
    %v1669 = vpop.f32.mrf.mxu0
    %v1670 = vadd.f32 %v612, %v1669
    %v1671 = vpop.f32.mrf.mxu0
    %v1672 = vadd.f32 %v612, %v1671
    %1673 = vmatmul.bf16.gmra.mxu0 %v460
    %v1674 = vpop.f32.mrf.mxu0
    %v1675 = vadd.f32 %v612, %v1674
    %v1676 = vpop.f32.mrf.mxu0
    %v1677 = vadd.f32 %v612, %v1676
    %1678 = vmatmul.bf16.gmra.mxu0 %v464
    %v1679 = vpop.f32.mrf.mxu0
    %v1680 = vadd.f32 %v612, %v1679
    %v1681 = vpop.f32.mrf.mxu0
    %v1682 = vadd.f32 %v612, %v1681
    %1683 = vmatmul.bf16.gmra.mxu0 %v468
    %v1684 = vpop.f32.mrf.mxu0
    %v1685 = vadd.f32 %v612, %v1684
    %v1686 = vpop.f32.mrf.mxu0
    %v1687 = vadd.f32 %v612, %v1686
    %1688 = vmatmul.bf16.gmra.mxu0 %v472
    %v1689 = vpop.f32.mrf.mxu0
    %v1690 = vadd.f32 %v612, %v1689
    %v1691 = vpop.f32.mrf.mxu0
    %v1692 = vadd.f32 %v612, %v1691
    %1693 = vmatmul.bf16.gmra.mxu0 %v476
    %v1694 = vpop.f32.mrf.mxu0
    %v1695 = vadd.f32 %v612, %v1694
    %v1696 = vpop.f32.mrf.mxu0
    %v1697 = vadd.f32 %v612, %v1696
    %1698 = vdwg.mxu0
    %1699 = vmatpush.bf16.msra.mxu0 %v1064
    %1700 = vmatpush.bf16.msra.mxu0 %v1060
    %1701 = vmatpush.bf16.msra.mxu0 %v1056
    %1702 = vmatpush.bf16.msra.mxu0 %v1052
    %1703 = vmatpush.bf16.msra.mxu0 %v1048
    %1704 = vmatpush.bf16.msra.mxu0 %v1044
    %1705 = vmatpush.bf16.msra.mxu0 %v1040
    %1706 = vmatpush.bf16.msra.mxu0 %v1036
    %1707 = vmatmul.bf16.gmra.mxu0 %v449
    %v1708 = vpop.f32.mrf.mxu0
    %v1709 = vadd.f32 %v1660, %v1708
    %v1710 = vpop.f32.mrf.mxu0
    %v1711 = vadd.f32 %v1662, %v1710
    %1712 = vmatmul.bf16.gmra.mxu0 %v453
    %v1713 = vpop.f32.mrf.mxu0
    %v1714 = vadd.f32 %v1665, %v1713
    %v1715 = vpop.f32.mrf.mxu0
    %v1716 = vadd.f32 %v1667, %v1715
    %1717 = vmatmul.bf16.gmra.mxu0 %v457
    %v1718 = vpop.f32.mrf.mxu0
    %v1719 = vadd.f32 %v1670, %v1718
    %v1720 = vpop.f32.mrf.mxu0
    %v1721 = vadd.f32 %v1672, %v1720
    %1722 = vmatmul.bf16.gmra.mxu0 %v461
    %v1723 = vpop.f32.mrf.mxu0
    %v1724 = vadd.f32 %v1675, %v1723
    %v1725 = vpop.f32.mrf.mxu0
    %v1726 = vadd.f32 %v1677, %v1725
    %1727 = vmatmul.bf16.gmra.mxu0 %v465
    %v1728 = vpop.f32.mrf.mxu0
    %v1729 = vadd.f32 %v1680, %v1728
    %v1730 = vpop.f32.mrf.mxu0
    %v1731 = vadd.f32 %v1682, %v1730
    %1732 = vmatmul.bf16.gmra.mxu0 %v469
    %v1733 = vpop.f32.mrf.mxu0
    %v1734 = vadd.f32 %v1685, %v1733
    %v1735 = vpop.f32.mrf.mxu0
    %v1736 = vadd.f32 %v1687, %v1735
    %1737 = vmatmul.bf16.gmra.mxu0 %v473
    %v1738 = vpop.f32.mrf.mxu0
    %v1739 = vadd.f32 %v1690, %v1738
    %v1740 = vpop.f32.mrf.mxu0
    %v1741 = vadd.f32 %v1692, %v1740
    %1742 = vmatmul.bf16.gmra.mxu0 %v477
    %v1743 = vpop.f32.mrf.mxu0
    %v1744 = vadd.f32 %v1695, %v1743
    %v1745 = vpop.f32.mrf.mxu0
    %v1746 = vadd.f32 %v1697, %v1745
    %1747 = vdwg.mxu0
    %1748 = vmatpush.bf16.msra.mxu0 %v1096
    %1749 = vmatpush.bf16.msra.mxu0 %v1092
    %1750 = vmatpush.bf16.msra.mxu0 %v1088
    %1751 = vmatpush.bf16.msra.mxu0 %v1084
    %1752 = vmatpush.bf16.msra.mxu0 %v1080
    %1753 = vmatpush.bf16.msra.mxu0 %v1076
    %1754 = vmatpush.bf16.msra.mxu0 %v1072
    %1755 = vmatpush.bf16.msra.mxu0 %v1068
    %1756 = vmatmul.bf16.gmra.mxu0 %v450
    %v1757 = vpop.f32.mrf.mxu0
    %v1758 = vadd.f32 %v1709, %v1757
    %v1759 = vpop.f32.mrf.mxu0
    %v1760 = vadd.f32 %v1711, %v1759
    %1761 = vmatmul.bf16.gmra.mxu0 %v454
    %v1762 = vpop.f32.mrf.mxu0
    %v1763 = vadd.f32 %v1714, %v1762
    %v1764 = vpop.f32.mrf.mxu0
    %v1765 = vadd.f32 %v1716, %v1764
    %1766 = vmatmul.bf16.gmra.mxu0 %v458
    %v1767 = vpop.f32.mrf.mxu0
    %v1768 = vadd.f32 %v1719, %v1767
    %v1769 = vpop.f32.mrf.mxu0
    %v1770 = vadd.f32 %v1721, %v1769
    %1771 = vmatmul.bf16.gmra.mxu0 %v462
    %v1772 = vpop.f32.mrf.mxu0
    %v1773 = vadd.f32 %v1724, %v1772
    %v1774 = vpop.f32.mrf.mxu0
    %v1775 = vadd.f32 %v1726, %v1774
    %1776 = vmatmul.bf16.gmra.mxu0 %v466
    %v1777 = vpop.f32.mrf.mxu0
    %v1778 = vadd.f32 %v1729, %v1777
    %v1779 = vpop.f32.mrf.mxu0
    %v1780 = vadd.f32 %v1731, %v1779
    %1781 = vmatmul.bf16.gmra.mxu0 %v470
    %v1782 = vpop.f32.mrf.mxu0
    %v1783 = vadd.f32 %v1734, %v1782
    %v1784 = vpop.f32.mrf.mxu0
    %v1785 = vadd.f32 %v1736, %v1784
    %1786 = vmatmul.bf16.gmra.mxu0 %v474
    %v1787 = vpop.f32.mrf.mxu0
    %v1788 = vadd.f32 %v1739, %v1787
    %v1789 = vpop.f32.mrf.mxu0
    %v1790 = vadd.f32 %v1741, %v1789
    %1791 = vmatmul.bf16.gmra.mxu0 %v478
    %v1792 = vpop.f32.mrf.mxu0
    %v1793 = vadd.f32 %v1744, %v1792
    %v1794 = vpop.f32.mrf.mxu0
    %v1795 = vadd.f32 %v1746, %v1794
    %1796 = vdwg.mxu0
    %1797 = vmatpush.bf16.msra.mxu0 %v1128
    %1798 = vmatpush.bf16.msra.mxu0 %v1124
    %1799 = vmatpush.bf16.msra.mxu0 %v1120
    %1800 = vmatpush.bf16.msra.mxu0 %v1116
    %1801 = vmatpush.bf16.msra.mxu0 %v1112
    %1802 = vmatpush.bf16.msra.mxu0 %v1108
    %1803 = vmatpush.bf16.msra.mxu0 %v1104
    %1804 = vmatpush.bf16.msra.mxu0 %v1100
    %1805 = vmatmul.bf16.gmra.mxu0 %v451
    %v1806 = vpop.f32.mrf.mxu0
    %v1807 = vadd.f32 %v1758, %v1806
    %v1808 = vpop.f32.mrf.mxu0
    %v1809 = vadd.f32 %v1760, %v1808
    %1810 = vmatmul.bf16.gmra.mxu0 %v455
    %v1811 = vpop.f32.mrf.mxu0
    %v1812 = vadd.f32 %v1763, %v1811
    %v1813 = vpop.f32.mrf.mxu0
    %v1814 = vadd.f32 %v1765, %v1813
    %1815 = vmatmul.bf16.gmra.mxu0 %v459
    %v1816 = vpop.f32.mrf.mxu0
    %v1817 = vadd.f32 %v1768, %v1816
    %v1818 = vpop.f32.mrf.mxu0
    %v1819 = vadd.f32 %v1770, %v1818
    %1820 = vmatmul.bf16.gmra.mxu0 %v463
    %v1821 = vpop.f32.mrf.mxu0
    %v1822 = vadd.f32 %v1773, %v1821
    %v1823 = vpop.f32.mrf.mxu0
    %v1824 = vadd.f32 %v1775, %v1823
    %1825 = vmatmul.bf16.gmra.mxu0 %v467
    %v1826 = vpop.f32.mrf.mxu0
    %v1827 = vadd.f32 %v1778, %v1826
    %v1828 = vpop.f32.mrf.mxu0
    %v1829 = vadd.f32 %v1780, %v1828
    %1830 = vmatmul.bf16.gmra.mxu0 %v471
    %v1831 = vpop.f32.mrf.mxu0
    %v1832 = vadd.f32 %v1783, %v1831
    %v1833 = vpop.f32.mrf.mxu0
    %v1834 = vadd.f32 %v1785, %v1833
    %1835 = vmatmul.bf16.gmra.mxu0 %v475
    %v1836 = vpop.f32.mrf.mxu0
    %v1837 = vadd.f32 %v1788, %v1836
    %v1838 = vpop.f32.mrf.mxu0
    %v1839 = vadd.f32 %v1790, %v1838
    %1840 = vmatmul.bf16.gmra.mxu0 %v479
    %v1841 = vpop.f32.mrf.mxu0
    %v1842 = vadd.f32 %v1793, %v1841
    %v1843 = vpop.f32.mrf.mxu0
    %v1844 = vadd.f32 %v1795, %v1843
    %1845 = vdwg.mxu0
    %1846 = vmatpush.bf16.msra.mxu0 %v1033
    %1847 = vmatpush.bf16.msra.mxu0 %v1029
    %1848 = vmatpush.bf16.msra.mxu0 %v1025
    %1849 = vmatpush.bf16.msra.mxu0 %v1021
    %1850 = vmatpush.bf16.msra.mxu0 %v1017
    %1851 = vmatpush.bf16.msra.mxu0 %v1013
    %1852 = vmatpush.bf16.msra.mxu0 %v1009
    %1853 = vmatpush.bf16.msra.mxu0 %v1005
    %1854 = vmatmul.bf16.gmra.mxu0 %v448
    %v1855 = vpop.f32.mrf.mxu0
    %v1856 = vadd.f32 %v613, %v1855
    %v1857 = vpop.f32.mrf.mxu0
    %v1858 = vadd.f32 %v613, %v1857
    %1859 = vmatmul.bf16.gmra.mxu0 %v452
    %v1860 = vpop.f32.mrf.mxu0
    %v1861 = vadd.f32 %v613, %v1860
    %v1862 = vpop.f32.mrf.mxu0
    %v1863 = vadd.f32 %v613, %v1862
    %1864 = vmatmul.bf16.gmra.mxu0 %v456
    %v1865 = vpop.f32.mrf.mxu0
    %v1866 = vadd.f32 %v613, %v1865
    %v1867 = vpop.f32.mrf.mxu0
    %v1868 = vadd.f32 %v613, %v1867
    %1869 = vmatmul.bf16.gmra.mxu0 %v460
    %v1870 = vpop.f32.mrf.mxu0
    %v1871 = vadd.f32 %v613, %v1870
    %v1872 = vpop.f32.mrf.mxu0
    %v1873 = vadd.f32 %v613, %v1872
    %1874 = vmatmul.bf16.gmra.mxu0 %v464
    %v1875 = vpop.f32.mrf.mxu0
    %v1876 = vadd.f32 %v613, %v1875
    %v1877 = vpop.f32.mrf.mxu0
    %v1878 = vadd.f32 %v613, %v1877
    %1879 = vmatmul.bf16.gmra.mxu0 %v468
    %v1880 = vpop.f32.mrf.mxu0
    %v1881 = vadd.f32 %v613, %v1880
    %v1882 = vpop.f32.mrf.mxu0
    %v1883 = vadd.f32 %v613, %v1882
    %1884 = vmatmul.bf16.gmra.mxu0 %v472
    %v1885 = vpop.f32.mrf.mxu0
    %v1886 = vadd.f32 %v613, %v1885
    %v1887 = vpop.f32.mrf.mxu0
    %v1888 = vadd.f32 %v613, %v1887
    %1889 = vmatmul.bf16.gmra.mxu0 %v476
    %v1890 = vpop.f32.mrf.mxu0
    %v1891 = vadd.f32 %v613, %v1890
    %v1892 = vpop.f32.mrf.mxu0
    %v1893 = vadd.f32 %v613, %v1892
    %1894 = vdwg.mxu0
    %1895 = vmatpush.bf16.msra.mxu0 %v1065
    %1896 = vmatpush.bf16.msra.mxu0 %v1061
    %1897 = vmatpush.bf16.msra.mxu0 %v1057
    %1898 = vmatpush.bf16.msra.mxu0 %v1053
    %1899 = vmatpush.bf16.msra.mxu0 %v1049
    %1900 = vmatpush.bf16.msra.mxu0 %v1045
    %1901 = vmatpush.bf16.msra.mxu0 %v1041
    %1902 = vmatpush.bf16.msra.mxu0 %v1037
    %1903 = vmatmul.bf16.gmra.mxu0 %v449
    %v1904 = vpop.f32.mrf.mxu0
    %v1905 = vadd.f32 %v1856, %v1904
    %v1906 = vpop.f32.mrf.mxu0
    %v1907 = vadd.f32 %v1858, %v1906
    %1908 = vmatmul.bf16.gmra.mxu0 %v453
    %v1909 = vpop.f32.mrf.mxu0
    %v1910 = vadd.f32 %v1861, %v1909
    %v1911 = vpop.f32.mrf.mxu0
    %v1912 = vadd.f32 %v1863, %v1911
    %1913 = vmatmul.bf16.gmra.mxu0 %v457
    %v1914 = vpop.f32.mrf.mxu0
    %v1915 = vadd.f32 %v1866, %v1914
    %v1916 = vpop.f32.mrf.mxu0
    %v1917 = vadd.f32 %v1868, %v1916
    %1918 = vmatmul.bf16.gmra.mxu0 %v461
    %v1919 = vpop.f32.mrf.mxu0
    %v1920 = vadd.f32 %v1871, %v1919
    %v1921 = vpop.f32.mrf.mxu0
    %v1922 = vadd.f32 %v1873, %v1921
    %1923 = vmatmul.bf16.gmra.mxu0 %v465
    %v1924 = vpop.f32.mrf.mxu0
    %v1925 = vadd.f32 %v1876, %v1924
    %v1926 = vpop.f32.mrf.mxu0
    %v1927 = vadd.f32 %v1878, %v1926
    %1928 = vmatmul.bf16.gmra.mxu0 %v469
    %v1929 = vpop.f32.mrf.mxu0
    %v1930 = vadd.f32 %v1881, %v1929
    %v1931 = vpop.f32.mrf.mxu0
    %v1932 = vadd.f32 %v1883, %v1931
    %1933 = vmatmul.bf16.gmra.mxu0 %v473
    %v1934 = vpop.f32.mrf.mxu0
    %v1935 = vadd.f32 %v1886, %v1934
    %v1936 = vpop.f32.mrf.mxu0
    %v1937 = vadd.f32 %v1888, %v1936
    %1938 = vmatmul.bf16.gmra.mxu0 %v477
    %v1939 = vpop.f32.mrf.mxu0
    %v1940 = vadd.f32 %v1891, %v1939
    %v1941 = vpop.f32.mrf.mxu0
    %v1942 = vadd.f32 %v1893, %v1941
    %1943 = vdwg.mxu0
    %1944 = vmatpush.bf16.msra.mxu0 %v1097
    %1945 = vmatpush.bf16.msra.mxu0 %v1093
    %1946 = vmatpush.bf16.msra.mxu0 %v1089
    %1947 = vmatpush.bf16.msra.mxu0 %v1085
    %1948 = vmatpush.bf16.msra.mxu0 %v1081
    %1949 = vmatpush.bf16.msra.mxu0 %v1077
    %1950 = vmatpush.bf16.msra.mxu0 %v1073
    %1951 = vmatpush.bf16.msra.mxu0 %v1069
    %1952 = vmatmul.bf16.gmra.mxu0 %v450
    %v1953 = vpop.f32.mrf.mxu0
    %v1954 = vadd.f32 %v1905, %v1953
    %v1955 = vpop.f32.mrf.mxu0
    %v1956 = vadd.f32 %v1907, %v1955
    %1957 = vmatmul.bf16.gmra.mxu0 %v454
    %v1958 = vpop.f32.mrf.mxu0
    %v1959 = vadd.f32 %v1910, %v1958
    %v1960 = vpop.f32.mrf.mxu0
    %v1961 = vadd.f32 %v1912, %v1960
    %1962 = vmatmul.bf16.gmra.mxu0 %v458
    %v1963 = vpop.f32.mrf.mxu0
    %v1964 = vadd.f32 %v1915, %v1963
    %v1965 = vpop.f32.mrf.mxu0
    %v1966 = vadd.f32 %v1917, %v1965
    %1967 = vmatmul.bf16.gmra.mxu0 %v462
    %v1968 = vpop.f32.mrf.mxu0
    %v1969 = vadd.f32 %v1920, %v1968
    %v1970 = vpop.f32.mrf.mxu0
    %v1971 = vadd.f32 %v1922, %v1970
    %1972 = vmatmul.bf16.gmra.mxu0 %v466
    %v1973 = vpop.f32.mrf.mxu0
    %v1974 = vadd.f32 %v1925, %v1973
    %v1975 = vpop.f32.mrf.mxu0
    %v1976 = vadd.f32 %v1927, %v1975
    %1977 = vmatmul.bf16.gmra.mxu0 %v470
    %v1978 = vpop.f32.mrf.mxu0
    %v1979 = vadd.f32 %v1930, %v1978
    %v1980 = vpop.f32.mrf.mxu0
    %v1981 = vadd.f32 %v1932, %v1980
    %1982 = vmatmul.bf16.gmra.mxu0 %v474
    %v1983 = vpop.f32.mrf.mxu0
    %v1984 = vadd.f32 %v1935, %v1983
    %v1985 = vpop.f32.mrf.mxu0
    %v1986 = vadd.f32 %v1937, %v1985
    %1987 = vmatmul.bf16.gmra.mxu0 %v478
    %v1988 = vpop.f32.mrf.mxu0
    %v1989 = vadd.f32 %v1940, %v1988
    %v1990 = vpop.f32.mrf.mxu0
    %v1991 = vadd.f32 %v1942, %v1990
    %1992 = vdwg.mxu0
    %1993 = vmatpush.bf16.msra.mxu0 %v1129
    %1994 = vmatpush.bf16.msra.mxu0 %v1125
    %1995 = vmatpush.bf16.msra.mxu0 %v1121
    %1996 = vmatpush.bf16.msra.mxu0 %v1117
    %1997 = vmatpush.bf16.msra.mxu0 %v1113
    %1998 = vmatpush.bf16.msra.mxu0 %v1109
    %1999 = vmatpush.bf16.msra.mxu0 %v1105
    %2000 = vmatpush.bf16.msra.mxu0 %v1101
    %2001 = vmatmul.bf16.gmra.mxu0 %v451
    %v2002 = vpop.f32.mrf.mxu0
    %v2003 = vadd.f32 %v1954, %v2002
    %v2004 = vpop.f32.mrf.mxu0
    %v2005 = vadd.f32 %v1956, %v2004
    %2006 = vmatmul.bf16.gmra.mxu0 %v455
    %v2007 = vpop.f32.mrf.mxu0
    %v2008 = vadd.f32 %v1959, %v2007
    %v2009 = vpop.f32.mrf.mxu0
    %v2010 = vadd.f32 %v1961, %v2009
    %2011 = vmatmul.bf16.gmra.mxu0 %v459
    %v2012 = vpop.f32.mrf.mxu0
    %v2013 = vadd.f32 %v1964, %v2012
    %v2014 = vpop.f32.mrf.mxu0
    %v2015 = vadd.f32 %v1966, %v2014
    %2016 = vmatmul.bf16.gmra.mxu0 %v463
    %v2017 = vpop.f32.mrf.mxu0
    %v2018 = vadd.f32 %v1969, %v2017
    %v2019 = vpop.f32.mrf.mxu0
    %v2020 = vadd.f32 %v1971, %v2019
    %2021 = vmatmul.bf16.gmra.mxu0 %v467
    %v2022 = vpop.f32.mrf.mxu0
    %v2023 = vadd.f32 %v1974, %v2022
    %v2024 = vpop.f32.mrf.mxu0
    %v2025 = vadd.f32 %v1976, %v2024
    %2026 = vmatmul.bf16.gmra.mxu0 %v471
    %v2027 = vpop.f32.mrf.mxu0
    %v2028 = vadd.f32 %v1979, %v2027
    %v2029 = vpop.f32.mrf.mxu0
    %v2030 = vadd.f32 %v1981, %v2029
    %2031 = vmatmul.bf16.gmra.mxu0 %v475
    %v2032 = vpop.f32.mrf.mxu0
    %v2033 = vadd.f32 %v1984, %v2032
    %v2034 = vpop.f32.mrf.mxu0
    %v2035 = vadd.f32 %v1986, %v2034
    %2036 = vmatmul.bf16.gmra.mxu0 %v479
    %v2037 = vpop.f32.mrf.mxu0
    %v2038 = vadd.f32 %v1989, %v2037
    %v2039 = vpop.f32.mrf.mxu0
    %v2040 = vadd.f32 %v1991, %v2039
    %2041 = vdwg.mxu0
    %v2042 = vmax.f32 %v1415, 0.0
    %v2043 = vmax.f32 %v1611, 0.0
    %v2044 = vmax.f32 %v1807, 0.0
    %v2045 = vmax.f32 %v2003, 0.0
    %v2046 = vmax.f32 %v1417, 0.0
    %v2047 = vmax.f32 %v1613, 0.0
    %v2048 = vmax.f32 %v1809, 0.0
    %v2049 = vmax.f32 %v2005, 0.0
    %v2050 = vmax.f32 %v1420, 0.0
    %v2051 = vmax.f32 %v1616, 0.0
    %v2052 = vmax.f32 %v1812, 0.0
    %v2053 = vmax.f32 %v2008, 0.0
    %v2054 = vmax.f32 %v1422, 0.0
    %v2055 = vmax.f32 %v1618, 0.0
    %v2056 = vmax.f32 %v1814, 0.0
    %v2057 = vmax.f32 %v2010, 0.0
    %v2058 = vmax.f32 %v1425, 0.0
    %v2059 = vmax.f32 %v1621, 0.0
    %v2060 = vmax.f32 %v1817, 0.0
    %v2061 = vmax.f32 %v2013, 0.0
    %v2062 = vmax.f32 %v1427, 0.0
    %v2063 = vmax.f32 %v1623, 0.0
    %v2064 = vmax.f32 %v1819, 0.0
    %v2065 = vmax.f32 %v2015, 0.0
    %v2066 = vmax.f32 %v1430, 0.0
    %v2067 = vmax.f32 %v1626, 0.0
    %v2068 = vmax.f32 %v1822, 0.0
    %v2069 = vmax.f32 %v2018, 0.0
    %v2070 = vmax.f32 %v1432, 0.0
    %v2071 = vmax.f32 %v1628, 0.0
    %v2072 = vmax.f32 %v1824, 0.0
    %v2073 = vmax.f32 %v2020, 0.0
    %v2074 = vmax.f32 %v1435, 0.0
    %v2075 = vmax.f32 %v1631, 0.0
    %v2076 = vmax.f32 %v1827, 0.0
    %v2077 = vmax.f32 %v2023, 0.0
    %v2078 = vmax.f32 %v1437, 0.0
    %v2079 = vmax.f32 %v1633, 0.0
    %v2080 = vmax.f32 %v1829, 0.0
    %v2081 = vmax.f32 %v2025, 0.0
    %v2082 = vmax.f32 %v1440, 0.0
    %v2083 = vmax.f32 %v1636, 0.0
    %v2084 = vmax.f32 %v1832, 0.0
    %v2085 = vmax.f32 %v2028, 0.0
    %v2086 = vmax.f32 %v1442, 0.0
    %v2087 = vmax.f32 %v1638, 0.0
    %v2088 = vmax.f32 %v1834, 0.0
    %v2089 = vmax.f32 %v2030, 0.0
    %v2090 = vmax.f32 %v1445, 0.0
    %v2091 = vmax.f32 %v1641, 0.0
    %v2092 = vmax.f32 %v1837, 0.0
    %v2093 = vmax.f32 %v2033, 0.0
    %v2094 = vmax.f32 %v1447, 0.0
    %v2095 = vmax.f32 %v1643, 0.0
    %v2096 = vmax.f32 %v1839, 0.0
    %v2097 = vmax.f32 %v2035, 0.0
    %v2098 = vmax.f32 %v1450, 0.0
    %v2099 = vmax.f32 %v1646, 0.0
    %v2100 = vmax.f32 %v1842, 0.0
    %v2101 = vmax.f32 %v2038, 0.0
    %v2102 = vmax.f32 %v1452, 0.0
    %v2103 = vmax.f32 %v1648, 0.0
    %v2104 = vmax.f32 %v1844, 0.0
    %v2105 = vmax.f32 %v2040, 0.0
    %v2106 = vpack.c.bf16 %v2046, %v2042
    %v2107 = vpack.c.bf16 %v2047, %v2043
    %v2108 = vpack.c.bf16 %v2048, %v2044
    %v2109 = vpack.c.bf16 %v2049, %v2045
    %v2110 = vpack.c.bf16 %v2054, %v2050
    %v2111 = vpack.c.bf16 %v2055, %v2051
    %v2112 = vpack.c.bf16 %v2056, %v2052
    %v2113 = vpack.c.bf16 %v2057, %v2053
    %v2114 = vpack.c.bf16 %v2062, %v2058
    %v2115 = vpack.c.bf16 %v2063, %v2059
    %v2116 = vpack.c.bf16 %v2064, %v2060
    %v2117 = vpack.c.bf16 %v2065, %v2061
    %v2118 = vpack.c.bf16 %v2070, %v2066
    %v2119 = vpack.c.bf16 %v2071, %v2067
    %v2120 = vpack.c.bf16 %v2072, %v2068
    %v2121 = vpack.c.bf16 %v2073, %v2069
    %v2122 = vpack.c.bf16 %v2078, %v2074
    %v2123 = vpack.c.bf16 %v2079, %v2075
    %v2124 = vpack.c.bf16 %v2080, %v2076
    %v2125 = vpack.c.bf16 %v2081, %v2077
    %v2126 = vpack.c.bf16 %v2086, %v2082
    %v2127 = vpack.c.bf16 %v2087, %v2083
    %v2128 = vpack.c.bf16 %v2088, %v2084
    %v2129 = vpack.c.bf16 %v2089, %v2085
    %v2130 = vpack.c.bf16 %v2094, %v2090
    %v2131 = vpack.c.bf16 %v2095, %v2091
    %v2132 = vpack.c.bf16 %v2096, %v2092
    %v2133 = vpack.c.bf16 %v2097, %v2093
    %v2134 = vpack.c.bf16 %v2102, %v2098
    %v2135 = vpack.c.bf16 %v2103, %v2099
    %v2136 = vpack.c.bf16 %v2104, %v2100
    %v2137 = vpack.c.bf16 %v2105, %v2101
    %v2138 = vld [vmem:[#allocation5] sm:$0xff]
    %v2139 = vld [vmem:[#allocation5 + $0x8] sm:$0xff]
    %v2140 = vld [vmem:[#allocation5 + $0x10] sm:$0xff]
    %v2141 = vld [vmem:[#allocation5 + $0x18] sm:$0xff]
    %v2142 = vld [vmem:[#allocation5 + $0x20] sm:$0xff]
    %v2143 = vld [vmem:[#allocation5 + $0x28] sm:$0xff]
    %v2144 = vld [vmem:[#allocation5 + $0x30] sm:$0xff]
    %v2145 = vld [vmem:[#allocation5 + $0x38] sm:$0xff]
    %v2146 = vld [vmem:[#allocation5 + $0x40] sm:$0xff]
    %v2147 = vld [vmem:[#allocation5 + $0x48] sm:$0xff]
    %v2148 = vld [vmem:[#allocation5 + $0x50] sm:$0xff]
    %v2149 = vld [vmem:[#allocation5 + $0x58] sm:$0xff]
    %v2150 = vld [vmem:[#allocation5 + $0x60] sm:$0xff]
    %v2151 = vld [vmem:[#allocation5 + $0x68] sm:$0xff]
    %v2152 = vld [vmem:[#allocation5 + $0x70] sm:$0xff]
    %v2153 = vld [vmem:[#allocation5 + $0x78] sm:$0xff]
    %v2154 = vld [vmem:[#allocation5 + $0x80] sm:$0xff]
    %v2155 = vld [vmem:[#allocation5 + $0x88] sm:$0xff]
    %v2156 = vld [vmem:[#allocation5 + $0x90] sm:$0xff]
    %v2157 = vld [vmem:[#allocation5 + $0x98] sm:$0xff]
    %v2158 = vld [vmem:[#allocation5 + $0xa0] sm:$0xff]
    %v2159 = vld [vmem:[#allocation5 + $0xa8] sm:$0xff]
    %v2160 = vld [vmem:[#allocation5 + $0xb0] sm:$0xff]
    %v2161 = vld [vmem:[#allocation5 + $0xb8] sm:$0xff]
    %v2162 = vld [vmem:[#allocation5 + $0xc0] sm:$0xff]
    %v2163 = vld [vmem:[#allocation5 + $0xc8] sm:$0xff]
    %v2164 = vld [vmem:[#allocation5 + $0xd0] sm:$0xff]
    %v2165 = vld [vmem:[#allocation5 + $0xd8] sm:$0xff]
    %v2166 = vld [vmem:[#allocation5 + $0xe0] sm:$0xff]
    %v2167 = vld [vmem:[#allocation5 + $0xe8] sm:$0xff]
    %v2168 = vld [vmem:[#allocation5 + $0xf0] sm:$0xff]
    %v2169 = vld [vmem:[#allocation5 + $0xf8] sm:$0xff]
    %v2170 = vld [vmem:[#allocation5 + $0x100] sm:$0xff]
    %v2171 = vld [vmem:[#allocation5 + $0x108] sm:$0xff]
    %v2172 = vld [vmem:[#allocation5 + $0x110] sm:$0xff]
    %v2173 = vld [vmem:[#allocation5 + $0x118] sm:$0xff]
    %v2174 = vld [vmem:[#allocation5 + $0x120] sm:$0xff]
    %v2175 = vld [vmem:[#allocation5 + $0x128] sm:$0xff]
    %v2176 = vld [vmem:[#allocation5 + $0x130] sm:$0xff]
    %v2177 = vld [vmem:[#allocation5 + $0x138] sm:$0xff]
    %v2178 = vld [vmem:[#allocation5 + $0x140] sm:$0xff]
    %v2179 = vld [vmem:[#allocation5 + $0x148] sm:$0xff]
    %v2180 = vld [vmem:[#allocation5 + $0x150] sm:$0xff]
    %v2181 = vld [vmem:[#allocation5 + $0x158] sm:$0xff]
    %v2182 = vld [vmem:[#allocation5 + $0x160] sm:$0xff]
    %v2183 = vld [vmem:[#allocation5 + $0x168] sm:$0xff]
    %v2184 = vld [vmem:[#allocation5 + $0x170] sm:$0xff]
    %v2185 = vld [vmem:[#allocation5 + $0x178] sm:$0xff]
    %v2186 = vld [vmem:[#allocation5 + $0x180] sm:$0xff]
    %v2187 = vld [vmem:[#allocation5 + $0x188] sm:$0xff]
    %v2188 = vld [vmem:[#allocation5 + $0x190] sm:$0xff]
    %v2189 = vld [vmem:[#allocation5 + $0x198] sm:$0xff]
    %v2190 = vld [vmem:[#allocation5 + $0x1a0] sm:$0xff]
    %v2191 = vld [vmem:[#allocation5 + $0x1a8] sm:$0xff]
    %v2192 = vld [vmem:[#allocation5 + $0x1b0] sm:$0xff]
    %v2193 = vld [vmem:[#allocation5 + $0x1b8] sm:$0xff]
    %v2194 = vld [vmem:[#allocation5 + $0x1c0] sm:$0xff]
    %v2195 = vld [vmem:[#allocation5 + $0x1c8] sm:$0xff]
    %v2196 = vld [vmem:[#allocation5 + $0x1d0] sm:$0xff]
    %v2197 = vld [vmem:[#allocation5 + $0x1d8] sm:$0xff]
    %v2198 = vld [vmem:[#allocation5 + $0x1e0] sm:$0xff]
    %v2199 = vld [vmem:[#allocation5 + $0x1e8] sm:$0xff]
    %v2200 = vld [vmem:[#allocation5 + $0x1f0] sm:$0xff]
    %v2201 = vld [vmem:[#allocation5 + $0x1f8] sm:$0xff]
    %v2202 = vld [vmem:[#allocation5 + $0x200] sm:$0xff]
    %v2203 = vld [vmem:[#allocation5 + $0x208] sm:$0xff]
    %v2204 = vld [vmem:[#allocation5 + $0x210] sm:$0xff]
    %v2205 = vld [vmem:[#allocation5 + $0x218] sm:$0xff]
    %v2206 = vld [vmem:[#allocation5 + $0x220] sm:$0xff]
    %v2207 = vld [vmem:[#allocation5 + $0x228] sm:$0xff]
    %v2208 = vld [vmem:[#allocation5 + $0x230] sm:$0xff]
    %v2209 = vld [vmem:[#allocation5 + $0x238] sm:$0xff]
    %v2210 = vld [vmem:[#allocation5 + $0x240] sm:$0xff]
    %v2211 = vld [vmem:[#allocation5 + $0x248] sm:$0xff]
    %v2212 = vld [vmem:[#allocation5 + $0x250] sm:$0xff]
    %v2213 = vld [vmem:[#allocation5 + $0x258] sm:$0xff]
    %v2214 = vld [vmem:[#allocation5 + $0x260] sm:$0xff]
    %v2215 = vld [vmem:[#allocation5 + $0x268] sm:$0xff]
    %v2216 = vld [vmem:[#allocation5 + $0x270] sm:$0xff]
    %v2217 = vld [vmem:[#allocation5 + $0x278] sm:$0xff]
    %v2218 = vld [vmem:[#allocation5 + $0x280] sm:$0xff]
    %v2219 = vld [vmem:[#allocation5 + $0x288] sm:$0xff]
    %v2220 = vld [vmem:[#allocation5 + $0x290] sm:$0xff]
    %v2221 = vld [vmem:[#allocation5 + $0x298] sm:$0xff]
    %v2222 = vld [vmem:[#allocation5 + $0x2a0] sm:$0xff]
    %v2223 = vld [vmem:[#allocation5 + $0x2a8] sm:$0xff]
    %v2224 = vld [vmem:[#allocation5 + $0x2b0] sm:$0xff]
    %v2225 = vld [vmem:[#allocation5 + $0x2b8] sm:$0xff]
    %v2226 = vld [vmem:[#allocation5 + $0x2c0] sm:$0xff]
    %v2227 = vld [vmem:[#allocation5 + $0x2c8] sm:$0xff]
    %v2228 = vld [vmem:[#allocation5 + $0x2d0] sm:$0xff]
    %v2229 = vld [vmem:[#allocation5 + $0x2d8] sm:$0xff]
    %v2230 = vld [vmem:[#allocation5 + $0x2e0] sm:$0xff]
    %v2231 = vld [vmem:[#allocation5 + $0x2e8] sm:$0xff]
    %v2232 = vld [vmem:[#allocation5 + $0x2f0] sm:$0xff]
    %v2233 = vld [vmem:[#allocation5 + $0x2f8] sm:$0xff]
    %v2234 = vld [vmem:[#allocation5 + $0x300] sm:$0xff]
    %v2235 = vld [vmem:[#allocation5 + $0x308] sm:$0xff]
    %v2236 = vld [vmem:[#allocation5 + $0x310] sm:$0xff]
    %v2237 = vld [vmem:[#allocation5 + $0x318] sm:$0xff]
    %v2238 = vld [vmem:[#allocation5 + $0x320] sm:$0xff]
    %v2239 = vld [vmem:[#allocation5 + $0x328] sm:$0xff]
    %v2240 = vld [vmem:[#allocation5 + $0x330] sm:$0xff]
    %v2241 = vld [vmem:[#allocation5 + $0x338] sm:$0xff]
    %v2242 = vld [vmem:[#allocation5 + $0x340] sm:$0xff]
    %v2243 = vld [vmem:[#allocation5 + $0x348] sm:$0xff]
    %v2244 = vld [vmem:[#allocation5 + $0x350] sm:$0xff]
    %v2245 = vld [vmem:[#allocation5 + $0x358] sm:$0xff]
    %v2246 = vld [vmem:[#allocation5 + $0x360] sm:$0xff]
    %v2247 = vld [vmem:[#allocation5 + $0x368] sm:$0xff]
    %v2248 = vld [vmem:[#allocation5 + $0x370] sm:$0xff]
    %v2249 = vld [vmem:[#allocation5 + $0x378] sm:$0xff]
    %v2250 = vld [vmem:[#allocation5 + $0x380] sm:$0xff]
    %v2251 = vld [vmem:[#allocation5 + $0x388] sm:$0xff]
    %v2252 = vld [vmem:[#allocation5 + $0x390] sm:$0xff]
    %v2253 = vld [vmem:[#allocation5 + $0x398] sm:$0xff]
    %v2254 = vld [vmem:[#allocation5 + $0x3a0] sm:$0xff]
    %v2255 = vld [vmem:[#allocation5 + $0x3a8] sm:$0xff]
    %v2256 = vld [vmem:[#allocation5 + $0x3b0] sm:$0xff]
    %v2257 = vld [vmem:[#allocation5 + $0x3b8] sm:$0xff]
    %v2258 = vld [vmem:[#allocation5 + $0x3c0] sm:$0xff]
    %v2259 = vld [vmem:[#allocation5 + $0x3c8] sm:$0xff]
    %v2260 = vld [vmem:[#allocation5 + $0x3d0] sm:$0xff]
    %v2261 = vld [vmem:[#allocation5 + $0x3d8] sm:$0xff]
    %v2262 = vld [vmem:[#allocation5 + $0x3e0] sm:$0xff]
    %v2263 = vld [vmem:[#allocation5 + $0x3e8] sm:$0xff]
    %v2264 = vld [vmem:[#allocation5 + $0x3f0] sm:$0xff]
    %v2265 = vld [vmem:[#allocation5 + $0x3f8] sm:$0xff]
    %v2266 = vld [vmem:[%s6] sm:$0xf]
    %v2268 = vperm.slane %v2266, 0
    %v2269 = vperm.slane %v2266, 1
    %v2270 = vperm.slane %v2266, 2
    %v2271 = vperm.slane %v2266, 3
    %v2404 = vunpack.c.l.b16 %v2138
    %v2405 = vunpack.c.h.b16 %v2138
    %v2406 = vunpack.c.l.b16 %v2139
    %v2407 = vunpack.c.h.b16 %v2139
    %v2408 = vunpack.c.l.b16 %v2140
    %v2409 = vunpack.c.h.b16 %v2140
    %v2410 = vunpack.c.l.b16 %v2141
    %v2411 = vunpack.c.h.b16 %v2141
    %v2412 = vunpack.c.l.b16 %v2142
    %v2413 = vunpack.c.h.b16 %v2142
    %v2414 = vunpack.c.l.b16 %v2143
    %v2415 = vunpack.c.h.b16 %v2143
    %v2416 = vunpack.c.l.b16 %v2144
    %v2417 = vunpack.c.h.b16 %v2144
    %v2418 = vunpack.c.l.b16 %v2145
    %v2419 = vunpack.c.h.b16 %v2145
    %v2420 = vunpack.c.l.b16 %v2146
    %v2421 = vunpack.c.h.b16 %v2146
    %v2422 = vunpack.c.l.b16 %v2147
    %v2423 = vunpack.c.h.b16 %v2147
    %v2424 = vunpack.c.l.b16 %v2148
    %v2425 = vunpack.c.h.b16 %v2148
    %v2426 = vunpack.c.l.b16 %v2149
    %v2427 = vunpack.c.h.b16 %v2149
    %v2428 = vunpack.c.l.b16 %v2150
    %v2429 = vunpack.c.h.b16 %v2150
    %v2430 = vunpack.c.l.b16 %v2151
    %v2431 = vunpack.c.h.b16 %v2151
    %v2432 = vunpack.c.l.b16 %v2152
    %v2433 = vunpack.c.h.b16 %v2152
    %v2434 = vunpack.c.l.b16 %v2153
    %v2435 = vunpack.c.h.b16 %v2153
    %v2436 = vunpack.c.l.b16 %v2154
    %v2437 = vunpack.c.h.b16 %v2154
    %v2438 = vunpack.c.l.b16 %v2155
    %v2439 = vunpack.c.h.b16 %v2155
    %v2440 = vunpack.c.l.b16 %v2156
    %v2441 = vunpack.c.h.b16 %v2156
    %v2442 = vunpack.c.l.b16 %v2157
    %v2443 = vunpack.c.h.b16 %v2157
    %v2444 = vunpack.c.l.b16 %v2158
    %v2445 = vunpack.c.h.b16 %v2158
    %v2446 = vunpack.c.l.b16 %v2159
    %v2447 = vunpack.c.h.b16 %v2159
    %v2448 = vunpack.c.l.b16 %v2160
    %v2449 = vunpack.c.h.b16 %v2160
    %v2450 = vunpack.c.l.b16 %v2161
    %v2451 = vunpack.c.h.b16 %v2161
    %v2452 = vunpack.c.l.b16 %v2162
    %v2453 = vunpack.c.h.b16 %v2162
    %v2454 = vunpack.c.l.b16 %v2163
    %v2455 = vunpack.c.h.b16 %v2163
    %v2456 = vunpack.c.l.b16 %v2164
    %v2457 = vunpack.c.h.b16 %v2164
    %v2458 = vunpack.c.l.b16 %v2165
    %v2459 = vunpack.c.h.b16 %v2165
    %v2460 = vunpack.c.l.b16 %v2166
    %v2461 = vunpack.c.h.b16 %v2166
    %v2462 = vunpack.c.l.b16 %v2167
    %v2463 = vunpack.c.h.b16 %v2167
    %v2464 = vunpack.c.l.b16 %v2168
    %v2465 = vunpack.c.h.b16 %v2168
    %v2466 = vunpack.c.l.b16 %v2169
    %v2467 = vunpack.c.h.b16 %v2169
    %v2468 = vunpack.c.l.b16 %v2170
    %v2469 = vunpack.c.h.b16 %v2170
    %v2470 = vunpack.c.l.b16 %v2171
    %v2471 = vunpack.c.h.b16 %v2171
    %v2472 = vunpack.c.l.b16 %v2172
    %v2473 = vunpack.c.h.b16 %v2172
    %v2474 = vunpack.c.l.b16 %v2173
    %v2475 = vunpack.c.h.b16 %v2173
    %v2476 = vunpack.c.l.b16 %v2174
    %v2477 = vunpack.c.h.b16 %v2174
    %v2478 = vunpack.c.l.b16 %v2175
    %v2479 = vunpack.c.h.b16 %v2175
    %v2480 = vunpack.c.l.b16 %v2176
    %v2481 = vunpack.c.h.b16 %v2176
    %v2482 = vunpack.c.l.b16 %v2177
    %v2483 = vunpack.c.h.b16 %v2177
    %v2484 = vunpack.c.l.b16 %v2178
    %v2485 = vunpack.c.h.b16 %v2178
    %v2486 = vunpack.c.l.b16 %v2179
    %v2487 = vunpack.c.h.b16 %v2179
    %v2488 = vunpack.c.l.b16 %v2180
    %v2489 = vunpack.c.h.b16 %v2180
    %v2490 = vunpack.c.l.b16 %v2181
    %v2491 = vunpack.c.h.b16 %v2181
    %v2492 = vunpack.c.l.b16 %v2182
    %v2493 = vunpack.c.h.b16 %v2182
    %v2494 = vunpack.c.l.b16 %v2183
    %v2495 = vunpack.c.h.b16 %v2183
    %v2496 = vunpack.c.l.b16 %v2184
    %v2497 = vunpack.c.h.b16 %v2184
    %v2498 = vunpack.c.l.b16 %v2185
    %v2499 = vunpack.c.h.b16 %v2185
    %v2500 = vunpack.c.l.b16 %v2186
    %v2501 = vunpack.c.h.b16 %v2186
    %v2502 = vunpack.c.l.b16 %v2187
    %v2503 = vunpack.c.h.b16 %v2187
    %v2504 = vunpack.c.l.b16 %v2188
    %v2505 = vunpack.c.h.b16 %v2188
    %v2506 = vunpack.c.l.b16 %v2189
    %v2507 = vunpack.c.h.b16 %v2189
    %v2508 = vunpack.c.l.b16 %v2190
    %v2509 = vunpack.c.h.b16 %v2190
    %v2510 = vunpack.c.l.b16 %v2191
    %v2511 = vunpack.c.h.b16 %v2191
    %v2512 = vunpack.c.l.b16 %v2192
    %v2513 = vunpack.c.h.b16 %v2192
    %v2514 = vunpack.c.l.b16 %v2193
    %v2515 = vunpack.c.h.b16 %v2193
    %v2516 = vunpack.c.l.b16 %v2194
    %v2517 = vunpack.c.h.b16 %v2194
    %v2518 = vunpack.c.l.b16 %v2195
    %v2519 = vunpack.c.h.b16 %v2195
    %v2520 = vunpack.c.l.b16 %v2196
    %v2521 = vunpack.c.h.b16 %v2196
    %v2522 = vunpack.c.l.b16 %v2197
    %v2523 = vunpack.c.h.b16 %v2197
    %v2524 = vunpack.c.l.b16 %v2198
    %v2525 = vunpack.c.h.b16 %v2198
    %v2526 = vunpack.c.l.b16 %v2199
    %v2527 = vunpack.c.h.b16 %v2199
    %v2528 = vunpack.c.l.b16 %v2200
    %v2529 = vunpack.c.h.b16 %v2200
    %v2530 = vunpack.c.l.b16 %v2201
    %v2531 = vunpack.c.h.b16 %v2201
    %v2532 = vunpack.c.l.b16 %v2202
    %v2533 = vunpack.c.h.b16 %v2202
    %v2534 = vunpack.c.l.b16 %v2203
    %v2535 = vunpack.c.h.b16 %v2203
    %v2536 = vunpack.c.l.b16 %v2204
    %v2537 = vunpack.c.h.b16 %v2204
    %v2538 = vunpack.c.l.b16 %v2205
    %v2539 = vunpack.c.h.b16 %v2205
    %v2540 = vunpack.c.l.b16 %v2206
    %v2541 = vunpack.c.h.b16 %v2206
    %v2542 = vunpack.c.l.b16 %v2207
    %v2543 = vunpack.c.h.b16 %v2207
    %v2544 = vunpack.c.l.b16 %v2208
    %v2545 = vunpack.c.h.b16 %v2208
    %v2546 = vunpack.c.l.b16 %v2209
    %v2547 = vunpack.c.h.b16 %v2209
    %v2548 = vunpack.c.l.b16 %v2210
    %v2549 = vunpack.c.h.b16 %v2210
    %v2550 = vunpack.c.l.b16 %v2211
    %v2551 = vunpack.c.h.b16 %v2211
    %v2552 = vunpack.c.l.b16 %v2212
    %v2553 = vunpack.c.h.b16 %v2212
    %v2554 = vunpack.c.l.b16 %v2213
    %v2555 = vunpack.c.h.b16 %v2213
    %v2556 = vunpack.c.l.b16 %v2214
    %v2557 = vunpack.c.h.b16 %v2214
    %v2558 = vunpack.c.l.b16 %v2215
    %v2559 = vunpack.c.h.b16 %v2215
    %v2560 = vunpack.c.l.b16 %v2216
    %v2561 = vunpack.c.h.b16 %v2216
    %v2562 = vunpack.c.l.b16 %v2217
    %v2563 = vunpack.c.h.b16 %v2217
    %v2564 = vunpack.c.l.b16 %v2218
    %v2565 = vunpack.c.h.b16 %v2218
    %v2566 = vunpack.c.l.b16 %v2219
    %v2567 = vunpack.c.h.b16 %v2219
    %v2568 = vunpack.c.l.b16 %v2220
    %v2569 = vunpack.c.h.b16 %v2220
    %v2570 = vunpack.c.l.b16 %v2221
    %v2571 = vunpack.c.h.b16 %v2221
    %v2572 = vunpack.c.l.b16 %v2222
    %v2573 = vunpack.c.h.b16 %v2222
    %v2574 = vunpack.c.l.b16 %v2223
    %v2575 = vunpack.c.h.b16 %v2223
    %v2576 = vunpack.c.l.b16 %v2224
    %v2577 = vunpack.c.h.b16 %v2224
    %v2578 = vunpack.c.l.b16 %v2225
    %v2579 = vunpack.c.h.b16 %v2225
    %v2580 = vunpack.c.l.b16 %v2226
    %v2581 = vunpack.c.h.b16 %v2226
    %v2582 = vunpack.c.l.b16 %v2227
    %v2583 = vunpack.c.h.b16 %v2227
    %v2584 = vunpack.c.l.b16 %v2228
    %v2585 = vunpack.c.h.b16 %v2228
    %v2586 = vunpack.c.l.b16 %v2229
    %v2587 = vunpack.c.h.b16 %v2229
    %v2588 = vunpack.c.l.b16 %v2230
    %v2589 = vunpack.c.h.b16 %v2230
    %v2590 = vunpack.c.l.b16 %v2231
    %v2591 = vunpack.c.h.b16 %v2231
    %v2592 = vunpack.c.l.b16 %v2232
    %v2593 = vunpack.c.h.b16 %v2232
    %v2594 = vunpack.c.l.b16 %v2233
    %v2595 = vunpack.c.h.b16 %v2233
    %v2596 = vunpack.c.l.b16 %v2234
    %v2597 = vunpack.c.h.b16 %v2234
    %v2598 = vunpack.c.l.b16 %v2235
    %v2599 = vunpack.c.h.b16 %v2235
    %v2600 = vunpack.c.l.b16 %v2236
    %v2601 = vunpack.c.h.b16 %v2236
    %v2602 = vunpack.c.l.b16 %v2237
    %v2603 = vunpack.c.h.b16 %v2237
    %v2604 = vunpack.c.l.b16 %v2238
    %v2605 = vunpack.c.h.b16 %v2238
    %v2606 = vunpack.c.l.b16 %v2239
    %v2607 = vunpack.c.h.b16 %v2239
    %v2608 = vunpack.c.l.b16 %v2240
    %v2609 = vunpack.c.h.b16 %v2240
    %v2610 = vunpack.c.l.b16 %v2241
    %v2611 = vunpack.c.h.b16 %v2241
    %v2612 = vunpack.c.l.b16 %v2242
    %v2613 = vunpack.c.h.b16 %v2242
    %v2614 = vunpack.c.l.b16 %v2243
    %v2615 = vunpack.c.h.b16 %v2243
    %v2616 = vunpack.c.l.b16 %v2244
    %v2617 = vunpack.c.h.b16 %v2244
    %v2618 = vunpack.c.l.b16 %v2245
    %v2619 = vunpack.c.h.b16 %v2245
    %v2620 = vunpack.c.l.b16 %v2246
    %v2621 = vunpack.c.h.b16 %v2246
    %v2622 = vunpack.c.l.b16 %v2247
    %v2623 = vunpack.c.h.b16 %v2247
    %v2624 = vunpack.c.l.b16 %v2248
    %v2625 = vunpack.c.h.b16 %v2248
    %v2626 = vunpack.c.l.b16 %v2249
    %v2627 = vunpack.c.h.b16 %v2249
    %v2628 = vunpack.c.l.b16 %v2250
    %v2629 = vunpack.c.h.b16 %v2250
    %v2630 = vunpack.c.l.b16 %v2251
    %v2631 = vunpack.c.h.b16 %v2251
    %v2632 = vunpack.c.l.b16 %v2252
    %v2633 = vunpack.c.h.b16 %v2252
    %v2634 = vunpack.c.l.b16 %v2253
    %v2635 = vunpack.c.h.b16 %v2253
    %v2636 = vunpack.c.l.b16 %v2254
    %v2637 = vunpack.c.h.b16 %v2254
    %v2638 = vunpack.c.l.b16 %v2255
    %v2639 = vunpack.c.h.b16 %v2255
    %v2640 = vunpack.c.l.b16 %v2256
    %v2641 = vunpack.c.h.b16 %v2256
    %v2642 = vunpack.c.l.b16 %v2257
    %v2643 = vunpack.c.h.b16 %v2257
    %v2644 = vunpack.c.l.b16 %v2258
    %v2645 = vunpack.c.h.b16 %v2258
    %v2646 = vunpack.c.l.b16 %v2259
    %v2647 = vunpack.c.h.b16 %v2259
    %v2648 = vunpack.c.l.b16 %v2260
    %v2649 = vunpack.c.h.b16 %v2260
    %v2650 = vunpack.c.l.b16 %v2261
    %v2651 = vunpack.c.h.b16 %v2261
    %v2652 = vunpack.c.l.b16 %v2262
    %v2653 = vunpack.c.h.b16 %v2262
    %v2654 = vunpack.c.l.b16 %v2263
    %v2655 = vunpack.c.h.b16 %v2263
    %v2656 = vunpack.c.l.b16 %v2264
    %v2657 = vunpack.c.h.b16 %v2264
    %v2658 = vunpack.c.l.b16 %v2265
    %v2659 = vunpack.c.h.b16 %v2265
    %v2660 = vpack.c.b16 %v2408, %v2404
    %v2661 = vpack.c.b16 %v2409, %v2405
    %v2662 = vpack.c.b16 %v2410, %v2406
    %v2663 = vpack.c.b16 %v2411, %v2407
    %v2664 = vpack.c.b16 %v2416, %v2412
    %v2665 = vpack.c.b16 %v2417, %v2413
    %v2666 = vpack.c.b16 %v2418, %v2414
    %v2667 = vpack.c.b16 %v2419, %v2415
    %v2668 = vpack.c.b16 %v2424, %v2420
    %v2669 = vpack.c.b16 %v2425, %v2421
    %v2670 = vpack.c.b16 %v2426, %v2422
    %v2671 = vpack.c.b16 %v2427, %v2423
    %v2672 = vpack.c.b16 %v2432, %v2428
    %v2673 = vpack.c.b16 %v2433, %v2429
    %v2674 = vpack.c.b16 %v2434, %v2430
    %v2675 = vpack.c.b16 %v2435, %v2431
    %v2676 = vpack.c.b16 %v2440, %v2436
    %v2677 = vpack.c.b16 %v2441, %v2437
    %v2678 = vpack.c.b16 %v2442, %v2438
    %v2679 = vpack.c.b16 %v2443, %v2439
    %v2680 = vpack.c.b16 %v2448, %v2444
    %v2681 = vpack.c.b16 %v2449, %v2445
    %v2682 = vpack.c.b16 %v2450, %v2446
    %v2683 = vpack.c.b16 %v2451, %v2447
    %v2684 = vpack.c.b16 %v2456, %v2452
    %v2685 = vpack.c.b16 %v2457, %v2453
    %v2686 = vpack.c.b16 %v2458, %v2454
    %v2687 = vpack.c.b16 %v2459, %v2455
    %v2688 = vpack.c.b16 %v2464, %v2460
    %v2689 = vpack.c.b16 %v2465, %v2461
    %v2690 = vpack.c.b16 %v2466, %v2462
    %v2691 = vpack.c.b16 %v2467, %v2463
    %v2692 = vpack.c.b16 %v2472, %v2468
    %v2693 = vpack.c.b16 %v2473, %v2469
    %v2694 = vpack.c.b16 %v2474, %v2470
    %v2695 = vpack.c.b16 %v2475, %v2471
    %v2696 = vpack.c.b16 %v2480, %v2476
    %v2697 = vpack.c.b16 %v2481, %v2477
    %v2698 = vpack.c.b16 %v2482, %v2478
    %v2699 = vpack.c.b16 %v2483, %v2479
    %v2700 = vpack.c.b16 %v2488, %v2484
    %v2701 = vpack.c.b16 %v2489, %v2485
    %v2702 = vpack.c.b16 %v2490, %v2486
    %v2703 = vpack.c.b16 %v2491, %v2487
    %v2704 = vpack.c.b16 %v2496, %v2492
    %v2705 = vpack.c.b16 %v2497, %v2493
    %v2706 = vpack.c.b16 %v2498, %v2494
    %v2707 = vpack.c.b16 %v2499, %v2495
    %v2708 = vpack.c.b16 %v2504, %v2500
    %v2709 = vpack.c.b16 %v2505, %v2501
    %v2710 = vpack.c.b16 %v2506, %v2502
    %v2711 = vpack.c.b16 %v2507, %v2503
    %v2712 = vpack.c.b16 %v2512, %v2508
    %v2713 = vpack.c.b16 %v2513, %v2509
    %v2714 = vpack.c.b16 %v2514, %v2510
    %v2715 = vpack.c.b16 %v2515, %v2511
    %v2716 = vpack.c.b16 %v2520, %v2516
    %v2717 = vpack.c.b16 %v2521, %v2517
    %v2718 = vpack.c.b16 %v2522, %v2518
    %v2719 = vpack.c.b16 %v2523, %v2519
    %v2720 = vpack.c.b16 %v2528, %v2524
    %v2721 = vpack.c.b16 %v2529, %v2525
    %v2722 = vpack.c.b16 %v2530, %v2526
    %v2723 = vpack.c.b16 %v2531, %v2527
    %v2724 = vpack.c.b16 %v2536, %v2532
    %v2725 = vpack.c.b16 %v2537, %v2533
    %v2726 = vpack.c.b16 %v2538, %v2534
    %v2727 = vpack.c.b16 %v2539, %v2535
    %v2728 = vpack.c.b16 %v2544, %v2540
    %v2729 = vpack.c.b16 %v2545, %v2541
    %v2730 = vpack.c.b16 %v2546, %v2542
    %v2731 = vpack.c.b16 %v2547, %v2543
    %v2732 = vpack.c.b16 %v2552, %v2548
    %v2733 = vpack.c.b16 %v2553, %v2549
    %v2734 = vpack.c.b16 %v2554, %v2550
    %v2735 = vpack.c.b16 %v2555, %v2551
    %v2736 = vpack.c.b16 %v2560, %v2556
    %v2737 = vpack.c.b16 %v2561, %v2557
    %v2738 = vpack.c.b16 %v2562, %v2558
    %v2739 = vpack.c.b16 %v2563, %v2559
    %v2740 = vpack.c.b16 %v2568, %v2564
    %v2741 = vpack.c.b16 %v2569, %v2565
    %v2742 = vpack.c.b16 %v2570, %v2566
    %v2743 = vpack.c.b16 %v2571, %v2567
    %v2744 = vpack.c.b16 %v2576, %v2572
    %v2745 = vpack.c.b16 %v2577, %v2573
    %v2746 = vpack.c.b16 %v2578, %v2574
    %v2747 = vpack.c.b16 %v2579, %v2575
    %v2748 = vpack.c.b16 %v2584, %v2580
    %v2749 = vpack.c.b16 %v2585, %v2581
    %v2750 = vpack.c.b16 %v2586, %v2582
    %v2751 = vpack.c.b16 %v2587, %v2583
    %v2752 = vpack.c.b16 %v2592, %v2588
    %v2753 = vpack.c.b16 %v2593, %v2589
    %v2754 = vpack.c.b16 %v2594, %v2590
    %v2755 = vpack.c.b16 %v2595, %v2591
    %v2756 = vpack.c.b16 %v2600, %v2596
    %v2757 = vpack.c.b16 %v2601, %v2597
    %v2758 = vpack.c.b16 %v2602, %v2598
    %v2759 = vpack.c.b16 %v2603, %v2599
    %v2760 = vpack.c.b16 %v2608, %v2604
    %v2761 = vpack.c.b16 %v2609, %v2605
    %v2762 = vpack.c.b16 %v2610, %v2606
    %v2763 = vpack.c.b16 %v2611, %v2607
    %v2764 = vpack.c.b16 %v2616, %v2612
    %v2765 = vpack.c.b16 %v2617, %v2613
    %v2766 = vpack.c.b16 %v2618, %v2614
    %v2767 = vpack.c.b16 %v2619, %v2615
    %v2768 = vpack.c.b16 %v2624, %v2620
    %v2769 = vpack.c.b16 %v2625, %v2621
    %v2770 = vpack.c.b16 %v2626, %v2622
    %v2771 = vpack.c.b16 %v2627, %v2623
    %v2772 = vpack.c.b16 %v2632, %v2628
    %v2773 = vpack.c.b16 %v2633, %v2629
    %v2774 = vpack.c.b16 %v2634, %v2630
    %v2775 = vpack.c.b16 %v2635, %v2631
    %v2776 = vpack.c.b16 %v2640, %v2636
    %v2777 = vpack.c.b16 %v2641, %v2637
    %v2778 = vpack.c.b16 %v2642, %v2638
    %v2779 = vpack.c.b16 %v2643, %v2639
    %v2780 = vpack.c.b16 %v2648, %v2644
    %v2781 = vpack.c.b16 %v2649, %v2645
    %v2782 = vpack.c.b16 %v2650, %v2646
    %v2783 = vpack.c.b16 %v2651, %v2647
    %v2784 = vpack.c.b16 %v2656, %v2652
    %v2785 = vpack.c.b16 %v2657, %v2653
    %v2786 = vpack.c.b16 %v2658, %v2654
    %v2787 = vpack.c.b16 %v2659, %v2655
    %2916 = vmatpush.bf16.msra.mxu0 %v2688
    %2917 = vmatpush.bf16.msra.mxu0 %v2684
    %2918 = vmatpush.bf16.msra.mxu0 %v2680
    %2919 = vmatpush.bf16.msra.mxu0 %v2676
    %2920 = vmatpush.bf16.msra.mxu0 %v2672
    %2921 = vmatpush.bf16.msra.mxu0 %v2668
    %2922 = vmatpush.bf16.msra.mxu0 %v2664
    %2923 = vmatpush.bf16.msra.mxu0 %v2660
    %2924 = vmatmul.bf16.gmra.mxu0 %v2106
    %v2925 = vpop.f32.mrf.mxu0
    %v2926 = vadd.f32 %v2268, %v2925
    %v2927 = vpop.f32.mrf.mxu0
    %v2928 = vadd.f32 %v2268, %v2927
    %2929 = vmatmul.bf16.gmra.mxu0 %v2110
    %v2930 = vpop.f32.mrf.mxu0
    %v2931 = vadd.f32 %v2268, %v2930
    %v2932 = vpop.f32.mrf.mxu0
    %v2933 = vadd.f32 %v2268, %v2932
    %2934 = vmatmul.bf16.gmra.mxu0 %v2114
    %v2935 = vpop.f32.mrf.mxu0
    %v2936 = vadd.f32 %v2268, %v2935
    %v2937 = vpop.f32.mrf.mxu0
    %v2938 = vadd.f32 %v2268, %v2937
    %2939 = vmatmul.bf16.gmra.mxu0 %v2118
    %v2940 = vpop.f32.mrf.mxu0
    %v2941 = vadd.f32 %v2268, %v2940
    %v2942 = vpop.f32.mrf.mxu0
    %v2943 = vadd.f32 %v2268, %v2942
    %2944 = vmatmul.bf16.gmra.mxu0 %v2122
    %v2945 = vpop.f32.mrf.mxu0
    %v2946 = vadd.f32 %v2268, %v2945
    %v2947 = vpop.f32.mrf.mxu0
    %v2948 = vadd.f32 %v2268, %v2947
    %2949 = vmatmul.bf16.gmra.mxu0 %v2126
    %v2950 = vpop.f32.mrf.mxu0
    %v2951 = vadd.f32 %v2268, %v2950
    %v2952 = vpop.f32.mrf.mxu0
    %v2953 = vadd.f32 %v2268, %v2952
    %2954 = vmatmul.bf16.gmra.mxu0 %v2130
    %v2955 = vpop.f32.mrf.mxu0
    %v2956 = vadd.f32 %v2268, %v2955
    %v2957 = vpop.f32.mrf.mxu0
    %v2958 = vadd.f32 %v2268, %v2957
    %2959 = vmatmul.bf16.gmra.mxu0 %v2134
    %v2960 = vpop.f32.mrf.mxu0
    %v2961 = vadd.f32 %v2268, %v2960
    %v2962 = vpop.f32.mrf.mxu0
    %v2963 = vadd.f32 %v2268, %v2962
    %2964 = vdwg.mxu0
    %2965 = vmatpush.bf16.msra.mxu0 %v2720
    %2966 = vmatpush.bf16.msra.mxu0 %v2716
    %2967 = vmatpush.bf16.msra.mxu0 %v2712
    %2968 = vmatpush.bf16.msra.mxu0 %v2708
    %2969 = vmatpush.bf16.msra.mxu0 %v2704
    %2970 = vmatpush.bf16.msra.mxu0 %v2700
    %2971 = vmatpush.bf16.msra.mxu0 %v2696
    %2972 = vmatpush.bf16.msra.mxu0 %v2692
    %2973 = vmatmul.bf16.gmra.mxu0 %v2107
    %v2974 = vpop.f32.mrf.mxu0
    %v2975 = vadd.f32 %v2926, %v2974
    %v2976 = vpop.f32.mrf.mxu0
    %v2977 = vadd.f32 %v2928, %v2976
    %2978 = vmatmul.bf16.gmra.mxu0 %v2111
    %v2979 = vpop.f32.mrf.mxu0
    %v2980 = vadd.f32 %v2931, %v2979
    %v2981 = vpop.f32.mrf.mxu0
    %v2982 = vadd.f32 %v2933, %v2981
    %2983 = vmatmul.bf16.gmra.mxu0 %v2115
    %v2984 = vpop.f32.mrf.mxu0
    %v2985 = vadd.f32 %v2936, %v2984
    %v2986 = vpop.f32.mrf.mxu0
    %v2987 = vadd.f32 %v2938, %v2986
    %2988 = vmatmul.bf16.gmra.mxu0 %v2119
    %v2989 = vpop.f32.mrf.mxu0
    %v2990 = vadd.f32 %v2941, %v2989
    %v2991 = vpop.f32.mrf.mxu0
    %v2992 = vadd.f32 %v2943, %v2991
    %2993 = vmatmul.bf16.gmra.mxu0 %v2123
    %v2994 = vpop.f32.mrf.mxu0
    %v2995 = vadd.f32 %v2946, %v2994
    %v2996 = vpop.f32.mrf.mxu0
    %v2997 = vadd.f32 %v2948, %v2996
    %2998 = vmatmul.bf16.gmra.mxu0 %v2127
    %v2999 = vpop.f32.mrf.mxu0
    %v3000 = vadd.f32 %v2951, %v2999
    %v3001 = vpop.f32.mrf.mxu0
    %v3002 = vadd.f32 %v2953, %v3001
    %3003 = vmatmul.bf16.gmra.mxu0 %v2131
    %v3004 = vpop.f32.mrf.mxu0
    %v3005 = vadd.f32 %v2956, %v3004
    %v3006 = vpop.f32.mrf.mxu0
    %v3007 = vadd.f32 %v2958, %v3006
    %3008 = vmatmul.bf16.gmra.mxu0 %v2135
    %v3009 = vpop.f32.mrf.mxu0
    %v3010 = vadd.f32 %v2961, %v3009
    %v3011 = vpop.f32.mrf.mxu0
    %v3012 = vadd.f32 %v2963, %v3011
    %3013 = vdwg.mxu0
    %3014 = vmatpush.bf16.msra.mxu0 %v2752
    %3015 = vmatpush.bf16.msra.mxu0 %v2748
    %3016 = vmatpush.bf16.msra.mxu0 %v2744
    %3017 = vmatpush.bf16.msra.mxu0 %v2740
    %3018 = vmatpush.bf16.msra.mxu0 %v2736
    %3019 = vmatpush.bf16.msra.mxu0 %v2732
    %3020 = vmatpush.bf16.msra.mxu0 %v2728
    %3021 = vmatpush.bf16.msra.mxu0 %v2724
    %3022 = vmatmul.bf16.gmra.mxu0 %v2108
    %v3023 = vpop.f32.mrf.mxu0
    %v3024 = vadd.f32 %v2975, %v3023
    %v3025 = vpop.f32.mrf.mxu0
    %v3026 = vadd.f32 %v2977, %v3025
    %3027 = vmatmul.bf16.gmra.mxu0 %v2112
    %v3028 = vpop.f32.mrf.mxu0
    %v3029 = vadd.f32 %v2980, %v3028
    %v3030 = vpop.f32.mrf.mxu0
    %v3031 = vadd.f32 %v2982, %v3030
    %3032 = vmatmul.bf16.gmra.mxu0 %v2116
    %v3033 = vpop.f32.mrf.mxu0
    %v3034 = vadd.f32 %v2985, %v3033
    %v3035 = vpop.f32.mrf.mxu0
    %v3036 = vadd.f32 %v2987, %v3035
    %3037 = vmatmul.bf16.gmra.mxu0 %v2120
    %v3038 = vpop.f32.mrf.mxu0
    %v3039 = vadd.f32 %v2990, %v3038
    %v3040 = vpop.f32.mrf.mxu0
    %v3041 = vadd.f32 %v2992, %v3040
    %3042 = vmatmul.bf16.gmra.mxu0 %v2124
    %v3043 = vpop.f32.mrf.mxu0
    %v3044 = vadd.f32 %v2995, %v3043
    %v3045 = vpop.f32.mrf.mxu0
    %v3046 = vadd.f32 %v2997, %v3045
    %3047 = vmatmul.bf16.gmra.mxu0 %v2128
    %v3048 = vpop.f32.mrf.mxu0
    %v3049 = vadd.f32 %v3000, %v3048
    %v3050 = vpop.f32.mrf.mxu0
    %v3051 = vadd.f32 %v3002, %v3050
    %3052 = vmatmul.bf16.gmra.mxu0 %v2132
    %v3053 = vpop.f32.mrf.mxu0
    %v3054 = vadd.f32 %v3005, %v3053
    %v3055 = vpop.f32.mrf.mxu0
    %v3056 = vadd.f32 %v3007, %v3055
    %3057 = vmatmul.bf16.gmra.mxu0 %v2136
    %v3058 = vpop.f32.mrf.mxu0
    %v3059 = vadd.f32 %v3010, %v3058
    %v3060 = vpop.f32.mrf.mxu0
    %v3061 = vadd.f32 %v3012, %v3060
    %3062 = vdwg.mxu0
    %3063 = vmatpush.bf16.msra.mxu0 %v2784
    %3064 = vmatpush.bf16.msra.mxu0 %v2780
    %3065 = vmatpush.bf16.msra.mxu0 %v2776
    %3066 = vmatpush.bf16.msra.mxu0 %v2772
    %3067 = vmatpush.bf16.msra.mxu0 %v2768
    %3068 = vmatpush.bf16.msra.mxu0 %v2764
    %3069 = vmatpush.bf16.msra.mxu0 %v2760
    %3070 = vmatpush.bf16.msra.mxu0 %v2756
    %3071 = vmatmul.bf16.gmra.mxu0 %v2109
    %v3072 = vpop.f32.mrf.mxu0
    %v3073 = vadd.f32 %v3024, %v3072
    %v3074 = vpop.f32.mrf.mxu0
    %v3075 = vadd.f32 %v3026, %v3074
    %3076 = vmatmul.bf16.gmra.mxu0 %v2113
    %v3077 = vpop.f32.mrf.mxu0
    %v3078 = vadd.f32 %v3029, %v3077
    %v3079 = vpop.f32.mrf.mxu0
    %v3080 = vadd.f32 %v3031, %v3079
    %3081 = vmatmul.bf16.gmra.mxu0 %v2117
    %v3082 = vpop.f32.mrf.mxu0
    %v3083 = vadd.f32 %v3034, %v3082
    %v3084 = vpop.f32.mrf.mxu0
    %v3085 = vadd.f32 %v3036, %v3084
    %3086 = vmatmul.bf16.gmra.mxu0 %v2121
    %v3087 = vpop.f32.mrf.mxu0
    %v3088 = vadd.f32 %v3039, %v3087
    %v3089 = vpop.f32.mrf.mxu0
    %v3090 = vadd.f32 %v3041, %v3089
    %3091 = vmatmul.bf16.gmra.mxu0 %v2125
    %v3092 = vpop.f32.mrf.mxu0
    %v3093 = vadd.f32 %v3044, %v3092
    %v3094 = vpop.f32.mrf.mxu0
    %v3095 = vadd.f32 %v3046, %v3094
    %3096 = vmatmul.bf16.gmra.mxu0 %v2129
    %v3097 = vpop.f32.mrf.mxu0
    %v3098 = vadd.f32 %v3049, %v3097
    %v3099 = vpop.f32.mrf.mxu0
    %v3100 = vadd.f32 %v3051, %v3099
    %3101 = vmatmul.bf16.gmra.mxu0 %v2133
    %v3102 = vpop.f32.mrf.mxu0
    %v3103 = vadd.f32 %v3054, %v3102
    %v3104 = vpop.f32.mrf.mxu0
    %v3105 = vadd.f32 %v3056, %v3104
    %3106 = vmatmul.bf16.gmra.mxu0 %v2137
    %v3107 = vpop.f32.mrf.mxu0
    %v3108 = vadd.f32 %v3059, %v3107
    %v3109 = vpop.f32.mrf.mxu0
    %v3110 = vadd.f32 %v3061, %v3109
    %3111 = vdwg.mxu0
    %3112 = vmatpush.bf16.msra.mxu0 %v2689
    %3113 = vmatpush.bf16.msra.mxu0 %v2685
    %3114 = vmatpush.bf16.msra.mxu0 %v2681
    %3115 = vmatpush.bf16.msra.mxu0 %v2677
    %3116 = vmatpush.bf16.msra.mxu0 %v2673
    %3117 = vmatpush.bf16.msra.mxu0 %v2669
    %3118 = vmatpush.bf16.msra.mxu0 %v2665
    %3119 = vmatpush.bf16.msra.mxu0 %v2661
    %3120 = vmatmul.bf16.gmra.mxu0 %v2106
    %v3121 = vpop.f32.mrf.mxu0
    %v3122 = vadd.f32 %v2269, %v3121
    %v3123 = vpop.f32.mrf.mxu0
    %v3124 = vadd.f32 %v2269, %v3123
    %3125 = vmatmul.bf16.gmra.mxu0 %v2110
    %v3126 = vpop.f32.mrf.mxu0
    %v3127 = vadd.f32 %v2269, %v3126
    %v3128 = vpop.f32.mrf.mxu0
    %v3129 = vadd.f32 %v2269, %v3128
    %3130 = vmatmul.bf16.gmra.mxu0 %v2114
    %v3131 = vpop.f32.mrf.mxu0
    %v3132 = vadd.f32 %v2269, %v3131
    %v3133 = vpop.f32.mrf.mxu0
    %v3134 = vadd.f32 %v2269, %v3133
    %3135 = vmatmul.bf16.gmra.mxu0 %v2118
    %v3136 = vpop.f32.mrf.mxu0
    %v3137 = vadd.f32 %v2269, %v3136
    %v3138 = vpop.f32.mrf.mxu0
    %v3139 = vadd.f32 %v2269, %v3138
    %3140 = vmatmul.bf16.gmra.mxu0 %v2122
    %v3141 = vpop.f32.mrf.mxu0
    %v3142 = vadd.f32 %v2269, %v3141
    %v3143 = vpop.f32.mrf.mxu0
    %v3144 = vadd.f32 %v2269, %v3143
    %3145 = vmatmul.bf16.gmra.mxu0 %v2126
    %v3146 = vpop.f32.mrf.mxu0
    %v3147 = vadd.f32 %v2269, %v3146
    %v3148 = vpop.f32.mrf.mxu0
    %v3149 = vadd.f32 %v2269, %v3148
    %3150 = vmatmul.bf16.gmra.mxu0 %v2130
    %v3151 = vpop.f32.mrf.mxu0
    %v3152 = vadd.f32 %v2269, %v3151
    %v3153 = vpop.f32.mrf.mxu0
    %v3154 = vadd.f32 %v2269, %v3153
    %3155 = vmatmul.bf16.gmra.mxu0 %v2134
    %v3156 = vpop.f32.mrf.mxu0
    %v3157 = vadd.f32 %v2269, %v3156
    %v3158 = vpop.f32.mrf.mxu0
    %v3159 = vadd.f32 %v2269, %v3158
    %3160 = vdwg.mxu0
    %3161 = vmatpush.bf16.msra.mxu0 %v2721
    %3162 = vmatpush.bf16.msra.mxu0 %v2717
    %3163 = vmatpush.bf16.msra.mxu0 %v2713
    %3164 = vmatpush.bf16.msra.mxu0 %v2709
    %3165 = vmatpush.bf16.msra.mxu0 %v2705
    %3166 = vmatpush.bf16.msra.mxu0 %v2701
    %3167 = vmatpush.bf16.msra.mxu0 %v2697
    %3168 = vmatpush.bf16.msra.mxu0 %v2693
    %3169 = vmatmul.bf16.gmra.mxu0 %v2107
    %v3170 = vpop.f32.mrf.mxu0
    %v3171 = vadd.f32 %v3122, %v3170
    %v3172 = vpop.f32.mrf.mxu0
    %v3173 = vadd.f32 %v3124, %v3172
    %3174 = vmatmul.bf16.gmra.mxu0 %v2111
    %v3175 = vpop.f32.mrf.mxu0
    %v3176 = vadd.f32 %v3127, %v3175
    %v3177 = vpop.f32.mrf.mxu0
    %v3178 = vadd.f32 %v3129, %v3177
    %3179 = vmatmul.bf16.gmra.mxu0 %v2115
    %v3180 = vpop.f32.mrf.mxu0
    %v3181 = vadd.f32 %v3132, %v3180
    %v3182 = vpop.f32.mrf.mxu0
    %v3183 = vadd.f32 %v3134, %v3182
    %3184 = vmatmul.bf16.gmra.mxu0 %v2119
    %v3185 = vpop.f32.mrf.mxu0
    %v3186 = vadd.f32 %v3137, %v3185
    %v3187 = vpop.f32.mrf.mxu0
    %v3188 = vadd.f32 %v3139, %v3187
    %3189 = vmatmul.bf16.gmra.mxu0 %v2123
    %v3190 = vpop.f32.mrf.mxu0
    %v3191 = vadd.f32 %v3142, %v3190
    %v3192 = vpop.f32.mrf.mxu0
    %v3193 = vadd.f32 %v3144, %v3192
    %3194 = vmatmul.bf16.gmra.mxu0 %v2127
    %v3195 = vpop.f32.mrf.mxu0
    %v3196 = vadd.f32 %v3147, %v3195
    %v3197 = vpop.f32.mrf.mxu0
    %v3198 = vadd.f32 %v3149, %v3197
    %3199 = vmatmul.bf16.gmra.mxu0 %v2131
    %v3200 = vpop.f32.mrf.mxu0
    %v3201 = vadd.f32 %v3152, %v3200
    %v3202 = vpop.f32.mrf.mxu0
    %v3203 = vadd.f32 %v3154, %v3202
    %3204 = vmatmul.bf16.gmra.mxu0 %v2135
    %v3205 = vpop.f32.mrf.mxu0
    %v3206 = vadd.f32 %v3157, %v3205
    %v3207 = vpop.f32.mrf.mxu0
    %v3208 = vadd.f32 %v3159, %v3207
    %3209 = vdwg.mxu0
    %3210 = vmatpush.bf16.msra.mxu0 %v2753
    %3211 = vmatpush.bf16.msra.mxu0 %v2749
    %3212 = vmatpush.bf16.msra.mxu0 %v2745
    %3213 = vmatpush.bf16.msra.mxu0 %v2741
    %3214 = vmatpush.bf16.msra.mxu0 %v2737
    %3215 = vmatpush.bf16.msra.mxu0 %v2733
    %3216 = vmatpush.bf16.msra.mxu0 %v2729
    %3217 = vmatpush.bf16.msra.mxu0 %v2725
    %3218 = vmatmul.bf16.gmra.mxu0 %v2108
    %v3219 = vpop.f32.mrf.mxu0
    %v3220 = vadd.f32 %v3171, %v3219
    %v3221 = vpop.f32.mrf.mxu0
    %v3222 = vadd.f32 %v3173, %v3221
    %3223 = vmatmul.bf16.gmra.mxu0 %v2112
    %v3224 = vpop.f32.mrf.mxu0
    %v3225 = vadd.f32 %v3176, %v3224
    %v3226 = vpop.f32.mrf.mxu0
    %v3227 = vadd.f32 %v3178, %v3226
    %3228 = vmatmul.bf16.gmra.mxu0 %v2116
    %v3229 = vpop.f32.mrf.mxu0
    %v3230 = vadd.f32 %v3181, %v3229
    %v3231 = vpop.f32.mrf.mxu0
    %v3232 = vadd.f32 %v3183, %v3231
    %3233 = vmatmul.bf16.gmra.mxu0 %v2120
    %v3234 = vpop.f32.mrf.mxu0
    %v3235 = vadd.f32 %v3186, %v3234
    %v3236 = vpop.f32.mrf.mxu0
    %v3237 = vadd.f32 %v3188, %v3236
    %3238 = vmatmul.bf16.gmra.mxu0 %v2124
    %v3239 = vpop.f32.mrf.mxu0
    %v3240 = vadd.f32 %v3191, %v3239
    %v3241 = vpop.f32.mrf.mxu0
    %v3242 = vadd.f32 %v3193, %v3241
    %3243 = vmatmul.bf16.gmra.mxu0 %v2128
    %v3244 = vpop.f32.mrf.mxu0
    %v3245 = vadd.f32 %v3196, %v3244
    %v3246 = vpop.f32.mrf.mxu0
    %v3247 = vadd.f32 %v3198, %v3246
    %3248 = vmatmul.bf16.gmra.mxu0 %v2132
    %v3249 = vpop.f32.mrf.mxu0
    %v3250 = vadd.f32 %v3201, %v3249
    %v3251 = vpop.f32.mrf.mxu0
    %v3252 = vadd.f32 %v3203, %v3251
    %3253 = vmatmul.bf16.gmra.mxu0 %v2136
    %v3254 = vpop.f32.mrf.mxu0
    %v3255 = vadd.f32 %v3206, %v3254
    %v3256 = vpop.f32.mrf.mxu0
    %v3257 = vadd.f32 %v3208, %v3256
    %3258 = vdwg.mxu0
    %3259 = vmatpush.bf16.msra.mxu0 %v2785
    %3260 = vmatpush.bf16.msra.mxu0 %v2781
    %3261 = vmatpush.bf16.msra.mxu0 %v2777
    %3262 = vmatpush.bf16.msra.mxu0 %v2773
    %3263 = vmatpush.bf16.msra.mxu0 %v2769
    %3264 = vmatpush.bf16.msra.mxu0 %v2765
    %3265 = vmatpush.bf16.msra.mxu0 %v2761
    %3266 = vmatpush.bf16.msra.mxu0 %v2757
    %3267 = vmatmul.bf16.gmra.mxu0 %v2109
    %v3268 = vpop.f32.mrf.mxu0
    %v3269 = vadd.f32 %v3220, %v3268
    %v3270 = vpop.f32.mrf.mxu0
    %v3271 = vadd.f32 %v3222, %v3270
    %3272 = vmatmul.bf16.gmra.mxu0 %v2113
    %v3273 = vpop.f32.mrf.mxu0
    %v3274 = vadd.f32 %v3225, %v3273
    %v3275 = vpop.f32.mrf.mxu0
    %v3276 = vadd.f32 %v3227, %v3275
    %3277 = vmatmul.bf16.gmra.mxu0 %v2117
    %v3278 = vpop.f32.mrf.mxu0
    %v3279 = vadd.f32 %v3230, %v3278
    %v3280 = vpop.f32.mrf.mxu0
    %v3281 = vadd.f32 %v3232, %v3280
    %3282 = vmatmul.bf16.gmra.mxu0 %v2121
    %v3283 = vpop.f32.mrf.mxu0
    %v3284 = vadd.f32 %v3235, %v3283
    %v3285 = vpop.f32.mrf.mxu0
    %v3286 = vadd.f32 %v3237, %v3285
    %3287 = vmatmul.bf16.gmra.mxu0 %v2125
    %v3288 = vpop.f32.mrf.mxu0
    %v3289 = vadd.f32 %v3240, %v3288
    %v3290 = vpop.f32.mrf.mxu0
    %v3291 = vadd.f32 %v3242, %v3290
    %3292 = vmatmul.bf16.gmra.mxu0 %v2129
    %v3293 = vpop.f32.mrf.mxu0
    %v3294 = vadd.f32 %v3245, %v3293
    %v3295 = vpop.f32.mrf.mxu0
    %v3296 = vadd.f32 %v3247, %v3295
    %3297 = vmatmul.bf16.gmra.mxu0 %v2133
    %v3298 = vpop.f32.mrf.mxu0
    %v3299 = vadd.f32 %v3250, %v3298
    %v3300 = vpop.f32.mrf.mxu0
    %v3301 = vadd.f32 %v3252, %v3300
    %3302 = vmatmul.bf16.gmra.mxu0 %v2137
    %v3303 = vpop.f32.mrf.mxu0
    %v3304 = vadd.f32 %v3255, %v3303
    %v3305 = vpop.f32.mrf.mxu0
    %v3306 = vadd.f32 %v3257, %v3305
    %3307 = vdwg.mxu0
    %3308 = vmatpush.bf16.msra.mxu0 %v2690
    %3309 = vmatpush.bf16.msra.mxu0 %v2686
    %3310 = vmatpush.bf16.msra.mxu0 %v2682
    %3311 = vmatpush.bf16.msra.mxu0 %v2678
    %3312 = vmatpush.bf16.msra.mxu0 %v2674
    %3313 = vmatpush.bf16.msra.mxu0 %v2670
    %3314 = vmatpush.bf16.msra.mxu0 %v2666
    %3315 = vmatpush.bf16.msra.mxu0 %v2662
    %3316 = vmatmul.bf16.gmra.mxu0 %v2106
    %v3317 = vpop.f32.mrf.mxu0
    %v3318 = vadd.f32 %v2270, %v3317
    %v3319 = vpop.f32.mrf.mxu0
    %v3320 = vadd.f32 %v2270, %v3319
    %3321 = vmatmul.bf16.gmra.mxu0 %v2110
    %v3322 = vpop.f32.mrf.mxu0
    %v3323 = vadd.f32 %v2270, %v3322
    %v3324 = vpop.f32.mrf.mxu0
    %v3325 = vadd.f32 %v2270, %v3324
    %3326 = vmatmul.bf16.gmra.mxu0 %v2114
    %v3327 = vpop.f32.mrf.mxu0
    %v3328 = vadd.f32 %v2270, %v3327
    %v3329 = vpop.f32.mrf.mxu0
    %v3330 = vadd.f32 %v2270, %v3329
    %3331 = vmatmul.bf16.gmra.mxu0 %v2118
    %v3332 = vpop.f32.mrf.mxu0
    %v3333 = vadd.f32 %v2270, %v3332
    %v3334 = vpop.f32.mrf.mxu0
    %v3335 = vadd.f32 %v2270, %v3334
    %3336 = vmatmul.bf16.gmra.mxu0 %v2122
    %v3337 = vpop.f32.mrf.mxu0
    %v3338 = vadd.f32 %v2270, %v3337
    %v3339 = vpop.f32.mrf.mxu0
    %v3340 = vadd.f32 %v2270, %v3339
    %3341 = vmatmul.bf16.gmra.mxu0 %v2126
    %v3342 = vpop.f32.mrf.mxu0
    %v3343 = vadd.f32 %v2270, %v3342
    %v3344 = vpop.f32.mrf.mxu0
    %v3345 = vadd.f32 %v2270, %v3344
    %3346 = vmatmul.bf16.gmra.mxu0 %v2130
    %v3347 = vpop.f32.mrf.mxu0
    %v3348 = vadd.f32 %v2270, %v3347
    %v3349 = vpop.f32.mrf.mxu0
    %v3350 = vadd.f32 %v2270, %v3349
    %3351 = vmatmul.bf16.gmra.mxu0 %v2134
    %v3352 = vpop.f32.mrf.mxu0
    %v3353 = vadd.f32 %v2270, %v3352
    %v3354 = vpop.f32.mrf.mxu0
    %v3355 = vadd.f32 %v2270, %v3354
    %3356 = vdwg.mxu0
    %3357 = vmatpush.bf16.msra.mxu0 %v2722
    %3358 = vmatpush.bf16.msra.mxu0 %v2718
    %3359 = vmatpush.bf16.msra.mxu0 %v2714
    %3360 = vmatpush.bf16.msra.mxu0 %v2710
    %3361 = vmatpush.bf16.msra.mxu0 %v2706
    %3362 = vmatpush.bf16.msra.mxu0 %v2702
    %3363 = vmatpush.bf16.msra.mxu0 %v2698
    %3364 = vmatpush.bf16.msra.mxu0 %v2694
    %3365 = vmatmul.bf16.gmra.mxu0 %v2107
    %v3366 = vpop.f32.mrf.mxu0
    %v3367 = vadd.f32 %v3318, %v3366
    %v3368 = vpop.f32.mrf.mxu0
    %v3369 = vadd.f32 %v3320, %v3368
    %3370 = vmatmul.bf16.gmra.mxu0 %v2111
    %v3371 = vpop.f32.mrf.mxu0
    %v3372 = vadd.f32 %v3323, %v3371
    %v3373 = vpop.f32.mrf.mxu0
    %v3374 = vadd.f32 %v3325, %v3373
    %3375 = vmatmul.bf16.gmra.mxu0 %v2115
    %v3376 = vpop.f32.mrf.mxu0
    %v3377 = vadd.f32 %v3328, %v3376
    %v3378 = vpop.f32.mrf.mxu0
    %v3379 = vadd.f32 %v3330, %v3378
    %3380 = vmatmul.bf16.gmra.mxu0 %v2119
    %v3381 = vpop.f32.mrf.mxu0
    %v3382 = vadd.f32 %v3333, %v3381
    %v3383 = vpop.f32.mrf.mxu0
    %v3384 = vadd.f32 %v3335, %v3383
    %3385 = vmatmul.bf16.gmra.mxu0 %v2123
    %v3386 = vpop.f32.mrf.mxu0
    %v3387 = vadd.f32 %v3338, %v3386
    %v3388 = vpop.f32.mrf.mxu0
    %v3389 = vadd.f32 %v3340, %v3388
    %3390 = vmatmul.bf16.gmra.mxu0 %v2127
    %v3391 = vpop.f32.mrf.mxu0
    %v3392 = vadd.f32 %v3343, %v3391
    %v3393 = vpop.f32.mrf.mxu0
    %v3394 = vadd.f32 %v3345, %v3393
    %3395 = vmatmul.bf16.gmra.mxu0 %v2131
    %v3396 = vpop.f32.mrf.mxu0
    %v3397 = vadd.f32 %v3348, %v3396
    %v3398 = vpop.f32.mrf.mxu0
    %v3399 = vadd.f32 %v3350, %v3398
    %3400 = vmatmul.bf16.gmra.mxu0 %v2135
    %v3401 = vpop.f32.mrf.mxu0
    %v3402 = vadd.f32 %v3353, %v3401
    %v3403 = vpop.f32.mrf.mxu0
    %v3404 = vadd.f32 %v3355, %v3403
    %3405 = vdwg.mxu0
    %3406 = vmatpush.bf16.msra.mxu0 %v2754
    %3407 = vmatpush.bf16.msra.mxu0 %v2750
    %3408 = vmatpush.bf16.msra.mxu0 %v2746
    %3409 = vmatpush.bf16.msra.mxu0 %v2742
    %3410 = vmatpush.bf16.msra.mxu0 %v2738
    %3411 = vmatpush.bf16.msra.mxu0 %v2734
    %3412 = vmatpush.bf16.msra.mxu0 %v2730
    %3413 = vmatpush.bf16.msra.mxu0 %v2726
    %3414 = vmatmul.bf16.gmra.mxu0 %v2108
    %v3415 = vpop.f32.mrf.mxu0
    %v3416 = vadd.f32 %v3367, %v3415
    %v3417 = vpop.f32.mrf.mxu0
    %v3418 = vadd.f32 %v3369, %v3417
    %3419 = vmatmul.bf16.gmra.mxu0 %v2112
    %v3420 = vpop.f32.mrf.mxu0
    %v3421 = vadd.f32 %v3372, %v3420
    %v3422 = vpop.f32.mrf.mxu0
    %v3423 = vadd.f32 %v3374, %v3422
    %3424 = vmatmul.bf16.gmra.mxu0 %v2116
    %v3425 = vpop.f32.mrf.mxu0
    %v3426 = vadd.f32 %v3377, %v3425
    %v3427 = vpop.f32.mrf.mxu0
    %v3428 = vadd.f32 %v3379, %v3427
    %3429 = vmatmul.bf16.gmra.mxu0 %v2120
    %v3430 = vpop.f32.mrf.mxu0
    %v3431 = vadd.f32 %v3382, %v3430
    %v3432 = vpop.f32.mrf.mxu0
    %v3433 = vadd.f32 %v3384, %v3432
    %3434 = vmatmul.bf16.gmra.mxu0 %v2124
    %v3435 = vpop.f32.mrf.mxu0
    %v3436 = vadd.f32 %v3387, %v3435
    %v3437 = vpop.f32.mrf.mxu0
    %v3438 = vadd.f32 %v3389, %v3437
    %3439 = vmatmul.bf16.gmra.mxu0 %v2128
    %v3440 = vpop.f32.mrf.mxu0
    %v3441 = vadd.f32 %v3392, %v3440
    %v3442 = vpop.f32.mrf.mxu0
    %v3443 = vadd.f32 %v3394, %v3442
    %3444 = vmatmul.bf16.gmra.mxu0 %v2132
    %v3445 = vpop.f32.mrf.mxu0
    %v3446 = vadd.f32 %v3397, %v3445
    %v3447 = vpop.f32.mrf.mxu0
    %v3448 = vadd.f32 %v3399, %v3447
    %3449 = vmatmul.bf16.gmra.mxu0 %v2136
    %v3450 = vpop.f32.mrf.mxu0
    %v3451 = vadd.f32 %v3402, %v3450
    %v3452 = vpop.f32.mrf.mxu0
    %v3453 = vadd.f32 %v3404, %v3452
    %3454 = vdwg.mxu0
    %3455 = vmatpush.bf16.msra.mxu0 %v2786
    %3456 = vmatpush.bf16.msra.mxu0 %v2782
    %3457 = vmatpush.bf16.msra.mxu0 %v2778
    %3458 = vmatpush.bf16.msra.mxu0 %v2774
    %3459 = vmatpush.bf16.msra.mxu0 %v2770
    %3460 = vmatpush.bf16.msra.mxu0 %v2766
    %3461 = vmatpush.bf16.msra.mxu0 %v2762
    %3462 = vmatpush.bf16.msra.mxu0 %v2758
    %3463 = vmatmul.bf16.gmra.mxu0 %v2109
    %v3464 = vpop.f32.mrf.mxu0
    %v3465 = vadd.f32 %v3416, %v3464
    %v3466 = vpop.f32.mrf.mxu0
    %v3467 = vadd.f32 %v3418, %v3466
    %3468 = vmatmul.bf16.gmra.mxu0 %v2113
    %v3469 = vpop.f32.mrf.mxu0
    %v3470 = vadd.f32 %v3421, %v3469
    %v3471 = vpop.f32.mrf.mxu0
    %v3472 = vadd.f32 %v3423, %v3471
    %3473 = vmatmul.bf16.gmra.mxu0 %v2117
    %v3474 = vpop.f32.mrf.mxu0
    %v3475 = vadd.f32 %v3426, %v3474
    %v3476 = vpop.f32.mrf.mxu0
    %v3477 = vadd.f32 %v3428, %v3476
    %3478 = vmatmul.bf16.gmra.mxu0 %v2121
    %v3479 = vpop.f32.mrf.mxu0
    %v3480 = vadd.f32 %v3431, %v3479
    %v3481 = vpop.f32.mrf.mxu0
    %v3482 = vadd.f32 %v3433, %v3481
    %3483 = vmatmul.bf16.gmra.mxu0 %v2125
    %v3484 = vpop.f32.mrf.mxu0
    %v3485 = vadd.f32 %v3436, %v3484
    %v3486 = vpop.f32.mrf.mxu0
    %v3487 = vadd.f32 %v3438, %v3486
    %3488 = vmatmul.bf16.gmra.mxu0 %v2129
    %v3489 = vpop.f32.mrf.mxu0
    %v3490 = vadd.f32 %v3441, %v3489
    %v3491 = vpop.f32.mrf.mxu0
    %v3492 = vadd.f32 %v3443, %v3491
    %3493 = vmatmul.bf16.gmra.mxu0 %v2133
    %v3494 = vpop.f32.mrf.mxu0
    %v3495 = vadd.f32 %v3446, %v3494
    %v3496 = vpop.f32.mrf.mxu0
    %v3497 = vadd.f32 %v3448, %v3496
    %3498 = vmatmul.bf16.gmra.mxu0 %v2137
    %v3499 = vpop.f32.mrf.mxu0
    %v3500 = vadd.f32 %v3451, %v3499
    %v3501 = vpop.f32.mrf.mxu0
    %v3502 = vadd.f32 %v3453, %v3501
    %3503 = vdwg.mxu0
    %3504 = vmatpush.bf16.msra.mxu0 %v2691
    %3505 = vmatpush.bf16.msra.mxu0 %v2687
    %3506 = vmatpush.bf16.msra.mxu0 %v2683
    %3507 = vmatpush.bf16.msra.mxu0 %v2679
    %3508 = vmatpush.bf16.msra.mxu0 %v2675
    %3509 = vmatpush.bf16.msra.mxu0 %v2671
    %3510 = vmatpush.bf16.msra.mxu0 %v2667
    %3511 = vmatpush.bf16.msra.mxu0 %v2663
    %3512 = vmatmul.bf16.gmra.mxu0 %v2106
    %v3513 = vpop.f32.mrf.mxu0
    %v3514 = vadd.f32 %v2271, %v3513
    %v3515 = vpop.f32.mrf.mxu0
    %v3516 = vadd.f32 %v2271, %v3515
    %3517 = vmatmul.bf16.gmra.mxu0 %v2110
    %v3518 = vpop.f32.mrf.mxu0
    %v3519 = vadd.f32 %v2271, %v3518
    %v3520 = vpop.f32.mrf.mxu0
    %v3521 = vadd.f32 %v2271, %v3520
    %3522 = vmatmul.bf16.gmra.mxu0 %v2114
    %v3523 = vpop.f32.mrf.mxu0
    %v3524 = vadd.f32 %v2271, %v3523
    %v3525 = vpop.f32.mrf.mxu0
    %v3526 = vadd.f32 %v2271, %v3525
    %3527 = vmatmul.bf16.gmra.mxu0 %v2118
    %v3528 = vpop.f32.mrf.mxu0
    %v3529 = vadd.f32 %v2271, %v3528
    %v3530 = vpop.f32.mrf.mxu0
    %v3531 = vadd.f32 %v2271, %v3530
    %3532 = vmatmul.bf16.gmra.mxu0 %v2122
    %v3533 = vpop.f32.mrf.mxu0
    %v3534 = vadd.f32 %v2271, %v3533
    %v3535 = vpop.f32.mrf.mxu0
    %v3536 = vadd.f32 %v2271, %v3535
    %3537 = vmatmul.bf16.gmra.mxu0 %v2126
    %v3538 = vpop.f32.mrf.mxu0
    %v3539 = vadd.f32 %v2271, %v3538
    %v3540 = vpop.f32.mrf.mxu0
    %v3541 = vadd.f32 %v2271, %v3540
    %3542 = vmatmul.bf16.gmra.mxu0 %v2130
    %v3543 = vpop.f32.mrf.mxu0
    %v3544 = vadd.f32 %v2271, %v3543
    %v3545 = vpop.f32.mrf.mxu0
    %v3546 = vadd.f32 %v2271, %v3545
    %3547 = vmatmul.bf16.gmra.mxu0 %v2134
    %v3548 = vpop.f32.mrf.mxu0
    %v3549 = vadd.f32 %v2271, %v3548
    %v3550 = vpop.f32.mrf.mxu0
    %v3551 = vadd.f32 %v2271, %v3550
    %3552 = vdwg.mxu0
    %3553 = vmatpush.bf16.msra.mxu0 %v2723
    %3554 = vmatpush.bf16.msra.mxu0 %v2719
    %3555 = vmatpush.bf16.msra.mxu0 %v2715
    %3556 = vmatpush.bf16.msra.mxu0 %v2711
    %3557 = vmatpush.bf16.msra.mxu0 %v2707
    %3558 = vmatpush.bf16.msra.mxu0 %v2703
    %3559 = vmatpush.bf16.msra.mxu0 %v2699
    %3560 = vmatpush.bf16.msra.mxu0 %v2695
    %3561 = vmatmul.bf16.gmra.mxu0 %v2107
    %v3562 = vpop.f32.mrf.mxu0
    %v3563 = vadd.f32 %v3514, %v3562
    %v3564 = vpop.f32.mrf.mxu0
    %v3565 = vadd.f32 %v3516, %v3564
    %3566 = vmatmul.bf16.gmra.mxu0 %v2111
    %v3567 = vpop.f32.mrf.mxu0
    %v3568 = vadd.f32 %v3519, %v3567
    %v3569 = vpop.f32.mrf.mxu0
    %v3570 = vadd.f32 %v3521, %v3569
    %3571 = vmatmul.bf16.gmra.mxu0 %v2115
    %v3572 = vpop.f32.mrf.mxu0
    %v3573 = vadd.f32 %v3524, %v3572
    %v3574 = vpop.f32.mrf.mxu0
    %v3575 = vadd.f32 %v3526, %v3574
    %3576 = vmatmul.bf16.gmra.mxu0 %v2119
    %v3577 = vpop.f32.mrf.mxu0
    %v3578 = vadd.f32 %v3529, %v3577
    %v3579 = vpop.f32.mrf.mxu0
    %v3580 = vadd.f32 %v3531, %v3579
    %3581 = vmatmul.bf16.gmra.mxu0 %v2123
    %v3582 = vpop.f32.mrf.mxu0
    %v3583 = vadd.f32 %v3534, %v3582
    %v3584 = vpop.f32.mrf.mxu0
    %v3585 = vadd.f32 %v3536, %v3584
    %3586 = vmatmul.bf16.gmra.mxu0 %v2127
    %v3587 = vpop.f32.mrf.mxu0
    %v3588 = vadd.f32 %v3539, %v3587
    %v3589 = vpop.f32.mrf.mxu0
    %v3590 = vadd.f32 %v3541, %v3589
    %3591 = vmatmul.bf16.gmra.mxu0 %v2131
    %v3592 = vpop.f32.mrf.mxu0
    %v3593 = vadd.f32 %v3544, %v3592
    %v3594 = vpop.f32.mrf.mxu0
    %v3595 = vadd.f32 %v3546, %v3594
    %3596 = vmatmul.bf16.gmra.mxu0 %v2135
    %v3597 = vpop.f32.mrf.mxu0
    %v3598 = vadd.f32 %v3549, %v3597
    %v3599 = vpop.f32.mrf.mxu0
    %v3600 = vadd.f32 %v3551, %v3599
    %3601 = vdwg.mxu0
    %3602 = vmatpush.bf16.msra.mxu0 %v2755
    %3603 = vmatpush.bf16.msra.mxu0 %v2751
    %3604 = vmatpush.bf16.msra.mxu0 %v2747
    %3605 = vmatpush.bf16.msra.mxu0 %v2743
    %3606 = vmatpush.bf16.msra.mxu0 %v2739
    %3607 = vmatpush.bf16.msra.mxu0 %v2735
    %3608 = vmatpush.bf16.msra.mxu0 %v2731
    %3609 = vmatpush.bf16.msra.mxu0 %v2727
    %3610 = vmatmul.bf16.gmra.mxu0 %v2108
    %v3611 = vpop.f32.mrf.mxu0
    %v3612 = vadd.f32 %v3563, %v3611
    %v3613 = vpop.f32.mrf.mxu0
    %v3614 = vadd.f32 %v3565, %v3613
    %3615 = vmatmul.bf16.gmra.mxu0 %v2112
    %v3616 = vpop.f32.mrf.mxu0
    %v3617 = vadd.f32 %v3568, %v3616
    %v3618 = vpop.f32.mrf.mxu0
    %v3619 = vadd.f32 %v3570, %v3618
    %3620 = vmatmul.bf16.gmra.mxu0 %v2116
    %v3621 = vpop.f32.mrf.mxu0
    %v3622 = vadd.f32 %v3573, %v3621
    %v3623 = vpop.f32.mrf.mxu0
    %v3624 = vadd.f32 %v3575, %v3623
    %3625 = vmatmul.bf16.gmra.mxu0 %v2120
    %v3626 = vpop.f32.mrf.mxu0
    %v3627 = vadd.f32 %v3578, %v3626
    %v3628 = vpop.f32.mrf.mxu0
    %v3629 = vadd.f32 %v3580, %v3628
    %3630 = vmatmul.bf16.gmra.mxu0 %v2124
    %v3631 = vpop.f32.mrf.mxu0
    %v3632 = vadd.f32 %v3583, %v3631
    %v3633 = vpop.f32.mrf.mxu0
    %v3634 = vadd.f32 %v3585, %v3633
    %3635 = vmatmul.bf16.gmra.mxu0 %v2128
    %v3636 = vpop.f32.mrf.mxu0
    %v3637 = vadd.f32 %v3588, %v3636
    %v3638 = vpop.f32.mrf.mxu0
    %v3639 = vadd.f32 %v3590, %v3638
    %3640 = vmatmul.bf16.gmra.mxu0 %v2132
    %v3641 = vpop.f32.mrf.mxu0
    %v3642 = vadd.f32 %v3593, %v3641
    %v3643 = vpop.f32.mrf.mxu0
    %v3644 = vadd.f32 %v3595, %v3643
    %3645 = vmatmul.bf16.gmra.mxu0 %v2136
    %v3646 = vpop.f32.mrf.mxu0
    %v3647 = vadd.f32 %v3598, %v3646
    %v3648 = vpop.f32.mrf.mxu0
    %v3649 = vadd.f32 %v3600, %v3648
    %3650 = vdwg.mxu0
    %3651 = vmatpush.bf16.msra.mxu0 %v2787
    %3652 = vmatpush.bf16.msra.mxu0 %v2783
    %3653 = vmatpush.bf16.msra.mxu0 %v2779
    %3654 = vmatpush.bf16.msra.mxu0 %v2775
    %3655 = vmatpush.bf16.msra.mxu0 %v2771
    %3656 = vmatpush.bf16.msra.mxu0 %v2767
    %3657 = vmatpush.bf16.msra.mxu0 %v2763
    %3658 = vmatpush.bf16.msra.mxu0 %v2759
    %3659 = vmatmul.bf16.gmra.mxu0 %v2109
    %v3660 = vpop.f32.mrf.mxu0
    %v3661 = vadd.f32 %v3612, %v3660
    %v3662 = vpop.f32.mrf.mxu0
    %v3663 = vadd.f32 %v3614, %v3662
    %3664 = vmatmul.bf16.gmra.mxu0 %v2113
    %v3665 = vpop.f32.mrf.mxu0
    %v3666 = vadd.f32 %v3617, %v3665
    %v3667 = vpop.f32.mrf.mxu0
    %v3668 = vadd.f32 %v3619, %v3667
    %3669 = vmatmul.bf16.gmra.mxu0 %v2117
    %v3670 = vpop.f32.mrf.mxu0
    %v3671 = vadd.f32 %v3622, %v3670
    %v3672 = vpop.f32.mrf.mxu0
    %v3673 = vadd.f32 %v3624, %v3672
    %3674 = vmatmul.bf16.gmra.mxu0 %v2121
    %v3675 = vpop.f32.mrf.mxu0
    %v3676 = vadd.f32 %v3627, %v3675
    %v3677 = vpop.f32.mrf.mxu0
    %v3678 = vadd.f32 %v3629, %v3677
    %3679 = vmatmul.bf16.gmra.mxu0 %v2125
    %v3680 = vpop.f32.mrf.mxu0
    %v3681 = vadd.f32 %v3632, %v3680
    %v3682 = vpop.f32.mrf.mxu0
    %v3683 = vadd.f32 %v3634, %v3682
    %3684 = vmatmul.bf16.gmra.mxu0 %v2129
    %v3685 = vpop.f32.mrf.mxu0
    %v3686 = vadd.f32 %v3637, %v3685
    %v3687 = vpop.f32.mrf.mxu0
    %v3688 = vadd.f32 %v3639, %v3687
    %3689 = vmatmul.bf16.gmra.mxu0 %v2133
    %v3690 = vpop.f32.mrf.mxu0
    %v3691 = vadd.f32 %v3642, %v3690
    %v3692 = vpop.f32.mrf.mxu0
    %v3693 = vadd.f32 %v3644, %v3692
    %3694 = vmatmul.bf16.gmra.mxu0 %v2137
    %v3695 = vpop.f32.mrf.mxu0
    %v3696 = vadd.f32 %v3647, %v3695
    %v3697 = vpop.f32.mrf.mxu0
    %v3698 = vadd.f32 %v3649, %v3697
    %3699 = vdwg.mxu0
    %v3700 = vmax.f32 %v3073, 0.0
    %v3701 = vmax.f32 %v3269, 0.0
    %v3702 = vmax.f32 %v3465, 0.0
    %v3703 = vmax.f32 %v3661, 0.0
    %v3704 = vmax.f32 %v3075, 0.0
    %v3705 = vmax.f32 %v3271, 0.0
    %v3706 = vmax.f32 %v3467, 0.0
    %v3707 = vmax.f32 %v3663, 0.0
    %v3708 = vmax.f32 %v3078, 0.0
    %v3709 = vmax.f32 %v3274, 0.0
    %v3710 = vmax.f32 %v3470, 0.0
    %v3711 = vmax.f32 %v3666, 0.0
    %v3712 = vmax.f32 %v3080, 0.0
    %v3713 = vmax.f32 %v3276, 0.0
    %v3714 = vmax.f32 %v3472, 0.0
    %v3715 = vmax.f32 %v3668, 0.0
    %v3716 = vmax.f32 %v3083, 0.0
    %v3717 = vmax.f32 %v3279, 0.0
    %v3718 = vmax.f32 %v3475, 0.0
    %v3719 = vmax.f32 %v3671, 0.0
    %v3720 = vmax.f32 %v3085, 0.0
    %v3721 = vmax.f32 %v3281, 0.0
    %v3722 = vmax.f32 %v3477, 0.0
    %v3723 = vmax.f32 %v3673, 0.0
    %v3724 = vmax.f32 %v3088, 0.0
    %v3725 = vmax.f32 %v3284, 0.0
    %v3726 = vmax.f32 %v3480, 0.0
    %v3727 = vmax.f32 %v3676, 0.0
    %v3728 = vmax.f32 %v3090, 0.0
    %v3729 = vmax.f32 %v3286, 0.0
    %v3730 = vmax.f32 %v3482, 0.0
    %v3731 = vmax.f32 %v3678, 0.0
    %v3732 = vmax.f32 %v3093, 0.0
    %v3733 = vmax.f32 %v3289, 0.0
    %v3734 = vmax.f32 %v3485, 0.0
    %v3735 = vmax.f32 %v3681, 0.0
    %v3736 = vmax.f32 %v3095, 0.0
    %v3737 = vmax.f32 %v3291, 0.0
    %v3738 = vmax.f32 %v3487, 0.0
    %v3739 = vmax.f32 %v3683, 0.0
    %v3740 = vmax.f32 %v3098, 0.0
    %v3741 = vmax.f32 %v3294, 0.0
    %v3742 = vmax.f32 %v3490, 0.0
    %v3743 = vmax.f32 %v3686, 0.0
    %v3744 = vmax.f32 %v3100, 0.0
    %v3745 = vmax.f32 %v3296, 0.0
    %v3746 = vmax.f32 %v3492, 0.0
    %v3747 = vmax.f32 %v3688, 0.0
    %v3748 = vmax.f32 %v3103, 0.0
    %v3749 = vmax.f32 %v3299, 0.0
    %v3750 = vmax.f32 %v3495, 0.0
    %v3751 = vmax.f32 %v3691, 0.0
    %v3752 = vmax.f32 %v3105, 0.0
    %v3753 = vmax.f32 %v3301, 0.0
    %v3754 = vmax.f32 %v3497, 0.0
    %v3755 = vmax.f32 %v3693, 0.0
    %v3756 = vmax.f32 %v3108, 0.0
    %v3757 = vmax.f32 %v3304, 0.0
    %v3758 = vmax.f32 %v3500, 0.0
    %v3759 = vmax.f32 %v3696, 0.0
    %v3760 = vmax.f32 %v3110, 0.0
    %v3761 = vmax.f32 %v3306, 0.0
    %v3762 = vmax.f32 %v3502, 0.0
    %v3763 = vmax.f32 %v3698, 0.0
    %v3764 = vpack.c.bf16 %v3704, %v3700
    %v3765 = vpack.c.bf16 %v3705, %v3701
    %v3766 = vpack.c.bf16 %v3706, %v3702
    %v3767 = vpack.c.bf16 %v3707, %v3703
    %v3768 = vpack.c.bf16 %v3712, %v3708
    %v3769 = vpack.c.bf16 %v3713, %v3709
    %v3770 = vpack.c.bf16 %v3714, %v3710
    %v3771 = vpack.c.bf16 %v3715, %v3711
    %v3772 = vpack.c.bf16 %v3720, %v3716
    %v3773 = vpack.c.bf16 %v3721, %v3717
    %v3774 = vpack.c.bf16 %v3722, %v3718
    %v3775 = vpack.c.bf16 %v3723, %v3719
    %v3776 = vpack.c.bf16 %v3728, %v3724
    %v3777 = vpack.c.bf16 %v3729, %v3725
    %v3778 = vpack.c.bf16 %v3730, %v3726
    %v3779 = vpack.c.bf16 %v3731, %v3727
    %v3780 = vpack.c.bf16 %v3736, %v3732
    %v3781 = vpack.c.bf16 %v3737, %v3733
    %v3782 = vpack.c.bf16 %v3738, %v3734
    %v3783 = vpack.c.bf16 %v3739, %v3735
    %v3784 = vpack.c.bf16 %v3744, %v3740
    %v3785 = vpack.c.bf16 %v3745, %v3741
    %v3786 = vpack.c.bf16 %v3746, %v3742
    %v3787 = vpack.c.bf16 %v3747, %v3743
    %v3788 = vpack.c.bf16 %v3752, %v3748
    %v3789 = vpack.c.bf16 %v3753, %v3749
    %v3790 = vpack.c.bf16 %v3754, %v3750
    %v3791 = vpack.c.bf16 %v3755, %v3751
    %v3792 = vpack.c.bf16 %v3760, %v3756
    %v3793 = vpack.c.bf16 %v3761, %v3757
    %v3794 = vpack.c.bf16 %v3762, %v3758
    %v3795 = vpack.c.bf16 %v3763, %v3759
    %v3796 = vld [vmem:[#allocation7] sm:$0xf]
    %v3797 = vld [vmem:[#allocation7 + $0x4] sm:$0xf]
    %v3798 = vld [vmem:[#allocation7 + $0x8] sm:$0xf]
    %v3799 = vld [vmem:[#allocation7 + $0xc] sm:$0xf]
    %v3800 = vld [vmem:[#allocation7 + $0x10] sm:$0xf]
    %v3801 = vld [vmem:[#allocation7 + $0x14] sm:$0xf]
    %v3802 = vld [vmem:[#allocation7 + $0x18] sm:$0xf]
    %v3803 = vld [vmem:[#allocation7 + $0x1c] sm:$0xf]
    %v3804 = vld [vmem:[#allocation7 + $0x20] sm:$0xf]
    %v3805 = vld [vmem:[#allocation7 + $0x24] sm:$0xf]
    %v3806 = vld [vmem:[#allocation7 + $0x28] sm:$0xf]
    %v3807 = vld [vmem:[#allocation7 + $0x2c] sm:$0xf]
    %v3808 = vld [vmem:[#allocation7 + $0x30] sm:$0xf]
    %v3809 = vld [vmem:[#allocation7 + $0x34] sm:$0xf]
    %v3810 = vld [vmem:[#allocation7 + $0x38] sm:$0xf]
    %v3811 = vld [vmem:[#allocation7 + $0x3c] sm:$0xf]
    %v3812 = vld [vmem:[#allocation7 + $0x40] sm:$0xf]
    %v3813 = vld [vmem:[#allocation7 + $0x44] sm:$0xf]
    %v3814 = vld [vmem:[#allocation7 + $0x48] sm:$0xf]
    %v3815 = vld [vmem:[#allocation7 + $0x4c] sm:$0xf]
    %v3816 = vld [vmem:[#allocation7 + $0x50] sm:$0xf]
    %v3817 = vld [vmem:[#allocation7 + $0x54] sm:$0xf]
    %v3818 = vld [vmem:[#allocation7 + $0x58] sm:$0xf]
    %v3819 = vld [vmem:[#allocation7 + $0x5c] sm:$0xf]
    %v3820 = vld [vmem:[#allocation7 + $0x60] sm:$0xf]
    %v3821 = vld [vmem:[#allocation7 + $0x64] sm:$0xf]
    %v3822 = vld [vmem:[#allocation7 + $0x68] sm:$0xf]
    %v3823 = vld [vmem:[#allocation7 + $0x6c] sm:$0xf]
    %v3824 = vld [vmem:[#allocation7 + $0x70] sm:$0xf]
    %v3825 = vld [vmem:[#allocation7 + $0x74] sm:$0xf]
    %v3826 = vld [vmem:[#allocation7 + $0x78] sm:$0xf]
    %v3827 = vld [vmem:[#allocation7 + $0x7c] sm:$0xf]
    %v3828 = vld [vmem:[#allocation7 + $0x80] sm:$0xf]
    %v3829 = vld [vmem:[#allocation7 + $0x84] sm:$0xf]
    %v3830 = vld [vmem:[#allocation7 + $0x88] sm:$0xf]
    %v3831 = vld [vmem:[#allocation7 + $0x8c] sm:$0xf]
    %v3832 = vld [vmem:[#allocation7 + $0x90] sm:$0xf]
    %v3833 = vld [vmem:[#allocation7 + $0x94] sm:$0xf]
    %v3834 = vld [vmem:[#allocation7 + $0x98] sm:$0xf]
    %v3835 = vld [vmem:[#allocation7 + $0x9c] sm:$0xf]
    %v3836 = vld [vmem:[#allocation7 + $0xa0] sm:$0xf]
    %v3837 = vld [vmem:[#allocation7 + $0xa4] sm:$0xf]
    %v3838 = vld [vmem:[#allocation7 + $0xa8] sm:$0xf]
    %v3839 = vld [vmem:[#allocation7 + $0xac] sm:$0xf]
    %v3840 = vld [vmem:[#allocation7 + $0xb0] sm:$0xf]
    %v3841 = vld [vmem:[#allocation7 + $0xb4] sm:$0xf]
    %v3842 = vld [vmem:[#allocation7 + $0xb8] sm:$0xf]
    %v3843 = vld [vmem:[#allocation7 + $0xbc] sm:$0xf]
    %v3844 = vld [vmem:[#allocation7 + $0xc0] sm:$0xf]
    %v3845 = vld [vmem:[#allocation7 + $0xc4] sm:$0xf]
    %v3846 = vld [vmem:[#allocation7 + $0xc8] sm:$0xf]
    %v3847 = vld [vmem:[#allocation7 + $0xcc] sm:$0xf]
    %v3848 = vld [vmem:[#allocation7 + $0xd0] sm:$0xf]
    %v3849 = vld [vmem:[#allocation7 + $0xd4] sm:$0xf]
    %v3850 = vld [vmem:[#allocation7 + $0xd8] sm:$0xf]
    %v3851 = vld [vmem:[#allocation7 + $0xdc] sm:$0xf]
    %v3852 = vld [vmem:[#allocation7 + $0xe0] sm:$0xf]
    %v3853 = vld [vmem:[#allocation7 + $0xe4] sm:$0xf]
    %v3854 = vld [vmem:[#allocation7 + $0xe8] sm:$0xf]
    %v3855 = vld [vmem:[#allocation7 + $0xec] sm:$0xf]
    %v3856 = vld [vmem:[#allocation7 + $0xf0] sm:$0xf]
    %v3857 = vld [vmem:[#allocation7 + $0xf4] sm:$0xf]
    %v3858 = vld [vmem:[#allocation7 + $0xf8] sm:$0xf]
    %v3859 = vld [vmem:[#allocation7 + $0xfc] sm:$0xf]
    %v3860 = vld [vmem:[%s8] sm:$0x1]
    %v3862 = vperm.slane %v3860, 0
    %v3928 = vunpack.c.l.b16 %v3796
    %v3929 = vunpack.c.l.b16 %v3797
    %v3930 = vunpack.c.l.b16 %v3798
    %v3931 = vunpack.c.l.b16 %v3799
    %v3932 = vunpack.c.l.b16 %v3800
    %v3933 = vunpack.c.l.b16 %v3801
    %v3934 = vunpack.c.l.b16 %v3802
    %v3935 = vunpack.c.l.b16 %v3803
    %v3936 = vunpack.c.l.b16 %v3804
    %v3937 = vunpack.c.l.b16 %v3805
    %v3938 = vunpack.c.l.b16 %v3806
    %v3939 = vunpack.c.l.b16 %v3807
    %v3940 = vunpack.c.l.b16 %v3808
    %v3941 = vunpack.c.l.b16 %v3809
    %v3942 = vunpack.c.l.b16 %v3810
    %v3943 = vunpack.c.l.b16 %v3811
    %v3944 = vunpack.c.l.b16 %v3812
    %v3945 = vunpack.c.l.b16 %v3813
    %v3946 = vunpack.c.l.b16 %v3814
    %v3947 = vunpack.c.l.b16 %v3815
    %v3948 = vunpack.c.l.b16 %v3816
    %v3949 = vunpack.c.l.b16 %v3817
    %v3950 = vunpack.c.l.b16 %v3818
    %v3951 = vunpack.c.l.b16 %v3819
    %v3952 = vunpack.c.l.b16 %v3820
    %v3953 = vunpack.c.l.b16 %v3821
    %v3954 = vunpack.c.l.b16 %v3822
    %v3955 = vunpack.c.l.b16 %v3823
    %v3956 = vunpack.c.l.b16 %v3824
    %v3957 = vunpack.c.l.b16 %v3825
    %v3958 = vunpack.c.l.b16 %v3826
    %v3959 = vunpack.c.l.b16 %v3827
    %v3960 = vunpack.c.l.b16 %v3828
    %v3961 = vunpack.c.l.b16 %v3829
    %v3962 = vunpack.c.l.b16 %v3830
    %v3963 = vunpack.c.l.b16 %v3831
    %v3964 = vunpack.c.l.b16 %v3832
    %v3965 = vunpack.c.l.b16 %v3833
    %v3966 = vunpack.c.l.b16 %v3834
    %v3967 = vunpack.c.l.b16 %v3835
    %v3968 = vunpack.c.l.b16 %v3836
    %v3969 = vunpack.c.l.b16 %v3837
    %v3970 = vunpack.c.l.b16 %v3838
    %v3971 = vunpack.c.l.b16 %v3839
    %v3972 = vunpack.c.l.b16 %v3840
    %v3973 = vunpack.c.l.b16 %v3841
    %v3974 = vunpack.c.l.b16 %v3842
    %v3975 = vunpack.c.l.b16 %v3843
    %v3976 = vunpack.c.l.b16 %v3844
    %v3977 = vunpack.c.l.b16 %v3845
    %v3978 = vunpack.c.l.b16 %v3846
    %v3979 = vunpack.c.l.b16 %v3847
    %v3980 = vunpack.c.l.b16 %v3848
    %v3981 = vunpack.c.l.b16 %v3849
    %v3982 = vunpack.c.l.b16 %v3850
    %v3983 = vunpack.c.l.b16 %v3851
    %v3984 = vunpack.c.l.b16 %v3852
    %v3985 = vunpack.c.l.b16 %v3853
    %v3986 = vunpack.c.l.b16 %v3854
    %v3987 = vunpack.c.l.b16 %v3855
    %v3988 = vunpack.c.l.b16 %v3856
    %v3989 = vunpack.c.l.b16 %v3857
    %v3990 = vunpack.c.l.b16 %v3858
    %v3991 = vunpack.c.l.b16 %v3859
    %v3992 = vpack.c.b16 %v3929, %v3928
    %v3993 = vpack.c.b16 %v3931, %v3930
    %v3994 = vpack.c.b16 %v3933, %v3932
    %v3995 = vpack.c.b16 %v3935, %v3934
    %v3996 = vpack.c.b16 %v3937, %v3936
    %v3997 = vpack.c.b16 %v3939, %v3938
    %v3998 = vpack.c.b16 %v3941, %v3940
    %v3999 = vpack.c.b16 %v3943, %v3942
    %v4000 = vpack.c.b16 %v3945, %v3944
    %v4001 = vpack.c.b16 %v3947, %v3946
    %v4002 = vpack.c.b16 %v3949, %v3948
    %v4003 = vpack.c.b16 %v3951, %v3950
    %v4004 = vpack.c.b16 %v3953, %v3952
    %v4005 = vpack.c.b16 %v3955, %v3954
    %v4006 = vpack.c.b16 %v3957, %v3956
    %v4007 = vpack.c.b16 %v3959, %v3958
    %v4008 = vpack.c.b16 %v3961, %v3960
    %v4009 = vpack.c.b16 %v3963, %v3962
    %v4010 = vpack.c.b16 %v3965, %v3964
    %v4011 = vpack.c.b16 %v3967, %v3966
    %v4012 = vpack.c.b16 %v3969, %v3968
    %v4013 = vpack.c.b16 %v3971, %v3970
    %v4014 = vpack.c.b16 %v3973, %v3972
    %v4015 = vpack.c.b16 %v3975, %v3974
    %v4016 = vpack.c.b16 %v3977, %v3976
    %v4017 = vpack.c.b16 %v3979, %v3978
    %v4018 = vpack.c.b16 %v3981, %v3980
    %v4019 = vpack.c.b16 %v3983, %v3982
    %v4020 = vpack.c.b16 %v3985, %v3984
    %v4021 = vpack.c.b16 %v3987, %v3986
    %v4022 = vpack.c.b16 %v3989, %v3988
    %v4023 = vpack.c.b16 %v3991, %v3990
    %4056 = vmatpush.bf16.msra.mxu0 %v3999
    %4057 = vmatpush.bf16.msra.mxu0 %v3998
    %4058 = vmatpush.bf16.msra.mxu0 %v3997
    %4059 = vmatpush.bf16.msra.mxu0 %v3996
    %4060 = vmatpush.bf16.msra.mxu0 %v3995
    %4061 = vmatpush.bf16.msra.mxu0 %v3994
    %4062 = vmatpush.bf16.msra.mxu0 %v3993
    %4063 = vmatpush.bf16.msra.mxu0 %v3992
    %4064 = vmatmul.bf16.gmra.mxu0 %v3764
    %v4065 = vpop.f32.mrf.mxu0
    %v4066 = vadd.f32 %v3862, %v4065
    %v4067 = vpop.f32.mrf.mxu0
    %v4068 = vadd.f32 %v3862, %v4067
    %4069 = vmatmul.bf16.gmra.mxu0 %v3768
    %v4070 = vpop.f32.mrf.mxu0
    %v4071 = vadd.f32 %v3862, %v4070
    %v4072 = vpop.f32.mrf.mxu0
    %v4073 = vadd.f32 %v3862, %v4072
    %4074 = vmatmul.bf16.gmra.mxu0 %v3772
    %v4075 = vpop.f32.mrf.mxu0
    %v4076 = vadd.f32 %v3862, %v4075
    %v4077 = vpop.f32.mrf.mxu0
    %v4078 = vadd.f32 %v3862, %v4077
    %4079 = vmatmul.bf16.gmra.mxu0 %v3776
    %v4080 = vpop.f32.mrf.mxu0
    %v4081 = vadd.f32 %v3862, %v4080
    %v4082 = vpop.f32.mrf.mxu0
    %v4083 = vadd.f32 %v3862, %v4082
    %4084 = vmatmul.bf16.gmra.mxu0 %v3780
    %v4085 = vpop.f32.mrf.mxu0
    %v4086 = vadd.f32 %v3862, %v4085
    %v4087 = vpop.f32.mrf.mxu0
    %v4088 = vadd.f32 %v3862, %v4087
    %4089 = vmatmul.bf16.gmra.mxu0 %v3784
    %v4090 = vpop.f32.mrf.mxu0
    %v4091 = vadd.f32 %v3862, %v4090
    %v4092 = vpop.f32.mrf.mxu0
    %v4093 = vadd.f32 %v3862, %v4092
    %4094 = vmatmul.bf16.gmra.mxu0 %v3788
    %v4095 = vpop.f32.mrf.mxu0
    %v4096 = vadd.f32 %v3862, %v4095
    %v4097 = vpop.f32.mrf.mxu0
    %v4098 = vadd.f32 %v3862, %v4097
    %4099 = vmatmul.bf16.gmra.mxu0 %v3792
    %v4100 = vpop.f32.mrf.mxu0
    %v4101 = vadd.f32 %v3862, %v4100
    %v4102 = vpop.f32.mrf.mxu0
    %v4103 = vadd.f32 %v3862, %v4102
    %4104 = vdwg.mxu0
    %4105 = vmatpush.bf16.msra.mxu0 %v4007
    %4106 = vmatpush.bf16.msra.mxu0 %v4006
    %4107 = vmatpush.bf16.msra.mxu0 %v4005
    %4108 = vmatpush.bf16.msra.mxu0 %v4004
    %4109 = vmatpush.bf16.msra.mxu0 %v4003
    %4110 = vmatpush.bf16.msra.mxu0 %v4002
    %4111 = vmatpush.bf16.msra.mxu0 %v4001
    %4112 = vmatpush.bf16.msra.mxu0 %v4000
    %4113 = vmatmul.bf16.gmra.mxu0 %v3765
    %v4114 = vpop.f32.mrf.mxu0
    %v4115 = vadd.f32 %v4066, %v4114
    %v4116 = vpop.f32.mrf.mxu0
    %v4117 = vadd.f32 %v4068, %v4116
    %4118 = vmatmul.bf16.gmra.mxu0 %v3769
    %v4119 = vpop.f32.mrf.mxu0
    %v4120 = vadd.f32 %v4071, %v4119
    %v4121 = vpop.f32.mrf.mxu0
    %v4122 = vadd.f32 %v4073, %v4121
    %4123 = vmatmul.bf16.gmra.mxu0 %v3773
    %v4124 = vpop.f32.mrf.mxu0
    %v4125 = vadd.f32 %v4076, %v4124
    %v4126 = vpop.f32.mrf.mxu0
    %v4127 = vadd.f32 %v4078, %v4126
    %4128 = vmatmul.bf16.gmra.mxu0 %v3777
    %v4129 = vpop.f32.mrf.mxu0
    %v4130 = vadd.f32 %v4081, %v4129
    %v4131 = vpop.f32.mrf.mxu0
    %v4132 = vadd.f32 %v4083, %v4131
    %4133 = vmatmul.bf16.gmra.mxu0 %v3781
    %v4134 = vpop.f32.mrf.mxu0
    %v4135 = vadd.f32 %v4086, %v4134
    %v4136 = vpop.f32.mrf.mxu0
    %v4137 = vadd.f32 %v4088, %v4136
    %4138 = vmatmul.bf16.gmra.mxu0 %v3785
    %v4139 = vpop.f32.mrf.mxu0
    %v4140 = vadd.f32 %v4091, %v4139
    %v4141 = vpop.f32.mrf.mxu0
    %v4142 = vadd.f32 %v4093, %v4141
    %4143 = vmatmul.bf16.gmra.mxu0 %v3789
    %v4144 = vpop.f32.mrf.mxu0
    %v4145 = vadd.f32 %v4096, %v4144
    %v4146 = vpop.f32.mrf.mxu0
    %v4147 = vadd.f32 %v4098, %v4146
    %4148 = vmatmul.bf16.gmra.mxu0 %v3793
    %v4149 = vpop.f32.mrf.mxu0
    %v4150 = vadd.f32 %v4101, %v4149
    %v4151 = vpop.f32.mrf.mxu0
    %v4152 = vadd.f32 %v4103, %v4151
    %4153 = vdwg.mxu0
    %4154 = vmatpush.bf16.msra.mxu0 %v4015
    %4155 = vmatpush.bf16.msra.mxu0 %v4014
    %4156 = vmatpush.bf16.msra.mxu0 %v4013
    %4157 = vmatpush.bf16.msra.mxu0 %v4012
    %4158 = vmatpush.bf16.msra.mxu0 %v4011
    %4159 = vmatpush.bf16.msra.mxu0 %v4010
    %4160 = vmatpush.bf16.msra.mxu0 %v4009
    %4161 = vmatpush.bf16.msra.mxu0 %v4008
    %4162 = vmatmul.bf16.gmra.mxu0 %v3766
    %v4163 = vpop.f32.mrf.mxu0
    %v4164 = vadd.f32 %v4115, %v4163
    %v4165 = vpop.f32.mrf.mxu0
    %v4166 = vadd.f32 %v4117, %v4165
    %4167 = vmatmul.bf16.gmra.mxu0 %v3770
    %v4168 = vpop.f32.mrf.mxu0
    %v4169 = vadd.f32 %v4120, %v4168
    %v4170 = vpop.f32.mrf.mxu0
    %v4171 = vadd.f32 %v4122, %v4170
    %4172 = vmatmul.bf16.gmra.mxu0 %v3774
    %v4173 = vpop.f32.mrf.mxu0
    %v4174 = vadd.f32 %v4125, %v4173
    %v4175 = vpop.f32.mrf.mxu0
    %v4176 = vadd.f32 %v4127, %v4175
    %4177 = vmatmul.bf16.gmra.mxu0 %v3778
    %v4178 = vpop.f32.mrf.mxu0
    %v4179 = vadd.f32 %v4130, %v4178
    %v4180 = vpop.f32.mrf.mxu0
    %v4181 = vadd.f32 %v4132, %v4180
    %4182 = vmatmul.bf16.gmra.mxu0 %v3782
    %v4183 = vpop.f32.mrf.mxu0
    %v4184 = vadd.f32 %v4135, %v4183
    %v4185 = vpop.f32.mrf.mxu0
    %v4186 = vadd.f32 %v4137, %v4185
    %4187 = vmatmul.bf16.gmra.mxu0 %v3786
    %v4188 = vpop.f32.mrf.mxu0
    %v4189 = vadd.f32 %v4140, %v4188
    %v4190 = vpop.f32.mrf.mxu0
    %v4191 = vadd.f32 %v4142, %v4190
    %4192 = vmatmul.bf16.gmra.mxu0 %v3790
    %v4193 = vpop.f32.mrf.mxu0
    %v4194 = vadd.f32 %v4145, %v4193
    %v4195 = vpop.f32.mrf.mxu0
    %v4196 = vadd.f32 %v4147, %v4195
    %4197 = vmatmul.bf16.gmra.mxu0 %v3794
    %v4198 = vpop.f32.mrf.mxu0
    %v4199 = vadd.f32 %v4150, %v4198
    %v4200 = vpop.f32.mrf.mxu0
    %v4201 = vadd.f32 %v4152, %v4200
    %4202 = vdwg.mxu0
    %4203 = vmatpush.bf16.msra.mxu0 %v4023
    %4204 = vmatpush.bf16.msra.mxu0 %v4022
    %4205 = vmatpush.bf16.msra.mxu0 %v4021
    %4206 = vmatpush.bf16.msra.mxu0 %v4020
    %4207 = vmatpush.bf16.msra.mxu0 %v4019
    %4208 = vmatpush.bf16.msra.mxu0 %v4018
    %4209 = vmatpush.bf16.msra.mxu0 %v4017
    %4210 = vmatpush.bf16.msra.mxu0 %v4016
    %4211 = vmatmul.bf16.gmra.mxu0 %v3767
    %v4212 = vpop.f32.mrf.mxu0
    %v4213 = vadd.f32 %v4164, %v4212
    %v4214 = vpop.f32.mrf.mxu0
    %v4215 = vadd.f32 %v4166, %v4214
    %4216 = vmatmul.bf16.gmra.mxu0 %v3771
    %v4217 = vpop.f32.mrf.mxu0
    %v4218 = vadd.f32 %v4169, %v4217
    %v4219 = vpop.f32.mrf.mxu0
    %v4220 = vadd.f32 %v4171, %v4219
    %4221 = vmatmul.bf16.gmra.mxu0 %v3775
    %v4222 = vpop.f32.mrf.mxu0
    %v4223 = vadd.f32 %v4174, %v4222
    %v4224 = vpop.f32.mrf.mxu0
    %v4225 = vadd.f32 %v4176, %v4224
    %4226 = vmatmul.bf16.gmra.mxu0 %v3779
    %v4227 = vpop.f32.mrf.mxu0
    %v4228 = vadd.f32 %v4179, %v4227
    %v4229 = vpop.f32.mrf.mxu0
    %v4230 = vadd.f32 %v4181, %v4229
    %4231 = vmatmul.bf16.gmra.mxu0 %v3783
    %v4232 = vpop.f32.mrf.mxu0
    %v4233 = vadd.f32 %v4184, %v4232
    %v4234 = vpop.f32.mrf.mxu0
    %v4235 = vadd.f32 %v4186, %v4234
    %4236 = vmatmul.bf16.gmra.mxu0 %v3787
    %v4237 = vpop.f32.mrf.mxu0
    %v4238 = vadd.f32 %v4189, %v4237
    %v4239 = vpop.f32.mrf.mxu0
    %v4240 = vadd.f32 %v4191, %v4239
    %4241 = vmatmul.bf16.gmra.mxu0 %v3791
    %v4242 = vpop.f32.mrf.mxu0
    %v4243 = vadd.f32 %v4194, %v4242
    %v4244 = vpop.f32.mrf.mxu0
    %v4245 = vadd.f32 %v4196, %v4244
    %4246 = vmatmul.bf16.gmra.mxu0 %v3795
    %v4247 = vpop.f32.mrf.mxu0
    %v4248 = vadd.f32 %v4199, %v4247
    %v4249 = vpop.f32.mrf.mxu0
    %v4250 = vadd.f32 %v4201, %v4249
    %4251 = vdwg.mxu0
    %4252 = vst [vmem:[#allocation8] sm:$0xff] %v4213
    %4253 = vst [vmem:[#allocation8 + $0x8] sm:$0xff] %v4215
    %4254 = vst [vmem:[#allocation8 + $0x10] sm:$0xff] %v4218
    %4255 = vst [vmem:[#allocation8 + $0x18] sm:$0xff] %v4220
    %4256 = vst [vmem:[#allocation8 + $0x20] sm:$0xff] %v4223
    %4257 = vst [vmem:[#allocation8 + $0x28] sm:$0xff] %v4225
    %4258 = vst [vmem:[#allocation8 + $0x30] sm:$0xff] %v4228
    %4259 = vst [vmem:[#allocation8 + $0x38] sm:$0xff] %v4230
    %4260 = vst [vmem:[#allocation8 + $0x40] sm:$0xff] %v4233
    %4261 = vst [vmem:[#allocation8 + $0x48] sm:$0xff] %v4235
    %4262 = vst [vmem:[#allocation8 + $0x50] sm:$0xff] %v4238
    %4263 = vst [vmem:[#allocation8 + $0x58] sm:$0xff] %v4240
    %4264 = vst [vmem:[#allocation8 + $0x60] sm:$0xff] %v4243
    %4265 = vst [vmem:[#allocation8 + $0x68] sm:$0xff] %v4245
    %4266 = vst [vmem:[#allocation8 + $0x70] sm:$0xff] %v4248
    %4267 = vst [vmem:[#allocation8 + $0x78] sm:$0xff] %v4250
    // Predicated region
    $region50: #{tpu_custom_call.1} parent=1 // pred_check
      _
    $region51: #{tpu_custom_call.1} parent=1 // pred_check_branch
      %4269 = sbr.rel (0) target = $region53
    $region52: #{tpu_custom_call.1} parent=1 // pred_region
      %4271 = vsyncadd [#allocation4], 0
      %s4272 = sshll.u32 [#allocation8], 4
      %s4273 = int_to_ptr.vmem [resolvable:$true] %s4272
      %s4274 = sshll.u32 %s9, 4
      %s4275 = int_to_ptr.hbm [resolvable:$true] %s4274
      %4280 = dma.vmem_to_hbm [thread:$0]  %s4273, 2048, %s4275, [#allocation4], 128, 128, 8
    $region53: #{tpu_custom_call.1} parent=1 // pred_fallthru
      _
    // Predicated region
    $region54: #{tpu_custom_call.1} parent=1 // pred_check
      _
    $region55: #{tpu_custom_call.1} parent=1 // pred_check_branch
      %4282 = sbr.rel (0) target = $region57
    $region56: #{tpu_custom_call.1} parent=1 // pred_region
      %4284 = dma.done [#allocation4], 2048
    $region57: #{tpu_custom_call.1} parent=1 // pred_fallthru
      _
    %4285 = vsyncpa [#allocation3], 1
    %4286 = vsyncpa [#allocation6], 1
    %4287 = vsyncpa [#allocation4], 1

</llo_original>
